<compile_context>
chip_gen: v5e
topology: v5e:2x2
jax: 0.10.0
libtpu: 0.0.40
codegen_flags: <defaults>
</compile_context>

<pallas_src>
import functools
import math

import jax
import jax.numpy as jnp
from jax.experimental import pallas as pl
from jax.experimental.pallas import tpu as pltpu

SCALING_FACTOR = 0.18215          # vae.config.scaling_factor (sd-turbo)
ALPHA_PROD_T999 = 0.0047          # TODO(synk): exact sd-turbo DDPM alphas_cumprod[999]


# --------------------------------------------------------------------------- #
# The single fused Pallas kernel: out = act(x @ w + b) + res_scale * res
# (x, w in bf16; accumulation, bias, activation and residual in f32)
# --------------------------------------------------------------------------- #
def _fused_mm_kernel(*refs, activation, res_scale, has_residual):
    if has_residual:
        x_ref, w_ref, b_ref, res_ref, o_ref, acc_ref = refs
    else:
        x_ref, w_ref, b_ref, o_ref, acc_ref = refs
        res_ref = None
    k = pl.program_id(1)

    @pl.when(k == 0)
    def _():
        acc_ref[...] = jnp.zeros_like(acc_ref)

    acc_ref[...] += jnp.dot(x_ref[...], w_ref[...],
                            preferred_element_type=jnp.float32)

    @pl.when(k == pl.num_programs(1) - 1)
    def _():
        y = acc_ref[...] + b_ref[...]
        if activation == "silu":
            y = y * jax.nn.sigmoid(y)
        elif activation == "tanh":
            y = jnp.tanh(y)
        elif activation == "clamp":
            y = jnp.clip(y, -1.0, 1.0)
        if res_ref is not None:
            y = y + res_scale * res_ref[...]
        o_ref[...] = y.astype(o_ref.dtype)


def _round_up(v, m):
    return (v + m - 1) // m * m


def _pad2d(a, rows, cols):
    r, c = a.shape
    if r == rows and c == cols:
        return a
    return jnp.pad(a, ((0, rows - r), (0, cols - c)))


def fused_matmul(x, w, b, *, activation="none", residual=None, res_scale=1.0):
    """x:(M,K), w:(K,N), b:(N,)|(1,N), residual:(M,N)|None -> (M,N) float32."""
    M, K = x.shape
    N = w.shape[1]

    # Lane-dense output stores: pad N up to a multiple of 128.
    Np = _round_up(N, 128)
    Mp = _round_up(M, 128)

    # M tiling: biggest tile that keeps >=2 parallel blocks when possible
    # (v7x megacore) while staying a multiple of 128.
    if Mp >= 1024 and Mp % 512 == 0:
        tm = 512
    elif Mp >= 512 and Mp % 256 == 0:
        tm = 256
    else:
        tm = 128

    # K tiling: single full-K block when small, else 256-wide reduction blocks
    # with an f32 accumulator (scales to real SD-turbo channel counts).
    TK = 256
    if K <= TK:
        Kp, tk, nk = K, K, 1
    else:
        tk = TK
        Kp = _round_up(K, tk)
        nk = Kp // tk

    xb = _pad2d(x.astype(jnp.bfloat16), Mp, Kp)
    wb = _pad2d(w.astype(jnp.bfloat16), Kp, Np)
    bb = _pad2d(jnp.reshape(b, (1, N)).astype(jnp.float32), 1, Np)

    has_res = residual is not None
    inputs = [xb, wb, bb]
    in_specs = [
        pl.BlockSpec((tm, tk), lambda i, k: (i, k)),
        pl.BlockSpec((tk, Np), lambda i, k: (k, 0)),
        pl.BlockSpec((1, Np), lambda i, k: (0, 0)),
    ]
    if has_res:
        inputs.append(_pad2d(residual.astype(jnp.float32), Mp, Np))
        in_specs.append(pl.BlockSpec((tm, Np), lambda i, k: (i, 0)))

    out = pl.pallas_call(
        functools.partial(_fused_mm_kernel, activation=activation,
                          res_scale=float(res_scale), has_residual=has_res),
        out_shape=jax.ShapeDtypeStruct((Mp, Np), jnp.float32),
        grid=(Mp // tm, nk),
        in_specs=in_specs,
        out_specs=pl.BlockSpec((tm, Np), lambda i, k: (i, 0)),
        scratch_shapes=[pltpu.VMEM((tm, Np), jnp.float32)],
        compiler_params=pltpu.CompilerParams(
            dimension_semantics=("parallel", "arbitrary"),
            vmem_limit_bytes=48 * 1024 * 1024),
    )(*inputs)
    return out[:M, :N]


# --------------------------------------------------------------------------- #
# Glue: im2col / reshapes / upsample (XLA; patch matrix built in bf16)
# --------------------------------------------------------------------------- #
def im2col_3x3(x, stride=1):
    """x: (N, H, W, C) -> patches (N, Ho, Wo, 9*C) for a pad=1, k=3 conv."""
    # TODO(synk): fuse the 9-tap window read into the matmul's DMA (halo loads)
    # instead of materializing the patch matrix at real SD feature-map sizes.
    N, H, W, C = x.shape
    xp = jnp.pad(x, ((0, 0), (1, 1), (1, 1), (0, 0)))
    Ho = (H - 1) // stride + 1
    Wo = (W - 1) // stride + 1
    cols = []
    for dy in range(3):
        for dx in range(3):
            cols.append(jax.lax.slice(
                xp, (0, dy, dx, 0),
                (N, dy + (Ho - 1) * stride + 1, dx + (Wo - 1) * stride + 1, C),
                (1, stride, stride, 1)))
    return jnp.concatenate(cols, axis=-1), Ho, Wo


def conv3x3(x, w, b, stride=1, activation="none", residual=None, res_scale=1.0):
    """w: (3, 3, Cin, Cout) HWIO, pad=1.  Optional fused residual (N,Ho,Wo,Cout)."""
    N, H, W, Cin = x.shape
    Cout = w.shape[-1]
    patches, Ho, Wo = im2col_3x3(x.astype(jnp.bfloat16), stride)
    res2d = None if residual is None else residual.reshape(N * Ho * Wo, Cout)
    out = fused_matmul(patches.reshape(N * Ho * Wo, 9 * Cin),
                       w.reshape(9 * Cin, Cout), b,
                       activation=activation, residual=res2d, res_scale=res_scale)
    return out.reshape(N, Ho, Wo, Cout)


def conv1x1(x, w, b=None, activation="none"):
    N, H, W, Cin = x.shape
    Cout = w.shape[-1]
    if b is None:
        b = jnp.zeros((Cout,), jnp.float32)
    out = fused_matmul(x.reshape(N * H * W, Cin), w.reshape(Cin, Cout), b,
                       activation=activation)
    return out.reshape(N, H, W, Cout)


def upsample_nearest_2x(x):
    # TODO(synk): at real decoder sizes, fold the 2x replication into the
    # following conv's patch gather instead of materializing the 4x map.
    return jnp.repeat(jnp.repeat(x, 2, axis=1), 2, axis=2)


# --------------------------------------------------------------------------- #
# Deterministic synthetic parameters (scaled-down SD-turbo stand-in)
# --------------------------------------------------------------------------- #
def _w(key, shape, scale=0.05):
    return scale * jax.random.normal(key, shape, jnp.float32)


def init_params(key):
    C_img, C_lat, C_enc, C_unet, d_txt, vocab = 3, 4, 32, 32, 32, 64
    ks = jax.random.split(key, 16)
    z = lambda c: jnp.zeros((c,), jnp.float32)
    return dict(
        emb_table=_w(ks[0], (vocab, d_txt), 0.02),
        txt_w=_w(ks[1], (d_txt, d_txt)), txt_b=z(d_txt),
        enc_conv1_w=_w(ks[2], (3, 3, C_img, C_enc)), enc_conv1_b=z(C_enc),
        enc_conv2_w=_w(ks[3], (3, 3, C_enc, C_lat)), enc_conv2_b=z(C_lat),
        unet_convin_pre_w=_w(ks[4], (3, 3, C_lat, C_unet)), unet_convin_pre_b=z(C_unet),
        unet_convin_cur_w=_w(ks[5], (3, 3, C_lat, C_unet)), unet_convin_cur_b=z(C_unet),
        ctx_proj_w=_w(ks[6], (d_txt, C_unet)), ctx_proj_b=z(C_unet),
        unet_mid_w=_w(ks[7], (3, 3, C_unet, C_unet)), unet_mid_b=z(C_unet),
        unet_out_w=_w(ks[8], (3, 3, C_unet, C_lat)), unet_out_b=z(C_lat),
        dec_convin_w=_w(ks[9], (3, 3, C_lat, C_enc)), dec_convin_b=z(C_enc),
        skip_conv_1_w=_w(ks[10], (C_enc, C_enc)),          # 1x1 conv, bias=False
        dec_up_w=_w(ks[11], (3, 3, C_enc, C_enc)), dec_up_b=z(C_enc),
        dec_out_w=_w(ks[12], (3, 3, C_enc, C_img)), dec_out_b=z(C_img),
    )


def tokenize(prompt, seq, vocab):
    ids = [(ord(c) % vocab) for c in prompt][:seq]
    ids = ids + [0] * (seq - len(ids))
    return jnp.asarray(ids, jnp.int32)


# --------------------------------------------------------------------------- #
# Pix2Pix_Turbo.forward
# --------------------------------------------------------------------------- #
def pix2pix_turbo_forward(p, c_t_nchw, prompt, deterministic=True, r=1.0,
                          noise_map_nchw=None):
    seq, vocab = 8, p["emb_table"].shape[0]

    # ---- text encoder ------------------------------------------------------
    # TODO(synk): full CLIP tokenizer/text-encoder stack not reproduced; a
    # deterministic token hash + embedding + projection stands in for caption_enc.
    toks = tokenize(prompt, seq, vocab)
    emb = p["emb_table"][toks]                                    # (seq, d_txt)
    caption_enc = fused_matmul(emb, p["txt_w"], p["txt_b"], activation="tanh")
    ctx = jnp.mean(caption_enc, axis=0, keepdims=True)            # pooled prompt
    ctx = fused_matmul(ctx, p["ctx_proj_w"], p["ctx_proj_b"], activation="silu")

    # ---- VAE encode ---------------------------------------------------------
    x = jnp.transpose(c_t_nchw, (0, 2, 3, 1))                     # NCHW -> NHWC
    down1 = conv3x3(x, p["enc_conv1_w"], p["enc_conv1_b"], stride=2,
                    activation="silu")                            # current_down_blocks
    # TODO(synk): latent_dist.sample() reparameterization noise omitted (mean used).
    # TODO(synk): LoRA adapter re-weighting (set_adapters weights=[r]) not modeled.

    if deterministic:
        twin_r, gamma = 1.0, 1.0
        # encoded_control = SCALING * conv2(down1)   (scale folded into weights)
        unet_input = conv3x3(down1,
                             p["enc_conv2_w"] * SCALING_FACTOR,
                             p["enc_conv2_b"] * SCALING_FACTOR)
    else:
        twin_r, gamma = r, r
        noise = jnp.transpose(noise_map_nchw, (0, 2, 3, 1))
        # unet_input = r*SCALING*conv2(down1) + (1-r)*noise  (blend fused as residual)
        unet_input = conv3x3(down1,
                             p["enc_conv2_w"] * (r * SCALING_FACTOR),
                             p["enc_conv2_b"] * (r * SCALING_FACTOR),
                             residual=noise, res_scale=(1.0 - r))

    # ---- UNet (tiny stand-in; conv_in is the TwinConv from the module) -------
    # TwinConv pre-blend: x@w1*(1-r) + x@w2*r == x@(w1*(1-r)+w2*r); pooled text
    # context is a broadcast add over spatial positions == extra bias term.
    w_in = p["unet_convin_pre_w"] * (1.0 - twin_r) + p["unet_convin_cur_w"] * twin_r
    b_in = (p["unet_convin_pre_b"] * (1.0 - twin_r)
            + p["unet_convin_cur_b"] * twin_r + ctx[0])           # cross-attn stand-in
    h = conv3x3(unet_input, w_in, b_in)
    h = conv3x3(h, p["unet_mid_w"], p["unet_mid_b"], activation="silu")

    # ---- one-step scheduler: prev = x_t/sqrt(a) - sqrt(1-a)/sqrt(a)*eps ------
    # scheduler coefficients folded into unet_out weights + residual epilogue.
    a = ALPHA_PROD_T999
    c1 = 1.0 / math.sqrt(a)
    c2 = -math.sqrt(1.0 - a) / math.sqrt(a)
    x_denoised = conv3x3(h, p["unet_out_w"] * c2, p["unet_out_b"] * c2,
                         residual=unet_input, res_scale=c1)

    # ---- VAE decode with gamma-scaled skip connection ------------------------
    # 1/SCALING folded into dec_convin weights; gamma folded into skip weights;
    # skip add fused as residual after the SiLU epilogue (matches reference order).
    skip = conv1x1(down1, p["skip_conv_1_w"] * gamma)             # skip_conv_1 (no bias)
    d = conv3x3(x_denoised,
                p["dec_convin_w"] * (1.0 / SCALING_FACTOR), p["dec_convin_b"],
                activation="silu", residual=skip, res_scale=1.0)
    d = upsample_nearest_2x(d)
    d = conv3x3(d, p["dec_up_w"], p["dec_up_b"], activation="silu")
    out = conv3x3(d, p["dec_out_w"], p["dec_out_b"], activation="clamp")  # .clamp(-1,1)
    return jnp.transpose(out, (0, 3, 1, 2))                       # back to NCHW


if __name__ == "__main__":
    key = jax.random.PRNGKey(0)
    k_img, k_noise = jax.random.split(key)
    c_t = jax.random.normal(k_img, (2, 3, 16, 16), jnp.float32)        # NCHW control image
    noise_map = jax.random.normal(k_noise, (2, 4, 8, 8), jnp.float32)  # NCHW latent noise
    params = init_params(jax.random.PRNGKey(42))

    fwd = jax.jit(lambda p_, c_, n_: pix2pix_turbo_forward(
        p_, c_, "a cute robot sketch", deterministic=False, r=0.4,
        noise_map_nchw=n_))
    out = fwd(params, c_t, noise_map)
    out = jax.block_until_ready(out)
    assert out.shape == (2, 3, 16, 16)
    assert bool(jnp.all(out <= 1.0)) and bool(jnp.all(out >= -1.0))
    print("KERNEL_OK")
</pallas_src>

<mosaic_0001>
module attributes {stable_mosaic.version = 11 : i64} {
  func.func @_fused_mm_kernel(%arg0: i32, %arg1: i32, %arg2: memref<128x27xbf16, #tpu.memory_space<vmem>>, %arg3: memref<27x128xbf16, #tpu.memory_space<vmem>>, %arg4: memref<1x128xf32, #tpu.memory_space<vmem>>, %arg5: memref<128x128xf32, #tpu.memory_space<vmem>>, %arg6: memref<128x128xf32, #tpu.memory_space<vmem>>) attributes {dimension_semantics = [#tpu.dimension_semantics<parallel>, #tpu.dimension_semantics<arbitrary>], iteration_bounds = array<i64: 1, 1>, scalar_prefetch = 0 : i64, scratch_operands = 1 : i64, tpu.core_type = #tpu.core_type<tc>, window_params = [{transform_indices = @transform_0, window_bounds = array<i64: 128, 27>}, {transform_indices = @transform_1, window_bounds = array<i64: 27, 128>}, {pipeline_mode = #tpu.pipeline_mode<synchronous>, transform_indices = @transform_2, window_bounds = array<i64: 1, 128>}, {transform_indices = @transform_3, window_bounds = array<i64: 128, 128>}]} {
    %c0_i32 = arith.constant 0 : i32
    %0 = arith.cmpi eq, %arg1, %c0_i32 : i32
    %1 = arith.extui %0 : i1 to i32
    %c0_i32_0 = arith.constant 0 : i32
    %2 = arith.cmpi ne, %1, %c0_i32_0 : i32
    scf.if %2 {
      %cst_10 = arith.constant 0.000000e+00 : f32
      %12 = vector.broadcast %cst_10 : f32 to vector<128x128xf32>
      %c0_11 = arith.constant 0 : index
      %c0_12 = arith.constant 0 : index
      %13 = vector.load %arg6[%c0_11, %c0_12] : memref<128x128xf32, #tpu.memory_space<vmem>>, vector<128x128xf32>
      tpu.vector_store %arg6[%c0_11, %c0_12], %12 {strides = array<i32>} : memref<128x128xf32, #tpu.memory_space<vmem>>, vector<128x128xf32>,
    } else {
    }
    %c0 = arith.constant 0 : index
    %c0_1 = arith.constant 0 : index
    %3 = vector.load %arg6[%c0, %c0_1] : memref<128x128xf32, #tpu.memory_space<vmem>>, vector<128x128xf32>
    %c0_2 = arith.constant 0 : index
    %c0_3 = arith.constant 0 : index
    %4 = vector.load %arg2[%c0_2, %c0_3] : memref<128x27xbf16, #tpu.memory_space<vmem>>, vector<128x27xbf16>
    %c0_4 = arith.constant 0 : index
    %c0_5 = arith.constant 0 : index
    %5 = vector.load %arg3[%c0_4, %c0_5] : memref<27x128xbf16, #tpu.memory_space<vmem>>, vector<27x128xbf16>
    %cst = arith.constant dense<0.000000e+00> : vector<128x128xf32>
    %6 = tpu.matmul %4, %5, %cst {dimension_numbers = #tpu.dot_dimension_numbers<[1], [0], [0], [1], [0, 0, 1, 1], [], []>} : vector<128x27xbf16>, vector<27x128xbf16>, vector<128x128xf32> -> vector<128x128xf32>
    %7 = arith.addf %3, %6 : vector<128x128xf32>
    %c0_6 = arith.constant 0 : index
    %c0_7 = arith.constant 0 : index
    %8 = vector.load %arg6[%c0_6, %c0_7] : memref<128x128xf32, #tpu.memory_space<vmem>>, vector<128x128xf32>
    tpu.vector_store %arg6[%c0_6, %c0_7], %7 {strides = array<i32>} : memref<128x128xf32, #tpu.memory_space<vmem>>, vector<128x128xf32>,
    %c0_i32_8 = arith.constant 0 : i32
    %9 = arith.cmpi eq, %arg1, %c0_i32_8 : i32
    %10 = arith.extui %9 : i1 to i32
    %c0_i32_9 = arith.constant 0 : i32
    %11 = arith.cmpi ne, %10, %c0_i32_9 : i32
    scf.if %11 {
      %c0_10 = arith.constant 0 : index
      %c0_11 = arith.constant 0 : index
      %12 = vector.load %arg6[%c0_10, %c0_11] : memref<128x128xf32, #tpu.memory_space<vmem>>, vector<128x128xf32>
      %c0_12 = arith.constant 0 : index
      %c0_13 = arith.constant 0 : index
      %13 = vector.load %arg4[%c0_12, %c0_13] : memref<1x128xf32, #tpu.memory_space<vmem>>, vector<1x128xf32>
      %14 = vector.broadcast %13 : vector<1x128xf32> to vector<128x128xf32>
      %15 = arith.addf %12, %14 : vector<128x128xf32>
      %16 = arith.negf %15 : vector<128x128xf32>
      %17 = math.exp %16 : vector<128x128xf32>
      %cst_14 = arith.constant 1.000000e+00 : f32
      %18 = vector.broadcast %cst_14 : f32 to vector<128x128xf32>
      %19 = arith.addf %18, %17 : vector<128x128xf32>
      %20 = arith.divf %18, %19 : vector<128x128xf32>
      %21 = arith.mulf %15, %20 : vector<128x128xf32>
      %c0_15 = arith.constant 0 : index
      %c0_16 = arith.constant 0 : index
      %22 = vector.load %arg5[%c0_15, %c0_16] : memref<128x128xf32, #tpu.memory_space<vmem>>, vector<128x128xf32>
      tpu.vector_store %arg5[%c0_15, %c0_16], %21 {strides = array<i32>} : memref<128x128xf32, #tpu.memory_space<vmem>>, vector<128x128xf32>,
    } else {
    }
    return
  }
  func.func @transform_0(%arg0: i32, %arg1: i32) -> (i32, i32) {
    %c0_i32 = arith.constant 0 : i32
    return %arg0, %arg1 : i32, i32
  }
  func.func @transform_1(%arg0: i32, %arg1: i32) -> (i32, i32) {
    %c0_i32 = arith.constant 0 : i32
    %c0_i32_0 = arith.constant 0 : i32
    return %arg1, %c0_i32 : i32, i32
  }
  func.func @transform_2(%arg0: i32, %arg1: i32) -> (i32, i32) {
    %c0_i32 = arith.constant 0 : i32
    %c0_i32_0 = arith.constant 0 : i32
    %c0_i32_1 = arith.constant 0 : i32
    return %c0_i32, %c0_i32_0 : i32, i32
  }
  func.func @transform_3(%arg0: i32, %arg1: i32) -> (i32, i32) {
    %c0_i32 = arith.constant 0 : i32
    %c0_i32_0 = arith.constant 0 : i32
    return %arg0, %c0_i32 : i32, i32
  }
}

module attributes {stable_mosaic.version = 11 : i64} {
  func.func @_fused_mm_kernel(%arg0: i32, %arg1: i32, %arg2: memref<128x256xbf16, #tpu.memory_space<vmem>>, %arg3: memref<256x128xbf16, #tpu.memory_space<vmem>>, %arg4: memref<1x128xf32, #tpu.memory_space<vmem>>, %arg5: memref<128x128xf32, #tpu.memory_space<vmem>>, %arg6: memref<128x128xf32, #tpu.memory_space<vmem>>, %arg7: memref<128x128xf32, #tpu.memory_space<vmem>>) attributes {dimension_semantics = [#tpu.dimension_semantics<parallel>, #tpu.dimension_semantics<arbitrary>], iteration_bounds = array<i64: 1, 2>, scalar_prefetch = 0 : i64, scratch_operands = 1 : i64, tpu.core_type = #tpu.core_type<tc>, window_params = [{transform_indices = @transform_0, window_bounds = array<i64: 128, 256>}, {transform_indices = @transform_1, window_bounds = array<i64: 256, 128>}, {pipeline_mode = #tpu.pipeline_mode<synchronous>, transform_indices = @transform_2, window_bounds = array<i64: 1, 128>}, {transform_indices = @transform_3, window_bounds = array<i64: 128, 128>}, {transform_indices = @transform_4, window_bounds = array<i64: 128, 128>}]} {
    %c0_i32 = arith.constant 0 : i32
    %0 = arith.cmpi eq, %arg1, %c0_i32 : i32
    %1 = arith.extui %0 : i1 to i32
    %c0_i32_0 = arith.constant 0 : i32
    %2 = arith.cmpi ne, %1, %c0_i32_0 : i32
    scf.if %2 {
      %cst_9 = arith.constant 0.000000e+00 : f32
      %12 = vector.broadcast %cst_9 : f32 to vector<128x128xf32>
      %c0_10 = arith.constant 0 : index
      %c0_11 = arith.constant 0 : index
      %13 = vector.load %arg7[%c0_10, %c0_11] : memref<128x128xf32, #tpu.memory_space<vmem>>, vector<128x128xf32>
      tpu.vector_store %arg7[%c0_10, %c0_11], %12 {strides = array<i32>} : memref<128x128xf32, #tpu.memory_space<vmem>>, vector<128x128xf32>,
    } else {
    }
    %c0 = arith.constant 0 : index
    %c0_1 = arith.constant 0 : index
    %3 = vector.load %arg7[%c0, %c0_1] : memref<128x128xf32, #tpu.memory_space<vmem>>, vector<128x128xf32>
    %c0_2 = arith.constant 0 : index
    %c0_3 = arith.constant 0 : index
    %4 = vector.load %arg2[%c0_2, %c0_3] : memref<128x256xbf16, #tpu.memory_space<vmem>>, vector<128x256xbf16>
    %c0_4 = arith.constant 0 : index
    %c0_5 = arith.constant 0 : index
    %5 = vector.load %arg3[%c0_4, %c0_5] : memref<256x128xbf16, #tpu.memory_space<vmem>>, vector<256x128xbf16>
    %cst = arith.constant dense<0.000000e+00> : vector<128x128xf32>
    %6 = tpu.matmul %4, %5, %cst {dimension_numbers = #tpu.dot_dimension_numbers<[1], [0], [0], [1], [0, 0, 1, 1], [], []>} : vector<128x256xbf16>, vector<256x128xbf16>, vector<128x128xf32> -> vector<128x128xf32>
    %7 = arith.addf %3, %6 : vector<128x128xf32>
    %c0_6 = arith.constant 0 : index
    %c0_7 = arith.constant 0 : index
    %8 = vector.load %arg7[%c0_6, %c0_7] : memref<128x128xf32, #tpu.memory_space<vmem>>, vector<128x128xf32>
    tpu.vector_store %arg7[%c0_6, %c0_7], %7 {strides = array<i32>} : memref<128x128xf32, #tpu.memory_space<vmem>>, vector<128x128xf32>,
    %c1_i32 = arith.constant 1 : i32
    %9 = arith.cmpi eq, %arg1, %c1_i32 : i32
    %10 = arith.extui %9 : i1 to i32
    %c0_i32_8 = arith.constant 0 : i32
    %11 = arith.cmpi ne, %10, %c0_i32_8 : i32
    scf.if %11 {
      %c0_9 = arith.constant 0 : index
      %c0_10 = arith.constant 0 : index
      %12 = vector.load %arg7[%c0_9, %c0_10] : memref<128x128xf32, #tpu.memory_space<vmem>>, vector<128x128xf32>
      %c0_11 = arith.constant 0 : index
      %c0_12 = arith.constant 0 : index
      %13 = vector.load %arg4[%c0_11, %c0_12] : memref<1x128xf32, #tpu.memory_space<vmem>>, vector<1x128xf32>
      %14 = vector.broadcast %13 : vector<1x128xf32> to vector<128x128xf32>
      %15 = arith.addf %12, %14 : vector<128x128xf32>
      %c0_13 = arith.constant 0 : index
      %c0_14 = arith.constant 0 : index
      %16 = vector.load %arg5[%c0_13, %c0_14] : memref<128x128xf32, #tpu.memory_space<vmem>>, vector<128x128xf32>
      %cst_15 = arith.constant 6.000000e-01 : f32
      %17 = vector.broadcast %cst_15 : f32 to vector<128x128xf32>
      %18 = arith.mulf %17, %16 : vector<128x128xf32>
      %19 = arith.addf %15, %18 : vector<128x128xf32>
      %c0_16 = arith.constant 0 : index
      %c0_17 = arith.constant 0 : index
      %20 = vector.load %arg6[%c0_16, %c0_17] : memref<128x128xf32, #tpu.memory_space<vmem>>, vector<128x128xf32>
      tpu.vector_store %arg6[%c0_16, %c0_17], %19 {strides = array<i32>} : memref<128x128xf32, #tpu.memory_space<vmem>>, vector<128x128xf32>,
    } else {
    }
    return
  }
  func.func @transform_0(%arg0: i32, %arg1: i32) -> (i32, i32) {
    %c0_i32 = arith.constant 0 : i32
    return %arg0, %arg1 : i32, i32
  }
  func.func @transform_1(%arg0: i32, %arg1: i32) -> (i32, i32) {
    %c0_i32 = arith.constant 0 : i32
    %c0_i32_0 = arith.constant 0 : i32
    return %arg1, %c0_i32 : i32, i32
  }
  func.func @transform_2(%arg0: i32, %arg1: i32) -> (i32, i32) {
    %c0_i32 = arith.constant 0 : i32
    %c0_i32_0 = arith.constant 0 : i32
    %c0_i32_1 = arith.constant 0 : i32
    return %c0_i32, %c0_i32_0 : i32, i32
  }
  func.func @transform_3(%arg0: i32, %arg1: i32) -> (i32, i32) {
    %c0_i32 = arith.constant 0 : i32
    %c0_i32_0 = arith.constant 0 : i32
    return %arg0, %c0_i32 : i32, i32
  }
  func.func @transform_4(%arg0: i32, %arg1: i32) -> (i32, i32) {
    %c0_i32 = arith.constant 0 : i32
    %c0_i32_0 = arith.constant 0 : i32
    return %arg0, %c0_i32 : i32, i32
  }
}

module attributes {stable_mosaic.version = 11 : i64} {
  func.func @_fused_mm_kernel(%arg0: i32, %arg1: i32, %arg2: memref<128x32xbf16, #tpu.memory_space<vmem>>, %arg3: memref<32x128xbf16, #tpu.memory_space<vmem>>, %arg4: memref<1x128xf32, #tpu.memory_space<vmem>>, %arg5: memref<128x128xf32, #tpu.memory_space<vmem>>, %arg6: memref<128x128xf32, #tpu.memory_space<vmem>>) attributes {dimension_semantics = [#tpu.dimension_semantics<parallel>, #tpu.dimension_semantics<arbitrary>], iteration_bounds = array<i64: 1, 1>, scalar_prefetch = 0 : i64, scratch_operands = 1 : i64, tpu.core_type = #tpu.core_type<tc>, window_params = [{transform_indices = @transform_0, window_bounds = array<i64: 128, 32>}, {transform_indices = @transform_1, window_bounds = array<i64: 32, 128>}, {pipeline_mode = #tpu.pipeline_mode<synchronous>, transform_indices = @transform_2, window_bounds = array<i64: 1, 128>}, {transform_indices = @transform_3, window_bounds = array<i64: 128, 128>}]} {
    %c0_i32 = arith.constant 0 : i32
    %0 = arith.cmpi eq, %arg1, %c0_i32 : i32
    %1 = arith.extui %0 : i1 to i32
    %c0_i32_0 = arith.constant 0 : i32
    %2 = arith.cmpi ne, %1, %c0_i32_0 : i32
    scf.if %2 {
      %cst_10 = arith.constant 0.000000e+00 : f32
      %12 = vector.broadcast %cst_10 : f32 to vector<128x128xf32>
      %c0_11 = arith.constant 0 : index
      %c0_12 = arith.constant 0 : index
      %13 = vector.load %arg6[%c0_11, %c0_12] : memref<128x128xf32, #tpu.memory_space<vmem>>, vector<128x128xf32>
      tpu.vector_store %arg6[%c0_11, %c0_12], %12 {strides = array<i32>} : memref<128x128xf32, #tpu.memory_space<vmem>>, vector<128x128xf32>,
    } else {
    }
    %c0 = arith.constant 0 : index
    %c0_1 = arith.constant 0 : index
    %3 = vector.load %arg6[%c0, %c0_1] : memref<128x128xf32, #tpu.memory_space<vmem>>, vector<128x128xf32>
    %c0_2 = arith.constant 0 : index
    %c0_3 = arith.constant 0 : index
    %4 = vector.load %arg2[%c0_2, %c0_3] : memref<128x32xbf16, #tpu.memory_space<vmem>>, vector<128x32xbf16>
    %c0_4 = arith.constant 0 : index
    %c0_5 = arith.constant 0 : index
    %5 = vector.load %arg3[%c0_4, %c0_5] : memref<32x128xbf16, #tpu.memory_space<vmem>>, vector<32x128xbf16>
    %cst = arith.constant dense<0.000000e+00> : vector<128x128xf32>
    %6 = tpu.matmul %4, %5, %cst {dimension_numbers = #tpu.dot_dimension_numbers<[1], [0], [0], [1], [0, 0, 1, 1], [], []>} : vector<128x32xbf16>, vector<32x128xbf16>, vector<128x128xf32> -> vector<128x128xf32>
    %7 = arith.addf %3, %6 : vector<128x128xf32>
    %c0_6 = arith.constant 0 : index
    %c0_7 = arith.constant 0 : index
    %8 = vector.load %arg6[%c0_6, %c0_7] : memref<128x128xf32, #tpu.memory_space<vmem>>, vector<128x128xf32>
    tpu.vector_store %arg6[%c0_6, %c0_7], %7 {strides = array<i32>} : memref<128x128xf32, #tpu.memory_space<vmem>>, vector<128x128xf32>,
    %c0_i32_8 = arith.constant 0 : i32
    %9 = arith.cmpi eq, %arg1, %c0_i32_8 : i32
    %10 = arith.extui %9 : i1 to i32
    %c0_i32_9 = arith.constant 0 : i32
    %11 = arith.cmpi ne, %10, %c0_i32_9 : i32
    scf.if %11 {
      %c0_10 = arith.constant 0 : index
      %c0_11 = arith.constant 0 : index
      %12 = vector.load %arg6[%c0_10, %c0_11] : memref<128x128xf32, #tpu.memory_space<vmem>>, vector<128x128xf32>
      %c0_12 = arith.constant 0 : index
      %c0_13 = arith.constant 0 : index
      %13 = vector.load %arg4[%c0_12, %c0_13] : memref<1x128xf32, #tpu.memory_space<vmem>>, vector<1x128xf32>
      %14 = vector.broadcast %13 : vector<1x128xf32> to vector<128x128xf32>
      %15 = arith.addf %12, %14 : vector<128x128xf32>
      %16 = math.tanh %15 : vector<128x128xf32>
      %c0_14 = arith.constant 0 : index
      %c0_15 = arith.constant 0 : index
      %17 = vector.load %arg5[%c0_14, %c0_15] : memref<128x128xf32, #tpu.memory_space<vmem>>, vector<128x128xf32>
      tpu.vector_store %arg5[%c0_14, %c0_15], %16 {strides = array<i32>} : memref<128x128xf32, #tpu.memory_space<vmem>>, vector<128x128xf32>,
    } else {
    }
    return
  }
  func.func @transform_0(%arg0: i32, %arg1: i32) -> (i32, i32) {
    %c0_i32 = arith.constant 0 : i32
    return %arg0, %arg1 : i32, i32
  }
  func.func @transform_1(%arg0: i32, %arg1: i32) -> (i32, i32) {
    %c0_i32 = arith.constant 0 : i32
    %c0_i32_0 = arith.constant 0 : i32
    return %arg1, %c0_i32 : i32, i32
  }
  func.func @transform_2(%arg0: i32, %arg1: i32) -> (i32, i32) {
    %c0_i32 = arith.constant 0 : i32
    %c0_i32_0 = arith.constant 0 : i32
    %c0_i32_1 = arith.constant 0 : i32
    return %c0_i32, %c0_i32_0 : i32, i32
  }
  func.func @transform_3(%arg0: i32, %arg1: i32) -> (i32, i32) {
    %c0_i32 = arith.constant 0 : i32
    %c0_i32_0 = arith.constant 0 : i32
    return %arg0, %c0_i32 : i32, i32
  }
}

module attributes {stable_mosaic.version = 11 : i64} {
  func.func @_fused_mm_kernel(%arg0: i32, %arg1: i32, %arg2: memref<128x32xbf16, #tpu.memory_space<vmem>>, %arg3: memref<32x128xbf16, #tpu.memory_space<vmem>>, %arg4: memref<1x128xf32, #tpu.memory_space<vmem>>, %arg5: memref<128x128xf32, #tpu.memory_space<vmem>>, %arg6: memref<128x128xf32, #tpu.memory_space<vmem>>) attributes {dimension_semantics = [#tpu.dimension_semantics<parallel>, #tpu.dimension_semantics<arbitrary>], iteration_bounds = array<i64: 1, 1>, scalar_prefetch = 0 : i64, scratch_operands = 1 : i64, tpu.core_type = #tpu.core_type<tc>, window_params = [{transform_indices = @transform_0, window_bounds = array<i64: 128, 32>}, {transform_indices = @transform_1, window_bounds = array<i64: 32, 128>}, {pipeline_mode = #tpu.pipeline_mode<synchronous>, transform_indices = @transform_2, window_bounds = array<i64: 1, 128>}, {transform_indices = @transform_3, window_bounds = array<i64: 128, 128>}]} {
    %c0_i32 = arith.constant 0 : i32
    %0 = arith.cmpi eq, %arg1, %c0_i32 : i32
    %1 = arith.extui %0 : i1 to i32
    %c0_i32_0 = arith.constant 0 : i32
    %2 = arith.cmpi ne, %1, %c0_i32_0 : i32
    scf.if %2 {
      %cst_10 = arith.constant 0.000000e+00 : f32
      %12 = vector.broadcast %cst_10 : f32 to vector<128x128xf32>
      %c0_11 = arith.constant 0 : index
      %c0_12 = arith.constant 0 : index
      %13 = vector.load %arg6[%c0_11, %c0_12] : memref<128x128xf32, #tpu.memory_space<vmem>>, vector<128x128xf32>
      tpu.vector_store %arg6[%c0_11, %c0_12], %12 {strides = array<i32>} : memref<128x128xf32, #tpu.memory_space<vmem>>, vector<128x128xf32>,
    } else {
    }
    %c0 = arith.constant 0 : index
    %c0_1 = arith.constant 0 : index
    %3 = vector.load %arg6[%c0, %c0_1] : memref<128x128xf32, #tpu.memory_space<vmem>>, vector<128x128xf32>
    %c0_2 = arith.constant 0 : index
    %c0_3 = arith.constant 0 : index
    %4 = vector.load %arg2[%c0_2, %c0_3] : memref<128x32xbf16, #tpu.memory_space<vmem>>, vector<128x32xbf16>
    %c0_4 = arith.constant 0 : index
    %c0_5 = arith.constant 0 : index
    %5 = vector.load %arg3[%c0_4, %c0_5] : memref<32x128xbf16, #tpu.memory_space<vmem>>, vector<32x128xbf16>
    %cst = arith.constant dense<0.000000e+00> : vector<128x128xf32>
    %6 = tpu.matmul %4, %5, %cst {dimension_numbers = #tpu.dot_dimension_numbers<[1], [0], [0], [1], [0, 0, 1, 1], [], []>} : vector<128x32xbf16>, vector<32x128xbf16>, vector<128x128xf32> -> vector<128x128xf32>
    %7 = arith.addf %3, %6 : vector<128x128xf32>
    %c0_6 = arith.constant 0 : index
    %c0_7 = arith.constant 0 : index
    %8 = vector.load %arg6[%c0_6, %c0_7] : memref<128x128xf32, #tpu.memory_space<vmem>>, vector<128x128xf32>
    tpu.vector_store %arg6[%c0_6, %c0_7], %7 {strides = array<i32>} : memref<128x128xf32, #tpu.memory_space<vmem>>, vector<128x128xf32>,
    %c0_i32_8 = arith.constant 0 : i32
    %9 = arith.cmpi eq, %arg1, %c0_i32_8 : i32
    %10 = arith.extui %9 : i1 to i32
    %c0_i32_9 = arith.constant 0 : i32
    %11 = arith.cmpi ne, %10, %c0_i32_9 : i32
    scf.if %11 {
      %c0_10 = arith.constant 0 : index
      %c0_11 = arith.constant 0 : index
      %12 = vector.load %arg6[%c0_10, %c0_11] : memref<128x128xf32, #tpu.memory_space<vmem>>, vector<128x128xf32>
      %c0_12 = arith.constant 0 : index
      %c0_13 = arith.constant 0 : index
      %13 = vector.load %arg4[%c0_12, %c0_13] : memref<1x128xf32, #tpu.memory_space<vmem>>, vector<1x128xf32>
      %14 = vector.broadcast %13 : vector<1x128xf32> to vector<128x128xf32>
      %15 = arith.addf %12, %14 : vector<128x128xf32>
      %16 = arith.negf %15 : vector<128x128xf32>
      %17 = math.exp %16 : vector<128x128xf32>
      %cst_14 = arith.constant 1.000000e+00 : f32
      %18 = vector.broadcast %cst_14 : f32 to vector<128x128xf32>
      %19 = arith.addf %18, %17 : vector<128x128xf32>
      %20 = arith.divf %18, %19 : vector<128x128xf32>
      %21 = arith.mulf %15, %20 : vector<128x128xf32>
      %c0_15 = arith.constant 0 : index
      %c0_16 = arith.constant 0 : index
      %22 = vector.load %arg5[%c0_15, %c0_16] : memref<128x128xf32, #tpu.memory_space<vmem>>, vector<128x128xf32>
      tpu.vector_store %arg5[%c0_15, %c0_16], %21 {strides = array<i32>} : memref<128x128xf32, #tpu.memory_space<vmem>>, vector<128x128xf32>,
    } else {
    }
    return
  }
  func.func @transform_0(%arg0: i32, %arg1: i32) -> (i32, i32) {
    %c0_i32 = arith.constant 0 : i32
    return %arg0, %arg1 : i32, i32
  }
  func.func @transform_1(%arg0: i32, %arg1: i32) -> (i32, i32) {
    %c0_i32 = arith.constant 0 : i32
    %c0_i32_0 = arith.constant 0 : i32
    return %arg1, %c0_i32 : i32, i32
  }
  func.func @transform_2(%arg0: i32, %arg1: i32) -> (i32, i32) {
    %c0_i32 = arith.constant 0 : i32
    %c0_i32_0 = arith.constant 0 : i32
    %c0_i32_1 = arith.constant 0 : i32
    return %c0_i32, %c0_i32_0 : i32, i32
  }
  func.func @transform_3(%arg0: i32, %arg1: i32) -> (i32, i32) {
    %c0_i32 = arith.constant 0 : i32
    %c0_i32_0 = arith.constant 0 : i32
    return %arg0, %c0_i32 : i32, i32
  }
}

module attributes {stable_mosaic.version = 11 : i64} {
  func.func @_fused_mm_kernel(%arg0: i32, %arg1: i32, %arg2: memref<128x36xbf16, #tpu.memory_space<vmem>>, %arg3: memref<36x128xbf16, #tpu.memory_space<vmem>>, %arg4: memref<1x128xf32, #tpu.memory_space<vmem>>, %arg5: memref<128x128xf32, #tpu.memory_space<vmem>>, %arg6: memref<128x128xf32, #tpu.memory_space<vmem>>) attributes {dimension_semantics = [#tpu.dimension_semantics<parallel>, #tpu.dimension_semantics<arbitrary>], iteration_bounds = array<i64: 1, 1>, scalar_prefetch = 0 : i64, scratch_operands = 1 : i64, tpu.core_type = #tpu.core_type<tc>, window_params = [{transform_indices = @transform_0, window_bounds = array<i64: 128, 36>}, {transform_indices = @transform_1, window_bounds = array<i64: 36, 128>}, {pipeline_mode = #tpu.pipeline_mode<synchronous>, transform_indices = @transform_2, window_bounds = array<i64: 1, 128>}, {transform_indices = @transform_3, window_bounds = array<i64: 128, 128>}]} {
    %c0_i32 = arith.constant 0 : i32
    %0 = arith.cmpi eq, %arg1, %c0_i32 : i32
    %1 = arith.extui %0 : i1 to i32
    %c0_i32_0 = arith.constant 0 : i32
    %2 = arith.cmpi ne, %1, %c0_i32_0 : i32
    scf.if %2 {
      %cst_10 = arith.constant 0.000000e+00 : f32
      %12 = vector.broadcast %cst_10 : f32 to vector<128x128xf32>
      %c0_11 = arith.constant 0 : index
      %c0_12 = arith.constant 0 : index
      %13 = vector.load %arg6[%c0_11, %c0_12] : memref<128x128xf32, #tpu.memory_space<vmem>>, vector<128x128xf32>
      tpu.vector_store %arg6[%c0_11, %c0_12], %12 {strides = array<i32>} : memref<128x128xf32, #tpu.memory_space<vmem>>, vector<128x128xf32>,
    } else {
    }
    %c0 = arith.constant 0 : index
    %c0_1 = arith.constant 0 : index
    %3 = vector.load %arg6[%c0, %c0_1] : memref<128x128xf32, #tpu.memory_space<vmem>>, vector<128x128xf32>
    %c0_2 = arith.constant 0 : index
    %c0_3 = arith.constant 0 : index
    %4 = vector.load %arg2[%c0_2, %c0_3] : memref<128x36xbf16, #tpu.memory_space<vmem>>, vector<128x36xbf16>
    %c0_4 = arith.constant 0 : index
    %c0_5 = arith.constant 0 : index
    %5 = vector.load %arg3[%c0_4, %c0_5] : memref<36x128xbf16, #tpu.memory_space<vmem>>, vector<36x128xbf16>
    %cst = arith.constant dense<0.000000e+00> : vector<128x128xf32>
    %6 = tpu.matmul %4, %5, %cst {dimension_numbers = #tpu.dot_dimension_numbers<[1], [0], [0], [1], [0, 0, 1, 1], [], []>} : vector<128x36xbf16>, vector<36x128xbf16>, vector<128x128xf32> -> vector<128x128xf32>
    %7 = arith.addf %3, %6 : vector<128x128xf32>
    %c0_6 = arith.constant 0 : index
    %c0_7 = arith.constant 0 : index
    %8 = vector.load %arg6[%c0_6, %c0_7] : memref<128x128xf32, #tpu.memory_space<vmem>>, vector<128x128xf32>
    tpu.vector_store %arg6[%c0_6, %c0_7], %7 {strides = array<i32>} : memref<128x128xf32, #tpu.memory_space<vmem>>, vector<128x128xf32>,
    %c0_i32_8 = arith.constant 0 : i32
    %9 = arith.cmpi eq, %arg1, %c0_i32_8 : i32
    %10 = arith.extui %9 : i1 to i32
    %c0_i32_9 = arith.constant 0 : i32
    %11 = arith.cmpi ne, %10, %c0_i32_9 : i32
    scf.if %11 {
      %c0_10 = arith.constant 0 : index
      %c0_11 = arith.constant 0 : index
      %12 = vector.load %arg6[%c0_10, %c0_11] : memref<128x128xf32, #tpu.memory_space<vmem>>, vector<128x128xf32>
      %c0_12 = arith.constant 0 : index
      %c0_13 = arith.constant 0 : index
      %13 = vector.load %arg4[%c0_12, %c0_13] : memref<1x128xf32, #tpu.memory_space<vmem>>, vector<1x128xf32>
      %14 = vector.broadcast %13 : vector<1x128xf32> to vector<128x128xf32>
      %15 = arith.addf %12, %14 : vector<128x128xf32>
      %c0_14 = arith.constant 0 : index
      %c0_15 = arith.constant 0 : index
      %16 = vector.load %arg5[%c0_14, %c0_15] : memref<128x128xf32, #tpu.memory_space<vmem>>, vector<128x128xf32>
      tpu.vector_store %arg5[%c0_14, %c0_15], %15 {strides = array<i32>} : memref<128x128xf32, #tpu.memory_space<vmem>>, vector<128x128xf32>,
    } else {
    }
    return
  }
  func.func @transform_0(%arg0: i32, %arg1: i32) -> (i32, i32) {
    %c0_i32 = arith.constant 0 : i32
    return %arg0, %arg1 : i32, i32
  }
  func.func @transform_1(%arg0: i32, %arg1: i32) -> (i32, i32) {
    %c0_i32 = arith.constant 0 : i32
    %c0_i32_0 = arith.constant 0 : i32
    return %arg1, %c0_i32 : i32, i32
  }
  func.func @transform_2(%arg0: i32, %arg1: i32) -> (i32, i32) {
    %c0_i32 = arith.constant 0 : i32
    %c0_i32_0 = arith.constant 0 : i32
    %c0_i32_1 = arith.constant 0 : i32
    return %c0_i32, %c0_i32_0 : i32, i32
  }
  func.func @transform_3(%arg0: i32, %arg1: i32) -> (i32, i32) {
    %c0_i32 = arith.constant 0 : i32
    %c0_i32_0 = arith.constant 0 : i32
    return %arg0, %c0_i32 : i32, i32
  }
}

module attributes {stable_mosaic.version = 11 : i64} {
  func.func @_fused_mm_kernel(%arg0: i32, %arg1: i32, %arg2: memref<128x256xbf16, #tpu.memory_space<vmem>>, %arg3: memref<256x128xbf16, #tpu.memory_space<vmem>>, %arg4: memref<1x128xf32, #tpu.memory_space<vmem>>, %arg5: memref<128x128xf32, #tpu.memory_space<vmem>>, %arg6: memref<128x128xf32, #tpu.memory_space<vmem>>) attributes {dimension_semantics = [#tpu.dimension_semantics<parallel>, #tpu.dimension_semantics<arbitrary>], iteration_bounds = array<i64: 1, 2>, scalar_prefetch = 0 : i64, scratch_operands = 1 : i64, tpu.core_type = #tpu.core_type<tc>, window_params = [{transform_indices = @transform_0, window_bounds = array<i64: 128, 256>}, {transform_indices = @transform_1, window_bounds = array<i64: 256, 128>}, {pipeline_mode = #tpu.pipeline_mode<synchronous>, transform_indices = @transform_2, window_bounds = array<i64: 1, 128>}, {transform_indices = @transform_3, window_bounds = array<i64: 128, 128>}]} {
    %c0_i32 = arith.constant 0 : i32
    %0 = arith.cmpi eq, %arg1, %c0_i32 : i32
    %1 = arith.extui %0 : i1 to i32
    %c0_i32_0 = arith.constant 0 : i32
    %2 = arith.cmpi ne, %1, %c0_i32_0 : i32
    scf.if %2 {
      %cst_9 = arith.constant 0.000000e+00 : f32
      %12 = vector.broadcast %cst_9 : f32 to vector<128x128xf32>
      %c0_10 = arith.constant 0 : index
      %c0_11 = arith.constant 0 : index
      %13 = vector.load %arg6[%c0_10, %c0_11] : memref<128x128xf32, #tpu.memory_space<vmem>>, vector<128x128xf32>
      tpu.vector_store %arg6[%c0_10, %c0_11], %12 {strides = array<i32>} : memref<128x128xf32, #tpu.memory_space<vmem>>, vector<128x128xf32>,
    } else {
    }
    %c0 = arith.constant 0 : index
    %c0_1 = arith.constant 0 : index
    %3 = vector.load %arg6[%c0, %c0_1] : memref<128x128xf32, #tpu.memory_space<vmem>>, vector<128x128xf32>
    %c0_2 = arith.constant 0 : index
    %c0_3 = arith.constant 0 : index
    %4 = vector.load %arg2[%c0_2, %c0_3] : memref<128x256xbf16, #tpu.memory_space<vmem>>, vector<128x256xbf16>
    %c0_4 = arith.constant 0 : index
    %c0_5 = arith.constant 0 : index
    %5 = vector.load %arg3[%c0_4, %c0_5] : memref<256x128xbf16, #tpu.memory_space<vmem>>, vector<256x128xbf16>
    %cst = arith.constant dense<0.000000e+00> : vector<128x128xf32>
    %6 = tpu.matmul %4, %5, %cst {dimension_numbers = #tpu.dot_dimension_numbers<[1], [0], [0], [1], [0, 0, 1, 1], [], []>} : vector<128x256xbf16>, vector<256x128xbf16>, vector<128x128xf32> -> vector<128x128xf32>
    %7 = arith.addf %3, %6 : vector<128x128xf32>
    %c0_6 = arith.constant 0 : index
    %c0_7 = arith.constant 0 : index
    %8 = vector.load %arg6[%c0_6, %c0_7] : memref<128x128xf32, #tpu.memory_space<vmem>>, vector<128x128xf32>
    tpu.vector_store %arg6[%c0_6, %c0_7], %7 {strides = array<i32>} : memref<128x128xf32, #tpu.memory_space<vmem>>, vector<128x128xf32>,
    %c1_i32 = arith.constant 1 : i32
    %9 = arith.cmpi eq, %arg1, %c1_i32 : i32
    %10 = arith.extui %9 : i1 to i32
    %c0_i32_8 = arith.constant 0 : i32
    %11 = arith.cmpi ne, %10, %c0_i32_8 : i32
    scf.if %11 {
      %c0_9 = arith.constant 0 : index
      %c0_10 = arith.constant 0 : index
      %12 = vector.load %arg6[%c0_9, %c0_10] : memref<128x128xf32, #tpu.memory_space<vmem>>, vector<128x128xf32>
      %c0_11 = arith.constant 0 : index
      %c0_12 = arith.constant 0 : index
      %13 = vector.load %arg4[%c0_11, %c0_12] : memref<1x128xf32, #tpu.memory_space<vmem>>, vector<1x128xf32>
      %14 = vector.broadcast %13 : vector<1x128xf32> to vector<128x128xf32>
      %15 = arith.addf %12, %14 : vector<128x128xf32>
      %16 = arith.negf %15 : vector<128x128xf32>
      %17 = math.exp %16 : vector<128x128xf32>
      %cst_13 = arith.constant 1.000000e+00 : f32
      %18 = vector.broadcast %cst_13 : f32 to vector<128x128xf32>
      %19 = arith.addf %18, %17 : vector<128x128xf32>
      %20 = arith.divf %18, %19 : vector<128x128xf32>
      %21 = arith.mulf %15, %20 : vector<128x128xf32>
      %c0_14 = arith.constant 0 : index
      %c0_15 = arith.constant 0 : index
      %22 = vector.load %arg5[%c0_14, %c0_15] : memref<128x128xf32, #tpu.memory_space<vmem>>, vector<128x128xf32>
      tpu.vector_store %arg5[%c0_14, %c0_15], %21 {strides = array<i32>} : memref<128x128xf32, #tpu.memory_space<vmem>>, vector<128x128xf32>,
    } else {
    }
    return
  }
  func.func @transform_0(%arg0: i32, %arg1: i32) -> (i32, i32) {
    %c0_i32 = arith.constant 0 : i32
    return %arg0, %arg1 : i32, i32
  }
  func.func @transform_1(%arg0: i32, %arg1: i32) -> (i32, i32) {
    %c0_i32 = arith.constant 0 : i32
    %c0_i32_0 = arith.constant 0 : i32
    return %arg1, %c0_i32 : i32, i32
  }
  func.func @transform_2(%arg0: i32, %arg1: i32) -> (i32, i32) {
    %c0_i32 = arith.constant 0 : i32
    %c0_i32_0 = arith.constant 0 : i32
    %c0_i32_1 = arith.constant 0 : i32
    return %c0_i32, %c0_i32_0 : i32, i32
  }
  func.func @transform_3(%arg0: i32, %arg1: i32) -> (i32, i32) {
    %c0_i32 = arith.constant 0 : i32
    %c0_i32_0 = arith.constant 0 : i32
    return %arg0, %c0_i32 : i32, i32
  }
}

module attributes {stable_mosaic.version = 11 : i64} {
  func.func @_fused_mm_kernel(%arg0: i32, %arg1: i32, %arg2: memref<128x32xbf16, #tpu.memory_space<vmem>>, %arg3: memref<32x128xbf16, #tpu.memory_space<vmem>>, %arg4: memref<1x128xf32, #tpu.memory_space<vmem>>, %arg5: memref<128x128xf32, #tpu.memory_space<vmem>>, %arg6: memref<128x128xf32, #tpu.memory_space<vmem>>) attributes {dimension_semantics = [#tpu.dimension_semantics<parallel>, #tpu.dimension_semantics<arbitrary>], iteration_bounds = array<i64: 1, 1>, scalar_prefetch = 0 : i64, scratch_operands = 1 : i64, tpu.core_type = #tpu.core_type<tc>, window_params = [{transform_indices = @transform_0, window_bounds = array<i64: 128, 32>}, {transform_indices = @transform_1, window_bounds = array<i64: 32, 128>}, {pipeline_mode = #tpu.pipeline_mode<synchronous>, transform_indices = @transform_2, window_bounds = array<i64: 1, 128>}, {transform_indices = @transform_3, window_bounds = array<i64: 128, 128>}]} {
    %c0_i32 = arith.constant 0 : i32
    %0 = arith.cmpi eq, %arg1, %c0_i32 : i32
    %1 = arith.extui %0 : i1 to i32
    %c0_i32_0 = arith.constant 0 : i32
    %2 = arith.cmpi ne, %1, %c0_i32_0 : i32
    scf.if %2 {
      %cst_10 = arith.constant 0.000000e+00 : f32
      %12 = vector.broadcast %cst_10 : f32 to vector<128x128xf32>
      %c0_11 = arith.constant 0 : index
      %c0_12 = arith.constant 0 : index
      %13 = vector.load %arg6[%c0_11, %c0_12] : memref<128x128xf32, #tpu.memory_space<vmem>>, vector<128x128xf32>
      tpu.vector_store %arg6[%c0_11, %c0_12], %12 {strides = array<i32>} : memref<128x128xf32, #tpu.memory_space<vmem>>, vector<128x128xf32>,
    } else {
    }
    %c0 = arith.constant 0 : index
    %c0_1 = arith.constant 0 : index
    %3 = vector.load %arg6[%c0, %c0_1] : memref<128x128xf32, #tpu.memory_space<vmem>>, vector<128x128xf32>
    %c0_2 = arith.constant 0 : index
    %c0_3 = arith.constant 0 : index
    %4 = vector.load %arg2[%c0_2, %c0_3] : memref<128x32xbf16, #tpu.memory_space<vmem>>, vector<128x32xbf16>
    %c0_4 = arith.constant 0 : index
    %c0_5 = arith.constant 0 : index
    %5 = vector.load %arg3[%c0_4, %c0_5] : memref<32x128xbf16, #tpu.memory_space<vmem>>, vector<32x128xbf16>
    %cst = arith.constant dense<0.000000e+00> : vector<128x128xf32>
    %6 = tpu.matmul %4, %5, %cst {dimension_numbers = #tpu.dot_dimension_numbers<[1], [0], [0], [1], [0, 0, 1, 1], [], []>} : vector<128x32xbf16>, vector<32x128xbf16>, vector<128x128xf32> -> vector<128x128xf32>
    %7 = arith.addf %3, %6 : vector<128x128xf32>
    %c0_6 = arith.constant 0 : index
    %c0_7 = arith.constant 0 : index
    %8 = vector.load %arg6[%c0_6, %c0_7] : memref<128x128xf32, #tpu.memory_space<vmem>>, vector<128x128xf32>
    tpu.vector_store %arg6[%c0_6, %c0_7], %7 {strides = array<i32>} : memref<128x128xf32, #tpu.memory_space<vmem>>, vector<128x128xf32>,
    %c0_i32_8 = arith.constant 0 : i32
    %9 = arith.cmpi eq, %arg1, %c0_i32_8 : i32
    %10 = arith.extui %9 : i1 to i32
    %c0_i32_9 = arith.constant 0 : i32
    %11 = arith.cmpi ne, %10, %c0_i32_9 : i32
    scf.if %11 {
      %c0_10 = arith.constant 0 : index
      %c0_11 = arith.constant 0 : index
      %12 = vector.load %arg6[%c0_10, %c0_11] : memref<128x128xf32, #tpu.memory_space<vmem>>, vector<128x128xf32>
      %c0_12 = arith.constant 0 : index
      %c0_13 = arith.constant 0 : index
      %13 = vector.load %arg4[%c0_12, %c0_13] : memref<1x128xf32, #tpu.memory_space<vmem>>, vector<1x128xf32>
      %14 = vector.broadcast %13 : vector<1x128xf32> to vector<128x128xf32>
      %15 = arith.addf %12, %14 : vector<128x128xf32>
      %c0_14 = arith.constant 0 : index
      %c0_15 = arith.constant 0 : index
      %16 = vector.load %arg5[%c0_14, %c0_15] : memref<128x128xf32, #tpu.memory_space<vmem>>, vector<128x128xf32>
      tpu.vector_store %arg5[%c0_14, %c0_15], %15 {strides = array<i32>} : memref<128x128xf32, #tpu.memory_space<vmem>>, vector<128x128xf32>,
    } else {
    }
    return
  }
  func.func @transform_0(%arg0: i32, %arg1: i32) -> (i32, i32) {
    %c0_i32 = arith.constant 0 : i32
    return %arg0, %arg1 : i32, i32
  }
  func.func @transform_1(%arg0: i32, %arg1: i32) -> (i32, i32) {
    %c0_i32 = arith.constant 0 : i32
    %c0_i32_0 = arith.constant 0 : i32
    return %arg1, %c0_i32 : i32, i32
  }
  func.func @transform_2(%arg0: i32, %arg1: i32) -> (i32, i32) {
    %c0_i32 = arith.constant 0 : i32
    %c0_i32_0 = arith.constant 0 : i32
    %c0_i32_1 = arith.constant 0 : i32
    return %c0_i32, %c0_i32_0 : i32, i32
  }
  func.func @transform_3(%arg0: i32, %arg1: i32) -> (i32, i32) {
    %c0_i32 = arith.constant 0 : i32
    %c0_i32_0 = arith.constant 0 : i32
    return %arg0, %c0_i32 : i32, i32
  }
}

module attributes {stable_mosaic.version = 11 : i64} {
  func.func @_fused_mm_kernel(%arg0: i32, %arg1: i32, %arg2: memref<128x256xbf16, #tpu.memory_space<vmem>>, %arg3: memref<256x128xbf16, #tpu.memory_space<vmem>>, %arg4: memref<1x128xf32, #tpu.memory_space<vmem>>, %arg5: memref<128x128xf32, #tpu.memory_space<vmem>>, %arg6: memref<128x128xf32, #tpu.memory_space<vmem>>, %arg7: memref<128x128xf32, #tpu.memory_space<vmem>>) attributes {dimension_semantics = [#tpu.dimension_semantics<parallel>, #tpu.dimension_semantics<arbitrary>], iteration_bounds = array<i64: 1, 2>, scalar_prefetch = 0 : i64, scratch_operands = 1 : i64, tpu.core_type = #tpu.core_type<tc>, window_params = [{transform_indices = @transform_0, window_bounds = array<i64: 128, 256>}, {transform_indices = @transform_1, window_bounds = array<i64: 256, 128>}, {pipeline_mode = #tpu.pipeline_mode<synchronous>, transform_indices = @transform_2, window_bounds = array<i64: 1, 128>}, {transform_indices = @transform_3, window_bounds = array<i64: 128, 128>}, {transform_indices = @transform_4, window_bounds = array<i64: 128, 128>}]} {
    %c0_i32 = arith.constant 0 : i32
    %0 = arith.cmpi eq, %arg1, %c0_i32 : i32
    %1 = arith.extui %0 : i1 to i32
    %c0_i32_0 = arith.constant 0 : i32
    %2 = arith.cmpi ne, %1, %c0_i32_0 : i32
    scf.if %2 {
      %cst_9 = arith.constant 0.000000e+00 : f32
      %12 = vector.broadcast %cst_9 : f32 to vector<128x128xf32>
      %c0_10 = arith.constant 0 : index
      %c0_11 = arith.constant 0 : index
      %13 = vector.load %arg7[%c0_10, %c0_11] : memref<128x128xf32, #tpu.memory_space<vmem>>, vector<128x128xf32>
      tpu.vector_store %arg7[%c0_10, %c0_11], %12 {strides = array<i32>} : memref<128x128xf32, #tpu.memory_space<vmem>>, vector<128x128xf32>,
    } else {
    }
    %c0 = arith.constant 0 : index
    %c0_1 = arith.constant 0 : index
    %3 = vector.load %arg7[%c0, %c0_1] : memref<128x128xf32, #tpu.memory_space<vmem>>, vector<128x128xf32>
    %c0_2 = arith.constant 0 : index
    %c0_3 = arith.constant 0 : index
    %4 = vector.load %arg2[%c0_2, %c0_3] : memref<128x256xbf16, #tpu.memory_space<vmem>>, vector<128x256xbf16>
    %c0_4 = arith.constant 0 : index
    %c0_5 = arith.constant 0 : index
    %5 = vector.load %arg3[%c0_4, %c0_5] : memref<256x128xbf16, #tpu.memory_space<vmem>>, vector<256x128xbf16>
    %cst = arith.constant dense<0.000000e+00> : vector<128x128xf32>
    %6 = tpu.matmul %4, %5, %cst {dimension_numbers = #tpu.dot_dimension_numbers<[1], [0], [0], [1], [0, 0, 1, 1], [], []>} : vector<128x256xbf16>, vector<256x128xbf16>, vector<128x128xf32> -> vector<128x128xf32>
    %7 = arith.addf %3, %6 : vector<128x128xf32>
    %c0_6 = arith.constant 0 : index
    %c0_7 = arith.constant 0 : index
    %8 = vector.load %arg7[%c0_6, %c0_7] : memref<128x128xf32, #tpu.memory_space<vmem>>, vector<128x128xf32>
    tpu.vector_store %arg7[%c0_6, %c0_7], %7 {strides = array<i32>} : memref<128x128xf32, #tpu.memory_space<vmem>>, vector<128x128xf32>,
    %c1_i32 = arith.constant 1 : i32
    %9 = arith.cmpi eq, %arg1, %c1_i32 : i32
    %10 = arith.extui %9 : i1 to i32
    %c0_i32_8 = arith.constant 0 : i32
    %11 = arith.cmpi ne, %10, %c0_i32_8 : i32
    scf.if %11 {
      %c0_9 = arith.constant 0 : index
      %c0_10 = arith.constant 0 : index
      %12 = vector.load %arg7[%c0_9, %c0_10] : memref<128x128xf32, #tpu.memory_space<vmem>>, vector<128x128xf32>
      %c0_11 = arith.constant 0 : index
      %c0_12 = arith.constant 0 : index
      %13 = vector.load %arg4[%c0_11, %c0_12] : memref<1x128xf32, #tpu.memory_space<vmem>>, vector<1x128xf32>
      %14 = vector.broadcast %13 : vector<1x128xf32> to vector<128x128xf32>
      %15 = arith.addf %12, %14 : vector<128x128xf32>
      %c0_13 = arith.constant 0 : index
      %c0_14 = arith.constant 0 : index
      %16 = vector.load %arg5[%c0_13, %c0_14] : memref<128x128xf32, #tpu.memory_space<vmem>>, vector<128x128xf32>
      %cst_15 = arith.constant 14.5864992 : f32
      %17 = vector.broadcast %cst_15 : f32 to vector<128x128xf32>
      %18 = arith.mulf %17, %16 : vector<128x128xf32>
      %19 = arith.addf %15, %18 : vector<128x128xf32>
      %c0_16 = arith.constant 0 : index
      %c0_17 = arith.constant 0 : index
      %20 = vector.load %arg6[%c0_16, %c0_17] : memref<128x128xf32, #tpu.memory_space<vmem>>, vector<128x128xf32>
      tpu.vector_store %arg6[%c0_16, %c0_17], %19 {strides = array<i32>} : memref<128x128xf32, #tpu.memory_space<vmem>>, vector<128x128xf32>,
    } else {
    }
    return
  }
  func.func @transform_0(%arg0: i32, %arg1: i32) -> (i32, i32) {
    %c0_i32 = arith.constant 0 : i32
    return %arg0, %arg1 : i32, i32
  }
  func.func @transform_1(%arg0: i32, %arg1: i32) -> (i32, i32) {
    %c0_i32 = arith.constant 0 : i32
    %c0_i32_0 = arith.constant 0 : i32
    return %arg1, %c0_i32 : i32, i32
  }
  func.func @transform_2(%arg0: i32, %arg1: i32) -> (i32, i32) {
    %c0_i32 = arith.constant 0 : i32
    %c0_i32_0 = arith.constant 0 : i32
    %c0_i32_1 = arith.constant 0 : i32
    return %c0_i32, %c0_i32_0 : i32, i32
  }
  func.func @transform_3(%arg0: i32, %arg1: i32) -> (i32, i32) {
    %c0_i32 = arith.constant 0 : i32
    %c0_i32_0 = arith.constant 0 : i32
    return %arg0, %c0_i32 : i32, i32
  }
  func.func @transform_4(%arg0: i32, %arg1: i32) -> (i32, i32) {
    %c0_i32 = arith.constant 0 : i32
    %c0_i32_0 = arith.constant 0 : i32
    return %arg0, %c0_i32 : i32, i32
  }
}

module attributes {stable_mosaic.version = 11 : i64} {
  func.func @_fused_mm_kernel(%arg0: i32, %arg1: i32, %arg2: memref<128x36xbf16, #tpu.memory_space<vmem>>, %arg3: memref<36x128xbf16, #tpu.memory_space<vmem>>, %arg4: memref<1x128xf32, #tpu.memory_space<vmem>>, %arg5: memref<128x128xf32, #tpu.memory_space<vmem>>, %arg6: memref<128x128xf32, #tpu.memory_space<vmem>>, %arg7: memref<128x128xf32, #tpu.memory_space<vmem>>) attributes {dimension_semantics = [#tpu.dimension_semantics<parallel>, #tpu.dimension_semantics<arbitrary>], iteration_bounds = array<i64: 1, 1>, scalar_prefetch = 0 : i64, scratch_operands = 1 : i64, tpu.core_type = #tpu.core_type<tc>, window_params = [{transform_indices = @transform_0, window_bounds = array<i64: 128, 36>}, {transform_indices = @transform_1, window_bounds = array<i64: 36, 128>}, {pipeline_mode = #tpu.pipeline_mode<synchronous>, transform_indices = @transform_2, window_bounds = array<i64: 1, 128>}, {transform_indices = @transform_3, window_bounds = array<i64: 128, 128>}, {transform_indices = @transform_4, window_bounds = array<i64: 128, 128>}]} {
    %c0_i32 = arith.constant 0 : i32
    %0 = arith.cmpi eq, %arg1, %c0_i32 : i32
    %1 = arith.extui %0 : i1 to i32
    %c0_i32_0 = arith.constant 0 : i32
    %2 = arith.cmpi ne, %1, %c0_i32_0 : i32
    scf.if %2 {
      %cst_10 = arith.constant 0.000000e+00 : f32
      %12 = vector.broadcast %cst_10 : f32 to vector<128x128xf32>
      %c0_11 = arith.constant 0 : index
      %c0_12 = arith.constant 0 : index
      %13 = vector.load %arg7[%c0_11, %c0_12] : memref<128x128xf32, #tpu.memory_space<vmem>>, vector<128x128xf32>
      tpu.vector_store %arg7[%c0_11, %c0_12], %12 {strides = array<i32>} : memref<128x128xf32, #tpu.memory_space<vmem>>, vector<128x128xf32>,
    } else {
    }
    %c0 = arith.constant 0 : index
    %c0_1 = arith.constant 0 : index
    %3 = vector.load %arg7[%c0, %c0_1] : memref<128x128xf32, #tpu.memory_space<vmem>>, vector<128x128xf32>
    %c0_2 = arith.constant 0 : index
    %c0_3 = arith.constant 0 : index
    %4 = vector.load %arg2[%c0_2, %c0_3] : memref<128x36xbf16, #tpu.memory_space<vmem>>, vector<128x36xbf16>
    %c0_4 = arith.constant 0 : index
    %c0_5 = arith.constant 0 : index
    %5 = vector.load %arg3[%c0_4, %c0_5] : memref<36x128xbf16, #tpu.memory_space<vmem>>, vector<36x128xbf16>
    %cst = arith.constant dense<0.000000e+00> : vector<128x128xf32>
    %6 = tpu.matmul %4, %5, %cst {dimension_numbers = #tpu.dot_dimension_numbers<[1], [0], [0], [1], [0, 0, 1, 1], [], []>} : vector<128x36xbf16>, vector<36x128xbf16>, vector<128x128xf32> -> vector<128x128xf32>
    %7 = arith.addf %3, %6 : vector<128x128xf32>
    %c0_6 = arith.constant 0 : index
    %c0_7 = arith.constant 0 : index
    %8 = vector.load %arg7[%c0_6, %c0_7] : memref<128x128xf32, #tpu.memory_space<vmem>>, vector<128x128xf32>
    tpu.vector_store %arg7[%c0_6, %c0_7], %7 {strides = array<i32>} : memref<128x128xf32, #tpu.memory_space<vmem>>, vector<128x128xf32>,
    %c0_i32_8 = arith.constant 0 : i32
    %9 = arith.cmpi eq, %arg1, %c0_i32_8 : i32
    %10 = arith.extui %9 : i1 to i32
    %c0_i32_9 = arith.constant 0 : i32
    %11 = arith.cmpi ne, %10, %c0_i32_9 : i32
    scf.if %11 {
      %c0_10 = arith.constant 0 : index
      %c0_11 = arith.constant 0 : index
      %12 = vector.load %arg7[%c0_10, %c0_11] : memref<128x128xf32, #tpu.memory_space<vmem>>, vector<128x128xf32>
      %c0_12 = arith.constant 0 : index
      %c0_13 = arith.constant 0 : index
      %13 = vector.load %arg4[%c0_12, %c0_13] : memref<1x128xf32, #tpu.memory_space<vmem>>, vector<1x128xf32>
      %14 = vector.broadcast %13 : vector<1x128xf32> to vector<128x128xf32>
      %15 = arith.addf %12, %14 : vector<128x128xf32>
      %16 = arith.negf %15 : vector<128x128xf32>
      %17 = math.exp %16 : vector<128x128xf32>
      %cst_14 = arith.constant 1.000000e+00 : f32
      %18 = vector.broadcast %cst_14 : f32 to vector<128x128xf32>
      %19 = arith.addf %18, %17 : vector<128x128xf32>
      %20 = arith.divf %18, %19 : vector<128x128xf32>
      %21 = arith.mulf %15, %20 : vector<128x128xf32>
      %c0_15 = arith.constant 0 : index
      %c0_16 = arith.constant 0 : index
      %22 = vector.load %arg5[%c0_15, %c0_16] : memref<128x128xf32, #tpu.memory_space<vmem>>, vector<128x128xf32>
      %cst_17 = arith.constant 1.000000e+00 : f32
      %23 = vector.broadcast %cst_17 : f32 to vector<128x128xf32>
      %24 = arith.mulf %23, %22 : vector<128x128xf32>
      %25 = arith.addf %21, %24 : vector<128x128xf32>
      %c0_18 = arith.constant 0 : index
      %c0_19 = arith.constant 0 : index
      %26 = vector.load %arg6[%c0_18, %c0_19] : memref<128x128xf32, #tpu.memory_space<vmem>>, vector<128x128xf32>
      tpu.vector_store %arg6[%c0_18, %c0_19], %25 {strides = array<i32>} : memref<128x128xf32, #tpu.memory_space<vmem>>, vector<128x128xf32>,
    } else {
    }
    return
  }
  func.func @transform_0(%arg0: i32, %arg1: i32) -> (i32, i32) {
    %c0_i32 = arith.constant 0 : i32
    return %arg0, %arg1 : i32, i32
  }
  func.func @transform_1(%arg0: i32, %arg1: i32) -> (i32, i32) {
    %c0_i32 = arith.constant 0 : i32
    %c0_i32_0 = arith.constant 0 : i32
    return %arg1, %c0_i32 : i32, i32
  }
  func.func @transform_2(%arg0: i32, %arg1: i32) -> (i32, i32) {
    %c0_i32 = arith.constant 0 : i32
    %c0_i32_0 = arith.constant 0 : i32
    %c0_i32_1 = arith.constant 0 : i32
    return %c0_i32, %c0_i32_0 : i32, i32
  }
  func.func @transform_3(%arg0: i32, %arg1: i32) -> (i32, i32) {
    %c0_i32 = arith.constant 0 : i32
    %c0_i32_0 = arith.constant 0 : i32
    return %arg0, %c0_i32 : i32, i32
  }
  func.func @transform_4(%arg0: i32, %arg1: i32) -> (i32, i32) {
    %c0_i32 = arith.constant 0 : i32
    %c0_i32_0 = arith.constant 0 : i32
    return %arg0, %c0_i32 : i32, i32
  }
}

module attributes {stable_mosaic.version = 11 : i64} {
  func.func @_fused_mm_kernel(%arg0: i32, %arg1: i32, %arg2: memref<256x256xbf16, #tpu.memory_space<vmem>>, %arg3: memref<256x128xbf16, #tpu.memory_space<vmem>>, %arg4: memref<1x128xf32, #tpu.memory_space<vmem>>, %arg5: memref<256x128xf32, #tpu.memory_space<vmem>>, %arg6: memref<256x128xf32, #tpu.memory_space<vmem>>) attributes {dimension_semantics = [#tpu.dimension_semantics<parallel>, #tpu.dimension_semantics<arbitrary>], iteration_bounds = array<i64: 2, 2>, scalar_prefetch = 0 : i64, scratch_operands = 1 : i64, tpu.core_type = #tpu.core_type<tc>, window_params = [{transform_indices = @transform_0, window_bounds = array<i64: 256, 256>}, {transform_indices = @transform_1, window_bounds = array<i64: 256, 128>}, {pipeline_mode = #tpu.pipeline_mode<synchronous>, transform_indices = @transform_2, window_bounds = array<i64: 1, 128>}, {transform_indices = @transform_3, window_bounds = array<i64: 256, 128>}]} {
    %c0_i32 = arith.constant 0 : i32
    %0 = arith.cmpi eq, %arg1, %c0_i32 : i32
    %1 = arith.extui %0 : i1 to i32
    %c0_i32_0 = arith.constant 0 : i32
    %2 = arith.cmpi ne, %1, %c0_i32_0 : i32
    scf.if %2 {
      %cst_9 = arith.constant 0.000000e+00 : f32
      %12 = vector.broadcast %cst_9 : f32 to vector<256x128xf32>
      %c0_10 = arith.constant 0 : index
      %c0_11 = arith.constant 0 : index
      %13 = vector.load %arg6[%c0_10, %c0_11] : memref<256x128xf32, #tpu.memory_space<vmem>>, vector<256x128xf32>
      tpu.vector_store %arg6[%c0_10, %c0_11], %12 {strides = array<i32>} : memref<256x128xf32, #tpu.memory_space<vmem>>, vector<256x128xf32>,
    } else {
    }
    %c0 = arith.constant 0 : index
    %c0_1 = arith.constant 0 : index
    %3 = vector.load %arg6[%c0, %c0_1] : memref<256x128xf32, #tpu.memory_space<vmem>>, vector<256x128xf32>
    %c0_2 = arith.constant 0 : index
    %c0_3 = arith.constant 0 : index
    %4 = vector.load %arg2[%c0_2, %c0_3] : memref<256x256xbf16, #tpu.memory_space<vmem>>, vector<256x256xbf16>
    %c0_4 = arith.constant 0 : index
    %c0_5 = arith.constant 0 : index
    %5 = vector.load %arg3[%c0_4, %c0_5] : memref<256x128xbf16, #tpu.memory_space<vmem>>, vector<256x128xbf16>
    %cst = arith.constant dense<0.000000e+00> : vector<256x128xf32>
    %6 = tpu.matmul %4, %5, %cst {dimension_numbers = #tpu.dot_dimension_numbers<[1], [0], [0], [1], [0, 0, 1, 1], [], []>} : vector<256x256xbf16>, vector<256x128xbf16>, vector<256x128xf32> -> vector<256x128xf32>
    %7 = arith.addf %3, %6 : vector<256x128xf32>
    %c0_6 = arith.constant 0 : index
    %c0_7 = arith.constant 0 : index
    %8 = vector.load %arg6[%c0_6, %c0_7] : memref<256x128xf32, #tpu.memory_space<vmem>>, vector<256x128xf32>
    tpu.vector_store %arg6[%c0_6, %c0_7], %7 {strides = array<i32>} : memref<256x128xf32, #tpu.memory_space<vmem>>, vector<256x128xf32>,
    %c1_i32 = arith.constant 1 : i32
    %9 = arith.cmpi eq, %arg1, %c1_i32 : i32
    %10 = arith.extui %9 : i1 to i32
    %c0_i32_8 = arith.constant 0 : i32
    %11 = arith.cmpi ne, %10, %c0_i32_8 : i32
    scf.if %11 {
      %c0_9 = arith.constant 0 : index
      %c0_10 = arith.constant 0 : index
      %12 = vector.load %arg6[%c0_9, %c0_10] : memref<256x128xf32, #tpu.memory_space<vmem>>, vector<256x128xf32>
      %c0_11 = arith.constant 0 : index
      %c0_12 = arith.constant 0 : index
      %13 = vector.load %arg4[%c0_11, %c0_12] : memref<1x128xf32, #tpu.memory_space<vmem>>, vector<1x128xf32>
      %14 = vector.broadcast %13 : vector<1x128xf32> to vector<256x128xf32>
      %15 = arith.addf %12, %14 : vector<256x128xf32>
      %16 = arith.negf %15 : vector<256x128xf32>
      %17 = math.exp %16 : vector<256x128xf32>
      %cst_13 = arith.constant 1.000000e+00 : f32
      %18 = vector.broadcast %cst_13 : f32 to vector<256x128xf32>
      %19 = arith.addf %18, %17 : vector<256x128xf32>
      %20 = arith.divf %18, %19 : vector<256x128xf32>
      %21 = arith.mulf %15, %20 : vector<256x128xf32>
      %c0_14 = arith.constant 0 : index
      %c0_15 = arith.constant 0 : index
      %22 = vector.load %arg5[%c0_14, %c0_15] : memref<256x128xf32, #tpu.memory_space<vmem>>, vector<256x128xf32>
      tpu.vector_store %arg5[%c0_14, %c0_15], %21 {strides = array<i32>} : memref<256x128xf32, #tpu.memory_space<vmem>>, vector<256x128xf32>,
    } else {
    }
    return
  }
  func.func @transform_0(%arg0: i32, %arg1: i32) -> (i32, i32) {
    %c0_i32 = arith.constant 0 : i32
    return %arg0, %arg1 : i32, i32
  }
  func.func @transform_1(%arg0: i32, %arg1: i32) -> (i32, i32) {
    %c0_i32 = arith.constant 0 : i32
    %c0_i32_0 = arith.constant 0 : i32
    return %arg1, %c0_i32 : i32, i32
  }
  func.func @transform_2(%arg0: i32, %arg1: i32) -> (i32, i32) {
    %c0_i32 = arith.constant 0 : i32
    %c0_i32_0 = arith.constant 0 : i32
    %c0_i32_1 = arith.constant 0 : i32
    return %c0_i32, %c0_i32_0 : i32, i32
  }
  func.func @transform_3(%arg0: i32, %arg1: i32) -> (i32, i32) {
    %c0_i32 = arith.constant 0 : i32
    %c0_i32_0 = arith.constant 0 : i32
    return %arg0, %c0_i32 : i32, i32
  }
}

module attributes {stable_mosaic.version = 11 : i64} {
  func.func @_fused_mm_kernel(%arg0: i32, %arg1: i32, %arg2: memref<256x256xbf16, #tpu.memory_space<vmem>>, %arg3: memref<256x128xbf16, #tpu.memory_space<vmem>>, %arg4: memref<1x128xf32, #tpu.memory_space<vmem>>, %arg5: memref<256x128xf32, #tpu.memory_space<vmem>>, %arg6: memref<256x128xf32, #tpu.memory_space<vmem>>) attributes {dimension_semantics = [#tpu.dimension_semantics<parallel>, #tpu.dimension_semantics<arbitrary>], iteration_bounds = array<i64: 2, 2>, scalar_prefetch = 0 : i64, scratch_operands = 1 : i64, tpu.core_type = #tpu.core_type<tc>, window_params = [{transform_indices = @transform_0, window_bounds = array<i64: 256, 256>}, {transform_indices = @transform_1, window_bounds = array<i64: 256, 128>}, {pipeline_mode = #tpu.pipeline_mode<synchronous>, transform_indices = @transform_2, window_bounds = array<i64: 1, 128>}, {transform_indices = @transform_3, window_bounds = array<i64: 256, 128>}]} {
    %c0_i32 = arith.constant 0 : i32
    %0 = arith.cmpi eq, %arg1, %c0_i32 : i32
    %1 = arith.extui %0 : i1 to i32
    %c0_i32_0 = arith.constant 0 : i32
    %2 = arith.cmpi ne, %1, %c0_i32_0 : i32
    scf.if %2 {
      %cst_9 = arith.constant 0.000000e+00 : f32
      %12 = vector.broadcast %cst_9 : f32 to vector<256x128xf32>
      %c0_10 = arith.constant 0 : index
      %c0_11 = arith.constant 0 : index
      %13 = vector.load %arg6[%c0_10, %c0_11] : memref<256x128xf32, #tpu.memory_space<vmem>>, vector<256x128xf32>
      tpu.vector_store %arg6[%c0_10, %c0_11], %12 {strides = array<i32>} : memref<256x128xf32, #tpu.memory_space<vmem>>, vector<256x128xf32>,
    } else {
    }
    %c0 = arith.constant 0 : index
    %c0_1 = arith.constant 0 : index
    %3 = vector.load %arg6[%c0, %c0_1] : memref<256x128xf32, #tpu.memory_space<vmem>>, vector<256x128xf32>
    %c0_2 = arith.constant 0 : index
    %c0_3 = arith.constant 0 : index
    %4 = vector.load %arg2[%c0_2, %c0_3] : memref<256x256xbf16, #tpu.memory_space<vmem>>, vector<256x256xbf16>
    %c0_4 = arith.constant 0 : index
    %c0_5 = arith.constant 0 : index
    %5 = vector.load %arg3[%c0_4, %c0_5] : memref<256x128xbf16, #tpu.memory_space<vmem>>, vector<256x128xbf16>
    %cst = arith.constant dense<0.000000e+00> : vector<256x128xf32>
    %6 = tpu.matmul %4, %5, %cst {dimension_numbers = #tpu.dot_dimension_numbers<[1], [0], [0], [1], [0, 0, 1, 1], [], []>} : vector<256x256xbf16>, vector<256x128xbf16>, vector<256x128xf32> -> vector<256x128xf32>
    %7 = arith.addf %3, %6 : vector<256x128xf32>
    %c0_6 = arith.constant 0 : index
    %c0_7 = arith.constant 0 : index
    %8 = vector.load %arg6[%c0_6, %c0_7] : memref<256x128xf32, #tpu.memory_space<vmem>>, vector<256x128xf32>
    tpu.vector_store %arg6[%c0_6, %c0_7], %7 {strides = array<i32>} : memref<256x128xf32, #tpu.memory_space<vmem>>, vector<256x128xf32>,
    %c1_i32 = arith.constant 1 : i32
    %9 = arith.cmpi eq, %arg1, %c1_i32 : i32
    %10 = arith.extui %9 : i1 to i32
    %c0_i32_8 = arith.constant 0 : i32
    %11 = arith.cmpi ne, %10, %c0_i32_8 : i32
    scf.if %11 {
      %c0_9 = arith.constant 0 : index
      %c0_10 = arith.constant 0 : index
      %12 = vector.load %arg6[%c0_9, %c0_10] : memref<256x128xf32, #tpu.memory_space<vmem>>, vector<256x128xf32>
      %c0_11 = arith.constant 0 : index
      %c0_12 = arith.constant 0 : index
      %13 = vector.load %arg4[%c0_11, %c0_12] : memref<1x128xf32, #tpu.memory_space<vmem>>, vector<1x128xf32>
      %14 = vector.broadcast %13 : vector<1x128xf32> to vector<256x128xf32>
      %15 = arith.addf %12, %14 : vector<256x128xf32>
      %cst_13 = arith.constant -1.000000e+00 : f32
      %cst_14 = arith.constant 1.000000e+00 : f32
      %16 = vector.broadcast %cst_13 : f32 to vector<256x128xf32>
      %17 = arith.maximumf %16, %15 : vector<256x128xf32>
      %18 = vector.broadcast %cst_14 : f32 to vector<256x128xf32>
      %19 = arith.minimumf %18, %17 : vector<256x128xf32>
      %c0_15 = arith.constant 0 : index
      %c0_16 = arith.constant 0 : index
      %20 = vector.load %arg5[%c0_15, %c0_16] : memref<256x128xf32, #tpu.memory_space<vmem>>, vector<256x128xf32>
      tpu.vector_store %arg5[%c0_15, %c0_16], %19 {strides = array<i32>} : memref<256x128xf32, #tpu.memory_space<vmem>>, vector<256x128xf32>,
    } else {
    }
    return
  }
  func.func @transform_0(%arg0: i32, %arg1: i32) -> (i32, i32) {
    %c0_i32 = arith.constant 0 : i32
    return %arg0, %arg1 : i32, i32
  }
  func.func @transform_1(%arg0: i32, %arg1: i32) -> (i32, i32) {
    %c0_i32 = arith.constant 0 : i32
    %c0_i32_0 = arith.constant 0 : i32
    return %arg1, %c0_i32 : i32, i32
  }
  func.func @transform_2(%arg0: i32, %arg1: i32) -> (i32, i32) {
    %c0_i32 = arith.constant 0 : i32
    %c0_i32_0 = arith.constant 0 : i32
    %c0_i32_1 = arith.constant 0 : i32
    return %c0_i32, %c0_i32_0 : i32, i32
  }
  func.func @transform_3(%arg0: i32, %arg1: i32) -> (i32, i32) {
    %c0_i32 = arith.constant 0 : i32
    %c0_i32_0 = arith.constant 0 : i32
    return %arg0, %c0_i32 : i32, i32
  }
}

</mosaic_0001>

<llo_original>
// kernel: _lambda_.13
$region0: #{_lambda_.13}
  #allocation0 [shape = 'u32[]', space=smem, size = 0x4, offset = 0x4, fixed_abs, tag = 'smem constant byte address 0x4 - core index']
  #allocation1 [shape = 'u32[72,128]{1,0:T(1,128)}', space=vmem, size = 0x9000, scoped, tag = 'internal scratch']
  #allocation2 [shape = 'f32[128,128]{1,0:T(8,128)}', space=vmem, size = 0x10000, scoped, tag = 'scratch operand']
  %s0 = inlined_call_operand.vmem [shape: bf16[128,27], index: 0, kind: input, shape index: {}]
  %s1 = inlined_call_operand.vmem [shape: bf16[27,128], index: 1, kind: input, shape index: {}]
  %s2 = inlined_call_operand.vmem [shape: f32[1,128], index: 2, kind: input, shape index: {}]
  %s3 = inlined_call_operand.vmem [shape: f32[128,128], index: 3, kind: output, shape index: {}]
  %s4 = sld [smem:[#allocation0]]
  $region30: #{_lambda_.13} parent=0
    _
  %s6 = ssub.s32 1, %s4
  %s7 = scalar_select 0, %s6, %s4
  // Predicated region
  $region2: #{_lambda_.13} parent=0 // pred_check
    _
  $region3: #{_lambda_.13} parent=0 // pred_check_branch
    %9 = sbr.rel (0) target = $region5
  $region4: #{_lambda_.13} parent=0 // pred_region
    _
  $region5: #{_lambda_.13} parent=0 // pred_fallthru
    _
  // Predicated region
  $region6: #{_lambda_.13} parent=0 // pred_check
    _
  $region7: #{_lambda_.13} parent=0 // pred_check_branch
    %11 = sbr.rel (0) target = $region9
  $region8: #{_lambda_.13} parent=0 // pred_region
    _
  $region9: #{_lambda_.13} parent=0 // pred_fallthru
    _
  // Predicated region
  $region10: #{_lambda_.13} parent=0 // pred_check
    _
  $region11: #{_lambda_.13} parent=0 // pred_check_branch
    %13 = sbr.rel (0) target = $region13
  $region12: #{_lambda_.13} parent=0 // pred_region
    _
  $region13: #{_lambda_.13} parent=0 // pred_fallthru
    _
  %p15 = scmp.eq.s32.totalorder 0, 0
  // Predicated region
  $region14: #{_lambda_.13} parent=0 // pred_check
    %p16 = pneg %p15
  $region15: #{_lambda_.13} parent=0 // pred_check_branch
    %18 = sbr.rel (%p16) target = $region17
  $region16: #{_lambda_.13} parent=0 // pred_region
    %19 = vst [vmem:[#allocation2] sm:$0xff] 0.0
    %20 = vst [vmem:[#allocation2 + $0x8] sm:$0xff] 0.0
    %21 = vst [vmem:[#allocation2 + $0x10] sm:$0xff] 0.0
    %22 = vst [vmem:[#allocation2 + $0x18] sm:$0xff] 0.0
    %23 = vst [vmem:[#allocation2 + $0x20] sm:$0xff] 0.0
    %24 = vst [vmem:[#allocation2 + $0x28] sm:$0xff] 0.0
    %25 = vst [vmem:[#allocation2 + $0x30] sm:$0xff] 0.0
    %26 = vst [vmem:[#allocation2 + $0x38] sm:$0xff] 0.0
    %27 = vst [vmem:[#allocation2 + $0x40] sm:$0xff] 0.0
    %28 = vst [vmem:[#allocation2 + $0x48] sm:$0xff] 0.0
    %29 = vst [vmem:[#allocation2 + $0x50] sm:$0xff] 0.0
    %30 = vst [vmem:[#allocation2 + $0x58] sm:$0xff] 0.0
    %31 = vst [vmem:[#allocation2 + $0x60] sm:$0xff] 0.0
    %32 = vst [vmem:[#allocation2 + $0x68] sm:$0xff] 0.0
    %33 = vst [vmem:[#allocation2 + $0x70] sm:$0xff] 0.0
    %34 = vst [vmem:[#allocation2 + $0x78] sm:$0xff] 0.0
  $region17: #{_lambda_.13} parent=0 // pred_fallthru
    _
  %v35 = vld [vmem:[#allocation2] sm:$0xff]
  %v36 = vld [vmem:[#allocation2 + $0x8] sm:$0xff]
  %v37 = vld [vmem:[#allocation2 + $0x10] sm:$0xff]
  %v38 = vld [vmem:[#allocation2 + $0x18] sm:$0xff]
  %v39 = vld [vmem:[#allocation2 + $0x20] sm:$0xff]
  %v40 = vld [vmem:[#allocation2 + $0x28] sm:$0xff]
  %v41 = vld [vmem:[#allocation2 + $0x30] sm:$0xff]
  %v42 = vld [vmem:[#allocation2 + $0x38] sm:$0xff]
  %v43 = vld [vmem:[#allocation2 + $0x40] sm:$0xff]
  %v44 = vld [vmem:[#allocation2 + $0x48] sm:$0xff]
  %v45 = vld [vmem:[#allocation2 + $0x50] sm:$0xff]
  %v46 = vld [vmem:[#allocation2 + $0x58] sm:$0xff]
  %v47 = vld [vmem:[#allocation2 + $0x60] sm:$0xff]
  %v48 = vld [vmem:[#allocation2 + $0x68] sm:$0xff]
  %v49 = vld [vmem:[#allocation2 + $0x70] sm:$0xff]
  %v50 = vld [vmem:[#allocation2 + $0x78] sm:$0xff]
  %v51 = vld [vmem:[%s0] sm:$0xf]
  %v52 = vld [vmem:[%s0 + $0x4] sm:$0xf]
  %v53 = vld [vmem:[%s0 + $0x8] sm:$0xf]
  %v54 = vld [vmem:[%s0 + $0xc] sm:$0xf]
  %v55 = vld [vmem:[%s0 + $0x10] sm:$0xf]
  %v56 = vld [vmem:[%s0 + $0x14] sm:$0xf]
  %v57 = vld [vmem:[%s0 + $0x18] sm:$0xf]
  %v58 = vld [vmem:[%s0 + $0x1c] sm:$0xf]
  %v59 = vld [vmem:[%s0 + $0x20] sm:$0xf]
  %v60 = vld [vmem:[%s0 + $0x24] sm:$0xf]
  %v61 = vld [vmem:[%s0 + $0x28] sm:$0xf]
  %v62 = vld [vmem:[%s0 + $0x2c] sm:$0xf]
  %v63 = vld [vmem:[%s0 + $0x30] sm:$0xf]
  %v64 = vld [vmem:[%s0 + $0x34] sm:$0xf]
  %v65 = vld [vmem:[%s0 + $0x38] sm:$0xf]
  %v66 = vld [vmem:[%s0 + $0x3c] sm:$0xf]
  %v67 = vld [vmem:[%s1] sm:$0xf]
  %v68 = vld [vmem:[%s1 + $0x4] sm:$0xf]
  %v69 = vld [vmem:[%s1 + $0x8] sm:$0xf]
  %v70 = vld [vmem:[%s1 + $0xc] sm:$0x3]
  %v87 = vunpack.c.l.b16 %v51
  %v88 = vunpack.c.l.b16 %v52
  %v89 = vunpack.c.l.b16 %v53
  %v90 = vunpack.c.l.b16 %v54
  %v91 = vunpack.c.l.b16 %v55
  %v92 = vunpack.c.l.b16 %v56
  %v93 = vunpack.c.l.b16 %v57
  %v94 = vunpack.c.l.b16 %v58
  %v95 = vunpack.c.l.b16 %v59
  %v96 = vunpack.c.l.b16 %v60
  %v97 = vunpack.c.l.b16 %v61
  %v98 = vunpack.c.l.b16 %v62
  %v99 = vunpack.c.l.b16 %v63
  %v100 = vunpack.c.l.b16 %v64
  %v101 = vunpack.c.l.b16 %v65
  %v102 = vunpack.c.l.b16 %v66
  %v103 = vpack.c.b16 %v88, %v87
  %v104 = vpack.c.b16 %v90, %v89
  %v105 = vpack.c.b16 %v92, %v91
  %v106 = vpack.c.b16 %v94, %v93
  %v107 = vpack.c.b16 %v96, %v95
  %v108 = vpack.c.b16 %v98, %v97
  %v109 = vpack.c.b16 %v100, %v99
  %v110 = vpack.c.b16 %v102, %v101
  %v115 = vunpack.c.l.b16 %v67
  %v116 = vunpack.c.l.b16 %v68
  %v117 = vunpack.c.l.b16 %v69
  %v118 = vunpack.c.l.b16 %v70
  %v119 = vpack.c.b16 %v116, %v115
  %v120 = vpack.c.b16 %v118, %v117
  %vm122 = vcmask 220160
  %v124 = vsel %vm122, %v103, 0
  %v127 = vsel %vm122, %v104, 0
  %v130 = vsel %vm122, %v105, 0
  %v133 = vsel %vm122, %v106, 0
  %v136 = vsel %vm122, %v107, 0
  %v139 = vsel %vm122, %v108, 0
  %v142 = vsel %vm122, %v109, 0
  %v145 = vsel %vm122, %v110, 0
  %vm147 = vcmask 1044480
  %vm148 = vcmask 1045504
  %v149 = vsel %vm147, 4294967295, 65535
  %v150 = vsel %vm148, %v149, 0
  %v152 = vand.u32 %v120, %v150
  %154 = vmatpush.bf16.msra.mxu0 0
  %155 = vmatpush.bf16.msra.mxu0 0
  %156 = vmatpush.bf16.msra.mxu0 0
  %157 = vmatpush.bf16.msra.mxu0 0
  %158 = vmatpush.bf16.msra.mxu0 0
  %159 = vmatpush.bf16.msra.mxu0 0
  %160 = vmatpush.bf16.msra.mxu0 %v152
  %161 = vmatpush.bf16.msra.mxu0 %v119
  %162 = vmatmul.bf16.gmra.mxu0 %v124
  %v163 = vpop.f32.mrf.mxu0
  %v164 = vadd.f32 0.0, %v163
  %v165 = vpop.f32.mrf.mxu0
  %v166 = vadd.f32 0.0, %v165
  %167 = vmatmul.bf16.gmra.mxu0 %v127
  %v168 = vpop.f32.mrf.mxu0
  %v169 = vadd.f32 0.0, %v168
  %v170 = vpop.f32.mrf.mxu0
  %v171 = vadd.f32 0.0, %v170
  %172 = vmatmul.bf16.gmra.mxu0 %v130
  %v173 = vpop.f32.mrf.mxu0
  %v174 = vadd.f32 0.0, %v173
  %v175 = vpop.f32.mrf.mxu0
  %v176 = vadd.f32 0.0, %v175
  %177 = vmatmul.bf16.gmra.mxu0 %v133
  %v178 = vpop.f32.mrf.mxu0
  %v179 = vadd.f32 0.0, %v178
  %v180 = vpop.f32.mrf.mxu0
  %v181 = vadd.f32 0.0, %v180
  %182 = vmatmul.bf16.gmra.mxu0 %v136
  %v183 = vpop.f32.mrf.mxu0
  %v184 = vadd.f32 0.0, %v183
  %v185 = vpop.f32.mrf.mxu0
  %v186 = vadd.f32 0.0, %v185
  %187 = vmatmul.bf16.gmra.mxu0 %v139
  %v188 = vpop.f32.mrf.mxu0
  %v189 = vadd.f32 0.0, %v188
  %v190 = vpop.f32.mrf.mxu0
  %v191 = vadd.f32 0.0, %v190
  %192 = vmatmul.bf16.gmra.mxu0 %v142
  %v193 = vpop.f32.mrf.mxu0
  %v194 = vadd.f32 0.0, %v193
  %v195 = vpop.f32.mrf.mxu0
  %v196 = vadd.f32 0.0, %v195
  %197 = vmatmul.bf16.gmra.mxu0 %v145
  %v198 = vpop.f32.mrf.mxu0
  %v199 = vadd.f32 0.0, %v198
  %v200 = vpop.f32.mrf.mxu0
  %v201 = vadd.f32 0.0, %v200
  %202 = vdwg.mxu0
  %v203 = vadd.f32 %v35, %v164
  %v204 = vadd.f32 %v36, %v166
  %v205 = vadd.f32 %v37, %v169
  %v206 = vadd.f32 %v38, %v171
  %v207 = vadd.f32 %v39, %v174
  %v208 = vadd.f32 %v40, %v176
  %v209 = vadd.f32 %v41, %v179
  %v210 = vadd.f32 %v42, %v181
  %v211 = vadd.f32 %v43, %v184
  %v212 = vadd.f32 %v44, %v186
  %v213 = vadd.f32 %v45, %v189
  %v214 = vadd.f32 %v46, %v191
  %v215 = vadd.f32 %v47, %v194
  %v216 = vadd.f32 %v48, %v196
  %v217 = vadd.f32 %v49, %v199
  %v218 = vadd.f32 %v50, %v201
  %219 = vst [vmem:[#allocation2] sm:$0xff] %v203
  %220 = vst [vmem:[#allocation2 + $0x8] sm:$0xff] %v204
  %221 = vst [vmem:[#allocation2 + $0x10] sm:$0xff] %v205
  %222 = vst [vmem:[#allocation2 + $0x18] sm:$0xff] %v206
  %223 = vst [vmem:[#allocation2 + $0x20] sm:$0xff] %v207
  %224 = vst [vmem:[#allocation2 + $0x28] sm:$0xff] %v208
  %225 = vst [vmem:[#allocation2 + $0x30] sm:$0xff] %v209
  %226 = vst [vmem:[#allocation2 + $0x38] sm:$0xff] %v210
  %227 = vst [vmem:[#allocation2 + $0x40] sm:$0xff] %v211
  %228 = vst [vmem:[#allocation2 + $0x48] sm:$0xff] %v212
  %229 = vst [vmem:[#allocation2 + $0x50] sm:$0xff] %v213
  %230 = vst [vmem:[#allocation2 + $0x58] sm:$0xff] %v214
  %231 = vst [vmem:[#allocation2 + $0x60] sm:$0xff] %v215
  %232 = vst [vmem:[#allocation2 + $0x68] sm:$0xff] %v216
  %233 = vst [vmem:[#allocation2 + $0x70] sm:$0xff] %v217
  %234 = vst [vmem:[#allocation2 + $0x78] sm:$0xff] %v218
  // Predicated region
  $region18: #{_lambda_.13} parent=0 // pred_check
    %p235 = pneg %p15
  $region19: #{_lambda_.13} parent=0 // pred_check_branch
    %237 = sbr.rel (%p235) target = $region21
  $region20: #{_lambda_.13} parent=0 // pred_region
    %v238 = vld [vmem:[#allocation2] sm:$0xff]
    %v239 = vld [vmem:[#allocation2 + $0x8] sm:$0xff]
    %v240 = vld [vmem:[#allocation2 + $0x10] sm:$0xff]
    %v241 = vld [vmem:[#allocation2 + $0x18] sm:$0xff]
    %v242 = vld [vmem:[#allocation2 + $0x20] sm:$0xff]
    %v243 = vld [vmem:[#allocation2 + $0x28] sm:$0xff]
    %v244 = vld [vmem:[#allocation2 + $0x30] sm:$0xff]
    %v245 = vld [vmem:[#allocation2 + $0x38] sm:$0xff]
    %v246 = vld [vmem:[#allocation2 + $0x40] sm:$0xff]
    %v247 = vld [vmem:[#allocation2 + $0x48] sm:$0xff]
    %v248 = vld [vmem:[#allocation2 + $0x50] sm:$0xff]
    %v249 = vld [vmem:[#allocation2 + $0x58] sm:$0xff]
    %v250 = vld [vmem:[#allocation2 + $0x60] sm:$0xff]
    %v251 = vld [vmem:[#allocation2 + $0x68] sm:$0xff]
    %v252 = vld [vmem:[#allocation2 + $0x70] sm:$0xff]
    %v253 = vld [vmem:[#allocation2 + $0x78] sm:$0xff]
    %v254 = vld [vmem:[%s2] sm:$0x1]
    %v256 = vperm.slane %v254, 0
    %v258 = vadd.f32 %v238, %v256
    %v259 = vadd.f32 %v239, %v256
    %v260 = vadd.f32 %v240, %v256
    %v261 = vadd.f32 %v241, %v256
    %v262 = vadd.f32 %v242, %v256
    %v263 = vadd.f32 %v243, %v256
    %v264 = vadd.f32 %v244, %v256
    %v265 = vadd.f32 %v245, %v256
    %v266 = vadd.f32 %v246, %v256
    %v267 = vadd.f32 %v247, %v256
    %v268 = vadd.f32 %v248, %v256
    %v269 = vadd.f32 %v249, %v256
    %v270 = vadd.f32 %v250, %v256
    %v271 = vadd.f32 %v251, %v256
    %v272 = vadd.f32 %v252, %v256
    %v273 = vadd.f32 %v253, %v256
    %v274 = vxor.u32 %v258, 2147483648
    %v275 = vxor.u32 %v259, 2147483648
    %v276 = vxor.u32 %v260, 2147483648
    %v277 = vxor.u32 %v261, 2147483648
    %v278 = vxor.u32 %v262, 2147483648
    %v279 = vxor.u32 %v263, 2147483648
    %v280 = vxor.u32 %v264, 2147483648
    %v281 = vxor.u32 %v265, 2147483648
    %v282 = vxor.u32 %v266, 2147483648
    %v283 = vxor.u32 %v267, 2147483648
    %v284 = vxor.u32 %v268, 2147483648
    %v285 = vxor.u32 %v269, 2147483648
    %v286 = vxor.u32 %v270, 2147483648
    %v287 = vxor.u32 %v271, 2147483648
    %v288 = vxor.u32 %v272, 2147483648
    %v289 = vxor.u32 %v273, 2147483648
    %v290 = vmul.f32 %v274, 1.442695
    %v291 = vpow.pop %v290
    %v292 = vmul.f32 %v275, 1.442695
    %v293 = vpow.pop %v292
    %v294 = vmul.f32 %v276, 1.442695
    %v295 = vpow.pop %v294
    %v296 = vmul.f32 %v277, 1.442695
    %v297 = vpow.pop %v296
    %v298 = vmul.f32 %v278, 1.442695
    %v299 = vpow.pop %v298
    %v300 = vmul.f32 %v279, 1.442695
    %v301 = vpow.pop %v300
    %v302 = vmul.f32 %v280, 1.442695
    %v303 = vpow.pop %v302
    %v304 = vmul.f32 %v281, 1.442695
    %v305 = vpow.pop %v304
    %v306 = vmul.f32 %v282, 1.442695
    %v307 = vpow.pop %v306
    %v308 = vmul.f32 %v283, 1.442695
    %v309 = vpow.pop %v308
    %v310 = vmul.f32 %v284, 1.442695
    %v311 = vpow.pop %v310
    %v312 = vmul.f32 %v285, 1.442695
    %v313 = vpow.pop %v312
    %v314 = vmul.f32 %v286, 1.442695
    %v315 = vpow.pop %v314
    %v316 = vmul.f32 %v287, 1.442695
    %v317 = vpow.pop %v316
    %v318 = vmul.f32 %v288, 1.442695
    %v319 = vpow.pop %v318
    %v320 = vmul.f32 %v289, 1.442695
    %v321 = vpow.pop %v320
    %v322 = vadd.f32 %v291, 1.0
    %v323 = vadd.f32 %v293, 1.0
    %v324 = vadd.f32 %v295, 1.0
    %v325 = vadd.f32 %v297, 1.0
    %v326 = vadd.f32 %v299, 1.0
    %v327 = vadd.f32 %v301, 1.0
    %v328 = vadd.f32 %v303, 1.0
    %v329 = vadd.f32 %v305, 1.0
    %v330 = vadd.f32 %v307, 1.0
    %v331 = vadd.f32 %v309, 1.0
    %v332 = vadd.f32 %v311, 1.0
    %v333 = vadd.f32 %v313, 1.0
    %v334 = vadd.f32 %v315, 1.0
    %v335 = vadd.f32 %v317, 1.0
    %v336 = vadd.f32 %v319, 1.0
    %v337 = vadd.f32 %v321, 1.0
    %v338 = vrcp.pop %v322
    %v339 = vmul.f32 %v322, %v338
    %v340 = vsub.f32 1.0, %v339
    %v341 = vmul.f32 %v338, %v340
    %v342 = vadd.f32 %v338, %v341
    %vm343 = vweird.f32 %v322
    %vm344 = vweird.f32 %v338
    %vm345 = vmor %vm343, %vm344
    %v346 = vsel %vm345, %v338, %v342
    %v347 = vand.u32 2147483647, %v322
    %vm348 = vcmp.eq.f32.partialorder %v347, 8.507059e+37
    %v349 = vand.u32 %v322, 2147483648
    %v350 = vor.u32 1.1754944e-38, %v349
    %v351 = vsel %vm348, %v350, %v346
    %v352 = vmul.f32 1.0, %v351
    %v353 = vrcp.pop %v323
    %v354 = vmul.f32 %v323, %v353
    %v355 = vsub.f32 1.0, %v354
    %v356 = vmul.f32 %v353, %v355
    %v357 = vadd.f32 %v353, %v356
    %vm358 = vweird.f32 %v323
    %vm359 = vweird.f32 %v353
    %vm360 = vmor %vm358, %vm359
    %v361 = vsel %vm360, %v353, %v357
    %v362 = vand.u32 2147483647, %v323
    %vm363 = vcmp.eq.f32.partialorder %v362, 8.507059e+37
    %v364 = vand.u32 %v323, 2147483648
    %v365 = vor.u32 1.1754944e-38, %v364
    %v366 = vsel %vm363, %v365, %v361
    %v367 = vmul.f32 1.0, %v366
    %v368 = vrcp.pop %v324
    %v369 = vmul.f32 %v324, %v368
    %v370 = vsub.f32 1.0, %v369
    %v371 = vmul.f32 %v368, %v370
    %v372 = vadd.f32 %v368, %v371
    %vm373 = vweird.f32 %v324
    %vm374 = vweird.f32 %v368
    %vm375 = vmor %vm373, %vm374
    %v376 = vsel %vm375, %v368, %v372
    %v377 = vand.u32 2147483647, %v324
    %vm378 = vcmp.eq.f32.partialorder %v377, 8.507059e+37
    %v379 = vand.u32 %v324, 2147483648
    %v380 = vor.u32 1.1754944e-38, %v379
    %v381 = vsel %vm378, %v380, %v376
    %v382 = vmul.f32 1.0, %v381
    %v383 = vrcp.pop %v325
    %v384 = vmul.f32 %v325, %v383
    %v385 = vsub.f32 1.0, %v384
    %v386 = vmul.f32 %v383, %v385
    %v387 = vadd.f32 %v383, %v386
    %vm388 = vweird.f32 %v325
    %vm389 = vweird.f32 %v383
    %vm390 = vmor %vm388, %vm389
    %v391 = vsel %vm390, %v383, %v387
    %v392 = vand.u32 2147483647, %v325
    %vm393 = vcmp.eq.f32.partialorder %v392, 8.507059e+37
    %v394 = vand.u32 %v325, 2147483648
    %v395 = vor.u32 1.1754944e-38, %v394
    %v396 = vsel %vm393, %v395, %v391
    %v397 = vmul.f32 1.0, %v396
    %v398 = vrcp.pop %v326
    %v399 = vmul.f32 %v326, %v398
    %v400 = vsub.f32 1.0, %v399
    %v401 = vmul.f32 %v398, %v400
    %v402 = vadd.f32 %v398, %v401
    %vm403 = vweird.f32 %v326
    %vm404 = vweird.f32 %v398
    %vm405 = vmor %vm403, %vm404
    %v406 = vsel %vm405, %v398, %v402
    %v407 = vand.u32 2147483647, %v326
    %vm408 = vcmp.eq.f32.partialorder %v407, 8.507059e+37
    %v409 = vand.u32 %v326, 2147483648
    %v410 = vor.u32 1.1754944e-38, %v409
    %v411 = vsel %vm408, %v410, %v406
    %v412 = vmul.f32 1.0, %v411
    %v413 = vrcp.pop %v327
    %v414 = vmul.f32 %v327, %v413
    %v415 = vsub.f32 1.0, %v414
    %v416 = vmul.f32 %v413, %v415
    %v417 = vadd.f32 %v413, %v416
    %vm418 = vweird.f32 %v327
    %vm419 = vweird.f32 %v413
    %vm420 = vmor %vm418, %vm419
    %v421 = vsel %vm420, %v413, %v417
    %v422 = vand.u32 2147483647, %v327
    %vm423 = vcmp.eq.f32.partialorder %v422, 8.507059e+37
    %v424 = vand.u32 %v327, 2147483648
    %v425 = vor.u32 1.1754944e-38, %v424
    %v426 = vsel %vm423, %v425, %v421
    %v427 = vmul.f32 1.0, %v426
    %v428 = vrcp.pop %v328
    %v429 = vmul.f32 %v328, %v428
    %v430 = vsub.f32 1.0, %v429
    %v431 = vmul.f32 %v428, %v430
    %v432 = vadd.f32 %v428, %v431
    %vm433 = vweird.f32 %v328
    %vm434 = vweird.f32 %v428
    %vm435 = vmor %vm433, %vm434
    %v436 = vsel %vm435, %v428, %v432
    %v437 = vand.u32 2147483647, %v328
    %vm438 = vcmp.eq.f32.partialorder %v437, 8.507059e+37
    %v439 = vand.u32 %v328, 2147483648
    %v440 = vor.u32 1.1754944e-38, %v439
    %v441 = vsel %vm438, %v440, %v436
    %v442 = vmul.f32 1.0, %v441
    %v443 = vrcp.pop %v329
    %v444 = vmul.f32 %v329, %v443
    %v445 = vsub.f32 1.0, %v444
    %v446 = vmul.f32 %v443, %v445
    %v447 = vadd.f32 %v443, %v446
    %vm448 = vweird.f32 %v329
    %vm449 = vweird.f32 %v443
    %vm450 = vmor %vm448, %vm449
    %v451 = vsel %vm450, %v443, %v447
    %v452 = vand.u32 2147483647, %v329
    %vm453 = vcmp.eq.f32.partialorder %v452, 8.507059e+37
    %v454 = vand.u32 %v329, 2147483648
    %v455 = vor.u32 1.1754944e-38, %v454
    %v456 = vsel %vm453, %v455, %v451
    %v457 = vmul.f32 1.0, %v456
    %v458 = vrcp.pop %v330
    %v459 = vmul.f32 %v330, %v458
    %v460 = vsub.f32 1.0, %v459
    %v461 = vmul.f32 %v458, %v460
    %v462 = vadd.f32 %v458, %v461
    %vm463 = vweird.f32 %v330
    %vm464 = vweird.f32 %v458
    %vm465 = vmor %vm463, %vm464
    %v466 = vsel %vm465, %v458, %v462
    %v467 = vand.u32 2147483647, %v330
    %vm468 = vcmp.eq.f32.partialorder %v467, 8.507059e+37
    %v469 = vand.u32 %v330, 2147483648
    %v470 = vor.u32 1.1754944e-38, %v469
    %v471 = vsel %vm468, %v470, %v466
    %v472 = vmul.f32 1.0, %v471
    %v473 = vrcp.pop %v331
    %v474 = vmul.f32 %v331, %v473
    %v475 = vsub.f32 1.0, %v474
    %v476 = vmul.f32 %v473, %v475
    %v477 = vadd.f32 %v473, %v476
    %vm478 = vweird.f32 %v331
    %vm479 = vweird.f32 %v473
    %vm480 = vmor %vm478, %vm479
    %v481 = vsel %vm480, %v473, %v477
    %v482 = vand.u32 2147483647, %v331
    %vm483 = vcmp.eq.f32.partialorder %v482, 8.507059e+37
    %v484 = vand.u32 %v331, 2147483648
    %v485 = vor.u32 1.1754944e-38, %v484
    %v486 = vsel %vm483, %v485, %v481
    %v487 = vmul.f32 1.0, %v486
    %v488 = vrcp.pop %v332
    %v489 = vmul.f32 %v332, %v488
    %v490 = vsub.f32 1.0, %v489
    %v491 = vmul.f32 %v488, %v490
    %v492 = vadd.f32 %v488, %v491
    %vm493 = vweird.f32 %v332
    %vm494 = vweird.f32 %v488
    %vm495 = vmor %vm493, %vm494
    %v496 = vsel %vm495, %v488, %v492
    %v497 = vand.u32 2147483647, %v332
    %vm498 = vcmp.eq.f32.partialorder %v497, 8.507059e+37
    %v499 = vand.u32 %v332, 2147483648
    %v500 = vor.u32 1.1754944e-38, %v499
    %v501 = vsel %vm498, %v500, %v496
    %v502 = vmul.f32 1.0, %v501
    %v503 = vrcp.pop %v333
    %v504 = vmul.f32 %v333, %v503
    %v505 = vsub.f32 1.0, %v504
    %v506 = vmul.f32 %v503, %v505
    %v507 = vadd.f32 %v503, %v506
    %vm508 = vweird.f32 %v333
    %vm509 = vweird.f32 %v503
    %vm510 = vmor %vm508, %vm509
    %v511 = vsel %vm510, %v503, %v507
    %v512 = vand.u32 2147483647, %v333
    %vm513 = vcmp.eq.f32.partialorder %v512, 8.507059e+37
    %v514 = vand.u32 %v333, 2147483648
    %v515 = vor.u32 1.1754944e-38, %v514
    %v516 = vsel %vm513, %v515, %v511
    %v517 = vmul.f32 1.0, %v516
    %v518 = vrcp.pop %v334
    %v519 = vmul.f32 %v334, %v518
    %v520 = vsub.f32 1.0, %v519
    %v521 = vmul.f32 %v518, %v520
    %v522 = vadd.f32 %v518, %v521
    %vm523 = vweird.f32 %v334
    %vm524 = vweird.f32 %v518
    %vm525 = vmor %vm523, %vm524
    %v526 = vsel %vm525, %v518, %v522
    %v527 = vand.u32 2147483647, %v334
    %vm528 = vcmp.eq.f32.partialorder %v527, 8.507059e+37
    %v529 = vand.u32 %v334, 2147483648
    %v530 = vor.u32 1.1754944e-38, %v529
    %v531 = vsel %vm528, %v530, %v526
    %v532 = vmul.f32 1.0, %v531
    %v533 = vrcp.pop %v335
    %v534 = vmul.f32 %v335, %v533
    %v535 = vsub.f32 1.0, %v534
    %v536 = vmul.f32 %v533, %v535
    %v537 = vadd.f32 %v533, %v536
    %vm538 = vweird.f32 %v335
    %vm539 = vweird.f32 %v533
    %vm540 = vmor %vm538, %vm539
    %v541 = vsel %vm540, %v533, %v537
    %v542 = vand.u32 2147483647, %v335
    %vm543 = vcmp.eq.f32.partialorder %v542, 8.507059e+37
    %v544 = vand.u32 %v335, 2147483648
    %v545 = vor.u32 1.1754944e-38, %v544
    %v546 = vsel %vm543, %v545, %v541
    %v547 = vmul.f32 1.0, %v546
    %v548 = vrcp.pop %v336
    %v549 = vmul.f32 %v336, %v548
    %v550 = vsub.f32 1.0, %v549
    %v551 = vmul.f32 %v548, %v550
    %v552 = vadd.f32 %v548, %v551
    %vm553 = vweird.f32 %v336
    %vm554 = vweird.f32 %v548
    %vm555 = vmor %vm553, %vm554
    %v556 = vsel %vm555, %v548, %v552
    %v557 = vand.u32 2147483647, %v336
    %vm558 = vcmp.eq.f32.partialorder %v557, 8.507059e+37
    %v559 = vand.u32 %v336, 2147483648
    %v560 = vor.u32 1.1754944e-38, %v559
    %v561 = vsel %vm558, %v560, %v556
    %v562 = vmul.f32 1.0, %v561
    %v563 = vrcp.pop %v337
    %v564 = vmul.f32 %v337, %v563
    %v565 = vsub.f32 1.0, %v564
    %v566 = vmul.f32 %v563, %v565
    %v567 = vadd.f32 %v563, %v566
    %vm568 = vweird.f32 %v337
    %vm569 = vweird.f32 %v563
    %vm570 = vmor %vm568, %vm569
    %v571 = vsel %vm570, %v563, %v567
    %v572 = vand.u32 2147483647, %v337
    %vm573 = vcmp.eq.f32.partialorder %v572, 8.507059e+37
    %v574 = vand.u32 %v337, 2147483648
    %v575 = vor.u32 1.1754944e-38, %v574
    %v576 = vsel %vm573, %v575, %v571
    %v577 = vmul.f32 1.0, %v576
    %v578 = vmul.f32 %v258, %v352
    %v579 = vmul.f32 %v259, %v367
    %v580 = vmul.f32 %v260, %v382
    %v581 = vmul.f32 %v261, %v397
    %v582 = vmul.f32 %v262, %v412
    %v583 = vmul.f32 %v263, %v427
    %v584 = vmul.f32 %v264, %v442
    %v585 = vmul.f32 %v265, %v457
    %v586 = vmul.f32 %v266, %v472
    %v587 = vmul.f32 %v267, %v487
    %v588 = vmul.f32 %v268, %v502
    %v589 = vmul.f32 %v269, %v517
    %v590 = vmul.f32 %v270, %v532
    %v591 = vmul.f32 %v271, %v547
    %v592 = vmul.f32 %v272, %v562
    %v593 = vmul.f32 %v273, %v577
    %594 = vst [vmem:[%s3] sm:$0xff] %v578
    %595 = vst [vmem:[%s3 + $0x8] sm:$0xff] %v579
    %596 = vst [vmem:[%s3 + $0x10] sm:$0xff] %v580
    %597 = vst [vmem:[%s3 + $0x18] sm:$0xff] %v581
    %598 = vst [vmem:[%s3 + $0x20] sm:$0xff] %v582
    %599 = vst [vmem:[%s3 + $0x28] sm:$0xff] %v583
    %600 = vst [vmem:[%s3 + $0x30] sm:$0xff] %v584
    %601 = vst [vmem:[%s3 + $0x38] sm:$0xff] %v585
    %602 = vst [vmem:[%s3 + $0x40] sm:$0xff] %v586
    %603 = vst [vmem:[%s3 + $0x48] sm:$0xff] %v587
    %604 = vst [vmem:[%s3 + $0x50] sm:$0xff] %v588
    %605 = vst [vmem:[%s3 + $0x58] sm:$0xff] %v589
    %606 = vst [vmem:[%s3 + $0x60] sm:$0xff] %v590
    %607 = vst [vmem:[%s3 + $0x68] sm:$0xff] %v591
    %608 = vst [vmem:[%s3 + $0x70] sm:$0xff] %v592
    %609 = vst [vmem:[%s3 + $0x78] sm:$0xff] %v593
  $region21: #{_lambda_.13} parent=0 // pred_fallthru
    _
  // Predicated region
  $region22: #{_lambda_.13} parent=0 // pred_check
    _
  $region23: #{_lambda_.13} parent=0 // pred_check_branch
    %611 = sbr.rel (0) target = $region25
  $region24: #{_lambda_.13} parent=0 // pred_region
    _
  $region25: #{_lambda_.13} parent=0 // pred_fallthru
    _
  // Predicated region
  $region26: #{_lambda_.13} parent=0 // pred_check
    _
  $region27: #{_lambda_.13} parent=0 // pred_check_branch
    %613 = sbr.rel (0) target = $region29
  $region28: #{_lambda_.13} parent=0 // pred_region
    _
  $region29: #{_lambda_.13} parent=0 // pred_fallthru
    _

// kernel: _lambda_.14
$region0: #{_lambda_.14}
  #allocation0 [shape = 'u32[]', space=smem, size = 0x4, offset = 0x4, fixed_abs, tag = 'smem constant byte address 0x4 - core index']
  #allocation1 [shape = 'u32[72,128]{1,0:T(1,128)}', space=vmem, size = 0x9000, scoped, tag = 'internal scratch']
  #allocation2 [shape = 'f32[128,128]{1,0:T(8,128)}', space=vmem, size = 0x10000, scoped, tag = 'scratch operand']
  %s0 = inlined_call_operand.vmem [shape: bf16[128,512], index: 0, kind: input, shape index: {}]
  %s1 = inlined_call_operand.vmem [shape: bf16[512,128], index: 1, kind: input, shape index: {}]
  %s2 = inlined_call_operand.vmem [shape: f32[1,128], index: 2, kind: input, shape index: {}]
  %s3 = inlined_call_operand.vmem [shape: f32[128,128], index: 3, kind: input, shape index: {}]
  %s4 = inlined_call_operand.vmem [shape: f32[128,128], index: 4, kind: output, shape index: {}]
  %s5 = sld [smem:[#allocation0]]
  $region95: #{_lambda_.14} parent=0
    _
  %s7 = ssub.s32 1, %s5
  %s8 = scalar_select 0, %s7, %s5
  $region1: #{_lambda_.14} parent=0
    #allocation3 [shape = 'u8[131072]{0}', space=vmem, size = 0x20000, scoped, tag = 'input window, operand 0']
    loop: start=0, step=1, limit=4
    $region2: #{_lambda_.14} parent=1 // loop_pre_header
      _
    $region3: #{_lambda_.14} parent=1 // loop_header
      %s10 = sphi 0, %s14
      %p11 = scmp.ge.s32.totalorder %s10, 4
      %s17 = sphi 0, %s29
      %s18 = sphi 0, %s25
      %s19 = sphi 0, %s17
      %s20 = sphi 0, %s18
      %s21 = sphi 0, %s19
      %s22 = sphi 0, %s20
      %s34 = sphi 0, %s36
      %s37 = sphi 0, %s34
      %s38 = sphi 0, %s37
      %s54 = sphi 0, %s38
      %s60 = sphi 0, %s62
      %s63 = sphi 0, %s60
      %s64 = sphi 0, %s63
      %s80 = sphi 0, %s64
      %s84 = sphi 0, %s84
      %s86 = sphi 0, %s84
      %s87 = sphi 0, %s86
      %s101 = sphi 0, %s87
      %s107 = sphi 0, %s109
      %s110 = sphi 0, %s107
      %s111 = sphi 0, %s110
      %s127 = sphi 0, %s111
      %s133 = sphi 0, %s135
      %s136 = sphi 0, %s133
      %s137 = sphi 0, %s136
      %s153 = sphi 0, %s137
    $region4: #{_lambda_.14} parent=1 // loop_header_branch
      %13 = sbr.rel (%p11) target = $region8
    $region5: #{_lambda_.14} parent=1 // loop_body
      %s15 = ssub.s32 %s10, 1
      %s16 = ssub.s32 %s10, 2
      %s23 = sadd.s32 1, %s18
      %p24 = scmp.ge.s32.totalorder %s23, 2
      %s25 = scalar_select %p24, 0, %s23
      %s26 = sadd.s32 1, %s17
      %s27 = scalar_select %p24, %s26, %s17
      %p28 = scmp.ge.s32.totalorder %s27, 1
      %s29 = scalar_select %p28, 0, %s27
      %s30 = ssub.s32 %s17, %s29
      %s31 = ssub.s32 %s18, %s25
      %s32 = sor.u32 %s30, %s31
      %p33 = scmp.eq.s32.totalorder %s32, 0
      %s35 = sadd.s32 %s34, 1
      %s36 = scalar_select %p33, %s34, %s35
      %p39 = pneg %p33
      %p40 = scmp.eq.s32.totalorder %s10, 1
      %p41 = por %p39, %p40
      %p42 = scmp.ne.s32.totalorder %s34, %s37
      %p43 = scmp.eq.s32.totalorder %s10, 0
      %p44 = por %p42, %p43
      %p45 = scmp.ne.s32.totalorder %s34, %s37
      %p46 = scmp.eq.s32.totalorder %s15, 1
      %p47 = por %p45, %p46
      %p48 = scmp.ne.s32.totalorder %s37, %s38
      %p49 = scmp.eq.s32.totalorder %s15, 0
      %p50 = por %p48, %p49
      %p51 = scmp.ne.s32.totalorder %s37, %s38
      %p52 = scmp.eq.s32.totalorder %s16, 1
      %p53 = por %p51, %p52
      %p55 = scmp.ne.s32.totalorder %s38, %s54
      %p56 = scmp.eq.s32.totalorder %s16, 0
      %p57 = por %p55, %p56
      %s58 = ssub.s32 %s18, %s25
      %p59 = scmp.eq.s32.totalorder %s58, 0
      %s61 = sadd.s32 %s60, 1
      %s62 = scalar_select %p59, %s60, %s61
      %p65 = pneg %p59
      %p66 = scmp.eq.s32.totalorder %s10, 1
      %p67 = por %p65, %p66
      %p68 = scmp.ne.s32.totalorder %s60, %s63
      %p69 = scmp.eq.s32.totalorder %s10, 0
      %p70 = por %p68, %p69
      %p71 = scmp.ne.s32.totalorder %s60, %s63
      %p72 = scmp.eq.s32.totalorder %s15, 1
      %p73 = por %p71, %p72
      %p74 = scmp.ne.s32.totalorder %s63, %s64
      %p75 = scmp.eq.s32.totalorder %s15, 0
      %p76 = por %p74, %p75
      %p77 = scmp.ne.s32.totalorder %s63, %s64
      %p78 = scmp.eq.s32.totalorder %s16, 1
      %p79 = por %p77, %p78
      %p81 = scmp.ne.s32.totalorder %s64, %s80
      %p82 = scmp.eq.s32.totalorder %s16, 0
      %p83 = por %p81, %p82
      %s85 = sadd.s32 %s84, 1
      %p88 = scmp.eq.s32.totalorder %s10, 1
      %p89 = scmp.ne.s32.totalorder %s84, %s86
      %p90 = scmp.eq.s32.totalorder %s10, 0
      %p91 = por %p89, %p90
      %p92 = scmp.ne.s32.totalorder %s84, %s86
      %p93 = scmp.eq.s32.totalorder %s15, 1
      %p94 = por %p92, %p93
      %p95 = scmp.ne.s32.totalorder %s86, %s87
      %p96 = scmp.eq.s32.totalorder %s15, 0
      %p97 = por %p95, %p96
      %p98 = scmp.ne.s32.totalorder %s86, %s87
      %p99 = scmp.eq.s32.totalorder %s16, 1
      %p100 = por %p98, %p99
      %p102 = scmp.ne.s32.totalorder %s87, %s101
      %p103 = scmp.eq.s32.totalorder %s16, 0
      %p104 = por %p102, %p103
      %s105 = ssub.s32 %s17, %s29
      %p106 = scmp.eq.s32.totalorder %s105, 0
      %s108 = sadd.s32 %s107, 1
      %s109 = scalar_select %p106, %s107, %s108
      %p112 = pneg %p106
      %p113 = scmp.eq.s32.totalorder %s10, 1
      %p114 = por %p112, %p113
      %p115 = scmp.ne.s32.totalorder %s107, %s110
      %p116 = scmp.eq.s32.totalorder %s10, 0
      %p117 = por %p115, %p116
      %p118 = scmp.ne.s32.totalorder %s107, %s110
      %p119 = scmp.eq.s32.totalorder %s15, 1
      %p120 = por %p118, %p119
      %p121 = scmp.ne.s32.totalorder %s110, %s111
      %p122 = scmp.eq.s32.totalorder %s15, 0
      %p123 = por %p121, %p122
      %p124 = scmp.ne.s32.totalorder %s110, %s111
      %p125 = scmp.eq.s32.totalorder %s16, 1
      %p126 = por %p124, %p125
      %p128 = scmp.ne.s32.totalorder %s111, %s127
      %p129 = scmp.eq.s32.totalorder %s16, 0
      %p130 = por %p128, %p129
      %s131 = ssub.s32 %s17, %s29
      %p132 = scmp.eq.s32.totalorder %s131, 0
      %s134 = sadd.s32 %s133, 1
      %s135 = scalar_select %p132, %s133, %s134
      %p138 = pneg %p132
      %p139 = scmp.eq.s32.totalorder %s10, 1
      %p140 = por %p138, %p139
      %p141 = scmp.ne.s32.totalorder %s133, %s136
      %p142 = scmp.eq.s32.totalorder %s10, 0
      %p143 = por %p141, %p142
      %p144 = scmp.ne.s32.totalorder %s133, %s136
      %p145 = scmp.eq.s32.totalorder %s15, 1
      %p146 = por %p144, %p145
      %p147 = scmp.ne.s32.totalorder %s136, %s137
      %p148 = scmp.eq.s32.totalorder %s15, 0
      %p149 = por %p147, %p148
      %p150 = scmp.ne.s32.totalorder %s136, %s137
      %p151 = scmp.eq.s32.totalorder %s16, 1
      %p152 = por %p150, %p151
      %p154 = scmp.ne.s32.totalorder %s137, %s153
      %p155 = scmp.eq.s32.totalorder %s16, 0
      %p156 = por %p154, %p155
      %p157 = scmp.le.s32.totalorder 1, %s10
      %p158 = scmp.lt.s32.totalorder %s10, 3
      %p159 = pnand %p157, %p158
      %p160 = pneg %p159
      // Predicated region
      $region9: #{_lambda_.14} parent=5 // pred_check
        _
      $region10: #{_lambda_.14} parent=5 // pred_check_branch
        %162 = sbr.rel (%p159) target = $region12
      $region11: #{_lambda_.14} parent=5 // pred_region
        %s163 = ssub.s32 %s10, 1
        // Predicated region
        $region13: #{_lambda_.14} parent=11 // pred_check
          %p164 = pneg %p97
        $region14: #{_lambda_.14} parent=11 // pred_check_branch
          %166 = sbr.rel (%p164) target = $region16
        $region15: #{_lambda_.14} parent=11 // pred_region
          _
        $region16: #{_lambda_.14} parent=11 // pred_fallthru
          _
        // Predicated region
        $region17: #{_lambda_.14} parent=11 // pred_check
          %p167 = pneg %p123
        $region18: #{_lambda_.14} parent=11 // pred_check_branch
          %169 = sbr.rel (%p167) target = $region20
        $region19: #{_lambda_.14} parent=11 // pred_region
          %s170 = smul.u32 16, %s19
          %p171 = scmp.lt.s32.totalorder %s170, 15
          %s172 = scalar_select %p171, %s170, 15
          %s173 = smul.addr %s172, 8
          %s174 = scalar_lea.vmem %s3, %s173
          %s175 = smul.u32 16, %s19
        $region20: #{_lambda_.14} parent=11 // pred_fallthru
          _
      $region12: #{_lambda_.14} parent=5 // pred_fallthru
        _
      %p176 = scmp.lt.s32.totalorder %s10, 2
      // Predicated region
      $region21: #{_lambda_.14} parent=5 // pred_check
        %p177 = pneg %p176
      $region22: #{_lambda_.14} parent=5 // pred_check_branch
        %179 = sbr.rel (%p177) target = $region24
      $region23: #{_lambda_.14} parent=5 // pred_region
        // Predicated region
        $region25: #{_lambda_.14} parent=23 // pred_check
          %p180 = pneg %p44
        $region26: #{_lambda_.14} parent=23 // pred_check_branch
          %182 = sbr.rel (%p180) target = $region28
        $region27: #{_lambda_.14} parent=23 // pred_region
          %s183 = sand.u32 %s34, 1
          %s184 = sand.u32 %s34, 1
          %s185 = smul.addr %s184, 128
          %s186 = scalar_lea.vmem [#allocation3], %s185
          %s187 = smul.u32 16, %s17
          %s188 = smul.u32 2, %s18
          %s189 = smul.addr %s187, 4
          %s190 = sadd.s32 %s188, %s189
          %s191 = smul.addr %s190, 4
          %s192 = scalar_lea.vmem %s0, %s191
          // Predicated region
          $region29: #{_lambda_.14} parent=27 // pred_check
            _
          $region30: #{_lambda_.14} parent=27 // pred_check_branch
            %194 = sbr.rel (0) target = $region32
          $region31: #{_lambda_.14} parent=27 // pred_region
            // Predicated region
            $region33: #{_lambda_.14} parent=31 // pred_check
              _
            $region34: #{_lambda_.14} parent=31 // pred_check_branch
              %196 = sbr.rel (0) target = $region36
            $region35: #{_lambda_.14} parent=31 // pred_region
              // Predicated region
              $region48: #{_lambda_.14} parent=35 // pred_check
                _
              $region49: #{_lambda_.14} parent=35 // pred_check_branch
                %242 = sbr.rel (0) target = $region51
              $region50: #{_lambda_.14} parent=35 // pred_region
                loop: start=0, step=1, limit=1
                $region52: #{_lambda_.14} parent=50 // loop_pre_header
                  _
                $region53: #{_lambda_.14} parent=50 // loop_header
                  %s244 = sphi 0, %s248
                  %p245 = scmp.ge.s32.totalorder %s244, 1
                  %s249 = sphi %s192, %s192
                  %s250 = sphi %s186, %s186
                $region54: #{_lambda_.14} parent=50 // loop_header_branch
                  %247 = sbr.rel (%p245) target = $region58
                $region55: #{_lambda_.14} parent=50 // loop_body
                  %v251 = vld [vmem:[%s249] sm:$0xff]
                  %252 = vst [vmem:[%s250] sm:$0xff] %v251
                  %v253 = vld [vmem:[%s249 + $0x10] sm:$0xff]
                  %254 = vst [vmem:[%s250 + $0x8] sm:$0xff] %v253
                  %v255 = vld [vmem:[%s249 + $0x20] sm:$0xff]
                  %256 = vst [vmem:[%s250 + $0x10] sm:$0xff] %v255
                  %v257 = vld [vmem:[%s249 + $0x30] sm:$0xff]
                  %258 = vst [vmem:[%s250 + $0x18] sm:$0xff] %v257
                  %v259 = vld [vmem:[%s249 + $0x40] sm:$0xff]
                  %260 = vst [vmem:[%s250 + $0x20] sm:$0xff] %v259
                  %v261 = vld [vmem:[%s249 + $0x50] sm:$0xff]
                  %262 = vst [vmem:[%s250 + $0x28] sm:$0xff] %v261
                  %v263 = vld [vmem:[%s249 + $0x60] sm:$0xff]
                  %264 = vst [vmem:[%s250 + $0x30] sm:$0xff] %v263
                  %v265 = vld [vmem:[%s249 + $0x70] sm:$0xff]
                  %266 = vst [vmem:[%s250 + $0x38] sm:$0xff] %v265
                  %v267 = vld [vmem:[%s249 + $0x80] sm:$0xff]
                  %268 = vst [vmem:[%s250 + $0x40] sm:$0xff] %v267
                  %v269 = vld [vmem:[%s249 + $0x90] sm:$0xff]
                  %270 = vst [vmem:[%s250 + $0x48] sm:$0xff] %v269
                  %v271 = vld [vmem:[%s249 + $0xa0] sm:$0xff]
                  %272 = vst [vmem:[%s250 + $0x50] sm:$0xff] %v271
                  %v273 = vld [vmem:[%s249 + $0xb0] sm:$0xff]
                  %274 = vst [vmem:[%s250 + $0x58] sm:$0xff] %v273
                  %v275 = vld [vmem:[%s249 + $0xc0] sm:$0xff]
                  %276 = vst [vmem:[%s250 + $0x60] sm:$0xff] %v275
                  %v277 = vld [vmem:[%s249 + $0xd0] sm:$0xff]
                  %278 = vst [vmem:[%s250 + $0x68] sm:$0xff] %v277
                  %v279 = vld [vmem:[%s249 + $0xe0] sm:$0xff]
                  %280 = vst [vmem:[%s250 + $0x70] sm:$0xff] %v279
                  %v281 = vld [vmem:[%s249 + $0xf0] sm:$0xff]
                  %282 = vst [vmem:[%s250 + $0x78] sm:$0xff] %v281
                $region56: #{_lambda_.14} parent=50 // loop_footer
                  %s248 = sadd.s32 1, %s244
                $region57: #{_lambda_.14} parent=50 // loop_footer_branch
                  %243 = sbr.rel target = $region53
                $region58: #{_lambda_.14} parent=50 // loop_exit
                  _
              $region51: #{_lambda_.14} parent=35 // pred_fallthru
                _
              // Predicated region
              $region59: #{_lambda_.14} parent=35 // pred_check
                _
              $region60: #{_lambda_.14} parent=35 // pred_check_branch
                %284 = sbr.rel target = $region62
              $region61: #{_lambda_.14} parent=35 // pred_region
                _
              $region62: #{_lambda_.14} parent=35 // pred_fallthru
                _
            $region36: #{_lambda_.14} parent=31 // pred_fallthru
              _
            // Predicated region
            $region37: #{_lambda_.14} parent=31 // pred_check
              _
            $region38: #{_lambda_.14} parent=31 // pred_check_branch
              %198 = sbr.rel target = $region40
            $region39: #{_lambda_.14} parent=31 // pred_region
              %s200 = ssub.s32 256, 1
              loop: start=0, step=1, limit=1
              $region41: #{_lambda_.14} parent=39 // loop_pre_header
                _
              $region42: #{_lambda_.14} parent=39 // loop_header
                %s202 = sphi 0, %s206
                %p203 = scmp.ge.s32.totalorder %s202, 1
                %s207 = sphi %s192, %s192
                %s208 = sphi %s186, %s186
              $region43: #{_lambda_.14} parent=39 // loop_header_branch
                %205 = sbr.rel (%p203) target = $region47
              $region44: #{_lambda_.14} parent=39 // loop_body
                %v209 = vld [vmem:[%s207] sm:%s200]
                %210 = vst [vmem:[%s208] sm:%s200] %v209
                %v211 = vld [vmem:[%s207 + $0x10] sm:%s200]
                %212 = vst [vmem:[%s208 + $0x8] sm:%s200] %v211
                %v213 = vld [vmem:[%s207 + $0x20] sm:%s200]
                %214 = vst [vmem:[%s208 + $0x10] sm:%s200] %v213
                %v215 = vld [vmem:[%s207 + $0x30] sm:%s200]
                %216 = vst [vmem:[%s208 + $0x18] sm:%s200] %v215
                %v217 = vld [vmem:[%s207 + $0x40] sm:%s200]
                %218 = vst [vmem:[%s208 + $0x20] sm:%s200] %v217
                %v219 = vld [vmem:[%s207 + $0x50] sm:%s200]
                %220 = vst [vmem:[%s208 + $0x28] sm:%s200] %v219
                %v221 = vld [vmem:[%s207 + $0x60] sm:%s200]
                %222 = vst [vmem:[%s208 + $0x30] sm:%s200] %v221
                %v223 = vld [vmem:[%s207 + $0x70] sm:%s200]
                %224 = vst [vmem:[%s208 + $0x38] sm:%s200] %v223
                %v225 = vld [vmem:[%s207 + $0x80] sm:%s200]
                %226 = vst [vmem:[%s208 + $0x40] sm:%s200] %v225
                %v227 = vld [vmem:[%s207 + $0x90] sm:%s200]
                %228 = vst [vmem:[%s208 + $0x48] sm:%s200] %v227
                %v229 = vld [vmem:[%s207 + $0xa0] sm:%s200]
                %230 = vst [vmem:[%s208 + $0x50] sm:%s200] %v229
                %v231 = vld [vmem:[%s207 + $0xb0] sm:%s200]
                %232 = vst [vmem:[%s208 + $0x58] sm:%s200] %v231
                %v233 = vld [vmem:[%s207 + $0xc0] sm:%s200]
                %234 = vst [vmem:[%s208 + $0x60] sm:%s200] %v233
                %v235 = vld [vmem:[%s207 + $0xd0] sm:%s200]
                %236 = vst [vmem:[%s208 + $0x68] sm:%s200] %v235
                %v237 = vld [vmem:[%s207 + $0xe0] sm:%s200]
                %238 = vst [vmem:[%s208 + $0x70] sm:%s200] %v237
                %v239 = vld [vmem:[%s207 + $0xf0] sm:%s200]
                %240 = vst [vmem:[%s208 + $0x78] sm:%s200] %v239
              $region45: #{_lambda_.14} parent=39 // loop_footer
                %s206 = sadd.s32 1, %s202
              $region46: #{_lambda_.14} parent=39 // loop_footer_branch
                %201 = sbr.rel target = $region42
              $region47: #{_lambda_.14} parent=39 // loop_exit
                _
            $region40: #{_lambda_.14} parent=31 // pred_fallthru
              _
          $region32: #{_lambda_.14} parent=27 // pred_fallthru
            _
          %285 = vnop
        $region28: #{_lambda_.14} parent=23 // pred_fallthru
          _
        // Predicated region
        $region63: #{_lambda_.14} parent=23 // pred_check
          %p286 = pneg %p70
        $region64: #{_lambda_.14} parent=23 // pred_check_branch
          %288 = sbr.rel (%p286) target = $region66
        $region65: #{_lambda_.14} parent=23 // pred_region
          %s289 = smul.u32 32, %s18
          %p290 = scmp.lt.s32.totalorder %s289, 63
          %s291 = scalar_select %p290, %s289, 63
          %s292 = smul.addr %s291, 4
          %s293 = scalar_lea.vmem %s1, %s292
          %s294 = smul.u32 32, %s18
        $region66: #{_lambda_.14} parent=23 // pred_fallthru
          _
      $region24: #{_lambda_.14} parent=5 // pred_fallthru
        _
      %p295 = scmp.le.s32.totalorder 1, %s10
      %p296 = scmp.lt.s32.totalorder %s10, 3
      %p297 = pnand %p295, %p296
      %p298 = pneg %p297
      // Predicated region
      $region67: #{_lambda_.14} parent=5 // pred_check
        _
      $region68: #{_lambda_.14} parent=5 // pred_check_branch
        %300 = sbr.rel (%p297) target = $region70
      $region69: #{_lambda_.14} parent=5 // pred_region
        %s301 = ssub.s32 %s10, 1
        %s302 = sand.u32 %s37, 1
        %s303 = sand.u32 %s37, 1
        %s304 = smul.addr %s303, 128
        %s305 = scalar_lea.vmem [#allocation3], %s304
        // Predicated region
        $region71: #{_lambda_.14} parent=69 // pred_check
          %p306 = pneg %p50
        $region72: #{_lambda_.14} parent=69 // pred_check_branch
          %308 = sbr.rel (%p306) target = $region74
        $region73: #{_lambda_.14} parent=69 // pred_region
          _
        $region74: #{_lambda_.14} parent=69 // pred_fallthru
          _
        %s309 = sand.u32 %s37, 1
        %s310 = sand.u32 %s37, 1
        %s311 = smul.addr %s310, 128
        %s312 = scalar_lea.vmem [#allocation3], %s311
        %p313 = pneg %p50
        %p314 = pneg %p47
        %s315 = smul.u32 32, %s20
        %p316 = scmp.lt.s32.totalorder %s315, 63
        %s317 = scalar_select %p316, %s315, 63
        %s318 = smul.addr %s317, 4
        %s319 = scalar_lea.vmem %s1, %s318
        %p320 = pneg %p76
        %p321 = pneg %p73
        %p322 = pneg %p97
        %p323 = pneg %p94
        %s324 = smul.u32 16, %s19
        %p325 = scmp.lt.s32.totalorder %s324, 15
        %s326 = scalar_select %p325, %s324, 15
        %s327 = smul.addr %s326, 8
        %s328 = scalar_lea.vmem %s3, %s327
        %p329 = pneg %p123
        %p330 = pneg %p120
        %p331 = pneg %p149
        %p332 = pneg %p146
        %s333 = smul.u32 16, %s19
        %p334 = scmp.lt.s32.totalorder %s333, 15
        %s335 = scalar_select %p334, %s333, 15
        %s336 = smul.addr %s335, 8
        %s337 = scalar_lea.vmem %s4, %s336
        %s338 = smul.u32 16, %s19
        %s339 = smul.u32 2, %s20
        %s340 = smul.u32 32, %s20
        %p341 = scmp.lt.s32.totalorder %s340, 63
        %s342 = scalar_select %p341, %s340, 63
        %s343 = smul.addr %s342, 4
        %s344 = scalar_lea.vmem %s1, %s343
        %s345 = smul.u32 32, %s20
        %s346 = smul.u32 16, %s19
        %p347 = scmp.lt.s32.totalorder %s346, 15
        %s348 = scalar_select %p347, %s346, 15
        %s349 = smul.addr %s348, 8
        %s350 = scalar_lea.vmem %s3, %s349
        %s351 = smul.u32 16, %s19
        %s352 = smul.u32 16, %s19
        %p353 = scmp.lt.s32.totalorder %s352, 15
        %s354 = scalar_select %p353, %s352, 15
        %s355 = smul.addr %s354, 8
        %s356 = scalar_lea.vmem %s4, %s355
        %s357 = smul.u32 16, %s19
        %p358 = scmp.eq.s32.totalorder %s20, 0
        // Predicated region
        $region75: #{_lambda_.14} parent=69 // pred_check
          %p359 = pneg %p358
        $region76: #{_lambda_.14} parent=69 // pred_check_branch
          %361 = sbr.rel (%p359) target = $region78
        $region77: #{_lambda_.14} parent=69 // pred_region
          %362 = vst [vmem:[#allocation2] sm:$0xff] 0.0
          %363 = vst [vmem:[#allocation2 + $0x8] sm:$0xff] 0.0
          %364 = vst [vmem:[#allocation2 + $0x10] sm:$0xff] 0.0
          %365 = vst [vmem:[#allocation2 + $0x18] sm:$0xff] 0.0
          %366 = vst [vmem:[#allocation2 + $0x20] sm:$0xff] 0.0
          %367 = vst [vmem:[#allocation2 + $0x28] sm:$0xff] 0.0
          %368 = vst [vmem:[#allocation2 + $0x30] sm:$0xff] 0.0
          %369 = vst [vmem:[#allocation2 + $0x38] sm:$0xff] 0.0
          %370 = vst [vmem:[#allocation2 + $0x40] sm:$0xff] 0.0
          %371 = vst [vmem:[#allocation2 + $0x48] sm:$0xff] 0.0
          %372 = vst [vmem:[#allocation2 + $0x50] sm:$0xff] 0.0
          %373 = vst [vmem:[#allocation2 + $0x58] sm:$0xff] 0.0
          %374 = vst [vmem:[#allocation2 + $0x60] sm:$0xff] 0.0
          %375 = vst [vmem:[#allocation2 + $0x68] sm:$0xff] 0.0
          %376 = vst [vmem:[#allocation2 + $0x70] sm:$0xff] 0.0
          %377 = vst [vmem:[#allocation2 + $0x78] sm:$0xff] 0.0
        $region78: #{_lambda_.14} parent=69 // pred_fallthru
          _
        %v378 = vld [vmem:[#allocation2] sm:$0xff]
        %v379 = vld [vmem:[#allocation2 + $0x8] sm:$0xff]
        %v380 = vld [vmem:[#allocation2 + $0x10] sm:$0xff]
        %v381 = vld [vmem:[#allocation2 + $0x18] sm:$0xff]
        %v382 = vld [vmem:[#allocation2 + $0x20] sm:$0xff]
        %v383 = vld [vmem:[#allocation2 + $0x28] sm:$0xff]
        %v384 = vld [vmem:[#allocation2 + $0x30] sm:$0xff]
        %v385 = vld [vmem:[#allocation2 + $0x38] sm:$0xff]
        %v386 = vld [vmem:[#allocation2 + $0x40] sm:$0xff]
        %v387 = vld [vmem:[#allocation2 + $0x48] sm:$0xff]
        %v388 = vld [vmem:[#allocation2 + $0x50] sm:$0xff]
        %v389 = vld [vmem:[#allocation2 + $0x58] sm:$0xff]
        %v390 = vld [vmem:[#allocation2 + $0x60] sm:$0xff]
        %v391 = vld [vmem:[#allocation2 + $0x68] sm:$0xff]
        %v392 = vld [vmem:[#allocation2 + $0x70] sm:$0xff]
        %v393 = vld [vmem:[#allocation2 + $0x78] sm:$0xff]
        %v394 = vld [vmem:[%s305] sm:$0xff]
        %v395 = vld [vmem:[%s305 + $0x8] sm:$0xff]
        %v396 = vld [vmem:[%s305 + $0x10] sm:$0xff]
        %v397 = vld [vmem:[%s305 + $0x18] sm:$0xff]
        %v398 = vld [vmem:[%s305 + $0x20] sm:$0xff]
        %v399 = vld [vmem:[%s305 + $0x28] sm:$0xff]
        %v400 = vld [vmem:[%s305 + $0x30] sm:$0xff]
        %v401 = vld [vmem:[%s305 + $0x38] sm:$0xff]
        %v402 = vld [vmem:[%s305 + $0x40] sm:$0xff]
        %v403 = vld [vmem:[%s305 + $0x48] sm:$0xff]
        %v404 = vld [vmem:[%s305 + $0x50] sm:$0xff]
        %v405 = vld [vmem:[%s305 + $0x58] sm:$0xff]
        %v406 = vld [vmem:[%s305 + $0x60] sm:$0xff]
        %v407 = vld [vmem:[%s305 + $0x68] sm:$0xff]
        %v408 = vld [vmem:[%s305 + $0x70] sm:$0xff]
        %v409 = vld [vmem:[%s305 + $0x78] sm:$0xff]
        %v410 = vld [vmem:[%s344] sm:$0xf]
        %v411 = vld [vmem:[%s344 + $0x4] sm:$0xf]
        %v412 = vld [vmem:[%s344 + $0x8] sm:$0xf]
        %v413 = vld [vmem:[%s344 + $0xc] sm:$0xf]
        %v414 = vld [vmem:[%s344 + $0x10] sm:$0xf]
        %v415 = vld [vmem:[%s344 + $0x14] sm:$0xf]
        %v416 = vld [vmem:[%s344 + $0x18] sm:$0xf]
        %v417 = vld [vmem:[%s344 + $0x1c] sm:$0xf]
        %v418 = vld [vmem:[%s344 + $0x20] sm:$0xf]
        %v419 = vld [vmem:[%s344 + $0x24] sm:$0xf]
        %v420 = vld [vmem:[%s344 + $0x28] sm:$0xf]
        %v421 = vld [vmem:[%s344 + $0x2c] sm:$0xf]
        %v422 = vld [vmem:[%s344 + $0x30] sm:$0xf]
        %v423 = vld [vmem:[%s344 + $0x34] sm:$0xf]
        %v424 = vld [vmem:[%s344 + $0x38] sm:$0xf]
        %v425 = vld [vmem:[%s344 + $0x3c] sm:$0xf]
        %v426 = vld [vmem:[%s344 + $0x40] sm:$0xf]
        %v427 = vld [vmem:[%s344 + $0x44] sm:$0xf]
        %v428 = vld [vmem:[%s344 + $0x48] sm:$0xf]
        %v429 = vld [vmem:[%s344 + $0x4c] sm:$0xf]
        %v430 = vld [vmem:[%s344 + $0x50] sm:$0xf]
        %v431 = vld [vmem:[%s344 + $0x54] sm:$0xf]
        %v432 = vld [vmem:[%s344 + $0x58] sm:$0xf]
        %v433 = vld [vmem:[%s344 + $0x5c] sm:$0xf]
        %v434 = vld [vmem:[%s344 + $0x60] sm:$0xf]
        %v435 = vld [vmem:[%s344 + $0x64] sm:$0xf]
        %v436 = vld [vmem:[%s344 + $0x68] sm:$0xf]
        %v437 = vld [vmem:[%s344 + $0x6c] sm:$0xf]
        %v438 = vld [vmem:[%s344 + $0x70] sm:$0xf]
        %v439 = vld [vmem:[%s344 + $0x74] sm:$0xf]
        %v440 = vld [vmem:[%s344 + $0x78] sm:$0xf]
        %v441 = vld [vmem:[%s344 + $0x7c] sm:$0xf]
        %v458 = vunpack.c.l.b16 %v394
        %v459 = vunpack.c.h.b16 %v394
        %v460 = vunpack.c.l.b16 %v395
        %v461 = vunpack.c.h.b16 %v395
        %v462 = vunpack.c.l.b16 %v396
        %v463 = vunpack.c.h.b16 %v396
        %v464 = vunpack.c.l.b16 %v397
        %v465 = vunpack.c.h.b16 %v397
        %v466 = vunpack.c.l.b16 %v398
        %v467 = vunpack.c.h.b16 %v398
        %v468 = vunpack.c.l.b16 %v399
        %v469 = vunpack.c.h.b16 %v399
        %v470 = vunpack.c.l.b16 %v400
        %v471 = vunpack.c.h.b16 %v400
        %v472 = vunpack.c.l.b16 %v401
        %v473 = vunpack.c.h.b16 %v401
        %v474 = vunpack.c.l.b16 %v402
        %v475 = vunpack.c.h.b16 %v402
        %v476 = vunpack.c.l.b16 %v403
        %v477 = vunpack.c.h.b16 %v403
        %v478 = vunpack.c.l.b16 %v404
        %v479 = vunpack.c.h.b16 %v404
        %v480 = vunpack.c.l.b16 %v405
        %v481 = vunpack.c.h.b16 %v405
        %v482 = vunpack.c.l.b16 %v406
        %v483 = vunpack.c.h.b16 %v406
        %v484 = vunpack.c.l.b16 %v407
        %v485 = vunpack.c.h.b16 %v407
        %v486 = vunpack.c.l.b16 %v408
        %v487 = vunpack.c.h.b16 %v408
        %v488 = vunpack.c.l.b16 %v409
        %v489 = vunpack.c.h.b16 %v409
        %v490 = vpack.c.b16 %v460, %v458
        %v491 = vpack.c.b16 %v461, %v459
        %v492 = vpack.c.b16 %v464, %v462
        %v493 = vpack.c.b16 %v465, %v463
        %v494 = vpack.c.b16 %v468, %v466
        %v495 = vpack.c.b16 %v469, %v467
        %v496 = vpack.c.b16 %v472, %v470
        %v497 = vpack.c.b16 %v473, %v471
        %v498 = vpack.c.b16 %v476, %v474
        %v499 = vpack.c.b16 %v477, %v475
        %v500 = vpack.c.b16 %v480, %v478
        %v501 = vpack.c.b16 %v481, %v479
        %v502 = vpack.c.b16 %v484, %v482
        %v503 = vpack.c.b16 %v485, %v483
        %v504 = vpack.c.b16 %v488, %v486
        %v505 = vpack.c.b16 %v489, %v487
        %v554 = vunpack.c.l.b16 %v410
        %v555 = vunpack.c.l.b16 %v411
        %v556 = vunpack.c.l.b16 %v412
        %v557 = vunpack.c.l.b16 %v413
        %v558 = vunpack.c.l.b16 %v414
        %v559 = vunpack.c.l.b16 %v415
        %v560 = vunpack.c.l.b16 %v416
        %v561 = vunpack.c.l.b16 %v417
        %v562 = vunpack.c.l.b16 %v418
        %v563 = vunpack.c.l.b16 %v419
        %v564 = vunpack.c.l.b16 %v420
        %v565 = vunpack.c.l.b16 %v421
        %v566 = vunpack.c.l.b16 %v422
        %v567 = vunpack.c.l.b16 %v423
        %v568 = vunpack.c.l.b16 %v424
        %v569 = vunpack.c.l.b16 %v425
        %v570 = vunpack.c.l.b16 %v426
        %v571 = vunpack.c.l.b16 %v427
        %v572 = vunpack.c.l.b16 %v428
        %v573 = vunpack.c.l.b16 %v429
        %v574 = vunpack.c.l.b16 %v430
        %v575 = vunpack.c.l.b16 %v431
        %v576 = vunpack.c.l.b16 %v432
        %v577 = vunpack.c.l.b16 %v433
        %v578 = vunpack.c.l.b16 %v434
        %v579 = vunpack.c.l.b16 %v435
        %v580 = vunpack.c.l.b16 %v436
        %v581 = vunpack.c.l.b16 %v437
        %v582 = vunpack.c.l.b16 %v438
        %v583 = vunpack.c.l.b16 %v439
        %v584 = vunpack.c.l.b16 %v440
        %v585 = vunpack.c.l.b16 %v441
        %v586 = vpack.c.b16 %v555, %v554
        %v587 = vpack.c.b16 %v557, %v556
        %v588 = vpack.c.b16 %v559, %v558
        %v589 = vpack.c.b16 %v561, %v560
        %v590 = vpack.c.b16 %v563, %v562
        %v591 = vpack.c.b16 %v565, %v564
        %v592 = vpack.c.b16 %v567, %v566
        %v593 = vpack.c.b16 %v569, %v568
        %v594 = vpack.c.b16 %v571, %v570
        %v595 = vpack.c.b16 %v573, %v572
        %v596 = vpack.c.b16 %v575, %v574
        %v597 = vpack.c.b16 %v577, %v576
        %v598 = vpack.c.b16 %v579, %v578
        %v599 = vpack.c.b16 %v581, %v580
        %v600 = vpack.c.b16 %v583, %v582
        %v601 = vpack.c.b16 %v585, %v584
        %618 = vmatpush.bf16.msra.mxu0 %v593
        %619 = vmatpush.bf16.msra.mxu0 %v592
        %620 = vmatpush.bf16.msra.mxu0 %v591
        %621 = vmatpush.bf16.msra.mxu0 %v590
        %622 = vmatpush.bf16.msra.mxu0 %v589
        %623 = vmatpush.bf16.msra.mxu0 %v588
        %624 = vmatpush.bf16.msra.mxu0 %v587
        %625 = vmatpush.bf16.msra.mxu0 %v586
        %626 = vmatmul.bf16.gmra.mxu0 %v490
        %v627 = vpop.f32.mrf.mxu0
        %v628 = vadd.f32 0.0, %v627
        %v629 = vpop.f32.mrf.mxu0
        %v630 = vadd.f32 0.0, %v629
        %631 = vmatmul.bf16.gmra.mxu0 %v492
        %v632 = vpop.f32.mrf.mxu0
        %v633 = vadd.f32 0.0, %v632
        %v634 = vpop.f32.mrf.mxu0
        %v635 = vadd.f32 0.0, %v634
        %636 = vmatmul.bf16.gmra.mxu0 %v494
        %v637 = vpop.f32.mrf.mxu0
        %v638 = vadd.f32 0.0, %v637
        %v639 = vpop.f32.mrf.mxu0
        %v640 = vadd.f32 0.0, %v639
        %641 = vmatmul.bf16.gmra.mxu0 %v496
        %v642 = vpop.f32.mrf.mxu0
        %v643 = vadd.f32 0.0, %v642
        %v644 = vpop.f32.mrf.mxu0
        %v645 = vadd.f32 0.0, %v644
        %646 = vmatmul.bf16.gmra.mxu0 %v498
        %v647 = vpop.f32.mrf.mxu0
        %v648 = vadd.f32 0.0, %v647
        %v649 = vpop.f32.mrf.mxu0
        %v650 = vadd.f32 0.0, %v649
        %651 = vmatmul.bf16.gmra.mxu0 %v500
        %v652 = vpop.f32.mrf.mxu0
        %v653 = vadd.f32 0.0, %v652
        %v654 = vpop.f32.mrf.mxu0
        %v655 = vadd.f32 0.0, %v654
        %656 = vmatmul.bf16.gmra.mxu0 %v502
        %v657 = vpop.f32.mrf.mxu0
        %v658 = vadd.f32 0.0, %v657
        %v659 = vpop.f32.mrf.mxu0
        %v660 = vadd.f32 0.0, %v659
        %661 = vmatmul.bf16.gmra.mxu0 %v504
        %v662 = vpop.f32.mrf.mxu0
        %v663 = vadd.f32 0.0, %v662
        %v664 = vpop.f32.mrf.mxu0
        %v665 = vadd.f32 0.0, %v664
        %666 = vdwg.mxu0
        %667 = vmatpush.bf16.msra.mxu0 %v601
        %668 = vmatpush.bf16.msra.mxu0 %v600
        %669 = vmatpush.bf16.msra.mxu0 %v599
        %670 = vmatpush.bf16.msra.mxu0 %v598
        %671 = vmatpush.bf16.msra.mxu0 %v597
        %672 = vmatpush.bf16.msra.mxu0 %v596
        %673 = vmatpush.bf16.msra.mxu0 %v595
        %674 = vmatpush.bf16.msra.mxu0 %v594
        %675 = vmatmul.bf16.gmra.mxu0 %v491
        %v676 = vpop.f32.mrf.mxu0
        %v677 = vadd.f32 %v628, %v676
        %v678 = vpop.f32.mrf.mxu0
        %v679 = vadd.f32 %v630, %v678
        %680 = vmatmul.bf16.gmra.mxu0 %v493
        %v681 = vpop.f32.mrf.mxu0
        %v682 = vadd.f32 %v633, %v681
        %v683 = vpop.f32.mrf.mxu0
        %v684 = vadd.f32 %v635, %v683
        %685 = vmatmul.bf16.gmra.mxu0 %v495
        %v686 = vpop.f32.mrf.mxu0
        %v687 = vadd.f32 %v638, %v686
        %v688 = vpop.f32.mrf.mxu0
        %v689 = vadd.f32 %v640, %v688
        %690 = vmatmul.bf16.gmra.mxu0 %v497
        %v691 = vpop.f32.mrf.mxu0
        %v692 = vadd.f32 %v643, %v691
        %v693 = vpop.f32.mrf.mxu0
        %v694 = vadd.f32 %v645, %v693
        %695 = vmatmul.bf16.gmra.mxu0 %v499
        %v696 = vpop.f32.mrf.mxu0
        %v697 = vadd.f32 %v648, %v696
        %v698 = vpop.f32.mrf.mxu0
        %v699 = vadd.f32 %v650, %v698
        %700 = vmatmul.bf16.gmra.mxu0 %v501
        %v701 = vpop.f32.mrf.mxu0
        %v702 = vadd.f32 %v653, %v701
        %v703 = vpop.f32.mrf.mxu0
        %v704 = vadd.f32 %v655, %v703
        %705 = vmatmul.bf16.gmra.mxu0 %v503
        %v706 = vpop.f32.mrf.mxu0
        %v707 = vadd.f32 %v658, %v706
        %v708 = vpop.f32.mrf.mxu0
        %v709 = vadd.f32 %v660, %v708
        %710 = vmatmul.bf16.gmra.mxu0 %v505
        %v711 = vpop.f32.mrf.mxu0
        %v712 = vadd.f32 %v663, %v711
        %v713 = vpop.f32.mrf.mxu0
        %v714 = vadd.f32 %v665, %v713
        %715 = vdwg.mxu0
        %v716 = vadd.f32 %v378, %v677
        %v717 = vadd.f32 %v379, %v679
        %v718 = vadd.f32 %v380, %v682
        %v719 = vadd.f32 %v381, %v684
        %v720 = vadd.f32 %v382, %v687
        %v721 = vadd.f32 %v383, %v689
        %v722 = vadd.f32 %v384, %v692
        %v723 = vadd.f32 %v385, %v694
        %v724 = vadd.f32 %v386, %v697
        %v725 = vadd.f32 %v387, %v699
        %v726 = vadd.f32 %v388, %v702
        %v727 = vadd.f32 %v389, %v704
        %v728 = vadd.f32 %v390, %v707
        %v729 = vadd.f32 %v391, %v709
        %v730 = vadd.f32 %v392, %v712
        %v731 = vadd.f32 %v393, %v714
        %732 = vst [vmem:[#allocation2] sm:$0xff] %v716
        %733 = vst [vmem:[#allocation2 + $0x8] sm:$0xff] %v717
        %734 = vst [vmem:[#allocation2 + $0x10] sm:$0xff] %v718
        %735 = vst [vmem:[#allocation2 + $0x18] sm:$0xff] %v719
        %736 = vst [vmem:[#allocation2 + $0x20] sm:$0xff] %v720
        %737 = vst [vmem:[#allocation2 + $0x28] sm:$0xff] %v721
        %738 = vst [vmem:[#allocation2 + $0x30] sm:$0xff] %v722
        %739 = vst [vmem:[#allocation2 + $0x38] sm:$0xff] %v723
        %740 = vst [vmem:[#allocation2 + $0x40] sm:$0xff] %v724
        %741 = vst [vmem:[#allocation2 + $0x48] sm:$0xff] %v725
        %742 = vst [vmem:[#allocation2 + $0x50] sm:$0xff] %v726
        %743 = vst [vmem:[#allocation2 + $0x58] sm:$0xff] %v727
        %744 = vst [vmem:[#allocation2 + $0x60] sm:$0xff] %v728
        %745 = vst [vmem:[#allocation2 + $0x68] sm:$0xff] %v729
        %746 = vst [vmem:[#allocation2 + $0x70] sm:$0xff] %v730
        %747 = vst [vmem:[#allocation2 + $0x78] sm:$0xff] %v731
        %p748 = scmp.eq.s32.totalorder %s20, 1
        // Predicated region
        $region79: #{_lambda_.14} parent=69 // pred_check
          %p749 = pneg %p748
        $region80: #{_lambda_.14} parent=69 // pred_check_branch
          %751 = sbr.rel (%p749) target = $region82
        $region81: #{_lambda_.14} parent=69 // pred_region
          %v752 = vld [vmem:[#allocation2] sm:$0xff]
          %v753 = vld [vmem:[#allocation2 + $0x8] sm:$0xff]
          %v754 = vld [vmem:[#allocation2 + $0x10] sm:$0xff]
          %v755 = vld [vmem:[#allocation2 + $0x18] sm:$0xff]
          %v756 = vld [vmem:[#allocation2 + $0x20] sm:$0xff]
          %v757 = vld [vmem:[#allocation2 + $0x28] sm:$0xff]
          %v758 = vld [vmem:[#allocation2 + $0x30] sm:$0xff]
          %v759 = vld [vmem:[#allocation2 + $0x38] sm:$0xff]
          %v760 = vld [vmem:[#allocation2 + $0x40] sm:$0xff]
          %v761 = vld [vmem:[#allocation2 + $0x48] sm:$0xff]
          %v762 = vld [vmem:[#allocation2 + $0x50] sm:$0xff]
          %v763 = vld [vmem:[#allocation2 + $0x58] sm:$0xff]
          %v764 = vld [vmem:[#allocation2 + $0x60] sm:$0xff]
          %v765 = vld [vmem:[#allocation2 + $0x68] sm:$0xff]
          %v766 = vld [vmem:[#allocation2 + $0x70] sm:$0xff]
          %v767 = vld [vmem:[#allocation2 + $0x78] sm:$0xff]
          %v768 = vld [vmem:[%s2] sm:$0x1]
          %v770 = vperm.slane %v768, 0
          %v772 = vadd.f32 %v752, %v770
          %v773 = vadd.f32 %v753, %v770
          %v774 = vadd.f32 %v754, %v770
          %v775 = vadd.f32 %v755, %v770
          %v776 = vadd.f32 %v756, %v770
          %v777 = vadd.f32 %v757, %v770
          %v778 = vadd.f32 %v758, %v770
          %v779 = vadd.f32 %v759, %v770
          %v780 = vadd.f32 %v760, %v770
          %v781 = vadd.f32 %v761, %v770
          %v782 = vadd.f32 %v762, %v770
          %v783 = vadd.f32 %v763, %v770
          %v784 = vadd.f32 %v764, %v770
          %v785 = vadd.f32 %v765, %v770
          %v786 = vadd.f32 %v766, %v770
          %v787 = vadd.f32 %v767, %v770
          %v788 = vld [vmem:[%s350] sm:$0xff]
          %v789 = vld [vmem:[%s350 + $0x8] sm:$0xff]
          %v790 = vld [vmem:[%s350 + $0x10] sm:$0xff]
          %v791 = vld [vmem:[%s350 + $0x18] sm:$0xff]
          %v792 = vld [vmem:[%s350 + $0x20] sm:$0xff]
          %v793 = vld [vmem:[%s350 + $0x28] sm:$0xff]
          %v794 = vld [vmem:[%s350 + $0x30] sm:$0xff]
          %v795 = vld [vmem:[%s350 + $0x38] sm:$0xff]
          %v796 = vld [vmem:[%s350 + $0x40] sm:$0xff]
          %v797 = vld [vmem:[%s350 + $0x48] sm:$0xff]
          %v798 = vld [vmem:[%s350 + $0x50] sm:$0xff]
          %v799 = vld [vmem:[%s350 + $0x58] sm:$0xff]
          %v800 = vld [vmem:[%s350 + $0x60] sm:$0xff]
          %v801 = vld [vmem:[%s350 + $0x68] sm:$0xff]
          %v802 = vld [vmem:[%s350 + $0x70] sm:$0xff]
          %v803 = vld [vmem:[%s350 + $0x78] sm:$0xff]
          %v804 = vmul.f32 %v788, 0.6
          %v805 = vmul.f32 %v789, 0.6
          %v806 = vmul.f32 %v790, 0.6
          %v807 = vmul.f32 %v791, 0.6
          %v808 = vmul.f32 %v792, 0.6
          %v809 = vmul.f32 %v793, 0.6
          %v810 = vmul.f32 %v794, 0.6
          %v811 = vmul.f32 %v795, 0.6
          %v812 = vmul.f32 %v796, 0.6
          %v813 = vmul.f32 %v797, 0.6
          %v814 = vmul.f32 %v798, 0.6
          %v815 = vmul.f32 %v799, 0.6
          %v816 = vmul.f32 %v800, 0.6
          %v817 = vmul.f32 %v801, 0.6
          %v818 = vmul.f32 %v802, 0.6
          %v819 = vmul.f32 %v803, 0.6
          %v820 = vadd.f32 %v772, %v804
          %v821 = vadd.f32 %v773, %v805
          %v822 = vadd.f32 %v774, %v806
          %v823 = vadd.f32 %v775, %v807
          %v824 = vadd.f32 %v776, %v808
          %v825 = vadd.f32 %v777, %v809
          %v826 = vadd.f32 %v778, %v810
          %v827 = vadd.f32 %v779, %v811
          %v828 = vadd.f32 %v780, %v812
          %v829 = vadd.f32 %v781, %v813
          %v830 = vadd.f32 %v782, %v814
          %v831 = vadd.f32 %v783, %v815
          %v832 = vadd.f32 %v784, %v816
          %v833 = vadd.f32 %v785, %v817
          %v834 = vadd.f32 %v786, %v818
          %v835 = vadd.f32 %v787, %v819
          %836 = vst [vmem:[%s356] sm:$0xff] %v820
          %837 = vst [vmem:[%s356 + $0x8] sm:$0xff] %v821
          %838 = vst [vmem:[%s356 + $0x10] sm:$0xff] %v822
          %839 = vst [vmem:[%s356 + $0x18] sm:$0xff] %v823
          %840 = vst [vmem:[%s356 + $0x20] sm:$0xff] %v824
          %841 = vst [vmem:[%s356 + $0x28] sm:$0xff] %v825
          %842 = vst [vmem:[%s356 + $0x30] sm:$0xff] %v826
          %843 = vst [vmem:[%s356 + $0x38] sm:$0xff] %v827
          %844 = vst [vmem:[%s356 + $0x40] sm:$0xff] %v828
          %845 = vst [vmem:[%s356 + $0x48] sm:$0xff] %v829
          %846 = vst [vmem:[%s356 + $0x50] sm:$0xff] %v830
          %847 = vst [vmem:[%s356 + $0x58] sm:$0xff] %v831
          %848 = vst [vmem:[%s356 + $0x60] sm:$0xff] %v832
          %849 = vst [vmem:[%s356 + $0x68] sm:$0xff] %v833
          %850 = vst [vmem:[%s356 + $0x70] sm:$0xff] %v834
          %851 = vst [vmem:[%s356 + $0x78] sm:$0xff] %v835
        $region82: #{_lambda_.14} parent=69 // pred_fallthru
          _
        %s852 = smul.u32 16, %s19
        %p853 = scmp.lt.s32.totalorder %s852, 15
        %s854 = scalar_select %p853, %s852, 15
        %s855 = smul.addr %s854, 8
        %s856 = scalar_lea.vmem %s4, %s855
        // Predicated region
        $region83: #{_lambda_.14} parent=69 // pred_check
          %p857 = pneg %p146
        $region84: #{_lambda_.14} parent=69 // pred_check_branch
          %859 = sbr.rel (%p857) target = $region86
        $region85: #{_lambda_.14} parent=69 // pred_region
          %s860 = smul.u32 16, %s19
        $region86: #{_lambda_.14} parent=69 // pred_fallthru
          _
        // Predicated region
        $region87: #{_lambda_.14} parent=69 // pred_check
          %p861 = pneg %p146
        $region88: #{_lambda_.14} parent=69 // pred_check_branch
          %863 = sbr.rel (%p861) target = $region90
        $region89: #{_lambda_.14} parent=69 // pred_region
          %s864 = smul.u32 16, %s19
          %p865 = scmp.lt.s32.totalorder %s864, 15
          %s866 = scalar_select %p865, %s864, 15
          %s867 = smul.addr %s866, 8
          %s868 = scalar_lea.vmem %s4, %s867
        $region90: #{_lambda_.14} parent=69 // pred_fallthru
          _
      $region70: #{_lambda_.14} parent=5 // pred_fallthru
        _
      %p869 = scmp.le.s32.totalorder 2, %s10
      // Predicated region
      $region91: #{_lambda_.14} parent=5 // pred_check
        %p870 = pneg %p869
      $region92: #{_lambda_.14} parent=5 // pred_check_branch
        %872 = sbr.rel (%p870) target = $region94
      $region93: #{_lambda_.14} parent=5 // pred_region
        %s873 = ssub.s32 %s10, 2
      $region94: #{_lambda_.14} parent=5 // pred_fallthru
        _
    $region6: #{_lambda_.14} parent=1 // loop_footer
      %s14 = sadd.s32 1, %s10
    $region7: #{_lambda_.14} parent=1 // loop_footer_branch
      %9 = sbr.rel target = $region3
    $region8: #{_lambda_.14} parent=1 // loop_exit
      _

// kernel: _lambda_.11
$region0: #{_lambda_.11}
  #allocation0 [shape = 'u32[]', space=smem, size = 0x4, offset = 0x4, fixed_abs, tag = 'smem constant byte address 0x4 - core index']
  #allocation1 [shape = 'u32[72,128]{1,0:T(1,128)}', space=vmem, size = 0x9000, scoped, tag = 'internal scratch']
  #allocation2 [shape = 'f32[128,128]{1,0:T(8,128)}', space=vmem, size = 0x10000, scoped, tag = 'scratch operand']
  %s0 = inlined_call_operand.vmem [shape: bf16[128,32], index: 0, kind: input, shape index: {}]
  %s1 = inlined_call_operand.vmem [shape: bf16[32,128], index: 1, kind: input, shape index: {}]
  %s2 = inlined_call_operand.vmem [shape: f32[1,128], index: 2, kind: input, shape index: {}]
  %s3 = inlined_call_operand.vmem [shape: f32[128,128], index: 3, kind: output, shape index: {}]
  %s4 = sld [smem:[#allocation0]]
  $region30: #{_lambda_.11} parent=0
    _
  %s6 = ssub.s32 1, %s4
  %s7 = scalar_select 0, %s6, %s4
  // Predicated region
  $region2: #{_lambda_.11} parent=0 // pred_check
    _
  $region3: #{_lambda_.11} parent=0 // pred_check_branch
    %9 = sbr.rel (0) target = $region5
  $region4: #{_lambda_.11} parent=0 // pred_region
    _
  $region5: #{_lambda_.11} parent=0 // pred_fallthru
    _
  // Predicated region
  $region6: #{_lambda_.11} parent=0 // pred_check
    _
  $region7: #{_lambda_.11} parent=0 // pred_check_branch
    %11 = sbr.rel (0) target = $region9
  $region8: #{_lambda_.11} parent=0 // pred_region
    _
  $region9: #{_lambda_.11} parent=0 // pred_fallthru
    _
  // Predicated region
  $region10: #{_lambda_.11} parent=0 // pred_check
    _
  $region11: #{_lambda_.11} parent=0 // pred_check_branch
    %13 = sbr.rel (0) target = $region13
  $region12: #{_lambda_.11} parent=0 // pred_region
    _
  $region13: #{_lambda_.11} parent=0 // pred_fallthru
    _
  %p15 = scmp.eq.s32.totalorder 0, 0
  // Predicated region
  $region14: #{_lambda_.11} parent=0 // pred_check
    %p16 = pneg %p15
  $region15: #{_lambda_.11} parent=0 // pred_check_branch
    %18 = sbr.rel (%p16) target = $region17
  $region16: #{_lambda_.11} parent=0 // pred_region
    %19 = vst [vmem:[#allocation2] sm:$0xff] 0.0
    %20 = vst [vmem:[#allocation2 + $0x8] sm:$0xff] 0.0
    %21 = vst [vmem:[#allocation2 + $0x10] sm:$0xff] 0.0
    %22 = vst [vmem:[#allocation2 + $0x18] sm:$0xff] 0.0
    %23 = vst [vmem:[#allocation2 + $0x20] sm:$0xff] 0.0
    %24 = vst [vmem:[#allocation2 + $0x28] sm:$0xff] 0.0
    %25 = vst [vmem:[#allocation2 + $0x30] sm:$0xff] 0.0
    %26 = vst [vmem:[#allocation2 + $0x38] sm:$0xff] 0.0
    %27 = vst [vmem:[#allocation2 + $0x40] sm:$0xff] 0.0
    %28 = vst [vmem:[#allocation2 + $0x48] sm:$0xff] 0.0
    %29 = vst [vmem:[#allocation2 + $0x50] sm:$0xff] 0.0
    %30 = vst [vmem:[#allocation2 + $0x58] sm:$0xff] 0.0
    %31 = vst [vmem:[#allocation2 + $0x60] sm:$0xff] 0.0
    %32 = vst [vmem:[#allocation2 + $0x68] sm:$0xff] 0.0
    %33 = vst [vmem:[#allocation2 + $0x70] sm:$0xff] 0.0
    %34 = vst [vmem:[#allocation2 + $0x78] sm:$0xff] 0.0
  $region17: #{_lambda_.11} parent=0 // pred_fallthru
    _
  %v35 = vld [vmem:[#allocation2] sm:$0xff]
  %v36 = vld [vmem:[#allocation2 + $0x8] sm:$0xff]
  %v37 = vld [vmem:[#allocation2 + $0x10] sm:$0xff]
  %v38 = vld [vmem:[#allocation2 + $0x18] sm:$0xff]
  %v39 = vld [vmem:[#allocation2 + $0x20] sm:$0xff]
  %v40 = vld [vmem:[#allocation2 + $0x28] sm:$0xff]
  %v41 = vld [vmem:[#allocation2 + $0x30] sm:$0xff]
  %v42 = vld [vmem:[#allocation2 + $0x38] sm:$0xff]
  %v43 = vld [vmem:[#allocation2 + $0x40] sm:$0xff]
  %v44 = vld [vmem:[#allocation2 + $0x48] sm:$0xff]
  %v45 = vld [vmem:[#allocation2 + $0x50] sm:$0xff]
  %v46 = vld [vmem:[#allocation2 + $0x58] sm:$0xff]
  %v47 = vld [vmem:[#allocation2 + $0x60] sm:$0xff]
  %v48 = vld [vmem:[#allocation2 + $0x68] sm:$0xff]
  %v49 = vld [vmem:[#allocation2 + $0x70] sm:$0xff]
  %v50 = vld [vmem:[#allocation2 + $0x78] sm:$0xff]
  %v51 = vld [vmem:[%s0] sm:$0xf]
  %v52 = vld [vmem:[%s0 + $0x4] sm:$0xf]
  %v53 = vld [vmem:[%s0 + $0x8] sm:$0xf]
  %v54 = vld [vmem:[%s0 + $0xc] sm:$0xf]
  %v55 = vld [vmem:[%s0 + $0x10] sm:$0xf]
  %v56 = vld [vmem:[%s0 + $0x14] sm:$0xf]
  %v57 = vld [vmem:[%s0 + $0x18] sm:$0xf]
  %v58 = vld [vmem:[%s0 + $0x1c] sm:$0xf]
  %v59 = vld [vmem:[%s0 + $0x20] sm:$0xf]
  %v60 = vld [vmem:[%s0 + $0x24] sm:$0xf]
  %v61 = vld [vmem:[%s0 + $0x28] sm:$0xf]
  %v62 = vld [vmem:[%s0 + $0x2c] sm:$0xf]
  %v63 = vld [vmem:[%s0 + $0x30] sm:$0xf]
  %v64 = vld [vmem:[%s0 + $0x34] sm:$0xf]
  %v65 = vld [vmem:[%s0 + $0x38] sm:$0xf]
  %v66 = vld [vmem:[%s0 + $0x3c] sm:$0xf]
  %v67 = vld [vmem:[%s1] sm:$0xf]
  %v68 = vld [vmem:[%s1 + $0x4] sm:$0xf]
  %v69 = vld [vmem:[%s1 + $0x8] sm:$0xf]
  %v70 = vld [vmem:[%s1 + $0xc] sm:$0xf]
  %v87 = vunpack.c.l.b16 %v51
  %v88 = vunpack.c.l.b16 %v52
  %v89 = vunpack.c.l.b16 %v53
  %v90 = vunpack.c.l.b16 %v54
  %v91 = vunpack.c.l.b16 %v55
  %v92 = vunpack.c.l.b16 %v56
  %v93 = vunpack.c.l.b16 %v57
  %v94 = vunpack.c.l.b16 %v58
  %v95 = vunpack.c.l.b16 %v59
  %v96 = vunpack.c.l.b16 %v60
  %v97 = vunpack.c.l.b16 %v61
  %v98 = vunpack.c.l.b16 %v62
  %v99 = vunpack.c.l.b16 %v63
  %v100 = vunpack.c.l.b16 %v64
  %v101 = vunpack.c.l.b16 %v65
  %v102 = vunpack.c.l.b16 %v66
  %v103 = vpack.c.b16 %v88, %v87
  %v104 = vpack.c.b16 %v90, %v89
  %v105 = vpack.c.b16 %v92, %v91
  %v106 = vpack.c.b16 %v94, %v93
  %v107 = vpack.c.b16 %v96, %v95
  %v108 = vpack.c.b16 %v98, %v97
  %v109 = vpack.c.b16 %v100, %v99
  %v110 = vpack.c.b16 %v102, %v101
  %v115 = vunpack.c.l.b16 %v67
  %v116 = vunpack.c.l.b16 %v68
  %v117 = vunpack.c.l.b16 %v69
  %v118 = vunpack.c.l.b16 %v70
  %v119 = vpack.c.b16 %v116, %v115
  %v120 = vpack.c.b16 %v118, %v117
  %vm123 = vcmask 261120
  %v125 = vsel %vm123, %v103, 0
  %v128 = vsel %vm123, %v104, 0
  %v131 = vsel %vm123, %v105, 0
  %v134 = vsel %vm123, %v106, 0
  %v137 = vsel %vm123, %v107, 0
  %v140 = vsel %vm123, %v108, 0
  %v143 = vsel %vm123, %v109, 0
  %v146 = vsel %vm123, %v110, 0
  %148 = vmatpush.bf16.msra.mxu0 0
  %149 = vmatpush.bf16.msra.mxu0 0
  %150 = vmatpush.bf16.msra.mxu0 0
  %151 = vmatpush.bf16.msra.mxu0 0
  %152 = vmatpush.bf16.msra.mxu0 0
  %153 = vmatpush.bf16.msra.mxu0 0
  %154 = vmatpush.bf16.msra.mxu0 %v120
  %155 = vmatpush.bf16.msra.mxu0 %v119
  %156 = vmatmul.bf16.gmra.mxu0 %v125
  %v157 = vpop.f32.mrf.mxu0
  %v158 = vadd.f32 0.0, %v157
  %v159 = vpop.f32.mrf.mxu0
  %v160 = vadd.f32 0.0, %v159
  %161 = vmatmul.bf16.gmra.mxu0 %v128
  %v162 = vpop.f32.mrf.mxu0
  %v163 = vadd.f32 0.0, %v162
  %v164 = vpop.f32.mrf.mxu0
  %v165 = vadd.f32 0.0, %v164
  %166 = vmatmul.bf16.gmra.mxu0 %v131
  %v167 = vpop.f32.mrf.mxu0
  %v168 = vadd.f32 0.0, %v167
  %v169 = vpop.f32.mrf.mxu0
  %v170 = vadd.f32 0.0, %v169
  %171 = vmatmul.bf16.gmra.mxu0 %v134
  %v172 = vpop.f32.mrf.mxu0
  %v173 = vadd.f32 0.0, %v172
  %v174 = vpop.f32.mrf.mxu0
  %v175 = vadd.f32 0.0, %v174
  %176 = vmatmul.bf16.gmra.mxu0 %v137
  %v177 = vpop.f32.mrf.mxu0
  %v178 = vadd.f32 0.0, %v177
  %v179 = vpop.f32.mrf.mxu0
  %v180 = vadd.f32 0.0, %v179
  %181 = vmatmul.bf16.gmra.mxu0 %v140
  %v182 = vpop.f32.mrf.mxu0
  %v183 = vadd.f32 0.0, %v182
  %v184 = vpop.f32.mrf.mxu0
  %v185 = vadd.f32 0.0, %v184
  %186 = vmatmul.bf16.gmra.mxu0 %v143
  %v187 = vpop.f32.mrf.mxu0
  %v188 = vadd.f32 0.0, %v187
  %v189 = vpop.f32.mrf.mxu0
  %v190 = vadd.f32 0.0, %v189
  %191 = vmatmul.bf16.gmra.mxu0 %v146
  %v192 = vpop.f32.mrf.mxu0
  %v193 = vadd.f32 0.0, %v192
  %v194 = vpop.f32.mrf.mxu0
  %v195 = vadd.f32 0.0, %v194
  %196 = vdwg.mxu0
  %v197 = vadd.f32 %v35, %v158
  %v198 = vadd.f32 %v36, %v160
  %v199 = vadd.f32 %v37, %v163
  %v200 = vadd.f32 %v38, %v165
  %v201 = vadd.f32 %v39, %v168
  %v202 = vadd.f32 %v40, %v170
  %v203 = vadd.f32 %v41, %v173
  %v204 = vadd.f32 %v42, %v175
  %v205 = vadd.f32 %v43, %v178
  %v206 = vadd.f32 %v44, %v180
  %v207 = vadd.f32 %v45, %v183
  %v208 = vadd.f32 %v46, %v185
  %v209 = vadd.f32 %v47, %v188
  %v210 = vadd.f32 %v48, %v190
  %v211 = vadd.f32 %v49, %v193
  %v212 = vadd.f32 %v50, %v195
  %213 = vst [vmem:[#allocation2] sm:$0xff] %v197
  %214 = vst [vmem:[#allocation2 + $0x8] sm:$0xff] %v198
  %215 = vst [vmem:[#allocation2 + $0x10] sm:$0xff] %v199
  %216 = vst [vmem:[#allocation2 + $0x18] sm:$0xff] %v200
  %217 = vst [vmem:[#allocation2 + $0x20] sm:$0xff] %v201
  %218 = vst [vmem:[#allocation2 + $0x28] sm:$0xff] %v202
  %219 = vst [vmem:[#allocation2 + $0x30] sm:$0xff] %v203
  %220 = vst [vmem:[#allocation2 + $0x38] sm:$0xff] %v204
  %221 = vst [vmem:[#allocation2 + $0x40] sm:$0xff] %v205
  %222 = vst [vmem:[#allocation2 + $0x48] sm:$0xff] %v206
  %223 = vst [vmem:[#allocation2 + $0x50] sm:$0xff] %v207
  %224 = vst [vmem:[#allocation2 + $0x58] sm:$0xff] %v208
  %225 = vst [vmem:[#allocation2 + $0x60] sm:$0xff] %v209
  %226 = vst [vmem:[#allocation2 + $0x68] sm:$0xff] %v210
  %227 = vst [vmem:[#allocation2 + $0x70] sm:$0xff] %v211
  %228 = vst [vmem:[#allocation2 + $0x78] sm:$0xff] %v212
  // Predicated region
  $region18: #{_lambda_.11} parent=0 // pred_check
    %p229 = pneg %p15
  $region19: #{_lambda_.11} parent=0 // pred_check_branch
    %231 = sbr.rel (%p229) target = $region21
  $region20: #{_lambda_.11} parent=0 // pred_region
    %v232 = vld [vmem:[#allocation2] sm:$0xff]
    %v233 = vld [vmem:[#allocation2 + $0x8] sm:$0xff]
    %v234 = vld [vmem:[#allocation2 + $0x10] sm:$0xff]
    %v235 = vld [vmem:[#allocation2 + $0x18] sm:$0xff]
    %v236 = vld [vmem:[#allocation2 + $0x20] sm:$0xff]
    %v237 = vld [vmem:[#allocation2 + $0x28] sm:$0xff]
    %v238 = vld [vmem:[#allocation2 + $0x30] sm:$0xff]
    %v239 = vld [vmem:[#allocation2 + $0x38] sm:$0xff]
    %v240 = vld [vmem:[#allocation2 + $0x40] sm:$0xff]
    %v241 = vld [vmem:[#allocation2 + $0x48] sm:$0xff]
    %v242 = vld [vmem:[#allocation2 + $0x50] sm:$0xff]
    %v243 = vld [vmem:[#allocation2 + $0x58] sm:$0xff]
    %v244 = vld [vmem:[#allocation2 + $0x60] sm:$0xff]
    %v245 = vld [vmem:[#allocation2 + $0x68] sm:$0xff]
    %v246 = vld [vmem:[#allocation2 + $0x70] sm:$0xff]
    %v247 = vld [vmem:[#allocation2 + $0x78] sm:$0xff]
    %v248 = vld [vmem:[%s2] sm:$0x1]
    %v250 = vperm.slane %v248, 0
    %v252 = vadd.f32 %v232, %v250
    %v253 = vadd.f32 %v233, %v250
    %v254 = vadd.f32 %v234, %v250
    %v255 = vadd.f32 %v235, %v250
    %v256 = vadd.f32 %v236, %v250
    %v257 = vadd.f32 %v237, %v250
    %v258 = vadd.f32 %v238, %v250
    %v259 = vadd.f32 %v239, %v250
    %v260 = vadd.f32 %v240, %v250
    %v261 = vadd.f32 %v241, %v250
    %v262 = vadd.f32 %v242, %v250
    %v263 = vadd.f32 %v243, %v250
    %v264 = vadd.f32 %v244, %v250
    %v265 = vadd.f32 %v245, %v250
    %v266 = vadd.f32 %v246, %v250
    %v267 = vadd.f32 %v247, %v250
    %v268 = vtanh.pop %v252
    %v269 = vtanh.pop %v253
    %v270 = vtanh.pop %v254
    %v271 = vtanh.pop %v255
    %v272 = vtanh.pop %v256
    %v273 = vtanh.pop %v257
    %v274 = vtanh.pop %v258
    %v275 = vtanh.pop %v259
    %v276 = vtanh.pop %v260
    %v277 = vtanh.pop %v261
    %v278 = vtanh.pop %v262
    %v279 = vtanh.pop %v263
    %v280 = vtanh.pop %v264
    %v281 = vtanh.pop %v265
    %v282 = vtanh.pop %v266
    %v283 = vtanh.pop %v267
    %284 = vst [vmem:[%s3] sm:$0xff] %v268
    %285 = vst [vmem:[%s3 + $0x8] sm:$0xff] %v269
    %286 = vst [vmem:[%s3 + $0x10] sm:$0xff] %v270
    %287 = vst [vmem:[%s3 + $0x18] sm:$0xff] %v271
    %288 = vst [vmem:[%s3 + $0x20] sm:$0xff] %v272
    %289 = vst [vmem:[%s3 + $0x28] sm:$0xff] %v273
    %290 = vst [vmem:[%s3 + $0x30] sm:$0xff] %v274
    %291 = vst [vmem:[%s3 + $0x38] sm:$0xff] %v275
    %292 = vst [vmem:[%s3 + $0x40] sm:$0xff] %v276
    %293 = vst [vmem:[%s3 + $0x48] sm:$0xff] %v277
    %294 = vst [vmem:[%s3 + $0x50] sm:$0xff] %v278
    %295 = vst [vmem:[%s3 + $0x58] sm:$0xff] %v279
    %296 = vst [vmem:[%s3 + $0x60] sm:$0xff] %v280
    %297 = vst [vmem:[%s3 + $0x68] sm:$0xff] %v281
    %298 = vst [vmem:[%s3 + $0x70] sm:$0xff] %v282
    %299 = vst [vmem:[%s3 + $0x78] sm:$0xff] %v283
  $region21: #{_lambda_.11} parent=0 // pred_fallthru
    _
  // Predicated region
  $region22: #{_lambda_.11} parent=0 // pred_check
    _
  $region23: #{_lambda_.11} parent=0 // pred_check_branch
    %301 = sbr.rel (0) target = $region25
  $region24: #{_lambda_.11} parent=0 // pred_region
    _
  $region25: #{_lambda_.11} parent=0 // pred_fallthru
    _
  // Predicated region
  $region26: #{_lambda_.11} parent=0 // pred_check
    _
  $region27: #{_lambda_.11} parent=0 // pred_check_branch
    %303 = sbr.rel (0) target = $region29
  $region28: #{_lambda_.11} parent=0 // pred_region
    _
  $region29: #{_lambda_.11} parent=0 // pred_fallthru
    _

// kernel: _lambda_.12
$region0: #{_lambda_.12}
  #allocation0 [shape = 'u32[]', space=smem, size = 0x4, offset = 0x4, fixed_abs, tag = 'smem constant byte address 0x4 - core index']
  #allocation1 [shape = 'u32[72,128]{1,0:T(1,128)}', space=vmem, size = 0x9000, scoped, tag = 'internal scratch']
  #allocation2 [shape = 'f32[128,128]{1,0:T(8,128)}', space=vmem, size = 0x10000, scoped, tag = 'scratch operand']
  %s0 = inlined_call_operand.vmem [shape: bf16[128,32], index: 0, kind: input, shape index: {}]
  %s1 = inlined_call_operand.vmem [shape: bf16[32,128], index: 1, kind: input, shape index: {}]
  %s2 = inlined_call_operand.vmem [shape: f32[1,128], index: 2, kind: input, shape index: {}]
  %s3 = inlined_call_operand.vmem [shape: f32[128,128], index: 3, kind: output, shape index: {}]
  %s4 = sld [smem:[#allocation0]]
  $region30: #{_lambda_.12} parent=0
    _
  %s6 = ssub.s32 1, %s4
  %s7 = scalar_select 0, %s6, %s4
  // Predicated region
  $region2: #{_lambda_.12} parent=0 // pred_check
    _
  $region3: #{_lambda_.12} parent=0 // pred_check_branch
    %9 = sbr.rel (0) target = $region5
  $region4: #{_lambda_.12} parent=0 // pred_region
    _
  $region5: #{_lambda_.12} parent=0 // pred_fallthru
    _
  // Predicated region
  $region6: #{_lambda_.12} parent=0 // pred_check
    _
  $region7: #{_lambda_.12} parent=0 // pred_check_branch
    %11 = sbr.rel (0) target = $region9
  $region8: #{_lambda_.12} parent=0 // pred_region
    _
  $region9: #{_lambda_.12} parent=0 // pred_fallthru
    _
  // Predicated region
  $region10: #{_lambda_.12} parent=0 // pred_check
    _
  $region11: #{_lambda_.12} parent=0 // pred_check_branch
    %13 = sbr.rel (0) target = $region13
  $region12: #{_lambda_.12} parent=0 // pred_region
    _
  $region13: #{_lambda_.12} parent=0 // pred_fallthru
    _
  %p15 = scmp.eq.s32.totalorder 0, 0
  // Predicated region
  $region14: #{_lambda_.12} parent=0 // pred_check
    %p16 = pneg %p15
  $region15: #{_lambda_.12} parent=0 // pred_check_branch
    %18 = sbr.rel (%p16) target = $region17
  $region16: #{_lambda_.12} parent=0 // pred_region
    %19 = vst [vmem:[#allocation2] sm:$0xff] 0.0
    %20 = vst [vmem:[#allocation2 + $0x8] sm:$0xff] 0.0
    %21 = vst [vmem:[#allocation2 + $0x10] sm:$0xff] 0.0
    %22 = vst [vmem:[#allocation2 + $0x18] sm:$0xff] 0.0
    %23 = vst [vmem:[#allocation2 + $0x20] sm:$0xff] 0.0
    %24 = vst [vmem:[#allocation2 + $0x28] sm:$0xff] 0.0
    %25 = vst [vmem:[#allocation2 + $0x30] sm:$0xff] 0.0
    %26 = vst [vmem:[#allocation2 + $0x38] sm:$0xff] 0.0
    %27 = vst [vmem:[#allocation2 + $0x40] sm:$0xff] 0.0
    %28 = vst [vmem:[#allocation2 + $0x48] sm:$0xff] 0.0
    %29 = vst [vmem:[#allocation2 + $0x50] sm:$0xff] 0.0
    %30 = vst [vmem:[#allocation2 + $0x58] sm:$0xff] 0.0
    %31 = vst [vmem:[#allocation2 + $0x60] sm:$0xff] 0.0
    %32 = vst [vmem:[#allocation2 + $0x68] sm:$0xff] 0.0
    %33 = vst [vmem:[#allocation2 + $0x70] sm:$0xff] 0.0
    %34 = vst [vmem:[#allocation2 + $0x78] sm:$0xff] 0.0
  $region17: #{_lambda_.12} parent=0 // pred_fallthru
    _
  %v35 = vld [vmem:[#allocation2] sm:$0xff]
  %v36 = vld [vmem:[#allocation2 + $0x8] sm:$0xff]
  %v37 = vld [vmem:[#allocation2 + $0x10] sm:$0xff]
  %v38 = vld [vmem:[#allocation2 + $0x18] sm:$0xff]
  %v39 = vld [vmem:[#allocation2 + $0x20] sm:$0xff]
  %v40 = vld [vmem:[#allocation2 + $0x28] sm:$0xff]
  %v41 = vld [vmem:[#allocation2 + $0x30] sm:$0xff]
  %v42 = vld [vmem:[#allocation2 + $0x38] sm:$0xff]
  %v43 = vld [vmem:[#allocation2 + $0x40] sm:$0xff]
  %v44 = vld [vmem:[#allocation2 + $0x48] sm:$0xff]
  %v45 = vld [vmem:[#allocation2 + $0x50] sm:$0xff]
  %v46 = vld [vmem:[#allocation2 + $0x58] sm:$0xff]
  %v47 = vld [vmem:[#allocation2 + $0x60] sm:$0xff]
  %v48 = vld [vmem:[#allocation2 + $0x68] sm:$0xff]
  %v49 = vld [vmem:[#allocation2 + $0x70] sm:$0xff]
  %v50 = vld [vmem:[#allocation2 + $0x78] sm:$0xff]
  %v51 = vld [vmem:[%s0] sm:$0xf]
  %v52 = vld [vmem:[%s0 + $0x4] sm:$0xf]
  %v53 = vld [vmem:[%s0 + $0x8] sm:$0xf]
  %v54 = vld [vmem:[%s0 + $0xc] sm:$0xf]
  %v55 = vld [vmem:[%s0 + $0x10] sm:$0xf]
  %v56 = vld [vmem:[%s0 + $0x14] sm:$0xf]
  %v57 = vld [vmem:[%s0 + $0x18] sm:$0xf]
  %v58 = vld [vmem:[%s0 + $0x1c] sm:$0xf]
  %v59 = vld [vmem:[%s0 + $0x20] sm:$0xf]
  %v60 = vld [vmem:[%s0 + $0x24] sm:$0xf]
  %v61 = vld [vmem:[%s0 + $0x28] sm:$0xf]
  %v62 = vld [vmem:[%s0 + $0x2c] sm:$0xf]
  %v63 = vld [vmem:[%s0 + $0x30] sm:$0xf]
  %v64 = vld [vmem:[%s0 + $0x34] sm:$0xf]
  %v65 = vld [vmem:[%s0 + $0x38] sm:$0xf]
  %v66 = vld [vmem:[%s0 + $0x3c] sm:$0xf]
  %v67 = vld [vmem:[%s1] sm:$0xf]
  %v68 = vld [vmem:[%s1 + $0x4] sm:$0xf]
  %v69 = vld [vmem:[%s1 + $0x8] sm:$0xf]
  %v70 = vld [vmem:[%s1 + $0xc] sm:$0xf]
  %v87 = vunpack.c.l.b16 %v51
  %v88 = vunpack.c.l.b16 %v52
  %v89 = vunpack.c.l.b16 %v53
  %v90 = vunpack.c.l.b16 %v54
  %v91 = vunpack.c.l.b16 %v55
  %v92 = vunpack.c.l.b16 %v56
  %v93 = vunpack.c.l.b16 %v57
  %v94 = vunpack.c.l.b16 %v58
  %v95 = vunpack.c.l.b16 %v59
  %v96 = vunpack.c.l.b16 %v60
  %v97 = vunpack.c.l.b16 %v61
  %v98 = vunpack.c.l.b16 %v62
  %v99 = vunpack.c.l.b16 %v63
  %v100 = vunpack.c.l.b16 %v64
  %v101 = vunpack.c.l.b16 %v65
  %v102 = vunpack.c.l.b16 %v66
  %v103 = vpack.c.b16 %v88, %v87
  %v104 = vpack.c.b16 %v90, %v89
  %v105 = vpack.c.b16 %v92, %v91
  %v106 = vpack.c.b16 %v94, %v93
  %v107 = vpack.c.b16 %v96, %v95
  %v108 = vpack.c.b16 %v98, %v97
  %v109 = vpack.c.b16 %v100, %v99
  %v110 = vpack.c.b16 %v102, %v101
  %v115 = vunpack.c.l.b16 %v67
  %v116 = vunpack.c.l.b16 %v68
  %v117 = vunpack.c.l.b16 %v69
  %v118 = vunpack.c.l.b16 %v70
  %v119 = vpack.c.b16 %v116, %v115
  %v120 = vpack.c.b16 %v118, %v117
  %vm123 = vcmask 261120
  %v125 = vsel %vm123, %v103, 0
  %v128 = vsel %vm123, %v104, 0
  %v131 = vsel %vm123, %v105, 0
  %v134 = vsel %vm123, %v106, 0
  %v137 = vsel %vm123, %v107, 0
  %v140 = vsel %vm123, %v108, 0
  %v143 = vsel %vm123, %v109, 0
  %v146 = vsel %vm123, %v110, 0
  %148 = vmatpush.bf16.msra.mxu0 0
  %149 = vmatpush.bf16.msra.mxu0 0
  %150 = vmatpush.bf16.msra.mxu0 0
  %151 = vmatpush.bf16.msra.mxu0 0
  %152 = vmatpush.bf16.msra.mxu0 0
  %153 = vmatpush.bf16.msra.mxu0 0
  %154 = vmatpush.bf16.msra.mxu0 %v120
  %155 = vmatpush.bf16.msra.mxu0 %v119
  %156 = vmatmul.bf16.gmra.mxu0 %v125
  %v157 = vpop.f32.mrf.mxu0
  %v158 = vadd.f32 0.0, %v157
  %v159 = vpop.f32.mrf.mxu0
  %v160 = vadd.f32 0.0, %v159
  %161 = vmatmul.bf16.gmra.mxu0 %v128
  %v162 = vpop.f32.mrf.mxu0
  %v163 = vadd.f32 0.0, %v162
  %v164 = vpop.f32.mrf.mxu0
  %v165 = vadd.f32 0.0, %v164
  %166 = vmatmul.bf16.gmra.mxu0 %v131
  %v167 = vpop.f32.mrf.mxu0
  %v168 = vadd.f32 0.0, %v167
  %v169 = vpop.f32.mrf.mxu0
  %v170 = vadd.f32 0.0, %v169
  %171 = vmatmul.bf16.gmra.mxu0 %v134
  %v172 = vpop.f32.mrf.mxu0
  %v173 = vadd.f32 0.0, %v172
  %v174 = vpop.f32.mrf.mxu0
  %v175 = vadd.f32 0.0, %v174
  %176 = vmatmul.bf16.gmra.mxu0 %v137
  %v177 = vpop.f32.mrf.mxu0
  %v178 = vadd.f32 0.0, %v177
  %v179 = vpop.f32.mrf.mxu0
  %v180 = vadd.f32 0.0, %v179
  %181 = vmatmul.bf16.gmra.mxu0 %v140
  %v182 = vpop.f32.mrf.mxu0
  %v183 = vadd.f32 0.0, %v182
  %v184 = vpop.f32.mrf.mxu0
  %v185 = vadd.f32 0.0, %v184
  %186 = vmatmul.bf16.gmra.mxu0 %v143
  %v187 = vpop.f32.mrf.mxu0
  %v188 = vadd.f32 0.0, %v187
  %v189 = vpop.f32.mrf.mxu0
  %v190 = vadd.f32 0.0, %v189
  %191 = vmatmul.bf16.gmra.mxu0 %v146
  %v192 = vpop.f32.mrf.mxu0
  %v193 = vadd.f32 0.0, %v192
  %v194 = vpop.f32.mrf.mxu0
  %v195 = vadd.f32 0.0, %v194
  %196 = vdwg.mxu0
  %v197 = vadd.f32 %v35, %v158
  %v198 = vadd.f32 %v36, %v160
  %v199 = vadd.f32 %v37, %v163
  %v200 = vadd.f32 %v38, %v165
  %v201 = vadd.f32 %v39, %v168
  %v202 = vadd.f32 %v40, %v170
  %v203 = vadd.f32 %v41, %v173
  %v204 = vadd.f32 %v42, %v175
  %v205 = vadd.f32 %v43, %v178
  %v206 = vadd.f32 %v44, %v180
  %v207 = vadd.f32 %v45, %v183
  %v208 = vadd.f32 %v46, %v185
  %v209 = vadd.f32 %v47, %v188
  %v210 = vadd.f32 %v48, %v190
  %v211 = vadd.f32 %v49, %v193
  %v212 = vadd.f32 %v50, %v195
  %213 = vst [vmem:[#allocation2] sm:$0xff] %v197
  %214 = vst [vmem:[#allocation2 + $0x8] sm:$0xff] %v198
  %215 = vst [vmem:[#allocation2 + $0x10] sm:$0xff] %v199
  %216 = vst [vmem:[#allocation2 + $0x18] sm:$0xff] %v200
  %217 = vst [vmem:[#allocation2 + $0x20] sm:$0xff] %v201
  %218 = vst [vmem:[#allocation2 + $0x28] sm:$0xff] %v202
  %219 = vst [vmem:[#allocation2 + $0x30] sm:$0xff] %v203
  %220 = vst [vmem:[#allocation2 + $0x38] sm:$0xff] %v204
  %221 = vst [vmem:[#allocation2 + $0x40] sm:$0xff] %v205
  %222 = vst [vmem:[#allocation2 + $0x48] sm:$0xff] %v206
  %223 = vst [vmem:[#allocation2 + $0x50] sm:$0xff] %v207
  %224 = vst [vmem:[#allocation2 + $0x58] sm:$0xff] %v208
  %225 = vst [vmem:[#allocation2 + $0x60] sm:$0xff] %v209
  %226 = vst [vmem:[#allocation2 + $0x68] sm:$0xff] %v210
  %227 = vst [vmem:[#allocation2 + $0x70] sm:$0xff] %v211
  %228 = vst [vmem:[#allocation2 + $0x78] sm:$0xff] %v212
  // Predicated region
  $region18: #{_lambda_.12} parent=0 // pred_check
    %p229 = pneg %p15
  $region19: #{_lambda_.12} parent=0 // pred_check_branch
    %231 = sbr.rel (%p229) target = $region21
  $region20: #{_lambda_.12} parent=0 // pred_region
    %v232 = vld [vmem:[#allocation2] sm:$0xff]
    %v233 = vld [vmem:[#allocation2 + $0x8] sm:$0xff]
    %v234 = vld [vmem:[#allocation2 + $0x10] sm:$0xff]
    %v235 = vld [vmem:[#allocation2 + $0x18] sm:$0xff]
    %v236 = vld [vmem:[#allocation2 + $0x20] sm:$0xff]
    %v237 = vld [vmem:[#allocation2 + $0x28] sm:$0xff]
    %v238 = vld [vmem:[#allocation2 + $0x30] sm:$0xff]
    %v239 = vld [vmem:[#allocation2 + $0x38] sm:$0xff]
    %v240 = vld [vmem:[#allocation2 + $0x40] sm:$0xff]
    %v241 = vld [vmem:[#allocation2 + $0x48] sm:$0xff]
    %v242 = vld [vmem:[#allocation2 + $0x50] sm:$0xff]
    %v243 = vld [vmem:[#allocation2 + $0x58] sm:$0xff]
    %v244 = vld [vmem:[#allocation2 + $0x60] sm:$0xff]
    %v245 = vld [vmem:[#allocation2 + $0x68] sm:$0xff]
    %v246 = vld [vmem:[#allocation2 + $0x70] sm:$0xff]
    %v247 = vld [vmem:[#allocation2 + $0x78] sm:$0xff]
    %v248 = vld [vmem:[%s2] sm:$0x1]
    %v250 = vperm.slane %v248, 0
    %v252 = vadd.f32 %v232, %v250
    %v253 = vadd.f32 %v233, %v250
    %v254 = vadd.f32 %v234, %v250
    %v255 = vadd.f32 %v235, %v250
    %v256 = vadd.f32 %v236, %v250
    %v257 = vadd.f32 %v237, %v250
    %v258 = vadd.f32 %v238, %v250
    %v259 = vadd.f32 %v239, %v250
    %v260 = vadd.f32 %v240, %v250
    %v261 = vadd.f32 %v241, %v250
    %v262 = vadd.f32 %v242, %v250
    %v263 = vadd.f32 %v243, %v250
    %v264 = vadd.f32 %v244, %v250
    %v265 = vadd.f32 %v245, %v250
    %v266 = vadd.f32 %v246, %v250
    %v267 = vadd.f32 %v247, %v250
    %v268 = vxor.u32 %v252, 2147483648
    %v269 = vxor.u32 %v253, 2147483648
    %v270 = vxor.u32 %v254, 2147483648
    %v271 = vxor.u32 %v255, 2147483648
    %v272 = vxor.u32 %v256, 2147483648
    %v273 = vxor.u32 %v257, 2147483648
    %v274 = vxor.u32 %v258, 2147483648
    %v275 = vxor.u32 %v259, 2147483648
    %v276 = vxor.u32 %v260, 2147483648
    %v277 = vxor.u32 %v261, 2147483648
    %v278 = vxor.u32 %v262, 2147483648
    %v279 = vxor.u32 %v263, 2147483648
    %v280 = vxor.u32 %v264, 2147483648
    %v281 = vxor.u32 %v265, 2147483648
    %v282 = vxor.u32 %v266, 2147483648
    %v283 = vxor.u32 %v267, 2147483648
    %v284 = vmul.f32 %v268, 1.442695
    %v285 = vpow.pop %v284
    %v286 = vmul.f32 %v269, 1.442695
    %v287 = vpow.pop %v286
    %v288 = vmul.f32 %v270, 1.442695
    %v289 = vpow.pop %v288
    %v290 = vmul.f32 %v271, 1.442695
    %v291 = vpow.pop %v290
    %v292 = vmul.f32 %v272, 1.442695
    %v293 = vpow.pop %v292
    %v294 = vmul.f32 %v273, 1.442695
    %v295 = vpow.pop %v294
    %v296 = vmul.f32 %v274, 1.442695
    %v297 = vpow.pop %v296
    %v298 = vmul.f32 %v275, 1.442695
    %v299 = vpow.pop %v298
    %v300 = vmul.f32 %v276, 1.442695
    %v301 = vpow.pop %v300
    %v302 = vmul.f32 %v277, 1.442695
    %v303 = vpow.pop %v302
    %v304 = vmul.f32 %v278, 1.442695
    %v305 = vpow.pop %v304
    %v306 = vmul.f32 %v279, 1.442695
    %v307 = vpow.pop %v306
    %v308 = vmul.f32 %v280, 1.442695
    %v309 = vpow.pop %v308
    %v310 = vmul.f32 %v281, 1.442695
    %v311 = vpow.pop %v310
    %v312 = vmul.f32 %v282, 1.442695
    %v313 = vpow.pop %v312
    %v314 = vmul.f32 %v283, 1.442695
    %v315 = vpow.pop %v314
    %v316 = vadd.f32 %v285, 1.0
    %v317 = vadd.f32 %v287, 1.0
    %v318 = vadd.f32 %v289, 1.0
    %v319 = vadd.f32 %v291, 1.0
    %v320 = vadd.f32 %v293, 1.0
    %v321 = vadd.f32 %v295, 1.0
    %v322 = vadd.f32 %v297, 1.0
    %v323 = vadd.f32 %v299, 1.0
    %v324 = vadd.f32 %v301, 1.0
    %v325 = vadd.f32 %v303, 1.0
    %v326 = vadd.f32 %v305, 1.0
    %v327 = vadd.f32 %v307, 1.0
    %v328 = vadd.f32 %v309, 1.0
    %v329 = vadd.f32 %v311, 1.0
    %v330 = vadd.f32 %v313, 1.0
    %v331 = vadd.f32 %v315, 1.0
    %v332 = vrcp.pop %v316
    %v333 = vmul.f32 %v316, %v332
    %v334 = vsub.f32 1.0, %v333
    %v335 = vmul.f32 %v332, %v334
    %v336 = vadd.f32 %v332, %v335
    %vm337 = vweird.f32 %v316
    %vm338 = vweird.f32 %v332
    %vm339 = vmor %vm337, %vm338
    %v340 = vsel %vm339, %v332, %v336
    %v341 = vand.u32 2147483647, %v316
    %vm342 = vcmp.eq.f32.partialorder %v341, 8.507059e+37
    %v343 = vand.u32 %v316, 2147483648
    %v344 = vor.u32 1.1754944e-38, %v343
    %v345 = vsel %vm342, %v344, %v340
    %v346 = vmul.f32 1.0, %v345
    %v347 = vrcp.pop %v317
    %v348 = vmul.f32 %v317, %v347
    %v349 = vsub.f32 1.0, %v348
    %v350 = vmul.f32 %v347, %v349
    %v351 = vadd.f32 %v347, %v350
    %vm352 = vweird.f32 %v317
    %vm353 = vweird.f32 %v347
    %vm354 = vmor %vm352, %vm353
    %v355 = vsel %vm354, %v347, %v351
    %v356 = vand.u32 2147483647, %v317
    %vm357 = vcmp.eq.f32.partialorder %v356, 8.507059e+37
    %v358 = vand.u32 %v317, 2147483648
    %v359 = vor.u32 1.1754944e-38, %v358
    %v360 = vsel %vm357, %v359, %v355
    %v361 = vmul.f32 1.0, %v360
    %v362 = vrcp.pop %v318
    %v363 = vmul.f32 %v318, %v362
    %v364 = vsub.f32 1.0, %v363
    %v365 = vmul.f32 %v362, %v364
    %v366 = vadd.f32 %v362, %v365
    %vm367 = vweird.f32 %v318
    %vm368 = vweird.f32 %v362
    %vm369 = vmor %vm367, %vm368
    %v370 = vsel %vm369, %v362, %v366
    %v371 = vand.u32 2147483647, %v318
    %vm372 = vcmp.eq.f32.partialorder %v371, 8.507059e+37
    %v373 = vand.u32 %v318, 2147483648
    %v374 = vor.u32 1.1754944e-38, %v373
    %v375 = vsel %vm372, %v374, %v370
    %v376 = vmul.f32 1.0, %v375
    %v377 = vrcp.pop %v319
    %v378 = vmul.f32 %v319, %v377
    %v379 = vsub.f32 1.0, %v378
    %v380 = vmul.f32 %v377, %v379
    %v381 = vadd.f32 %v377, %v380
    %vm382 = vweird.f32 %v319
    %vm383 = vweird.f32 %v377
    %vm384 = vmor %vm382, %vm383
    %v385 = vsel %vm384, %v377, %v381
    %v386 = vand.u32 2147483647, %v319
    %vm387 = vcmp.eq.f32.partialorder %v386, 8.507059e+37
    %v388 = vand.u32 %v319, 2147483648
    %v389 = vor.u32 1.1754944e-38, %v388
    %v390 = vsel %vm387, %v389, %v385
    %v391 = vmul.f32 1.0, %v390
    %v392 = vrcp.pop %v320
    %v393 = vmul.f32 %v320, %v392
    %v394 = vsub.f32 1.0, %v393
    %v395 = vmul.f32 %v392, %v394
    %v396 = vadd.f32 %v392, %v395
    %vm397 = vweird.f32 %v320
    %vm398 = vweird.f32 %v392
    %vm399 = vmor %vm397, %vm398
    %v400 = vsel %vm399, %v392, %v396
    %v401 = vand.u32 2147483647, %v320
    %vm402 = vcmp.eq.f32.partialorder %v401, 8.507059e+37
    %v403 = vand.u32 %v320, 2147483648
    %v404 = vor.u32 1.1754944e-38, %v403
    %v405 = vsel %vm402, %v404, %v400
    %v406 = vmul.f32 1.0, %v405
    %v407 = vrcp.pop %v321
    %v408 = vmul.f32 %v321, %v407
    %v409 = vsub.f32 1.0, %v408
    %v410 = vmul.f32 %v407, %v409
    %v411 = vadd.f32 %v407, %v410
    %vm412 = vweird.f32 %v321
    %vm413 = vweird.f32 %v407
    %vm414 = vmor %vm412, %vm413
    %v415 = vsel %vm414, %v407, %v411
    %v416 = vand.u32 2147483647, %v321
    %vm417 = vcmp.eq.f32.partialorder %v416, 8.507059e+37
    %v418 = vand.u32 %v321, 2147483648
    %v419 = vor.u32 1.1754944e-38, %v418
    %v420 = vsel %vm417, %v419, %v415
    %v421 = vmul.f32 1.0, %v420
    %v422 = vrcp.pop %v322
    %v423 = vmul.f32 %v322, %v422
    %v424 = vsub.f32 1.0, %v423
    %v425 = vmul.f32 %v422, %v424
    %v426 = vadd.f32 %v422, %v425
    %vm427 = vweird.f32 %v322
    %vm428 = vweird.f32 %v422
    %vm429 = vmor %vm427, %vm428
    %v430 = vsel %vm429, %v422, %v426
    %v431 = vand.u32 2147483647, %v322
    %vm432 = vcmp.eq.f32.partialorder %v431, 8.507059e+37
    %v433 = vand.u32 %v322, 2147483648
    %v434 = vor.u32 1.1754944e-38, %v433
    %v435 = vsel %vm432, %v434, %v430
    %v436 = vmul.f32 1.0, %v435
    %v437 = vrcp.pop %v323
    %v438 = vmul.f32 %v323, %v437
    %v439 = vsub.f32 1.0, %v438
    %v440 = vmul.f32 %v437, %v439
    %v441 = vadd.f32 %v437, %v440
    %vm442 = vweird.f32 %v323
    %vm443 = vweird.f32 %v437
    %vm444 = vmor %vm442, %vm443
    %v445 = vsel %vm444, %v437, %v441
    %v446 = vand.u32 2147483647, %v323
    %vm447 = vcmp.eq.f32.partialorder %v446, 8.507059e+37
    %v448 = vand.u32 %v323, 2147483648
    %v449 = vor.u32 1.1754944e-38, %v448
    %v450 = vsel %vm447, %v449, %v445
    %v451 = vmul.f32 1.0, %v450
    %v452 = vrcp.pop %v324
    %v453 = vmul.f32 %v324, %v452
    %v454 = vsub.f32 1.0, %v453
    %v455 = vmul.f32 %v452, %v454
    %v456 = vadd.f32 %v452, %v455
    %vm457 = vweird.f32 %v324
    %vm458 = vweird.f32 %v452
    %vm459 = vmor %vm457, %vm458
    %v460 = vsel %vm459, %v452, %v456
    %v461 = vand.u32 2147483647, %v324
    %vm462 = vcmp.eq.f32.partialorder %v461, 8.507059e+37
    %v463 = vand.u32 %v324, 2147483648
    %v464 = vor.u32 1.1754944e-38, %v463
    %v465 = vsel %vm462, %v464, %v460
    %v466 = vmul.f32 1.0, %v465
    %v467 = vrcp.pop %v325
    %v468 = vmul.f32 %v325, %v467
    %v469 = vsub.f32 1.0, %v468
    %v470 = vmul.f32 %v467, %v469
    %v471 = vadd.f32 %v467, %v470
    %vm472 = vweird.f32 %v325
    %vm473 = vweird.f32 %v467
    %vm474 = vmor %vm472, %vm473
    %v475 = vsel %vm474, %v467, %v471
    %v476 = vand.u32 2147483647, %v325
    %vm477 = vcmp.eq.f32.partialorder %v476, 8.507059e+37
    %v478 = vand.u32 %v325, 2147483648
    %v479 = vor.u32 1.1754944e-38, %v478
    %v480 = vsel %vm477, %v479, %v475
    %v481 = vmul.f32 1.0, %v480
    %v482 = vrcp.pop %v326
    %v483 = vmul.f32 %v326, %v482
    %v484 = vsub.f32 1.0, %v483
    %v485 = vmul.f32 %v482, %v484
    %v486 = vadd.f32 %v482, %v485
    %vm487 = vweird.f32 %v326
    %vm488 = vweird.f32 %v482
    %vm489 = vmor %vm487, %vm488
    %v490 = vsel %vm489, %v482, %v486
    %v491 = vand.u32 2147483647, %v326
    %vm492 = vcmp.eq.f32.partialorder %v491, 8.507059e+37
    %v493 = vand.u32 %v326, 2147483648
    %v494 = vor.u32 1.1754944e-38, %v493
    %v495 = vsel %vm492, %v494, %v490
    %v496 = vmul.f32 1.0, %v495
    %v497 = vrcp.pop %v327
    %v498 = vmul.f32 %v327, %v497
    %v499 = vsub.f32 1.0, %v498
    %v500 = vmul.f32 %v497, %v499
    %v501 = vadd.f32 %v497, %v500
    %vm502 = vweird.f32 %v327
    %vm503 = vweird.f32 %v497
    %vm504 = vmor %vm502, %vm503
    %v505 = vsel %vm504, %v497, %v501
    %v506 = vand.u32 2147483647, %v327
    %vm507 = vcmp.eq.f32.partialorder %v506, 8.507059e+37
    %v508 = vand.u32 %v327, 2147483648
    %v509 = vor.u32 1.1754944e-38, %v508
    %v510 = vsel %vm507, %v509, %v505
    %v511 = vmul.f32 1.0, %v510
    %v512 = vrcp.pop %v328
    %v513 = vmul.f32 %v328, %v512
    %v514 = vsub.f32 1.0, %v513
    %v515 = vmul.f32 %v512, %v514
    %v516 = vadd.f32 %v512, %v515
    %vm517 = vweird.f32 %v328
    %vm518 = vweird.f32 %v512
    %vm519 = vmor %vm517, %vm518
    %v520 = vsel %vm519, %v512, %v516
    %v521 = vand.u32 2147483647, %v328
    %vm522 = vcmp.eq.f32.partialorder %v521, 8.507059e+37
    %v523 = vand.u32 %v328, 2147483648
    %v524 = vor.u32 1.1754944e-38, %v523
    %v525 = vsel %vm522, %v524, %v520
    %v526 = vmul.f32 1.0, %v525
    %v527 = vrcp.pop %v329
    %v528 = vmul.f32 %v329, %v527
    %v529 = vsub.f32 1.0, %v528
    %v530 = vmul.f32 %v527, %v529
    %v531 = vadd.f32 %v527, %v530
    %vm532 = vweird.f32 %v329
    %vm533 = vweird.f32 %v527
    %vm534 = vmor %vm532, %vm533
    %v535 = vsel %vm534, %v527, %v531
    %v536 = vand.u32 2147483647, %v329
    %vm537 = vcmp.eq.f32.partialorder %v536, 8.507059e+37
    %v538 = vand.u32 %v329, 2147483648
    %v539 = vor.u32 1.1754944e-38, %v538
    %v540 = vsel %vm537, %v539, %v535
    %v541 = vmul.f32 1.0, %v540
    %v542 = vrcp.pop %v330
    %v543 = vmul.f32 %v330, %v542
    %v544 = vsub.f32 1.0, %v543
    %v545 = vmul.f32 %v542, %v544
    %v546 = vadd.f32 %v542, %v545
    %vm547 = vweird.f32 %v330
    %vm548 = vweird.f32 %v542
    %vm549 = vmor %vm547, %vm548
    %v550 = vsel %vm549, %v542, %v546
    %v551 = vand.u32 2147483647, %v330
    %vm552 = vcmp.eq.f32.partialorder %v551, 8.507059e+37
    %v553 = vand.u32 %v330, 2147483648
    %v554 = vor.u32 1.1754944e-38, %v553
    %v555 = vsel %vm552, %v554, %v550
    %v556 = vmul.f32 1.0, %v555
    %v557 = vrcp.pop %v331
    %v558 = vmul.f32 %v331, %v557
    %v559 = vsub.f32 1.0, %v558
    %v560 = vmul.f32 %v557, %v559
    %v561 = vadd.f32 %v557, %v560
    %vm562 = vweird.f32 %v331
    %vm563 = vweird.f32 %v557
    %vm564 = vmor %vm562, %vm563
    %v565 = vsel %vm564, %v557, %v561
    %v566 = vand.u32 2147483647, %v331
    %vm567 = vcmp.eq.f32.partialorder %v566, 8.507059e+37
    %v568 = vand.u32 %v331, 2147483648
    %v569 = vor.u32 1.1754944e-38, %v568
    %v570 = vsel %vm567, %v569, %v565
    %v571 = vmul.f32 1.0, %v570
    %v572 = vmul.f32 %v252, %v346
    %v573 = vmul.f32 %v253, %v361
    %v574 = vmul.f32 %v254, %v376
    %v575 = vmul.f32 %v255, %v391
    %v576 = vmul.f32 %v256, %v406
    %v577 = vmul.f32 %v257, %v421
    %v578 = vmul.f32 %v258, %v436
    %v579 = vmul.f32 %v259, %v451
    %v580 = vmul.f32 %v260, %v466
    %v581 = vmul.f32 %v261, %v481
    %v582 = vmul.f32 %v262, %v496
    %v583 = vmul.f32 %v263, %v511
    %v584 = vmul.f32 %v264, %v526
    %v585 = vmul.f32 %v265, %v541
    %v586 = vmul.f32 %v266, %v556
    %v587 = vmul.f32 %v267, %v571
    %588 = vst [vmem:[%s3] sm:$0xff] %v572
    %589 = vst [vmem:[%s3 + $0x8] sm:$0xff] %v573
    %590 = vst [vmem:[%s3 + $0x10] sm:$0xff] %v574
    %591 = vst [vmem:[%s3 + $0x18] sm:$0xff] %v575
    %592 = vst [vmem:[%s3 + $0x20] sm:$0xff] %v576
    %593 = vst [vmem:[%s3 + $0x28] sm:$0xff] %v577
    %594 = vst [vmem:[%s3 + $0x30] sm:$0xff] %v578
    %595 = vst [vmem:[%s3 + $0x38] sm:$0xff] %v579
    %596 = vst [vmem:[%s3 + $0x40] sm:$0xff] %v580
    %597 = vst [vmem:[%s3 + $0x48] sm:$0xff] %v581
    %598 = vst [vmem:[%s3 + $0x50] sm:$0xff] %v582
    %599 = vst [vmem:[%s3 + $0x58] sm:$0xff] %v583
    %600 = vst [vmem:[%s3 + $0x60] sm:$0xff] %v584
    %601 = vst [vmem:[%s3 + $0x68] sm:$0xff] %v585
    %602 = vst [vmem:[%s3 + $0x70] sm:$0xff] %v586
    %603 = vst [vmem:[%s3 + $0x78] sm:$0xff] %v587
  $region21: #{_lambda_.12} parent=0 // pred_fallthru
    _
  // Predicated region
  $region22: #{_lambda_.12} parent=0 // pred_check
    _
  $region23: #{_lambda_.12} parent=0 // pred_check_branch
    %605 = sbr.rel (0) target = $region25
  $region24: #{_lambda_.12} parent=0 // pred_region
    _
  $region25: #{_lambda_.12} parent=0 // pred_fallthru
    _
  // Predicated region
  $region26: #{_lambda_.12} parent=0 // pred_check
    _
  $region27: #{_lambda_.12} parent=0 // pred_check_branch
    %607 = sbr.rel (0) target = $region29
  $region28: #{_lambda_.12} parent=0 // pred_region
    _
  $region29: #{_lambda_.12} parent=0 // pred_fallthru
    _

// kernel: _lambda_.15
$region0: #{_lambda_.15}
  #allocation0 [shape = 'u32[]', space=smem, size = 0x4, offset = 0x4, fixed_abs, tag = 'smem constant byte address 0x4 - core index']
  #allocation1 [shape = 'u32[72,128]{1,0:T(1,128)}', space=vmem, size = 0x9000, scoped, tag = 'internal scratch']
  #allocation2 [shape = 'f32[128,128]{1,0:T(8,128)}', space=vmem, size = 0x10000, scoped, tag = 'scratch operand']
  %s0 = inlined_call_operand.vmem [shape: bf16[128,36], index: 0, kind: input, shape index: {}]
  %s1 = inlined_call_operand.vmem [shape: bf16[36,128], index: 1, kind: input, shape index: {}]
  %s2 = inlined_call_operand.vmem [shape: f32[1,128], index: 2, kind: input, shape index: {}]
  %s3 = inlined_call_operand.vmem [shape: f32[128,128], index: 3, kind: output, shape index: {}]
  %s4 = sld [smem:[#allocation0]]
  $region30: #{_lambda_.15} parent=0
    _
  %s6 = ssub.s32 1, %s4
  %s7 = scalar_select 0, %s6, %s4
  // Predicated region
  $region2: #{_lambda_.15} parent=0 // pred_check
    _
  $region3: #{_lambda_.15} parent=0 // pred_check_branch
    %9 = sbr.rel (0) target = $region5
  $region4: #{_lambda_.15} parent=0 // pred_region
    _
  $region5: #{_lambda_.15} parent=0 // pred_fallthru
    _
  // Predicated region
  $region6: #{_lambda_.15} parent=0 // pred_check
    _
  $region7: #{_lambda_.15} parent=0 // pred_check_branch
    %11 = sbr.rel (0) target = $region9
  $region8: #{_lambda_.15} parent=0 // pred_region
    _
  $region9: #{_lambda_.15} parent=0 // pred_fallthru
    _
  // Predicated region
  $region10: #{_lambda_.15} parent=0 // pred_check
    _
  $region11: #{_lambda_.15} parent=0 // pred_check_branch
    %13 = sbr.rel (0) target = $region13
  $region12: #{_lambda_.15} parent=0 // pred_region
    _
  $region13: #{_lambda_.15} parent=0 // pred_fallthru
    _
  %p15 = scmp.eq.s32.totalorder 0, 0
  // Predicated region
  $region14: #{_lambda_.15} parent=0 // pred_check
    %p16 = pneg %p15
  $region15: #{_lambda_.15} parent=0 // pred_check_branch
    %18 = sbr.rel (%p16) target = $region17
  $region16: #{_lambda_.15} parent=0 // pred_region
    %19 = vst [vmem:[#allocation2] sm:$0xff] 0.0
    %20 = vst [vmem:[#allocation2 + $0x8] sm:$0xff] 0.0
    %21 = vst [vmem:[#allocation2 + $0x10] sm:$0xff] 0.0
    %22 = vst [vmem:[#allocation2 + $0x18] sm:$0xff] 0.0
    %23 = vst [vmem:[#allocation2 + $0x20] sm:$0xff] 0.0
    %24 = vst [vmem:[#allocation2 + $0x28] sm:$0xff] 0.0
    %25 = vst [vmem:[#allocation2 + $0x30] sm:$0xff] 0.0
    %26 = vst [vmem:[#allocation2 + $0x38] sm:$0xff] 0.0
    %27 = vst [vmem:[#allocation2 + $0x40] sm:$0xff] 0.0
    %28 = vst [vmem:[#allocation2 + $0x48] sm:$0xff] 0.0
    %29 = vst [vmem:[#allocation2 + $0x50] sm:$0xff] 0.0
    %30 = vst [vmem:[#allocation2 + $0x58] sm:$0xff] 0.0
    %31 = vst [vmem:[#allocation2 + $0x60] sm:$0xff] 0.0
    %32 = vst [vmem:[#allocation2 + $0x68] sm:$0xff] 0.0
    %33 = vst [vmem:[#allocation2 + $0x70] sm:$0xff] 0.0
    %34 = vst [vmem:[#allocation2 + $0x78] sm:$0xff] 0.0
  $region17: #{_lambda_.15} parent=0 // pred_fallthru
    _
  %v35 = vld [vmem:[#allocation2] sm:$0xff]
  %v36 = vld [vmem:[#allocation2 + $0x8] sm:$0xff]
  %v37 = vld [vmem:[#allocation2 + $0x10] sm:$0xff]
  %v38 = vld [vmem:[#allocation2 + $0x18] sm:$0xff]
  %v39 = vld [vmem:[#allocation2 + $0x20] sm:$0xff]
  %v40 = vld [vmem:[#allocation2 + $0x28] sm:$0xff]
  %v41 = vld [vmem:[#allocation2 + $0x30] sm:$0xff]
  %v42 = vld [vmem:[#allocation2 + $0x38] sm:$0xff]
  %v43 = vld [vmem:[#allocation2 + $0x40] sm:$0xff]
  %v44 = vld [vmem:[#allocation2 + $0x48] sm:$0xff]
  %v45 = vld [vmem:[#allocation2 + $0x50] sm:$0xff]
  %v46 = vld [vmem:[#allocation2 + $0x58] sm:$0xff]
  %v47 = vld [vmem:[#allocation2 + $0x60] sm:$0xff]
  %v48 = vld [vmem:[#allocation2 + $0x68] sm:$0xff]
  %v49 = vld [vmem:[#allocation2 + $0x70] sm:$0xff]
  %v50 = vld [vmem:[#allocation2 + $0x78] sm:$0xff]
  %v51 = vld [vmem:[%s0] sm:$0xf]
  %v52 = vld [vmem:[%s0 + $0x4] sm:$0xf]
  %v53 = vld [vmem:[%s0 + $0x8] sm:$0xf]
  %v54 = vld [vmem:[%s0 + $0xc] sm:$0xf]
  %v55 = vld [vmem:[%s0 + $0x10] sm:$0xf]
  %v56 = vld [vmem:[%s0 + $0x14] sm:$0xf]
  %v57 = vld [vmem:[%s0 + $0x18] sm:$0xf]
  %v58 = vld [vmem:[%s0 + $0x1c] sm:$0xf]
  %v59 = vld [vmem:[%s0 + $0x20] sm:$0xf]
  %v60 = vld [vmem:[%s0 + $0x24] sm:$0xf]
  %v61 = vld [vmem:[%s0 + $0x28] sm:$0xf]
  %v62 = vld [vmem:[%s0 + $0x2c] sm:$0xf]
  %v63 = vld [vmem:[%s0 + $0x30] sm:$0xf]
  %v64 = vld [vmem:[%s0 + $0x34] sm:$0xf]
  %v65 = vld [vmem:[%s0 + $0x38] sm:$0xf]
  %v66 = vld [vmem:[%s0 + $0x3c] sm:$0xf]
  %v67 = vld [vmem:[%s1] sm:$0xf]
  %v68 = vld [vmem:[%s1 + $0x4] sm:$0xf]
  %v69 = vld [vmem:[%s1 + $0x8] sm:$0xf]
  %v70 = vld [vmem:[%s1 + $0xc] sm:$0xf]
  %v71 = vld [vmem:[%s1 + $0x10] sm:$0x3]
  %v88 = vunpack.c.l.b16 %v51
  %v89 = vunpack.c.l.b16 %v52
  %v90 = vunpack.c.l.b16 %v53
  %v91 = vunpack.c.l.b16 %v54
  %v92 = vunpack.c.l.b16 %v55
  %v93 = vunpack.c.l.b16 %v56
  %v94 = vunpack.c.l.b16 %v57
  %v95 = vunpack.c.l.b16 %v58
  %v96 = vunpack.c.l.b16 %v59
  %v97 = vunpack.c.l.b16 %v60
  %v98 = vunpack.c.l.b16 %v61
  %v99 = vunpack.c.l.b16 %v62
  %v100 = vunpack.c.l.b16 %v63
  %v101 = vunpack.c.l.b16 %v64
  %v102 = vunpack.c.l.b16 %v65
  %v103 = vunpack.c.l.b16 %v66
  %v104 = vpack.c.b16 %v89, %v88
  %v105 = vpack.c.b16 %v91, %v90
  %v106 = vpack.c.b16 %v93, %v92
  %v107 = vpack.c.b16 %v95, %v94
  %v108 = vpack.c.b16 %v97, %v96
  %v109 = vpack.c.b16 %v99, %v98
  %v110 = vpack.c.b16 %v101, %v100
  %v111 = vpack.c.b16 %v103, %v102
  %v117 = vunpack.c.l.b16 %v67
  %v118 = vunpack.c.l.b16 %v68
  %v119 = vunpack.c.l.b16 %v69
  %v120 = vunpack.c.l.b16 %v70
  %v121 = vunpack.c.l.b16 %v71
  %v122 = vpack.c.b16 %v118, %v117
  %v123 = vpack.c.b16 %v120, %v119
  %v124 = vpack.c.b16 %v121, %v121
  %vm127 = vcmask 293888
  %v129 = vsel %vm127, %v104, 0
  %v132 = vsel %vm127, %v105, 0
  %v135 = vsel %vm127, %v106, 0
  %v138 = vsel %vm127, %v107, 0
  %v141 = vsel %vm127, %v108, 0
  %v144 = vsel %vm127, %v109, 0
  %v147 = vsel %vm127, %v110, 0
  %v150 = vsel %vm127, %v111, 0
  %vm152 = vcmask 1041408
  %v154 = vsel %vm152, %v124, 0
  %156 = vmatpush.bf16.msra.mxu0 0
  %157 = vmatpush.bf16.msra.mxu0 0
  %158 = vmatpush.bf16.msra.mxu0 0
  %159 = vmatpush.bf16.msra.mxu0 0
  %160 = vmatpush.bf16.msra.mxu0 0
  %161 = vmatpush.bf16.msra.mxu0 %v154
  %162 = vmatpush.bf16.msra.mxu0 %v123
  %163 = vmatpush.bf16.msra.mxu0 %v122
  %164 = vmatmul.bf16.gmra.mxu0 %v129
  %v165 = vpop.f32.mrf.mxu0
  %v166 = vadd.f32 0.0, %v165
  %v167 = vpop.f32.mrf.mxu0
  %v168 = vadd.f32 0.0, %v167
  %169 = vmatmul.bf16.gmra.mxu0 %v132
  %v170 = vpop.f32.mrf.mxu0
  %v171 = vadd.f32 0.0, %v170
  %v172 = vpop.f32.mrf.mxu0
  %v173 = vadd.f32 0.0, %v172
  %174 = vmatmul.bf16.gmra.mxu0 %v135
  %v175 = vpop.f32.mrf.mxu0
  %v176 = vadd.f32 0.0, %v175
  %v177 = vpop.f32.mrf.mxu0
  %v178 = vadd.f32 0.0, %v177
  %179 = vmatmul.bf16.gmra.mxu0 %v138
  %v180 = vpop.f32.mrf.mxu0
  %v181 = vadd.f32 0.0, %v180
  %v182 = vpop.f32.mrf.mxu0
  %v183 = vadd.f32 0.0, %v182
  %184 = vmatmul.bf16.gmra.mxu0 %v141
  %v185 = vpop.f32.mrf.mxu0
  %v186 = vadd.f32 0.0, %v185
  %v187 = vpop.f32.mrf.mxu0
  %v188 = vadd.f32 0.0, %v187
  %189 = vmatmul.bf16.gmra.mxu0 %v144
  %v190 = vpop.f32.mrf.mxu0
  %v191 = vadd.f32 0.0, %v190
  %v192 = vpop.f32.mrf.mxu0
  %v193 = vadd.f32 0.0, %v192
  %194 = vmatmul.bf16.gmra.mxu0 %v147
  %v195 = vpop.f32.mrf.mxu0
  %v196 = vadd.f32 0.0, %v195
  %v197 = vpop.f32.mrf.mxu0
  %v198 = vadd.f32 0.0, %v197
  %199 = vmatmul.bf16.gmra.mxu0 %v150
  %v200 = vpop.f32.mrf.mxu0
  %v201 = vadd.f32 0.0, %v200
  %v202 = vpop.f32.mrf.mxu0
  %v203 = vadd.f32 0.0, %v202
  %204 = vdwg.mxu0
  %v205 = vadd.f32 %v35, %v166
  %v206 = vadd.f32 %v36, %v168
  %v207 = vadd.f32 %v37, %v171
  %v208 = vadd.f32 %v38, %v173
  %v209 = vadd.f32 %v39, %v176
  %v210 = vadd.f32 %v40, %v178
  %v211 = vadd.f32 %v41, %v181
  %v212 = vadd.f32 %v42, %v183
  %v213 = vadd.f32 %v43, %v186
  %v214 = vadd.f32 %v44, %v188
  %v215 = vadd.f32 %v45, %v191
  %v216 = vadd.f32 %v46, %v193
  %v217 = vadd.f32 %v47, %v196
  %v218 = vadd.f32 %v48, %v198
  %v219 = vadd.f32 %v49, %v201
  %v220 = vadd.f32 %v50, %v203
  %221 = vst [vmem:[#allocation2] sm:$0xff] %v205
  %222 = vst [vmem:[#allocation2 + $0x8] sm:$0xff] %v206
  %223 = vst [vmem:[#allocation2 + $0x10] sm:$0xff] %v207
  %224 = vst [vmem:[#allocation2 + $0x18] sm:$0xff] %v208
  %225 = vst [vmem:[#allocation2 + $0x20] sm:$0xff] %v209
  %226 = vst [vmem:[#allocation2 + $0x28] sm:$0xff] %v210
  %227 = vst [vmem:[#allocation2 + $0x30] sm:$0xff] %v211
  %228 = vst [vmem:[#allocation2 + $0x38] sm:$0xff] %v212
  %229 = vst [vmem:[#allocation2 + $0x40] sm:$0xff] %v213
  %230 = vst [vmem:[#allocation2 + $0x48] sm:$0xff] %v214
  %231 = vst [vmem:[#allocation2 + $0x50] sm:$0xff] %v215
  %232 = vst [vmem:[#allocation2 + $0x58] sm:$0xff] %v216
  %233 = vst [vmem:[#allocation2 + $0x60] sm:$0xff] %v217
  %234 = vst [vmem:[#allocation2 + $0x68] sm:$0xff] %v218
  %235 = vst [vmem:[#allocation2 + $0x70] sm:$0xff] %v219
  %236 = vst [vmem:[#allocation2 + $0x78] sm:$0xff] %v220
  // Predicated region
  $region18: #{_lambda_.15} parent=0 // pred_check
    %p237 = pneg %p15
  $region19: #{_lambda_.15} parent=0 // pred_check_branch
    %239 = sbr.rel (%p237) target = $region21
  $region20: #{_lambda_.15} parent=0 // pred_region
    %v240 = vld [vmem:[#allocation2] sm:$0xff]
    %v241 = vld [vmem:[#allocation2 + $0x8] sm:$0xff]
    %v242 = vld [vmem:[#allocation2 + $0x10] sm:$0xff]
    %v243 = vld [vmem:[#allocation2 + $0x18] sm:$0xff]
    %v244 = vld [vmem:[#allocation2 + $0x20] sm:$0xff]
    %v245 = vld [vmem:[#allocation2 + $0x28] sm:$0xff]
    %v246 = vld [vmem:[#allocation2 + $0x30] sm:$0xff]
    %v247 = vld [vmem:[#allocation2 + $0x38] sm:$0xff]
    %v248 = vld [vmem:[#allocation2 + $0x40] sm:$0xff]
    %v249 = vld [vmem:[#allocation2 + $0x48] sm:$0xff]
    %v250 = vld [vmem:[#allocation2 + $0x50] sm:$0xff]
    %v251 = vld [vmem:[#allocation2 + $0x58] sm:$0xff]
    %v252 = vld [vmem:[#allocation2 + $0x60] sm:$0xff]
    %v253 = vld [vmem:[#allocation2 + $0x68] sm:$0xff]
    %v254 = vld [vmem:[#allocation2 + $0x70] sm:$0xff]
    %v255 = vld [vmem:[#allocation2 + $0x78] sm:$0xff]
    %v256 = vld [vmem:[%s2] sm:$0x1]
    %v258 = vperm.slane %v256, 0
    %v260 = vadd.f32 %v240, %v258
    %v261 = vadd.f32 %v241, %v258
    %v262 = vadd.f32 %v242, %v258
    %v263 = vadd.f32 %v243, %v258
    %v264 = vadd.f32 %v244, %v258
    %v265 = vadd.f32 %v245, %v258
    %v266 = vadd.f32 %v246, %v258
    %v267 = vadd.f32 %v247, %v258
    %v268 = vadd.f32 %v248, %v258
    %v269 = vadd.f32 %v249, %v258
    %v270 = vadd.f32 %v250, %v258
    %v271 = vadd.f32 %v251, %v258
    %v272 = vadd.f32 %v252, %v258
    %v273 = vadd.f32 %v253, %v258
    %v274 = vadd.f32 %v254, %v258
    %v275 = vadd.f32 %v255, %v258
    %276 = vst [vmem:[%s3] sm:$0xff] %v260
    %277 = vst [vmem:[%s3 + $0x8] sm:$0xff] %v261
    %278 = vst [vmem:[%s3 + $0x10] sm:$0xff] %v262
    %279 = vst [vmem:[%s3 + $0x18] sm:$0xff] %v263
    %280 = vst [vmem:[%s3 + $0x20] sm:$0xff] %v264
    %281 = vst [vmem:[%s3 + $0x28] sm:$0xff] %v265
    %282 = vst [vmem:[%s3 + $0x30] sm:$0xff] %v266
    %283 = vst [vmem:[%s3 + $0x38] sm:$0xff] %v267
    %284 = vst [vmem:[%s3 + $0x40] sm:$0xff] %v268
    %285 = vst [vmem:[%s3 + $0x48] sm:$0xff] %v269
    %286 = vst [vmem:[%s3 + $0x50] sm:$0xff] %v270
    %287 = vst [vmem:[%s3 + $0x58] sm:$0xff] %v271
    %288 = vst [vmem:[%s3 + $0x60] sm:$0xff] %v272
    %289 = vst [vmem:[%s3 + $0x68] sm:$0xff] %v273
    %290 = vst [vmem:[%s3 + $0x70] sm:$0xff] %v274
    %291 = vst [vmem:[%s3 + $0x78] sm:$0xff] %v275
  $region21: #{_lambda_.15} parent=0 // pred_fallthru
    _
  // Predicated region
  $region22: #{_lambda_.15} parent=0 // pred_check
    _
  $region23: #{_lambda_.15} parent=0 // pred_check_branch
    %293 = sbr.rel (0) target = $region25
  $region24: #{_lambda_.15} parent=0 // pred_region
    _
  $region25: #{_lambda_.15} parent=0 // pred_fallthru
    _
  // Predicated region
  $region26: #{_lambda_.15} parent=0 // pred_check
    _
  $region27: #{_lambda_.15} parent=0 // pred_check_branch
    %295 = sbr.rel (0) target = $region29
  $region28: #{_lambda_.15} parent=0 // pred_region
    _
  $region29: #{_lambda_.15} parent=0 // pred_fallthru
    _

// kernel: _lambda_.16
$region0: #{_lambda_.16}
  #allocation0 [shape = 'u32[]', space=smem, size = 0x4, offset = 0x4, fixed_abs, tag = 'smem constant byte address 0x4 - core index']
  #allocation1 [shape = 'u32[72,128]{1,0:T(1,128)}', space=vmem, size = 0x9000, scoped, tag = 'internal scratch']
  #allocation2 [shape = 'f32[128,128]{1,0:T(8,128)}', space=vmem, size = 0x10000, scoped, tag = 'scratch operand']
  %s0 = inlined_call_operand.vmem [shape: bf16[128,512], index: 0, kind: input, shape index: {}]
  %s1 = inlined_call_operand.vmem [shape: bf16[512,128], index: 1, kind: input, shape index: {}]
  %s2 = inlined_call_operand.vmem [shape: f32[1,128], index: 2, kind: input, shape index: {}]
  %s3 = inlined_call_operand.vmem [shape: f32[128,128], index: 3, kind: output, shape index: {}]
  %s4 = sld [smem:[#allocation0]]
  $region91: #{_lambda_.16} parent=0
    _
  %s6 = ssub.s32 1, %s4
  %s7 = scalar_select 0, %s6, %s4
  $region1: #{_lambda_.16} parent=0
    #allocation3 [shape = 'u8[131072]{0}', space=vmem, size = 0x20000, scoped, tag = 'input window, operand 0']
    loop: start=0, step=1, limit=4
    $region2: #{_lambda_.16} parent=1 // loop_pre_header
      _
    $region3: #{_lambda_.16} parent=1 // loop_header
      %s9 = sphi 0, %s13
      %p10 = scmp.ge.s32.totalorder %s9, 4
      %s16 = sphi 0, %s28
      %s17 = sphi 0, %s24
      %s18 = sphi 0, %s16
      %s19 = sphi 0, %s17
      %s20 = sphi 0, %s18
      %s21 = sphi 0, %s19
      %s33 = sphi 0, %s35
      %s36 = sphi 0, %s33
      %s37 = sphi 0, %s36
      %s53 = sphi 0, %s37
      %s59 = sphi 0, %s61
      %s62 = sphi 0, %s59
      %s63 = sphi 0, %s62
      %s79 = sphi 0, %s63
      %s83 = sphi 0, %s83
      %s85 = sphi 0, %s83
      %s86 = sphi 0, %s85
      %s100 = sphi 0, %s86
      %s106 = sphi 0, %s108
      %s109 = sphi 0, %s106
      %s110 = sphi 0, %s109
      %s126 = sphi 0, %s110
    $region4: #{_lambda_.16} parent=1 // loop_header_branch
      %12 = sbr.rel (%p10) target = $region8
    $region5: #{_lambda_.16} parent=1 // loop_body
      %s14 = ssub.s32 %s9, 1
      %s15 = ssub.s32 %s9, 2
      %s22 = sadd.s32 1, %s17
      %p23 = scmp.ge.s32.totalorder %s22, 2
      %s24 = scalar_select %p23, 0, %s22
      %s25 = sadd.s32 1, %s16
      %s26 = scalar_select %p23, %s25, %s16
      %p27 = scmp.ge.s32.totalorder %s26, 1
      %s28 = scalar_select %p27, 0, %s26
      %s29 = ssub.s32 %s16, %s28
      %s30 = ssub.s32 %s17, %s24
      %s31 = sor.u32 %s29, %s30
      %p32 = scmp.eq.s32.totalorder %s31, 0
      %s34 = sadd.s32 %s33, 1
      %s35 = scalar_select %p32, %s33, %s34
      %p38 = pneg %p32
      %p39 = scmp.eq.s32.totalorder %s9, 1
      %p40 = por %p38, %p39
      %p41 = scmp.ne.s32.totalorder %s33, %s36
      %p42 = scmp.eq.s32.totalorder %s9, 0
      %p43 = por %p41, %p42
      %p44 = scmp.ne.s32.totalorder %s33, %s36
      %p45 = scmp.eq.s32.totalorder %s14, 1
      %p46 = por %p44, %p45
      %p47 = scmp.ne.s32.totalorder %s36, %s37
      %p48 = scmp.eq.s32.totalorder %s14, 0
      %p49 = por %p47, %p48
      %p50 = scmp.ne.s32.totalorder %s36, %s37
      %p51 = scmp.eq.s32.totalorder %s15, 1
      %p52 = por %p50, %p51
      %p54 = scmp.ne.s32.totalorder %s37, %s53
      %p55 = scmp.eq.s32.totalorder %s15, 0
      %p56 = por %p54, %p55
      %s57 = ssub.s32 %s17, %s24
      %p58 = scmp.eq.s32.totalorder %s57, 0
      %s60 = sadd.s32 %s59, 1
      %s61 = scalar_select %p58, %s59, %s60
      %p64 = pneg %p58
      %p65 = scmp.eq.s32.totalorder %s9, 1
      %p66 = por %p64, %p65
      %p67 = scmp.ne.s32.totalorder %s59, %s62
      %p68 = scmp.eq.s32.totalorder %s9, 0
      %p69 = por %p67, %p68
      %p70 = scmp.ne.s32.totalorder %s59, %s62
      %p71 = scmp.eq.s32.totalorder %s14, 1
      %p72 = por %p70, %p71
      %p73 = scmp.ne.s32.totalorder %s62, %s63
      %p74 = scmp.eq.s32.totalorder %s14, 0
      %p75 = por %p73, %p74
      %p76 = scmp.ne.s32.totalorder %s62, %s63
      %p77 = scmp.eq.s32.totalorder %s15, 1
      %p78 = por %p76, %p77
      %p80 = scmp.ne.s32.totalorder %s63, %s79
      %p81 = scmp.eq.s32.totalorder %s15, 0
      %p82 = por %p80, %p81
      %s84 = sadd.s32 %s83, 1
      %p87 = scmp.eq.s32.totalorder %s9, 1
      %p88 = scmp.ne.s32.totalorder %s83, %s85
      %p89 = scmp.eq.s32.totalorder %s9, 0
      %p90 = por %p88, %p89
      %p91 = scmp.ne.s32.totalorder %s83, %s85
      %p92 = scmp.eq.s32.totalorder %s14, 1
      %p93 = por %p91, %p92
      %p94 = scmp.ne.s32.totalorder %s85, %s86
      %p95 = scmp.eq.s32.totalorder %s14, 0
      %p96 = por %p94, %p95
      %p97 = scmp.ne.s32.totalorder %s85, %s86
      %p98 = scmp.eq.s32.totalorder %s15, 1
      %p99 = por %p97, %p98
      %p101 = scmp.ne.s32.totalorder %s86, %s100
      %p102 = scmp.eq.s32.totalorder %s15, 0
      %p103 = por %p101, %p102
      %s104 = ssub.s32 %s16, %s28
      %p105 = scmp.eq.s32.totalorder %s104, 0
      %s107 = sadd.s32 %s106, 1
      %s108 = scalar_select %p105, %s106, %s107
      %p111 = pneg %p105
      %p112 = scmp.eq.s32.totalorder %s9, 1
      %p113 = por %p111, %p112
      %p114 = scmp.ne.s32.totalorder %s106, %s109
      %p115 = scmp.eq.s32.totalorder %s9, 0
      %p116 = por %p114, %p115
      %p117 = scmp.ne.s32.totalorder %s106, %s109
      %p118 = scmp.eq.s32.totalorder %s14, 1
      %p119 = por %p117, %p118
      %p120 = scmp.ne.s32.totalorder %s109, %s110
      %p121 = scmp.eq.s32.totalorder %s14, 0
      %p122 = por %p120, %p121
      %p123 = scmp.ne.s32.totalorder %s109, %s110
      %p124 = scmp.eq.s32.totalorder %s15, 1
      %p125 = por %p123, %p124
      %p127 = scmp.ne.s32.totalorder %s110, %s126
      %p128 = scmp.eq.s32.totalorder %s15, 0
      %p129 = por %p127, %p128
      %p130 = scmp.le.s32.totalorder 1, %s9
      %p131 = scmp.lt.s32.totalorder %s9, 3
      %p132 = pnand %p130, %p131
      %p133 = pneg %p132
      // Predicated region
      $region9: #{_lambda_.16} parent=5 // pred_check
        _
      $region10: #{_lambda_.16} parent=5 // pred_check_branch
        %135 = sbr.rel (%p132) target = $region12
      $region11: #{_lambda_.16} parent=5 // pred_region
        %s136 = ssub.s32 %s9, 1
        // Predicated region
        $region13: #{_lambda_.16} parent=11 // pred_check
          %p137 = pneg %p96
        $region14: #{_lambda_.16} parent=11 // pred_check_branch
          %139 = sbr.rel (%p137) target = $region16
        $region15: #{_lambda_.16} parent=11 // pred_region
          _
        $region16: #{_lambda_.16} parent=11 // pred_fallthru
          _
      $region12: #{_lambda_.16} parent=5 // pred_fallthru
        _
      %p140 = scmp.lt.s32.totalorder %s9, 2
      // Predicated region
      $region17: #{_lambda_.16} parent=5 // pred_check
        %p141 = pneg %p140
      $region18: #{_lambda_.16} parent=5 // pred_check_branch
        %143 = sbr.rel (%p141) target = $region20
      $region19: #{_lambda_.16} parent=5 // pred_region
        // Predicated region
        $region21: #{_lambda_.16} parent=19 // pred_check
          %p144 = pneg %p43
        $region22: #{_lambda_.16} parent=19 // pred_check_branch
          %146 = sbr.rel (%p144) target = $region24
        $region23: #{_lambda_.16} parent=19 // pred_region
          %s147 = sand.u32 %s33, 1
          %s148 = sand.u32 %s33, 1
          %s149 = smul.addr %s148, 128
          %s150 = scalar_lea.vmem [#allocation3], %s149
          %s151 = smul.u32 16, %s16
          %s152 = smul.u32 2, %s17
          %s153 = smul.addr %s151, 4
          %s154 = sadd.s32 %s152, %s153
          %s155 = smul.addr %s154, 4
          %s156 = scalar_lea.vmem %s0, %s155
          // Predicated region
          $region25: #{_lambda_.16} parent=23 // pred_check
            _
          $region26: #{_lambda_.16} parent=23 // pred_check_branch
            %158 = sbr.rel (0) target = $region28
          $region27: #{_lambda_.16} parent=23 // pred_region
            // Predicated region
            $region29: #{_lambda_.16} parent=27 // pred_check
              _
            $region30: #{_lambda_.16} parent=27 // pred_check_branch
              %160 = sbr.rel (0) target = $region32
            $region31: #{_lambda_.16} parent=27 // pred_region
              // Predicated region
              $region44: #{_lambda_.16} parent=31 // pred_check
                _
              $region45: #{_lambda_.16} parent=31 // pred_check_branch
                %206 = sbr.rel (0) target = $region47
              $region46: #{_lambda_.16} parent=31 // pred_region
                loop: start=0, step=1, limit=1
                $region48: #{_lambda_.16} parent=46 // loop_pre_header
                  _
                $region49: #{_lambda_.16} parent=46 // loop_header
                  %s208 = sphi 0, %s212
                  %p209 = scmp.ge.s32.totalorder %s208, 1
                  %s213 = sphi %s156, %s156
                  %s214 = sphi %s150, %s150
                $region50: #{_lambda_.16} parent=46 // loop_header_branch
                  %211 = sbr.rel (%p209) target = $region54
                $region51: #{_lambda_.16} parent=46 // loop_body
                  %v215 = vld [vmem:[%s213] sm:$0xff]
                  %216 = vst [vmem:[%s214] sm:$0xff] %v215
                  %v217 = vld [vmem:[%s213 + $0x10] sm:$0xff]
                  %218 = vst [vmem:[%s214 + $0x8] sm:$0xff] %v217
                  %v219 = vld [vmem:[%s213 + $0x20] sm:$0xff]
                  %220 = vst [vmem:[%s214 + $0x10] sm:$0xff] %v219
                  %v221 = vld [vmem:[%s213 + $0x30] sm:$0xff]
                  %222 = vst [vmem:[%s214 + $0x18] sm:$0xff] %v221
                  %v223 = vld [vmem:[%s213 + $0x40] sm:$0xff]
                  %224 = vst [vmem:[%s214 + $0x20] sm:$0xff] %v223
                  %v225 = vld [vmem:[%s213 + $0x50] sm:$0xff]
                  %226 = vst [vmem:[%s214 + $0x28] sm:$0xff] %v225
                  %v227 = vld [vmem:[%s213 + $0x60] sm:$0xff]
                  %228 = vst [vmem:[%s214 + $0x30] sm:$0xff] %v227
                  %v229 = vld [vmem:[%s213 + $0x70] sm:$0xff]
                  %230 = vst [vmem:[%s214 + $0x38] sm:$0xff] %v229
                  %v231 = vld [vmem:[%s213 + $0x80] sm:$0xff]
                  %232 = vst [vmem:[%s214 + $0x40] sm:$0xff] %v231
                  %v233 = vld [vmem:[%s213 + $0x90] sm:$0xff]
                  %234 = vst [vmem:[%s214 + $0x48] sm:$0xff] %v233
                  %v235 = vld [vmem:[%s213 + $0xa0] sm:$0xff]
                  %236 = vst [vmem:[%s214 + $0x50] sm:$0xff] %v235
                  %v237 = vld [vmem:[%s213 + $0xb0] sm:$0xff]
                  %238 = vst [vmem:[%s214 + $0x58] sm:$0xff] %v237
                  %v239 = vld [vmem:[%s213 + $0xc0] sm:$0xff]
                  %240 = vst [vmem:[%s214 + $0x60] sm:$0xff] %v239
                  %v241 = vld [vmem:[%s213 + $0xd0] sm:$0xff]
                  %242 = vst [vmem:[%s214 + $0x68] sm:$0xff] %v241
                  %v243 = vld [vmem:[%s213 + $0xe0] sm:$0xff]
                  %244 = vst [vmem:[%s214 + $0x70] sm:$0xff] %v243
                  %v245 = vld [vmem:[%s213 + $0xf0] sm:$0xff]
                  %246 = vst [vmem:[%s214 + $0x78] sm:$0xff] %v245
                $region52: #{_lambda_.16} parent=46 // loop_footer
                  %s212 = sadd.s32 1, %s208
                $region53: #{_lambda_.16} parent=46 // loop_footer_branch
                  %207 = sbr.rel target = $region49
                $region54: #{_lambda_.16} parent=46 // loop_exit
                  _
              $region47: #{_lambda_.16} parent=31 // pred_fallthru
                _
              // Predicated region
              $region55: #{_lambda_.16} parent=31 // pred_check
                _
              $region56: #{_lambda_.16} parent=31 // pred_check_branch
                %248 = sbr.rel target = $region58
              $region57: #{_lambda_.16} parent=31 // pred_region
                _
              $region58: #{_lambda_.16} parent=31 // pred_fallthru
                _
            $region32: #{_lambda_.16} parent=27 // pred_fallthru
              _
            // Predicated region
            $region33: #{_lambda_.16} parent=27 // pred_check
              _
            $region34: #{_lambda_.16} parent=27 // pred_check_branch
              %162 = sbr.rel target = $region36
            $region35: #{_lambda_.16} parent=27 // pred_region
              %s164 = ssub.s32 256, 1
              loop: start=0, step=1, limit=1
              $region37: #{_lambda_.16} parent=35 // loop_pre_header
                _
              $region38: #{_lambda_.16} parent=35 // loop_header
                %s166 = sphi 0, %s170
                %p167 = scmp.ge.s32.totalorder %s166, 1
                %s171 = sphi %s156, %s156
                %s172 = sphi %s150, %s150
              $region39: #{_lambda_.16} parent=35 // loop_header_branch
                %169 = sbr.rel (%p167) target = $region43
              $region40: #{_lambda_.16} parent=35 // loop_body
                %v173 = vld [vmem:[%s171] sm:%s164]
                %174 = vst [vmem:[%s172] sm:%s164] %v173
                %v175 = vld [vmem:[%s171 + $0x10] sm:%s164]
                %176 = vst [vmem:[%s172 + $0x8] sm:%s164] %v175
                %v177 = vld [vmem:[%s171 + $0x20] sm:%s164]
                %178 = vst [vmem:[%s172 + $0x10] sm:%s164] %v177
                %v179 = vld [vmem:[%s171 + $0x30] sm:%s164]
                %180 = vst [vmem:[%s172 + $0x18] sm:%s164] %v179
                %v181 = vld [vmem:[%s171 + $0x40] sm:%s164]
                %182 = vst [vmem:[%s172 + $0x20] sm:%s164] %v181
                %v183 = vld [vmem:[%s171 + $0x50] sm:%s164]
                %184 = vst [vmem:[%s172 + $0x28] sm:%s164] %v183
                %v185 = vld [vmem:[%s171 + $0x60] sm:%s164]
                %186 = vst [vmem:[%s172 + $0x30] sm:%s164] %v185
                %v187 = vld [vmem:[%s171 + $0x70] sm:%s164]
                %188 = vst [vmem:[%s172 + $0x38] sm:%s164] %v187
                %v189 = vld [vmem:[%s171 + $0x80] sm:%s164]
                %190 = vst [vmem:[%s172 + $0x40] sm:%s164] %v189
                %v191 = vld [vmem:[%s171 + $0x90] sm:%s164]
                %192 = vst [vmem:[%s172 + $0x48] sm:%s164] %v191
                %v193 = vld [vmem:[%s171 + $0xa0] sm:%s164]
                %194 = vst [vmem:[%s172 + $0x50] sm:%s164] %v193
                %v195 = vld [vmem:[%s171 + $0xb0] sm:%s164]
                %196 = vst [vmem:[%s172 + $0x58] sm:%s164] %v195
                %v197 = vld [vmem:[%s171 + $0xc0] sm:%s164]
                %198 = vst [vmem:[%s172 + $0x60] sm:%s164] %v197
                %v199 = vld [vmem:[%s171 + $0xd0] sm:%s164]
                %200 = vst [vmem:[%s172 + $0x68] sm:%s164] %v199
                %v201 = vld [vmem:[%s171 + $0xe0] sm:%s164]
                %202 = vst [vmem:[%s172 + $0x70] sm:%s164] %v201
                %v203 = vld [vmem:[%s171 + $0xf0] sm:%s164]
                %204 = vst [vmem:[%s172 + $0x78] sm:%s164] %v203
              $region41: #{_lambda_.16} parent=35 // loop_footer
                %s170 = sadd.s32 1, %s166
              $region42: #{_lambda_.16} parent=35 // loop_footer_branch
                %165 = sbr.rel target = $region38
              $region43: #{_lambda_.16} parent=35 // loop_exit
                _
            $region36: #{_lambda_.16} parent=27 // pred_fallthru
              _
          $region28: #{_lambda_.16} parent=23 // pred_fallthru
            _
          %249 = vnop
        $region24: #{_lambda_.16} parent=19 // pred_fallthru
          _
        // Predicated region
        $region59: #{_lambda_.16} parent=19 // pred_check
          %p250 = pneg %p69
        $region60: #{_lambda_.16} parent=19 // pred_check_branch
          %252 = sbr.rel (%p250) target = $region62
        $region61: #{_lambda_.16} parent=19 // pred_region
          %s253 = smul.u32 32, %s17
          %p254 = scmp.lt.s32.totalorder %s253, 63
          %s255 = scalar_select %p254, %s253, 63
          %s256 = smul.addr %s255, 4
          %s257 = scalar_lea.vmem %s1, %s256
          %s258 = smul.u32 32, %s17
        $region62: #{_lambda_.16} parent=19 // pred_fallthru
          _
      $region20: #{_lambda_.16} parent=5 // pred_fallthru
        _
      %p259 = scmp.le.s32.totalorder 1, %s9
      %p260 = scmp.lt.s32.totalorder %s9, 3
      %p261 = pnand %p259, %p260
      %p262 = pneg %p261
      // Predicated region
      $region63: #{_lambda_.16} parent=5 // pred_check
        _
      $region64: #{_lambda_.16} parent=5 // pred_check_branch
        %264 = sbr.rel (%p261) target = $region66
      $region65: #{_lambda_.16} parent=5 // pred_region
        %s265 = ssub.s32 %s9, 1
        %s266 = sand.u32 %s36, 1
        %s267 = sand.u32 %s36, 1
        %s268 = smul.addr %s267, 128
        %s269 = scalar_lea.vmem [#allocation3], %s268
        // Predicated region
        $region67: #{_lambda_.16} parent=65 // pred_check
          %p270 = pneg %p49
        $region68: #{_lambda_.16} parent=65 // pred_check_branch
          %272 = sbr.rel (%p270) target = $region70
        $region69: #{_lambda_.16} parent=65 // pred_region
          _
        $region70: #{_lambda_.16} parent=65 // pred_fallthru
          _
        %s273 = sand.u32 %s36, 1
        %s274 = sand.u32 %s36, 1
        %s275 = smul.addr %s274, 128
        %s276 = scalar_lea.vmem [#allocation3], %s275
        %p277 = pneg %p49
        %p278 = pneg %p46
        %s279 = smul.u32 32, %s19
        %p280 = scmp.lt.s32.totalorder %s279, 63
        %s281 = scalar_select %p280, %s279, 63
        %s282 = smul.addr %s281, 4
        %s283 = scalar_lea.vmem %s1, %s282
        %p284 = pneg %p75
        %p285 = pneg %p72
        %p286 = pneg %p96
        %p287 = pneg %p93
        %p288 = pneg %p122
        %p289 = pneg %p119
        %s290 = smul.u32 16, %s18
        %p291 = scmp.lt.s32.totalorder %s290, 15
        %s292 = scalar_select %p291, %s290, 15
        %s293 = smul.addr %s292, 8
        %s294 = scalar_lea.vmem %s3, %s293
        %s295 = smul.u32 16, %s18
        %s296 = smul.u32 2, %s19
        %s297 = smul.u32 32, %s19
        %p298 = scmp.lt.s32.totalorder %s297, 63
        %s299 = scalar_select %p298, %s297, 63
        %s300 = smul.addr %s299, 4
        %s301 = scalar_lea.vmem %s1, %s300
        %s302 = smul.u32 32, %s19
        %s303 = smul.u32 16, %s18
        %p304 = scmp.lt.s32.totalorder %s303, 15
        %s305 = scalar_select %p304, %s303, 15
        %s306 = smul.addr %s305, 8
        %s307 = scalar_lea.vmem %s3, %s306
        %s308 = smul.u32 16, %s18
        %p309 = scmp.eq.s32.totalorder %s19, 0
        // Predicated region
        $region71: #{_lambda_.16} parent=65 // pred_check
          %p310 = pneg %p309
        $region72: #{_lambda_.16} parent=65 // pred_check_branch
          %312 = sbr.rel (%p310) target = $region74
        $region73: #{_lambda_.16} parent=65 // pred_region
          %313 = vst [vmem:[#allocation2] sm:$0xff] 0.0
          %314 = vst [vmem:[#allocation2 + $0x8] sm:$0xff] 0.0
          %315 = vst [vmem:[#allocation2 + $0x10] sm:$0xff] 0.0
          %316 = vst [vmem:[#allocation2 + $0x18] sm:$0xff] 0.0
          %317 = vst [vmem:[#allocation2 + $0x20] sm:$0xff] 0.0
          %318 = vst [vmem:[#allocation2 + $0x28] sm:$0xff] 0.0
          %319 = vst [vmem:[#allocation2 + $0x30] sm:$0xff] 0.0
          %320 = vst [vmem:[#allocation2 + $0x38] sm:$0xff] 0.0
          %321 = vst [vmem:[#allocation2 + $0x40] sm:$0xff] 0.0
          %322 = vst [vmem:[#allocation2 + $0x48] sm:$0xff] 0.0
          %323 = vst [vmem:[#allocation2 + $0x50] sm:$0xff] 0.0
          %324 = vst [vmem:[#allocation2 + $0x58] sm:$0xff] 0.0
          %325 = vst [vmem:[#allocation2 + $0x60] sm:$0xff] 0.0
          %326 = vst [vmem:[#allocation2 + $0x68] sm:$0xff] 0.0
          %327 = vst [vmem:[#allocation2 + $0x70] sm:$0xff] 0.0
          %328 = vst [vmem:[#allocation2 + $0x78] sm:$0xff] 0.0
        $region74: #{_lambda_.16} parent=65 // pred_fallthru
          _
        %v329 = vld [vmem:[#allocation2] sm:$0xff]
        %v330 = vld [vmem:[#allocation2 + $0x8] sm:$0xff]
        %v331 = vld [vmem:[#allocation2 + $0x10] sm:$0xff]
        %v332 = vld [vmem:[#allocation2 + $0x18] sm:$0xff]
        %v333 = vld [vmem:[#allocation2 + $0x20] sm:$0xff]
        %v334 = vld [vmem:[#allocation2 + $0x28] sm:$0xff]
        %v335 = vld [vmem:[#allocation2 + $0x30] sm:$0xff]
        %v336 = vld [vmem:[#allocation2 + $0x38] sm:$0xff]
        %v337 = vld [vmem:[#allocation2 + $0x40] sm:$0xff]
        %v338 = vld [vmem:[#allocation2 + $0x48] sm:$0xff]
        %v339 = vld [vmem:[#allocation2 + $0x50] sm:$0xff]
        %v340 = vld [vmem:[#allocation2 + $0x58] sm:$0xff]
        %v341 = vld [vmem:[#allocation2 + $0x60] sm:$0xff]
        %v342 = vld [vmem:[#allocation2 + $0x68] sm:$0xff]
        %v343 = vld [vmem:[#allocation2 + $0x70] sm:$0xff]
        %v344 = vld [vmem:[#allocation2 + $0x78] sm:$0xff]
        %v345 = vld [vmem:[%s269] sm:$0xff]
        %v346 = vld [vmem:[%s269 + $0x8] sm:$0xff]
        %v347 = vld [vmem:[%s269 + $0x10] sm:$0xff]
        %v348 = vld [vmem:[%s269 + $0x18] sm:$0xff]
        %v349 = vld [vmem:[%s269 + $0x20] sm:$0xff]
        %v350 = vld [vmem:[%s269 + $0x28] sm:$0xff]
        %v351 = vld [vmem:[%s269 + $0x30] sm:$0xff]
        %v352 = vld [vmem:[%s269 + $0x38] sm:$0xff]
        %v353 = vld [vmem:[%s269 + $0x40] sm:$0xff]
        %v354 = vld [vmem:[%s269 + $0x48] sm:$0xff]
        %v355 = vld [vmem:[%s269 + $0x50] sm:$0xff]
        %v356 = vld [vmem:[%s269 + $0x58] sm:$0xff]
        %v357 = vld [vmem:[%s269 + $0x60] sm:$0xff]
        %v358 = vld [vmem:[%s269 + $0x68] sm:$0xff]
        %v359 = vld [vmem:[%s269 + $0x70] sm:$0xff]
        %v360 = vld [vmem:[%s269 + $0x78] sm:$0xff]
        %v361 = vld [vmem:[%s301] sm:$0xf]
        %v362 = vld [vmem:[%s301 + $0x4] sm:$0xf]
        %v363 = vld [vmem:[%s301 + $0x8] sm:$0xf]
        %v364 = vld [vmem:[%s301 + $0xc] sm:$0xf]
        %v365 = vld [vmem:[%s301 + $0x10] sm:$0xf]
        %v366 = vld [vmem:[%s301 + $0x14] sm:$0xf]
        %v367 = vld [vmem:[%s301 + $0x18] sm:$0xf]
        %v368 = vld [vmem:[%s301 + $0x1c] sm:$0xf]
        %v369 = vld [vmem:[%s301 + $0x20] sm:$0xf]
        %v370 = vld [vmem:[%s301 + $0x24] sm:$0xf]
        %v371 = vld [vmem:[%s301 + $0x28] sm:$0xf]
        %v372 = vld [vmem:[%s301 + $0x2c] sm:$0xf]
        %v373 = vld [vmem:[%s301 + $0x30] sm:$0xf]
        %v374 = vld [vmem:[%s301 + $0x34] sm:$0xf]
        %v375 = vld [vmem:[%s301 + $0x38] sm:$0xf]
        %v376 = vld [vmem:[%s301 + $0x3c] sm:$0xf]
        %v377 = vld [vmem:[%s301 + $0x40] sm:$0xf]
        %v378 = vld [vmem:[%s301 + $0x44] sm:$0xf]
        %v379 = vld [vmem:[%s301 + $0x48] sm:$0xf]
        %v380 = vld [vmem:[%s301 + $0x4c] sm:$0xf]
        %v381 = vld [vmem:[%s301 + $0x50] sm:$0xf]
        %v382 = vld [vmem:[%s301 + $0x54] sm:$0xf]
        %v383 = vld [vmem:[%s301 + $0x58] sm:$0xf]
        %v384 = vld [vmem:[%s301 + $0x5c] sm:$0xf]
        %v385 = vld [vmem:[%s301 + $0x60] sm:$0xf]
        %v386 = vld [vmem:[%s301 + $0x64] sm:$0xf]
        %v387 = vld [vmem:[%s301 + $0x68] sm:$0xf]
        %v388 = vld [vmem:[%s301 + $0x6c] sm:$0xf]
        %v389 = vld [vmem:[%s301 + $0x70] sm:$0xf]
        %v390 = vld [vmem:[%s301 + $0x74] sm:$0xf]
        %v391 = vld [vmem:[%s301 + $0x78] sm:$0xf]
        %v392 = vld [vmem:[%s301 + $0x7c] sm:$0xf]
        %v409 = vunpack.c.l.b16 %v345
        %v410 = vunpack.c.h.b16 %v345
        %v411 = vunpack.c.l.b16 %v346
        %v412 = vunpack.c.h.b16 %v346
        %v413 = vunpack.c.l.b16 %v347
        %v414 = vunpack.c.h.b16 %v347
        %v415 = vunpack.c.l.b16 %v348
        %v416 = vunpack.c.h.b16 %v348
        %v417 = vunpack.c.l.b16 %v349
        %v418 = vunpack.c.h.b16 %v349
        %v419 = vunpack.c.l.b16 %v350
        %v420 = vunpack.c.h.b16 %v350
        %v421 = vunpack.c.l.b16 %v351
        %v422 = vunpack.c.h.b16 %v351
        %v423 = vunpack.c.l.b16 %v352
        %v424 = vunpack.c.h.b16 %v352
        %v425 = vunpack.c.l.b16 %v353
        %v426 = vunpack.c.h.b16 %v353
        %v427 = vunpack.c.l.b16 %v354
        %v428 = vunpack.c.h.b16 %v354
        %v429 = vunpack.c.l.b16 %v355
        %v430 = vunpack.c.h.b16 %v355
        %v431 = vunpack.c.l.b16 %v356
        %v432 = vunpack.c.h.b16 %v356
        %v433 = vunpack.c.l.b16 %v357
        %v434 = vunpack.c.h.b16 %v357
        %v435 = vunpack.c.l.b16 %v358
        %v436 = vunpack.c.h.b16 %v358
        %v437 = vunpack.c.l.b16 %v359
        %v438 = vunpack.c.h.b16 %v359
        %v439 = vunpack.c.l.b16 %v360
        %v440 = vunpack.c.h.b16 %v360
        %v441 = vpack.c.b16 %v411, %v409
        %v442 = vpack.c.b16 %v412, %v410
        %v443 = vpack.c.b16 %v415, %v413
        %v444 = vpack.c.b16 %v416, %v414
        %v445 = vpack.c.b16 %v419, %v417
        %v446 = vpack.c.b16 %v420, %v418
        %v447 = vpack.c.b16 %v423, %v421
        %v448 = vpack.c.b16 %v424, %v422
        %v449 = vpack.c.b16 %v427, %v425
        %v450 = vpack.c.b16 %v428, %v426
        %v451 = vpack.c.b16 %v431, %v429
        %v452 = vpack.c.b16 %v432, %v430
        %v453 = vpack.c.b16 %v435, %v433
        %v454 = vpack.c.b16 %v436, %v434
        %v455 = vpack.c.b16 %v439, %v437
        %v456 = vpack.c.b16 %v440, %v438
        %v505 = vunpack.c.l.b16 %v361
        %v506 = vunpack.c.l.b16 %v362
        %v507 = vunpack.c.l.b16 %v363
        %v508 = vunpack.c.l.b16 %v364
        %v509 = vunpack.c.l.b16 %v365
        %v510 = vunpack.c.l.b16 %v366
        %v511 = vunpack.c.l.b16 %v367
        %v512 = vunpack.c.l.b16 %v368
        %v513 = vunpack.c.l.b16 %v369
        %v514 = vunpack.c.l.b16 %v370
        %v515 = vunpack.c.l.b16 %v371
        %v516 = vunpack.c.l.b16 %v372
        %v517 = vunpack.c.l.b16 %v373
        %v518 = vunpack.c.l.b16 %v374
        %v519 = vunpack.c.l.b16 %v375
        %v520 = vunpack.c.l.b16 %v376
        %v521 = vunpack.c.l.b16 %v377
        %v522 = vunpack.c.l.b16 %v378
        %v523 = vunpack.c.l.b16 %v379
        %v524 = vunpack.c.l.b16 %v380
        %v525 = vunpack.c.l.b16 %v381
        %v526 = vunpack.c.l.b16 %v382
        %v527 = vunpack.c.l.b16 %v383
        %v528 = vunpack.c.l.b16 %v384
        %v529 = vunpack.c.l.b16 %v385
        %v530 = vunpack.c.l.b16 %v386
        %v531 = vunpack.c.l.b16 %v387
        %v532 = vunpack.c.l.b16 %v388
        %v533 = vunpack.c.l.b16 %v389
        %v534 = vunpack.c.l.b16 %v390
        %v535 = vunpack.c.l.b16 %v391
        %v536 = vunpack.c.l.b16 %v392
        %v537 = vpack.c.b16 %v506, %v505
        %v538 = vpack.c.b16 %v508, %v507
        %v539 = vpack.c.b16 %v510, %v509
        %v540 = vpack.c.b16 %v512, %v511
        %v541 = vpack.c.b16 %v514, %v513
        %v542 = vpack.c.b16 %v516, %v515
        %v543 = vpack.c.b16 %v518, %v517
        %v544 = vpack.c.b16 %v520, %v519
        %v545 = vpack.c.b16 %v522, %v521
        %v546 = vpack.c.b16 %v524, %v523
        %v547 = vpack.c.b16 %v526, %v525
        %v548 = vpack.c.b16 %v528, %v527
        %v549 = vpack.c.b16 %v530, %v529
        %v550 = vpack.c.b16 %v532, %v531
        %v551 = vpack.c.b16 %v534, %v533
        %v552 = vpack.c.b16 %v536, %v535
        %569 = vmatpush.bf16.msra.mxu0 %v544
        %570 = vmatpush.bf16.msra.mxu0 %v543
        %571 = vmatpush.bf16.msra.mxu0 %v542
        %572 = vmatpush.bf16.msra.mxu0 %v541
        %573 = vmatpush.bf16.msra.mxu0 %v540
        %574 = vmatpush.bf16.msra.mxu0 %v539
        %575 = vmatpush.bf16.msra.mxu0 %v538
        %576 = vmatpush.bf16.msra.mxu0 %v537
        %577 = vmatmul.bf16.gmra.mxu0 %v441
        %v578 = vpop.f32.mrf.mxu0
        %v579 = vadd.f32 0.0, %v578
        %v580 = vpop.f32.mrf.mxu0
        %v581 = vadd.f32 0.0, %v580
        %582 = vmatmul.bf16.gmra.mxu0 %v443
        %v583 = vpop.f32.mrf.mxu0
        %v584 = vadd.f32 0.0, %v583
        %v585 = vpop.f32.mrf.mxu0
        %v586 = vadd.f32 0.0, %v585
        %587 = vmatmul.bf16.gmra.mxu0 %v445
        %v588 = vpop.f32.mrf.mxu0
        %v589 = vadd.f32 0.0, %v588
        %v590 = vpop.f32.mrf.mxu0
        %v591 = vadd.f32 0.0, %v590
        %592 = vmatmul.bf16.gmra.mxu0 %v447
        %v593 = vpop.f32.mrf.mxu0
        %v594 = vadd.f32 0.0, %v593
        %v595 = vpop.f32.mrf.mxu0
        %v596 = vadd.f32 0.0, %v595
        %597 = vmatmul.bf16.gmra.mxu0 %v449
        %v598 = vpop.f32.mrf.mxu0
        %v599 = vadd.f32 0.0, %v598
        %v600 = vpop.f32.mrf.mxu0
        %v601 = vadd.f32 0.0, %v600
        %602 = vmatmul.bf16.gmra.mxu0 %v451
        %v603 = vpop.f32.mrf.mxu0
        %v604 = vadd.f32 0.0, %v603
        %v605 = vpop.f32.mrf.mxu0
        %v606 = vadd.f32 0.0, %v605
        %607 = vmatmul.bf16.gmra.mxu0 %v453
        %v608 = vpop.f32.mrf.mxu0
        %v609 = vadd.f32 0.0, %v608
        %v610 = vpop.f32.mrf.mxu0
        %v611 = vadd.f32 0.0, %v610
        %612 = vmatmul.bf16.gmra.mxu0 %v455
        %v613 = vpop.f32.mrf.mxu0
        %v614 = vadd.f32 0.0, %v613
        %v615 = vpop.f32.mrf.mxu0
        %v616 = vadd.f32 0.0, %v615
        %617 = vdwg.mxu0
        %618 = vmatpush.bf16.msra.mxu0 %v552
        %619 = vmatpush.bf16.msra.mxu0 %v551
        %620 = vmatpush.bf16.msra.mxu0 %v550
        %621 = vmatpush.bf16.msra.mxu0 %v549
        %622 = vmatpush.bf16.msra.mxu0 %v548
        %623 = vmatpush.bf16.msra.mxu0 %v547
        %624 = vmatpush.bf16.msra.mxu0 %v546
        %625 = vmatpush.bf16.msra.mxu0 %v545
        %626 = vmatmul.bf16.gmra.mxu0 %v442
        %v627 = vpop.f32.mrf.mxu0
        %v628 = vadd.f32 %v579, %v627
        %v629 = vpop.f32.mrf.mxu0
        %v630 = vadd.f32 %v581, %v629
        %631 = vmatmul.bf16.gmra.mxu0 %v444
        %v632 = vpop.f32.mrf.mxu0
        %v633 = vadd.f32 %v584, %v632
        %v634 = vpop.f32.mrf.mxu0
        %v635 = vadd.f32 %v586, %v634
        %636 = vmatmul.bf16.gmra.mxu0 %v446
        %v637 = vpop.f32.mrf.mxu0
        %v638 = vadd.f32 %v589, %v637
        %v639 = vpop.f32.mrf.mxu0
        %v640 = vadd.f32 %v591, %v639
        %641 = vmatmul.bf16.gmra.mxu0 %v448
        %v642 = vpop.f32.mrf.mxu0
        %v643 = vadd.f32 %v594, %v642
        %v644 = vpop.f32.mrf.mxu0
        %v645 = vadd.f32 %v596, %v644
        %646 = vmatmul.bf16.gmra.mxu0 %v450
        %v647 = vpop.f32.mrf.mxu0
        %v648 = vadd.f32 %v599, %v647
        %v649 = vpop.f32.mrf.mxu0
        %v650 = vadd.f32 %v601, %v649
        %651 = vmatmul.bf16.gmra.mxu0 %v452
        %v652 = vpop.f32.mrf.mxu0
        %v653 = vadd.f32 %v604, %v652
        %v654 = vpop.f32.mrf.mxu0
        %v655 = vadd.f32 %v606, %v654
        %656 = vmatmul.bf16.gmra.mxu0 %v454
        %v657 = vpop.f32.mrf.mxu0
        %v658 = vadd.f32 %v609, %v657
        %v659 = vpop.f32.mrf.mxu0
        %v660 = vadd.f32 %v611, %v659
        %661 = vmatmul.bf16.gmra.mxu0 %v456
        %v662 = vpop.f32.mrf.mxu0
        %v663 = vadd.f32 %v614, %v662
        %v664 = vpop.f32.mrf.mxu0
        %v665 = vadd.f32 %v616, %v664
        %666 = vdwg.mxu0
        %v667 = vadd.f32 %v329, %v628
        %v668 = vadd.f32 %v330, %v630
        %v669 = vadd.f32 %v331, %v633
        %v670 = vadd.f32 %v332, %v635
        %v671 = vadd.f32 %v333, %v638
        %v672 = vadd.f32 %v334, %v640
        %v673 = vadd.f32 %v335, %v643
        %v674 = vadd.f32 %v336, %v645
        %v675 = vadd.f32 %v337, %v648
        %v676 = vadd.f32 %v338, %v650
        %v677 = vadd.f32 %v339, %v653
        %v678 = vadd.f32 %v340, %v655
        %v679 = vadd.f32 %v341, %v658
        %v680 = vadd.f32 %v342, %v660
        %v681 = vadd.f32 %v343, %v663
        %v682 = vadd.f32 %v344, %v665
        %683 = vst [vmem:[#allocation2] sm:$0xff] %v667
        %684 = vst [vmem:[#allocation2 + $0x8] sm:$0xff] %v668
        %685 = vst [vmem:[#allocation2 + $0x10] sm:$0xff] %v669
        %686 = vst [vmem:[#allocation2 + $0x18] sm:$0xff] %v670
        %687 = vst [vmem:[#allocation2 + $0x20] sm:$0xff] %v671
        %688 = vst [vmem:[#allocation2 + $0x28] sm:$0xff] %v672
        %689 = vst [vmem:[#allocation2 + $0x30] sm:$0xff] %v673
        %690 = vst [vmem:[#allocation2 + $0x38] sm:$0xff] %v674
        %691 = vst [vmem:[#allocation2 + $0x40] sm:$0xff] %v675
        %692 = vst [vmem:[#allocation2 + $0x48] sm:$0xff] %v676
        %693 = vst [vmem:[#allocation2 + $0x50] sm:$0xff] %v677
        %694 = vst [vmem:[#allocation2 + $0x58] sm:$0xff] %v678
        %695 = vst [vmem:[#allocation2 + $0x60] sm:$0xff] %v679
        %696 = vst [vmem:[#allocation2 + $0x68] sm:$0xff] %v680
        %697 = vst [vmem:[#allocation2 + $0x70] sm:$0xff] %v681
        %698 = vst [vmem:[#allocation2 + $0x78] sm:$0xff] %v682
        %p699 = scmp.eq.s32.totalorder %s19, 1
        // Predicated region
        $region75: #{_lambda_.16} parent=65 // pred_check
          %p700 = pneg %p699
        $region76: #{_lambda_.16} parent=65 // pred_check_branch
          %702 = sbr.rel (%p700) target = $region78
        $region77: #{_lambda_.16} parent=65 // pred_region
          %v703 = vld [vmem:[#allocation2] sm:$0xff]
          %v704 = vld [vmem:[#allocation2 + $0x8] sm:$0xff]
          %v705 = vld [vmem:[#allocation2 + $0x10] sm:$0xff]
          %v706 = vld [vmem:[#allocation2 + $0x18] sm:$0xff]
          %v707 = vld [vmem:[#allocation2 + $0x20] sm:$0xff]
          %v708 = vld [vmem:[#allocation2 + $0x28] sm:$0xff]
          %v709 = vld [vmem:[#allocation2 + $0x30] sm:$0xff]
          %v710 = vld [vmem:[#allocation2 + $0x38] sm:$0xff]
          %v711 = vld [vmem:[#allocation2 + $0x40] sm:$0xff]
          %v712 = vld [vmem:[#allocation2 + $0x48] sm:$0xff]
          %v713 = vld [vmem:[#allocation2 + $0x50] sm:$0xff]
          %v714 = vld [vmem:[#allocation2 + $0x58] sm:$0xff]
          %v715 = vld [vmem:[#allocation2 + $0x60] sm:$0xff]
          %v716 = vld [vmem:[#allocation2 + $0x68] sm:$0xff]
          %v717 = vld [vmem:[#allocation2 + $0x70] sm:$0xff]
          %v718 = vld [vmem:[#allocation2 + $0x78] sm:$0xff]
          %v719 = vld [vmem:[%s2] sm:$0x1]
          %v721 = vperm.slane %v719, 0
          %v723 = vadd.f32 %v703, %v721
          %v724 = vadd.f32 %v704, %v721
          %v725 = vadd.f32 %v705, %v721
          %v726 = vadd.f32 %v706, %v721
          %v727 = vadd.f32 %v707, %v721
          %v728 = vadd.f32 %v708, %v721
          %v729 = vadd.f32 %v709, %v721
          %v730 = vadd.f32 %v710, %v721
          %v731 = vadd.f32 %v711, %v721
          %v732 = vadd.f32 %v712, %v721
          %v733 = vadd.f32 %v713, %v721
          %v734 = vadd.f32 %v714, %v721
          %v735 = vadd.f32 %v715, %v721
          %v736 = vadd.f32 %v716, %v721
          %v737 = vadd.f32 %v717, %v721
          %v738 = vadd.f32 %v718, %v721
          %v739 = vxor.u32 %v723, 2147483648
          %v740 = vxor.u32 %v724, 2147483648
          %v741 = vxor.u32 %v725, 2147483648
          %v742 = vxor.u32 %v726, 2147483648
          %v743 = vxor.u32 %v727, 2147483648
          %v744 = vxor.u32 %v728, 2147483648
          %v745 = vxor.u32 %v729, 2147483648
          %v746 = vxor.u32 %v730, 2147483648
          %v747 = vxor.u32 %v731, 2147483648
          %v748 = vxor.u32 %v732, 2147483648
          %v749 = vxor.u32 %v733, 2147483648
          %v750 = vxor.u32 %v734, 2147483648
          %v751 = vxor.u32 %v735, 2147483648
          %v752 = vxor.u32 %v736, 2147483648
          %v753 = vxor.u32 %v737, 2147483648
          %v754 = vxor.u32 %v738, 2147483648
          %v755 = vmul.f32 %v739, 1.442695
          %v756 = vpow.pop %v755
          %v757 = vmul.f32 %v740, 1.442695
          %v758 = vpow.pop %v757
          %v759 = vmul.f32 %v741, 1.442695
          %v760 = vpow.pop %v759
          %v761 = vmul.f32 %v742, 1.442695
          %v762 = vpow.pop %v761
          %v763 = vmul.f32 %v743, 1.442695
          %v764 = vpow.pop %v763
          %v765 = vmul.f32 %v744, 1.442695
          %v766 = vpow.pop %v765
          %v767 = vmul.f32 %v745, 1.442695
          %v768 = vpow.pop %v767
          %v769 = vmul.f32 %v746, 1.442695
          %v770 = vpow.pop %v769
          %v771 = vmul.f32 %v747, 1.442695
          %v772 = vpow.pop %v771
          %v773 = vmul.f32 %v748, 1.442695
          %v774 = vpow.pop %v773
          %v775 = vmul.f32 %v749, 1.442695
          %v776 = vpow.pop %v775
          %v777 = vmul.f32 %v750, 1.442695
          %v778 = vpow.pop %v777
          %v779 = vmul.f32 %v751, 1.442695
          %v780 = vpow.pop %v779
          %v781 = vmul.f32 %v752, 1.442695
          %v782 = vpow.pop %v781
          %v783 = vmul.f32 %v753, 1.442695
          %v784 = vpow.pop %v783
          %v785 = vmul.f32 %v754, 1.442695
          %v786 = vpow.pop %v785
          %v787 = vadd.f32 %v756, 1.0
          %v788 = vadd.f32 %v758, 1.0
          %v789 = vadd.f32 %v760, 1.0
          %v790 = vadd.f32 %v762, 1.0
          %v791 = vadd.f32 %v764, 1.0
          %v792 = vadd.f32 %v766, 1.0
          %v793 = vadd.f32 %v768, 1.0
          %v794 = vadd.f32 %v770, 1.0
          %v795 = vadd.f32 %v772, 1.0
          %v796 = vadd.f32 %v774, 1.0
          %v797 = vadd.f32 %v776, 1.0
          %v798 = vadd.f32 %v778, 1.0
          %v799 = vadd.f32 %v780, 1.0
          %v800 = vadd.f32 %v782, 1.0
          %v801 = vadd.f32 %v784, 1.0
          %v802 = vadd.f32 %v786, 1.0
          %v803 = vrcp.pop %v787
          %v804 = vmul.f32 %v787, %v803
          %v805 = vsub.f32 1.0, %v804
          %v806 = vmul.f32 %v803, %v805
          %v807 = vadd.f32 %v803, %v806
          %vm808 = vweird.f32 %v787
          %vm809 = vweird.f32 %v803
          %vm810 = vmor %vm808, %vm809
          %v811 = vsel %vm810, %v803, %v807
          %v812 = vand.u32 2147483647, %v787
          %vm813 = vcmp.eq.f32.partialorder %v812, 8.507059e+37
          %v814 = vand.u32 %v787, 2147483648
          %v815 = vor.u32 1.1754944e-38, %v814
          %v816 = vsel %vm813, %v815, %v811
          %v817 = vmul.f32 1.0, %v816
          %v818 = vrcp.pop %v788
          %v819 = vmul.f32 %v788, %v818
          %v820 = vsub.f32 1.0, %v819
          %v821 = vmul.f32 %v818, %v820
          %v822 = vadd.f32 %v818, %v821
          %vm823 = vweird.f32 %v788
          %vm824 = vweird.f32 %v818
          %vm825 = vmor %vm823, %vm824
          %v826 = vsel %vm825, %v818, %v822
          %v827 = vand.u32 2147483647, %v788
          %vm828 = vcmp.eq.f32.partialorder %v827, 8.507059e+37
          %v829 = vand.u32 %v788, 2147483648
          %v830 = vor.u32 1.1754944e-38, %v829
          %v831 = vsel %vm828, %v830, %v826
          %v832 = vmul.f32 1.0, %v831
          %v833 = vrcp.pop %v789
          %v834 = vmul.f32 %v789, %v833
          %v835 = vsub.f32 1.0, %v834
          %v836 = vmul.f32 %v833, %v835
          %v837 = vadd.f32 %v833, %v836
          %vm838 = vweird.f32 %v789
          %vm839 = vweird.f32 %v833
          %vm840 = vmor %vm838, %vm839
          %v841 = vsel %vm840, %v833, %v837
          %v842 = vand.u32 2147483647, %v789
          %vm843 = vcmp.eq.f32.partialorder %v842, 8.507059e+37
          %v844 = vand.u32 %v789, 2147483648
          %v845 = vor.u32 1.1754944e-38, %v844
          %v846 = vsel %vm843, %v845, %v841
          %v847 = vmul.f32 1.0, %v846
          %v848 = vrcp.pop %v790
          %v849 = vmul.f32 %v790, %v848
          %v850 = vsub.f32 1.0, %v849
          %v851 = vmul.f32 %v848, %v850
          %v852 = vadd.f32 %v848, %v851
          %vm853 = vweird.f32 %v790
          %vm854 = vweird.f32 %v848
          %vm855 = vmor %vm853, %vm854
          %v856 = vsel %vm855, %v848, %v852
          %v857 = vand.u32 2147483647, %v790
          %vm858 = vcmp.eq.f32.partialorder %v857, 8.507059e+37
          %v859 = vand.u32 %v790, 2147483648
          %v860 = vor.u32 1.1754944e-38, %v859
          %v861 = vsel %vm858, %v860, %v856
          %v862 = vmul.f32 1.0, %v861
          %v863 = vrcp.pop %v791
          %v864 = vmul.f32 %v791, %v863
          %v865 = vsub.f32 1.0, %v864
          %v866 = vmul.f32 %v863, %v865
          %v867 = vadd.f32 %v863, %v866
          %vm868 = vweird.f32 %v791
          %vm869 = vweird.f32 %v863
          %vm870 = vmor %vm868, %vm869
          %v871 = vsel %vm870, %v863, %v867
          %v872 = vand.u32 2147483647, %v791
          %vm873 = vcmp.eq.f32.partialorder %v872, 8.507059e+37
          %v874 = vand.u32 %v791, 2147483648
          %v875 = vor.u32 1.1754944e-38, %v874
          %v876 = vsel %vm873, %v875, %v871
          %v877 = vmul.f32 1.0, %v876
          %v878 = vrcp.pop %v792
          %v879 = vmul.f32 %v792, %v878
          %v880 = vsub.f32 1.0, %v879
          %v881 = vmul.f32 %v878, %v880
          %v882 = vadd.f32 %v878, %v881
          %vm883 = vweird.f32 %v792
          %vm884 = vweird.f32 %v878
          %vm885 = vmor %vm883, %vm884
          %v886 = vsel %vm885, %v878, %v882
          %v887 = vand.u32 2147483647, %v792
          %vm888 = vcmp.eq.f32.partialorder %v887, 8.507059e+37
          %v889 = vand.u32 %v792, 2147483648
          %v890 = vor.u32 1.1754944e-38, %v889
          %v891 = vsel %vm888, %v890, %v886
          %v892 = vmul.f32 1.0, %v891
          %v893 = vrcp.pop %v793
          %v894 = vmul.f32 %v793, %v893
          %v895 = vsub.f32 1.0, %v894
          %v896 = vmul.f32 %v893, %v895
          %v897 = vadd.f32 %v893, %v896
          %vm898 = vweird.f32 %v793
          %vm899 = vweird.f32 %v893
          %vm900 = vmor %vm898, %vm899
          %v901 = vsel %vm900, %v893, %v897
          %v902 = vand.u32 2147483647, %v793
          %vm903 = vcmp.eq.f32.partialorder %v902, 8.507059e+37
          %v904 = vand.u32 %v793, 2147483648
          %v905 = vor.u32 1.1754944e-38, %v904
          %v906 = vsel %vm903, %v905, %v901
          %v907 = vmul.f32 1.0, %v906
          %v908 = vrcp.pop %v794
          %v909 = vmul.f32 %v794, %v908
          %v910 = vsub.f32 1.0, %v909
          %v911 = vmul.f32 %v908, %v910
          %v912 = vadd.f32 %v908, %v911
          %vm913 = vweird.f32 %v794
          %vm914 = vweird.f32 %v908
          %vm915 = vmor %vm913, %vm914
          %v916 = vsel %vm915, %v908, %v912
          %v917 = vand.u32 2147483647, %v794
          %vm918 = vcmp.eq.f32.partialorder %v917, 8.507059e+37
          %v919 = vand.u32 %v794, 2147483648
          %v920 = vor.u32 1.1754944e-38, %v919
          %v921 = vsel %vm918, %v920, %v916
          %v922 = vmul.f32 1.0, %v921
          %v923 = vrcp.pop %v795
          %v924 = vmul.f32 %v795, %v923
          %v925 = vsub.f32 1.0, %v924
          %v926 = vmul.f32 %v923, %v925
          %v927 = vadd.f32 %v923, %v926
          %vm928 = vweird.f32 %v795
          %vm929 = vweird.f32 %v923
          %vm930 = vmor %vm928, %vm929
          %v931 = vsel %vm930, %v923, %v927
          %v932 = vand.u32 2147483647, %v795
          %vm933 = vcmp.eq.f32.partialorder %v932, 8.507059e+37
          %v934 = vand.u32 %v795, 2147483648
          %v935 = vor.u32 1.1754944e-38, %v934
          %v936 = vsel %vm933, %v935, %v931
          %v937 = vmul.f32 1.0, %v936
          %v938 = vrcp.pop %v796
          %v939 = vmul.f32 %v796, %v938
          %v940 = vsub.f32 1.0, %v939
          %v941 = vmul.f32 %v938, %v940
          %v942 = vadd.f32 %v938, %v941
          %vm943 = vweird.f32 %v796
          %vm944 = vweird.f32 %v938
          %vm945 = vmor %vm943, %vm944
          %v946 = vsel %vm945, %v938, %v942
          %v947 = vand.u32 2147483647, %v796
          %vm948 = vcmp.eq.f32.partialorder %v947, 8.507059e+37
          %v949 = vand.u32 %v796, 2147483648
          %v950 = vor.u32 1.1754944e-38, %v949
          %v951 = vsel %vm948, %v950, %v946
          %v952 = vmul.f32 1.0, %v951
          %v953 = vrcp.pop %v797
          %v954 = vmul.f32 %v797, %v953
          %v955 = vsub.f32 1.0, %v954
          %v956 = vmul.f32 %v953, %v955
          %v957 = vadd.f32 %v953, %v956
          %vm958 = vweird.f32 %v797
          %vm959 = vweird.f32 %v953
          %vm960 = vmor %vm958, %vm959
          %v961 = vsel %vm960, %v953, %v957
          %v962 = vand.u32 2147483647, %v797
          %vm963 = vcmp.eq.f32.partialorder %v962, 8.507059e+37
          %v964 = vand.u32 %v797, 2147483648
          %v965 = vor.u32 1.1754944e-38, %v964
          %v966 = vsel %vm963, %v965, %v961
          %v967 = vmul.f32 1.0, %v966
          %v968 = vrcp.pop %v798
          %v969 = vmul.f32 %v798, %v968
          %v970 = vsub.f32 1.0, %v969
          %v971 = vmul.f32 %v968, %v970
          %v972 = vadd.f32 %v968, %v971
          %vm973 = vweird.f32 %v798
          %vm974 = vweird.f32 %v968
          %vm975 = vmor %vm973, %vm974
          %v976 = vsel %vm975, %v968, %v972
          %v977 = vand.u32 2147483647, %v798
          %vm978 = vcmp.eq.f32.partialorder %v977, 8.507059e+37
          %v979 = vand.u32 %v798, 2147483648
          %v980 = vor.u32 1.1754944e-38, %v979
          %v981 = vsel %vm978, %v980, %v976
          %v982 = vmul.f32 1.0, %v981
          %v983 = vrcp.pop %v799
          %v984 = vmul.f32 %v799, %v983
          %v985 = vsub.f32 1.0, %v984
          %v986 = vmul.f32 %v983, %v985
          %v987 = vadd.f32 %v983, %v986
          %vm988 = vweird.f32 %v799
          %vm989 = vweird.f32 %v983
          %vm990 = vmor %vm988, %vm989
          %v991 = vsel %vm990, %v983, %v987
          %v992 = vand.u32 2147483647, %v799
          %vm993 = vcmp.eq.f32.partialorder %v992, 8.507059e+37
          %v994 = vand.u32 %v799, 2147483648
          %v995 = vor.u32 1.1754944e-38, %v994
          %v996 = vsel %vm993, %v995, %v991
          %v997 = vmul.f32 1.0, %v996
          %v998 = vrcp.pop %v800
          %v999 = vmul.f32 %v800, %v998
          %v1000 = vsub.f32 1.0, %v999
          %v1001 = vmul.f32 %v998, %v1000
          %v1002 = vadd.f32 %v998, %v1001
          %vm1003 = vweird.f32 %v800
          %vm1004 = vweird.f32 %v998
          %vm1005 = vmor %vm1003, %vm1004
          %v1006 = vsel %vm1005, %v998, %v1002
          %v1007 = vand.u32 2147483647, %v800
          %vm1008 = vcmp.eq.f32.partialorder %v1007, 8.507059e+37
          %v1009 = vand.u32 %v800, 2147483648
          %v1010 = vor.u32 1.1754944e-38, %v1009
          %v1011 = vsel %vm1008, %v1010, %v1006
          %v1012 = vmul.f32 1.0, %v1011
          %v1013 = vrcp.pop %v801
          %v1014 = vmul.f32 %v801, %v1013
          %v1015 = vsub.f32 1.0, %v1014
          %v1016 = vmul.f32 %v1013, %v1015
          %v1017 = vadd.f32 %v1013, %v1016
          %vm1018 = vweird.f32 %v801
          %vm1019 = vweird.f32 %v1013
          %vm1020 = vmor %vm1018, %vm1019
          %v1021 = vsel %vm1020, %v1013, %v1017
          %v1022 = vand.u32 2147483647, %v801
          %vm1023 = vcmp.eq.f32.partialorder %v1022, 8.507059e+37
          %v1024 = vand.u32 %v801, 2147483648
          %v1025 = vor.u32 1.1754944e-38, %v1024
          %v1026 = vsel %vm1023, %v1025, %v1021
          %v1027 = vmul.f32 1.0, %v1026
          %v1028 = vrcp.pop %v802
          %v1029 = vmul.f32 %v802, %v1028
          %v1030 = vsub.f32 1.0, %v1029
          %v1031 = vmul.f32 %v1028, %v1030
          %v1032 = vadd.f32 %v1028, %v1031
          %vm1033 = vweird.f32 %v802
          %vm1034 = vweird.f32 %v1028
          %vm1035 = vmor %vm1033, %vm1034
          %v1036 = vsel %vm1035, %v1028, %v1032
          %v1037 = vand.u32 2147483647, %v802
          %vm1038 = vcmp.eq.f32.partialorder %v1037, 8.507059e+37
          %v1039 = vand.u32 %v802, 2147483648
          %v1040 = vor.u32 1.1754944e-38, %v1039
          %v1041 = vsel %vm1038, %v1040, %v1036
          %v1042 = vmul.f32 1.0, %v1041
          %v1043 = vmul.f32 %v723, %v817
          %v1044 = vmul.f32 %v724, %v832
          %v1045 = vmul.f32 %v725, %v847
          %v1046 = vmul.f32 %v726, %v862
          %v1047 = vmul.f32 %v727, %v877
          %v1048 = vmul.f32 %v728, %v892
          %v1049 = vmul.f32 %v729, %v907
          %v1050 = vmul.f32 %v730, %v922
          %v1051 = vmul.f32 %v731, %v937
          %v1052 = vmul.f32 %v732, %v952
          %v1053 = vmul.f32 %v733, %v967
          %v1054 = vmul.f32 %v734, %v982
          %v1055 = vmul.f32 %v735, %v997
          %v1056 = vmul.f32 %v736, %v1012
          %v1057 = vmul.f32 %v737, %v1027
          %v1058 = vmul.f32 %v738, %v1042
          %1059 = vst [vmem:[%s307] sm:$0xff] %v1043
          %1060 = vst [vmem:[%s307 + $0x8] sm:$0xff] %v1044
          %1061 = vst [vmem:[%s307 + $0x10] sm:$0xff] %v1045
          %1062 = vst [vmem:[%s307 + $0x18] sm:$0xff] %v1046
          %1063 = vst [vmem:[%s307 + $0x20] sm:$0xff] %v1047
          %1064 = vst [vmem:[%s307 + $0x28] sm:$0xff] %v1048
          %1065 = vst [vmem:[%s307 + $0x30] sm:$0xff] %v1049
          %1066 = vst [vmem:[%s307 + $0x38] sm:$0xff] %v1050
          %1067 = vst [vmem:[%s307 + $0x40] sm:$0xff] %v1051
          %1068 = vst [vmem:[%s307 + $0x48] sm:$0xff] %v1052
          %1069 = vst [vmem:[%s307 + $0x50] sm:$0xff] %v1053
          %1070 = vst [vmem:[%s307 + $0x58] sm:$0xff] %v1054
          %1071 = vst [vmem:[%s307 + $0x60] sm:$0xff] %v1055
          %1072 = vst [vmem:[%s307 + $0x68] sm:$0xff] %v1056
          %1073 = vst [vmem:[%s307 + $0x70] sm:$0xff] %v1057
          %1074 = vst [vmem:[%s307 + $0x78] sm:$0xff] %v1058
        $region78: #{_lambda_.16} parent=65 // pred_fallthru
          _
        %s1075 = smul.u32 16, %s18
        %p1076 = scmp.lt.s32.totalorder %s1075, 15
        %s1077 = scalar_select %p1076, %s1075, 15
        %s1078 = smul.addr %s1077, 8
        %s1079 = scalar_lea.vmem %s3, %s1078
        // Predicated region
        $region79: #{_lambda_.16} parent=65 // pred_check
          %p1080 = pneg %p119
        $region80: #{_lambda_.16} parent=65 // pred_check_branch
          %1082 = sbr.rel (%p1080) target = $region82
        $region81: #{_lambda_.16} parent=65 // pred_region
          %s1083 = smul.u32 16, %s18
        $region82: #{_lambda_.16} parent=65 // pred_fallthru
          _
        // Predicated region
        $region83: #{_lambda_.16} parent=65 // pred_check
          %p1084 = pneg %p119
        $region84: #{_lambda_.16} parent=65 // pred_check_branch
          %1086 = sbr.rel (%p1084) target = $region86
        $region85: #{_lambda_.16} parent=65 // pred_region
          %s1087 = smul.u32 16, %s18
          %p1088 = scmp.lt.s32.totalorder %s1087, 15
          %s1089 = scalar_select %p1088, %s1087, 15
          %s1090 = smul.addr %s1089, 8
          %s1091 = scalar_lea.vmem %s3, %s1090
        $region86: #{_lambda_.16} parent=65 // pred_fallthru
          _
      $region66: #{_lambda_.16} parent=5 // pred_fallthru
        _
      %p1092 = scmp.le.s32.totalorder 2, %s9
      // Predicated region
      $region87: #{_lambda_.16} parent=5 // pred_check
        %p1093 = pneg %p1092
      $region88: #{_lambda_.16} parent=5 // pred_check_branch
        %1095 = sbr.rel (%p1093) target = $region90
      $region89: #{_lambda_.16} parent=5 // pred_region
        %s1096 = ssub.s32 %s9, 2
      $region90: #{_lambda_.16} parent=5 // pred_fallthru
        _
    $region6: #{_lambda_.16} parent=1 // loop_footer
      %s13 = sadd.s32 1, %s9
    $region7: #{_lambda_.16} parent=1 // loop_footer_branch
      %8 = sbr.rel target = $region3
    $region8: #{_lambda_.16} parent=1 // loop_exit
      _

// kernel: _lambda_.18
$region0: #{_lambda_.18}
  #allocation0 [shape = 'u32[]', space=smem, size = 0x4, offset = 0x4, fixed_abs, tag = 'smem constant byte address 0x4 - core index']
  #allocation1 [shape = 'u32[72,128]{1,0:T(1,128)}', space=vmem, size = 0x9000, scoped, tag = 'internal scratch']
  #allocation2 [shape = 'f32[128,128]{1,0:T(8,128)}', space=vmem, size = 0x10000, scoped, tag = 'scratch operand']
  %s0 = inlined_call_operand.vmem [shape: bf16[128,32], index: 0, kind: input, shape index: {}]
  %s1 = inlined_call_operand.vmem [shape: bf16[32,128], index: 1, kind: input, shape index: {}]
  %s2 = inlined_call_operand.vmem [shape: f32[1,128], index: 2, kind: input, shape index: {}]
  %s3 = inlined_call_operand.vmem [shape: f32[128,128], index: 3, kind: output, shape index: {}]
  %s4 = sld [smem:[#allocation0]]
  $region30: #{_lambda_.18} parent=0
    _
  %s6 = ssub.s32 1, %s4
  %s7 = scalar_select 0, %s6, %s4
  // Predicated region
  $region2: #{_lambda_.18} parent=0 // pred_check
    _
  $region3: #{_lambda_.18} parent=0 // pred_check_branch
    %9 = sbr.rel (0) target = $region5
  $region4: #{_lambda_.18} parent=0 // pred_region
    _
  $region5: #{_lambda_.18} parent=0 // pred_fallthru
    _
  // Predicated region
  $region6: #{_lambda_.18} parent=0 // pred_check
    _
  $region7: #{_lambda_.18} parent=0 // pred_check_branch
    %11 = sbr.rel (0) target = $region9
  $region8: #{_lambda_.18} parent=0 // pred_region
    _
  $region9: #{_lambda_.18} parent=0 // pred_fallthru
    _
  // Predicated region
  $region10: #{_lambda_.18} parent=0 // pred_check
    _
  $region11: #{_lambda_.18} parent=0 // pred_check_branch
    %13 = sbr.rel (0) target = $region13
  $region12: #{_lambda_.18} parent=0 // pred_region
    _
  $region13: #{_lambda_.18} parent=0 // pred_fallthru
    _
  %p15 = scmp.eq.s32.totalorder 0, 0
  // Predicated region
  $region14: #{_lambda_.18} parent=0 // pred_check
    %p16 = pneg %p15
  $region15: #{_lambda_.18} parent=0 // pred_check_branch
    %18 = sbr.rel (%p16) target = $region17
  $region16: #{_lambda_.18} parent=0 // pred_region
    %19 = vst [vmem:[#allocation2] sm:$0xff] 0.0
    %20 = vst [vmem:[#allocation2 + $0x8] sm:$0xff] 0.0
    %21 = vst [vmem:[#allocation2 + $0x10] sm:$0xff] 0.0
    %22 = vst [vmem:[#allocation2 + $0x18] sm:$0xff] 0.0
    %23 = vst [vmem:[#allocation2 + $0x20] sm:$0xff] 0.0
    %24 = vst [vmem:[#allocation2 + $0x28] sm:$0xff] 0.0
    %25 = vst [vmem:[#allocation2 + $0x30] sm:$0xff] 0.0
    %26 = vst [vmem:[#allocation2 + $0x38] sm:$0xff] 0.0
    %27 = vst [vmem:[#allocation2 + $0x40] sm:$0xff] 0.0
    %28 = vst [vmem:[#allocation2 + $0x48] sm:$0xff] 0.0
    %29 = vst [vmem:[#allocation2 + $0x50] sm:$0xff] 0.0
    %30 = vst [vmem:[#allocation2 + $0x58] sm:$0xff] 0.0
    %31 = vst [vmem:[#allocation2 + $0x60] sm:$0xff] 0.0
    %32 = vst [vmem:[#allocation2 + $0x68] sm:$0xff] 0.0
    %33 = vst [vmem:[#allocation2 + $0x70] sm:$0xff] 0.0
    %34 = vst [vmem:[#allocation2 + $0x78] sm:$0xff] 0.0
  $region17: #{_lambda_.18} parent=0 // pred_fallthru
    _
  %v35 = vld [vmem:[#allocation2] sm:$0xff]
  %v36 = vld [vmem:[#allocation2 + $0x8] sm:$0xff]
  %v37 = vld [vmem:[#allocation2 + $0x10] sm:$0xff]
  %v38 = vld [vmem:[#allocation2 + $0x18] sm:$0xff]
  %v39 = vld [vmem:[#allocation2 + $0x20] sm:$0xff]
  %v40 = vld [vmem:[#allocation2 + $0x28] sm:$0xff]
  %v41 = vld [vmem:[#allocation2 + $0x30] sm:$0xff]
  %v42 = vld [vmem:[#allocation2 + $0x38] sm:$0xff]
  %v43 = vld [vmem:[#allocation2 + $0x40] sm:$0xff]
  %v44 = vld [vmem:[#allocation2 + $0x48] sm:$0xff]
  %v45 = vld [vmem:[#allocation2 + $0x50] sm:$0xff]
  %v46 = vld [vmem:[#allocation2 + $0x58] sm:$0xff]
  %v47 = vld [vmem:[#allocation2 + $0x60] sm:$0xff]
  %v48 = vld [vmem:[#allocation2 + $0x68] sm:$0xff]
  %v49 = vld [vmem:[#allocation2 + $0x70] sm:$0xff]
  %v50 = vld [vmem:[#allocation2 + $0x78] sm:$0xff]
  %v51 = vld [vmem:[%s0] sm:$0xf]
  %v52 = vld [vmem:[%s0 + $0x4] sm:$0xf]
  %v53 = vld [vmem:[%s0 + $0x8] sm:$0xf]
  %v54 = vld [vmem:[%s0 + $0xc] sm:$0xf]
  %v55 = vld [vmem:[%s0 + $0x10] sm:$0xf]
  %v56 = vld [vmem:[%s0 + $0x14] sm:$0xf]
  %v57 = vld [vmem:[%s0 + $0x18] sm:$0xf]
  %v58 = vld [vmem:[%s0 + $0x1c] sm:$0xf]
  %v59 = vld [vmem:[%s0 + $0x20] sm:$0xf]
  %v60 = vld [vmem:[%s0 + $0x24] sm:$0xf]
  %v61 = vld [vmem:[%s0 + $0x28] sm:$0xf]
  %v62 = vld [vmem:[%s0 + $0x2c] sm:$0xf]
  %v63 = vld [vmem:[%s0 + $0x30] sm:$0xf]
  %v64 = vld [vmem:[%s0 + $0x34] sm:$0xf]
  %v65 = vld [vmem:[%s0 + $0x38] sm:$0xf]
  %v66 = vld [vmem:[%s0 + $0x3c] sm:$0xf]
  %v67 = vld [vmem:[%s1] sm:$0xf]
  %v68 = vld [vmem:[%s1 + $0x4] sm:$0xf]
  %v69 = vld [vmem:[%s1 + $0x8] sm:$0xf]
  %v70 = vld [vmem:[%s1 + $0xc] sm:$0xf]
  %v87 = vunpack.c.l.b16 %v51
  %v88 = vunpack.c.l.b16 %v52
  %v89 = vunpack.c.l.b16 %v53
  %v90 = vunpack.c.l.b16 %v54
  %v91 = vunpack.c.l.b16 %v55
  %v92 = vunpack.c.l.b16 %v56
  %v93 = vunpack.c.l.b16 %v57
  %v94 = vunpack.c.l.b16 %v58
  %v95 = vunpack.c.l.b16 %v59
  %v96 = vunpack.c.l.b16 %v60
  %v97 = vunpack.c.l.b16 %v61
  %v98 = vunpack.c.l.b16 %v62
  %v99 = vunpack.c.l.b16 %v63
  %v100 = vunpack.c.l.b16 %v64
  %v101 = vunpack.c.l.b16 %v65
  %v102 = vunpack.c.l.b16 %v66
  %v103 = vpack.c.b16 %v88, %v87
  %v104 = vpack.c.b16 %v90, %v89
  %v105 = vpack.c.b16 %v92, %v91
  %v106 = vpack.c.b16 %v94, %v93
  %v107 = vpack.c.b16 %v96, %v95
  %v108 = vpack.c.b16 %v98, %v97
  %v109 = vpack.c.b16 %v100, %v99
  %v110 = vpack.c.b16 %v102, %v101
  %v115 = vunpack.c.l.b16 %v67
  %v116 = vunpack.c.l.b16 %v68
  %v117 = vunpack.c.l.b16 %v69
  %v118 = vunpack.c.l.b16 %v70
  %v119 = vpack.c.b16 %v116, %v115
  %v120 = vpack.c.b16 %v118, %v117
  %vm123 = vcmask 261120
  %v125 = vsel %vm123, %v103, 0
  %v128 = vsel %vm123, %v104, 0
  %v131 = vsel %vm123, %v105, 0
  %v134 = vsel %vm123, %v106, 0
  %v137 = vsel %vm123, %v107, 0
  %v140 = vsel %vm123, %v108, 0
  %v143 = vsel %vm123, %v109, 0
  %v146 = vsel %vm123, %v110, 0
  %148 = vmatpush.bf16.msra.mxu0 0
  %149 = vmatpush.bf16.msra.mxu0 0
  %150 = vmatpush.bf16.msra.mxu0 0
  %151 = vmatpush.bf16.msra.mxu0 0
  %152 = vmatpush.bf16.msra.mxu0 0
  %153 = vmatpush.bf16.msra.mxu0 0
  %154 = vmatpush.bf16.msra.mxu0 %v120
  %155 = vmatpush.bf16.msra.mxu0 %v119
  %156 = vmatmul.bf16.gmra.mxu0 %v125
  %v157 = vpop.f32.mrf.mxu0
  %v158 = vadd.f32 0.0, %v157
  %v159 = vpop.f32.mrf.mxu0
  %v160 = vadd.f32 0.0, %v159
  %161 = vmatmul.bf16.gmra.mxu0 %v128
  %v162 = vpop.f32.mrf.mxu0
  %v163 = vadd.f32 0.0, %v162
  %v164 = vpop.f32.mrf.mxu0
  %v165 = vadd.f32 0.0, %v164
  %166 = vmatmul.bf16.gmra.mxu0 %v131
  %v167 = vpop.f32.mrf.mxu0
  %v168 = vadd.f32 0.0, %v167
  %v169 = vpop.f32.mrf.mxu0
  %v170 = vadd.f32 0.0, %v169
  %171 = vmatmul.bf16.gmra.mxu0 %v134
  %v172 = vpop.f32.mrf.mxu0
  %v173 = vadd.f32 0.0, %v172
  %v174 = vpop.f32.mrf.mxu0
  %v175 = vadd.f32 0.0, %v174
  %176 = vmatmul.bf16.gmra.mxu0 %v137
  %v177 = vpop.f32.mrf.mxu0
  %v178 = vadd.f32 0.0, %v177
  %v179 = vpop.f32.mrf.mxu0
  %v180 = vadd.f32 0.0, %v179
  %181 = vmatmul.bf16.gmra.mxu0 %v140
  %v182 = vpop.f32.mrf.mxu0
  %v183 = vadd.f32 0.0, %v182
  %v184 = vpop.f32.mrf.mxu0
  %v185 = vadd.f32 0.0, %v184
  %186 = vmatmul.bf16.gmra.mxu0 %v143
  %v187 = vpop.f32.mrf.mxu0
  %v188 = vadd.f32 0.0, %v187
  %v189 = vpop.f32.mrf.mxu0
  %v190 = vadd.f32 0.0, %v189
  %191 = vmatmul.bf16.gmra.mxu0 %v146
  %v192 = vpop.f32.mrf.mxu0
  %v193 = vadd.f32 0.0, %v192
  %v194 = vpop.f32.mrf.mxu0
  %v195 = vadd.f32 0.0, %v194
  %196 = vdwg.mxu0
  %v197 = vadd.f32 %v35, %v158
  %v198 = vadd.f32 %v36, %v160
  %v199 = vadd.f32 %v37, %v163
  %v200 = vadd.f32 %v38, %v165
  %v201 = vadd.f32 %v39, %v168
  %v202 = vadd.f32 %v40, %v170
  %v203 = vadd.f32 %v41, %v173
  %v204 = vadd.f32 %v42, %v175
  %v205 = vadd.f32 %v43, %v178
  %v206 = vadd.f32 %v44, %v180
  %v207 = vadd.f32 %v45, %v183
  %v208 = vadd.f32 %v46, %v185
  %v209 = vadd.f32 %v47, %v188
  %v210 = vadd.f32 %v48, %v190
  %v211 = vadd.f32 %v49, %v193
  %v212 = vadd.f32 %v50, %v195
  %213 = vst [vmem:[#allocation2] sm:$0xff] %v197
  %214 = vst [vmem:[#allocation2 + $0x8] sm:$0xff] %v198
  %215 = vst [vmem:[#allocation2 + $0x10] sm:$0xff] %v199
  %216 = vst [vmem:[#allocation2 + $0x18] sm:$0xff] %v200
  %217 = vst [vmem:[#allocation2 + $0x20] sm:$0xff] %v201
  %218 = vst [vmem:[#allocation2 + $0x28] sm:$0xff] %v202
  %219 = vst [vmem:[#allocation2 + $0x30] sm:$0xff] %v203
  %220 = vst [vmem:[#allocation2 + $0x38] sm:$0xff] %v204
  %221 = vst [vmem:[#allocation2 + $0x40] sm:$0xff] %v205
  %222 = vst [vmem:[#allocation2 + $0x48] sm:$0xff] %v206
  %223 = vst [vmem:[#allocation2 + $0x50] sm:$0xff] %v207
  %224 = vst [vmem:[#allocation2 + $0x58] sm:$0xff] %v208
  %225 = vst [vmem:[#allocation2 + $0x60] sm:$0xff] %v209
  %226 = vst [vmem:[#allocation2 + $0x68] sm:$0xff] %v210
  %227 = vst [vmem:[#allocation2 + $0x70] sm:$0xff] %v211
  %228 = vst [vmem:[#allocation2 + $0x78] sm:$0xff] %v212
  // Predicated region
  $region18: #{_lambda_.18} parent=0 // pred_check
    %p229 = pneg %p15
  $region19: #{_lambda_.18} parent=0 // pred_check_branch
    %231 = sbr.rel (%p229) target = $region21
  $region20: #{_lambda_.18} parent=0 // pred_region
    %v232 = vld [vmem:[#allocation2] sm:$0xff]
    %v233 = vld [vmem:[#allocation2 + $0x8] sm:$0xff]
    %v234 = vld [vmem:[#allocation2 + $0x10] sm:$0xff]
    %v235 = vld [vmem:[#allocation2 + $0x18] sm:$0xff]
    %v236 = vld [vmem:[#allocation2 + $0x20] sm:$0xff]
    %v237 = vld [vmem:[#allocation2 + $0x28] sm:$0xff]
    %v238 = vld [vmem:[#allocation2 + $0x30] sm:$0xff]
    %v239 = vld [vmem:[#allocation2 + $0x38] sm:$0xff]
    %v240 = vld [vmem:[#allocation2 + $0x40] sm:$0xff]
    %v241 = vld [vmem:[#allocation2 + $0x48] sm:$0xff]
    %v242 = vld [vmem:[#allocation2 + $0x50] sm:$0xff]
    %v243 = vld [vmem:[#allocation2 + $0x58] sm:$0xff]
    %v244 = vld [vmem:[#allocation2 + $0x60] sm:$0xff]
    %v245 = vld [vmem:[#allocation2 + $0x68] sm:$0xff]
    %v246 = vld [vmem:[#allocation2 + $0x70] sm:$0xff]
    %v247 = vld [vmem:[#allocation2 + $0x78] sm:$0xff]
    %v248 = vld [vmem:[%s2] sm:$0x1]
    %v250 = vperm.slane %v248, 0
    %v252 = vadd.f32 %v232, %v250
    %v253 = vadd.f32 %v233, %v250
    %v254 = vadd.f32 %v234, %v250
    %v255 = vadd.f32 %v235, %v250
    %v256 = vadd.f32 %v236, %v250
    %v257 = vadd.f32 %v237, %v250
    %v258 = vadd.f32 %v238, %v250
    %v259 = vadd.f32 %v239, %v250
    %v260 = vadd.f32 %v240, %v250
    %v261 = vadd.f32 %v241, %v250
    %v262 = vadd.f32 %v242, %v250
    %v263 = vadd.f32 %v243, %v250
    %v264 = vadd.f32 %v244, %v250
    %v265 = vadd.f32 %v245, %v250
    %v266 = vadd.f32 %v246, %v250
    %v267 = vadd.f32 %v247, %v250
    %268 = vst [vmem:[%s3] sm:$0xff] %v252
    %269 = vst [vmem:[%s3 + $0x8] sm:$0xff] %v253
    %270 = vst [vmem:[%s3 + $0x10] sm:$0xff] %v254
    %271 = vst [vmem:[%s3 + $0x18] sm:$0xff] %v255
    %272 = vst [vmem:[%s3 + $0x20] sm:$0xff] %v256
    %273 = vst [vmem:[%s3 + $0x28] sm:$0xff] %v257
    %274 = vst [vmem:[%s3 + $0x30] sm:$0xff] %v258
    %275 = vst [vmem:[%s3 + $0x38] sm:$0xff] %v259
    %276 = vst [vmem:[%s3 + $0x40] sm:$0xff] %v260
    %277 = vst [vmem:[%s3 + $0x48] sm:$0xff] %v261
    %278 = vst [vmem:[%s3 + $0x50] sm:$0xff] %v262
    %279 = vst [vmem:[%s3 + $0x58] sm:$0xff] %v263
    %280 = vst [vmem:[%s3 + $0x60] sm:$0xff] %v264
    %281 = vst [vmem:[%s3 + $0x68] sm:$0xff] %v265
    %282 = vst [vmem:[%s3 + $0x70] sm:$0xff] %v266
    %283 = vst [vmem:[%s3 + $0x78] sm:$0xff] %v267
  $region21: #{_lambda_.18} parent=0 // pred_fallthru
    _
  // Predicated region
  $region22: #{_lambda_.18} parent=0 // pred_check
    _
  $region23: #{_lambda_.18} parent=0 // pred_check_branch
    %285 = sbr.rel (0) target = $region25
  $region24: #{_lambda_.18} parent=0 // pred_region
    _
  $region25: #{_lambda_.18} parent=0 // pred_fallthru
    _
  // Predicated region
  $region26: #{_lambda_.18} parent=0 // pred_check
    _
  $region27: #{_lambda_.18} parent=0 // pred_check_branch
    %287 = sbr.rel (0) target = $region29
  $region28: #{_lambda_.18} parent=0 // pred_region
    _
  $region29: #{_lambda_.18} parent=0 // pred_fallthru
    _

// kernel: _lambda_.19
$region0: #{_lambda_.19}
  #allocation0 [shape = 'u32[]', space=smem, size = 0x4, offset = 0x4, fixed_abs, tag = 'smem constant byte address 0x4 - core index']
  #allocation1 [shape = 'u32[72,128]{1,0:T(1,128)}', space=vmem, size = 0x9000, scoped, tag = 'internal scratch']
  #allocation2 [shape = 'f32[128,128]{1,0:T(8,128)}', space=vmem, size = 0x10000, scoped, tag = 'scratch operand']
  %s0 = inlined_call_operand.vmem [shape: bf16[128,36], index: 0, kind: input, shape index: {}]
  %s1 = inlined_call_operand.vmem [shape: bf16[36,128], index: 1, kind: input, shape index: {}]
  %s2 = inlined_call_operand.vmem [shape: f32[1,128], index: 2, kind: input, shape index: {}]
  %s3 = inlined_call_operand.vmem [shape: f32[128,128], index: 3, kind: input, shape index: {}]
  %s4 = inlined_call_operand.vmem [shape: f32[128,128], index: 4, kind: output, shape index: {}]
  %s5 = sld [smem:[#allocation0]]
  $region34: #{_lambda_.19} parent=0
    _
  %s7 = ssub.s32 1, %s5
  %s8 = scalar_select 0, %s7, %s5
  // Predicated region
  $region2: #{_lambda_.19} parent=0 // pred_check
    _
  $region3: #{_lambda_.19} parent=0 // pred_check_branch
    %10 = sbr.rel (0) target = $region5
  $region4: #{_lambda_.19} parent=0 // pred_region
    _
  $region5: #{_lambda_.19} parent=0 // pred_fallthru
    _
  // Predicated region
  $region6: #{_lambda_.19} parent=0 // pred_check
    _
  $region7: #{_lambda_.19} parent=0 // pred_check_branch
    %12 = sbr.rel (0) target = $region9
  $region8: #{_lambda_.19} parent=0 // pred_region
    _
  $region9: #{_lambda_.19} parent=0 // pred_fallthru
    _
  // Predicated region
  $region10: #{_lambda_.19} parent=0 // pred_check
    _
  $region11: #{_lambda_.19} parent=0 // pred_check_branch
    %14 = sbr.rel (0) target = $region13
  $region12: #{_lambda_.19} parent=0 // pred_region
    _
  $region13: #{_lambda_.19} parent=0 // pred_fallthru
    _
  // Predicated region
  $region14: #{_lambda_.19} parent=0 // pred_check
    _
  $region15: #{_lambda_.19} parent=0 // pred_check_branch
    %16 = sbr.rel (0) target = $region17
  $region16: #{_lambda_.19} parent=0 // pred_region
    _
  $region17: #{_lambda_.19} parent=0 // pred_fallthru
    _
  %p18 = scmp.eq.s32.totalorder 0, 0
  // Predicated region
  $region18: #{_lambda_.19} parent=0 // pred_check
    %p19 = pneg %p18
  $region19: #{_lambda_.19} parent=0 // pred_check_branch
    %21 = sbr.rel (%p19) target = $region21
  $region20: #{_lambda_.19} parent=0 // pred_region
    %22 = vst [vmem:[#allocation2] sm:$0xff] 0.0
    %23 = vst [vmem:[#allocation2 + $0x8] sm:$0xff] 0.0
    %24 = vst [vmem:[#allocation2 + $0x10] sm:$0xff] 0.0
    %25 = vst [vmem:[#allocation2 + $0x18] sm:$0xff] 0.0
    %26 = vst [vmem:[#allocation2 + $0x20] sm:$0xff] 0.0
    %27 = vst [vmem:[#allocation2 + $0x28] sm:$0xff] 0.0
    %28 = vst [vmem:[#allocation2 + $0x30] sm:$0xff] 0.0
    %29 = vst [vmem:[#allocation2 + $0x38] sm:$0xff] 0.0
    %30 = vst [vmem:[#allocation2 + $0x40] sm:$0xff] 0.0
    %31 = vst [vmem:[#allocation2 + $0x48] sm:$0xff] 0.0
    %32 = vst [vmem:[#allocation2 + $0x50] sm:$0xff] 0.0
    %33 = vst [vmem:[#allocation2 + $0x58] sm:$0xff] 0.0
    %34 = vst [vmem:[#allocation2 + $0x60] sm:$0xff] 0.0
    %35 = vst [vmem:[#allocation2 + $0x68] sm:$0xff] 0.0
    %36 = vst [vmem:[#allocation2 + $0x70] sm:$0xff] 0.0
    %37 = vst [vmem:[#allocation2 + $0x78] sm:$0xff] 0.0
  $region21: #{_lambda_.19} parent=0 // pred_fallthru
    _
  %v38 = vld [vmem:[#allocation2] sm:$0xff]
  %v39 = vld [vmem:[#allocation2 + $0x8] sm:$0xff]
  %v40 = vld [vmem:[#allocation2 + $0x10] sm:$0xff]
  %v41 = vld [vmem:[#allocation2 + $0x18] sm:$0xff]
  %v42 = vld [vmem:[#allocation2 + $0x20] sm:$0xff]
  %v43 = vld [vmem:[#allocation2 + $0x28] sm:$0xff]
  %v44 = vld [vmem:[#allocation2 + $0x30] sm:$0xff]
  %v45 = vld [vmem:[#allocation2 + $0x38] sm:$0xff]
  %v46 = vld [vmem:[#allocation2 + $0x40] sm:$0xff]
  %v47 = vld [vmem:[#allocation2 + $0x48] sm:$0xff]
  %v48 = vld [vmem:[#allocation2 + $0x50] sm:$0xff]
  %v49 = vld [vmem:[#allocation2 + $0x58] sm:$0xff]
  %v50 = vld [vmem:[#allocation2 + $0x60] sm:$0xff]
  %v51 = vld [vmem:[#allocation2 + $0x68] sm:$0xff]
  %v52 = vld [vmem:[#allocation2 + $0x70] sm:$0xff]
  %v53 = vld [vmem:[#allocation2 + $0x78] sm:$0xff]
  %v54 = vld [vmem:[%s0] sm:$0xf]
  %v55 = vld [vmem:[%s0 + $0x4] sm:$0xf]
  %v56 = vld [vmem:[%s0 + $0x8] sm:$0xf]
  %v57 = vld [vmem:[%s0 + $0xc] sm:$0xf]
  %v58 = vld [vmem:[%s0 + $0x10] sm:$0xf]
  %v59 = vld [vmem:[%s0 + $0x14] sm:$0xf]
  %v60 = vld [vmem:[%s0 + $0x18] sm:$0xf]
  %v61 = vld [vmem:[%s0 + $0x1c] sm:$0xf]
  %v62 = vld [vmem:[%s0 + $0x20] sm:$0xf]
  %v63 = vld [vmem:[%s0 + $0x24] sm:$0xf]
  %v64 = vld [vmem:[%s0 + $0x28] sm:$0xf]
  %v65 = vld [vmem:[%s0 + $0x2c] sm:$0xf]
  %v66 = vld [vmem:[%s0 + $0x30] sm:$0xf]
  %v67 = vld [vmem:[%s0 + $0x34] sm:$0xf]
  %v68 = vld [vmem:[%s0 + $0x38] sm:$0xf]
  %v69 = vld [vmem:[%s0 + $0x3c] sm:$0xf]
  %v70 = vld [vmem:[%s1] sm:$0xf]
  %v71 = vld [vmem:[%s1 + $0x4] sm:$0xf]
  %v72 = vld [vmem:[%s1 + $0x8] sm:$0xf]
  %v73 = vld [vmem:[%s1 + $0xc] sm:$0xf]
  %v74 = vld [vmem:[%s1 + $0x10] sm:$0x3]
  %v91 = vunpack.c.l.b16 %v54
  %v92 = vunpack.c.l.b16 %v55
  %v93 = vunpack.c.l.b16 %v56
  %v94 = vunpack.c.l.b16 %v57
  %v95 = vunpack.c.l.b16 %v58
  %v96 = vunpack.c.l.b16 %v59
  %v97 = vunpack.c.l.b16 %v60
  %v98 = vunpack.c.l.b16 %v61
  %v99 = vunpack.c.l.b16 %v62
  %v100 = vunpack.c.l.b16 %v63
  %v101 = vunpack.c.l.b16 %v64
  %v102 = vunpack.c.l.b16 %v65
  %v103 = vunpack.c.l.b16 %v66
  %v104 = vunpack.c.l.b16 %v67
  %v105 = vunpack.c.l.b16 %v68
  %v106 = vunpack.c.l.b16 %v69
  %v107 = vpack.c.b16 %v92, %v91
  %v108 = vpack.c.b16 %v94, %v93
  %v109 = vpack.c.b16 %v96, %v95
  %v110 = vpack.c.b16 %v98, %v97
  %v111 = vpack.c.b16 %v100, %v99
  %v112 = vpack.c.b16 %v102, %v101
  %v113 = vpack.c.b16 %v104, %v103
  %v114 = vpack.c.b16 %v106, %v105
  %v120 = vunpack.c.l.b16 %v70
  %v121 = vunpack.c.l.b16 %v71
  %v122 = vunpack.c.l.b16 %v72
  %v123 = vunpack.c.l.b16 %v73
  %v124 = vunpack.c.l.b16 %v74
  %v125 = vpack.c.b16 %v121, %v120
  %v126 = vpack.c.b16 %v123, %v122
  %v127 = vpack.c.b16 %v124, %v124
  %vm130 = vcmask 293888
  %v132 = vsel %vm130, %v107, 0
  %v135 = vsel %vm130, %v108, 0
  %v138 = vsel %vm130, %v109, 0
  %v141 = vsel %vm130, %v110, 0
  %v144 = vsel %vm130, %v111, 0
  %v147 = vsel %vm130, %v112, 0
  %v150 = vsel %vm130, %v113, 0
  %v153 = vsel %vm130, %v114, 0
  %vm155 = vcmask 1041408
  %v157 = vsel %vm155, %v127, 0
  %159 = vmatpush.bf16.msra.mxu0 0
  %160 = vmatpush.bf16.msra.mxu0 0
  %161 = vmatpush.bf16.msra.mxu0 0
  %162 = vmatpush.bf16.msra.mxu0 0
  %163 = vmatpush.bf16.msra.mxu0 0
  %164 = vmatpush.bf16.msra.mxu0 %v157
  %165 = vmatpush.bf16.msra.mxu0 %v126
  %166 = vmatpush.bf16.msra.mxu0 %v125
  %167 = vmatmul.bf16.gmra.mxu0 %v132
  %v168 = vpop.f32.mrf.mxu0
  %v169 = vadd.f32 0.0, %v168
  %v170 = vpop.f32.mrf.mxu0
  %v171 = vadd.f32 0.0, %v170
  %172 = vmatmul.bf16.gmra.mxu0 %v135
  %v173 = vpop.f32.mrf.mxu0
  %v174 = vadd.f32 0.0, %v173
  %v175 = vpop.f32.mrf.mxu0
  %v176 = vadd.f32 0.0, %v175
  %177 = vmatmul.bf16.gmra.mxu0 %v138
  %v178 = vpop.f32.mrf.mxu0
  %v179 = vadd.f32 0.0, %v178
  %v180 = vpop.f32.mrf.mxu0
  %v181 = vadd.f32 0.0, %v180
  %182 = vmatmul.bf16.gmra.mxu0 %v141
  %v183 = vpop.f32.mrf.mxu0
  %v184 = vadd.f32 0.0, %v183
  %v185 = vpop.f32.mrf.mxu0
  %v186 = vadd.f32 0.0, %v185
  %187 = vmatmul.bf16.gmra.mxu0 %v144
  %v188 = vpop.f32.mrf.mxu0
  %v189 = vadd.f32 0.0, %v188
  %v190 = vpop.f32.mrf.mxu0
  %v191 = vadd.f32 0.0, %v190
  %192 = vmatmul.bf16.gmra.mxu0 %v147
  %v193 = vpop.f32.mrf.mxu0
  %v194 = vadd.f32 0.0, %v193
  %v195 = vpop.f32.mrf.mxu0
  %v196 = vadd.f32 0.0, %v195
  %197 = vmatmul.bf16.gmra.mxu0 %v150
  %v198 = vpop.f32.mrf.mxu0
  %v199 = vadd.f32 0.0, %v198
  %v200 = vpop.f32.mrf.mxu0
  %v201 = vadd.f32 0.0, %v200
  %202 = vmatmul.bf16.gmra.mxu0 %v153
  %v203 = vpop.f32.mrf.mxu0
  %v204 = vadd.f32 0.0, %v203
  %v205 = vpop.f32.mrf.mxu0
  %v206 = vadd.f32 0.0, %v205
  %207 = vdwg.mxu0
  %v208 = vadd.f32 %v38, %v169
  %v209 = vadd.f32 %v39, %v171
  %v210 = vadd.f32 %v40, %v174
  %v211 = vadd.f32 %v41, %v176
  %v212 = vadd.f32 %v42, %v179
  %v213 = vadd.f32 %v43, %v181
  %v214 = vadd.f32 %v44, %v184
  %v215 = vadd.f32 %v45, %v186
  %v216 = vadd.f32 %v46, %v189
  %v217 = vadd.f32 %v47, %v191
  %v218 = vadd.f32 %v48, %v194
  %v219 = vadd.f32 %v49, %v196
  %v220 = vadd.f32 %v50, %v199
  %v221 = vadd.f32 %v51, %v201
  %v222 = vadd.f32 %v52, %v204
  %v223 = vadd.f32 %v53, %v206
  %224 = vst [vmem:[#allocation2] sm:$0xff] %v208
  %225 = vst [vmem:[#allocation2 + $0x8] sm:$0xff] %v209
  %226 = vst [vmem:[#allocation2 + $0x10] sm:$0xff] %v210
  %227 = vst [vmem:[#allocation2 + $0x18] sm:$0xff] %v211
  %228 = vst [vmem:[#allocation2 + $0x20] sm:$0xff] %v212
  %229 = vst [vmem:[#allocation2 + $0x28] sm:$0xff] %v213
  %230 = vst [vmem:[#allocation2 + $0x30] sm:$0xff] %v214
  %231 = vst [vmem:[#allocation2 + $0x38] sm:$0xff] %v215
  %232 = vst [vmem:[#allocation2 + $0x40] sm:$0xff] %v216
  %233 = vst [vmem:[#allocation2 + $0x48] sm:$0xff] %v217
  %234 = vst [vmem:[#allocation2 + $0x50] sm:$0xff] %v218
  %235 = vst [vmem:[#allocation2 + $0x58] sm:$0xff] %v219
  %236 = vst [vmem:[#allocation2 + $0x60] sm:$0xff] %v220
  %237 = vst [vmem:[#allocation2 + $0x68] sm:$0xff] %v221
  %238 = vst [vmem:[#allocation2 + $0x70] sm:$0xff] %v222
  %239 = vst [vmem:[#allocation2 + $0x78] sm:$0xff] %v223
  // Predicated region
  $region22: #{_lambda_.19} parent=0 // pred_check
    %p240 = pneg %p18
  $region23: #{_lambda_.19} parent=0 // pred_check_branch
    %242 = sbr.rel (%p240) target = $region25
  $region24: #{_lambda_.19} parent=0 // pred_region
    %v243 = vld [vmem:[#allocation2] sm:$0xff]
    %v244 = vld [vmem:[#allocation2 + $0x8] sm:$0xff]
    %v245 = vld [vmem:[#allocation2 + $0x10] sm:$0xff]
    %v246 = vld [vmem:[#allocation2 + $0x18] sm:$0xff]
    %v247 = vld [vmem:[#allocation2 + $0x20] sm:$0xff]
    %v248 = vld [vmem:[#allocation2 + $0x28] sm:$0xff]
    %v249 = vld [vmem:[#allocation2 + $0x30] sm:$0xff]
    %v250 = vld [vmem:[#allocation2 + $0x38] sm:$0xff]
    %v251 = vld [vmem:[#allocation2 + $0x40] sm:$0xff]
    %v252 = vld [vmem:[#allocation2 + $0x48] sm:$0xff]
    %v253 = vld [vmem:[#allocation2 + $0x50] sm:$0xff]
    %v254 = vld [vmem:[#allocation2 + $0x58] sm:$0xff]
    %v255 = vld [vmem:[#allocation2 + $0x60] sm:$0xff]
    %v256 = vld [vmem:[#allocation2 + $0x68] sm:$0xff]
    %v257 = vld [vmem:[#allocation2 + $0x70] sm:$0xff]
    %v258 = vld [vmem:[#allocation2 + $0x78] sm:$0xff]
    %v259 = vld [vmem:[%s2] sm:$0x1]
    %v261 = vperm.slane %v259, 0
    %v263 = vadd.f32 %v243, %v261
    %v264 = vadd.f32 %v244, %v261
    %v265 = vadd.f32 %v245, %v261
    %v266 = vadd.f32 %v246, %v261
    %v267 = vadd.f32 %v247, %v261
    %v268 = vadd.f32 %v248, %v261
    %v269 = vadd.f32 %v249, %v261
    %v270 = vadd.f32 %v250, %v261
    %v271 = vadd.f32 %v251, %v261
    %v272 = vadd.f32 %v252, %v261
    %v273 = vadd.f32 %v253, %v261
    %v274 = vadd.f32 %v254, %v261
    %v275 = vadd.f32 %v255, %v261
    %v276 = vadd.f32 %v256, %v261
    %v277 = vadd.f32 %v257, %v261
    %v278 = vadd.f32 %v258, %v261
    %v279 = vxor.u32 %v263, 2147483648
    %v280 = vxor.u32 %v264, 2147483648
    %v281 = vxor.u32 %v265, 2147483648
    %v282 = vxor.u32 %v266, 2147483648
    %v283 = vxor.u32 %v267, 2147483648
    %v284 = vxor.u32 %v268, 2147483648
    %v285 = vxor.u32 %v269, 2147483648
    %v286 = vxor.u32 %v270, 2147483648
    %v287 = vxor.u32 %v271, 2147483648
    %v288 = vxor.u32 %v272, 2147483648
    %v289 = vxor.u32 %v273, 2147483648
    %v290 = vxor.u32 %v274, 2147483648
    %v291 = vxor.u32 %v275, 2147483648
    %v292 = vxor.u32 %v276, 2147483648
    %v293 = vxor.u32 %v277, 2147483648
    %v294 = vxor.u32 %v278, 2147483648
    %v295 = vmul.f32 %v279, 1.442695
    %v296 = vpow.pop %v295
    %v297 = vmul.f32 %v280, 1.442695
    %v298 = vpow.pop %v297
    %v299 = vmul.f32 %v281, 1.442695
    %v300 = vpow.pop %v299
    %v301 = vmul.f32 %v282, 1.442695
    %v302 = vpow.pop %v301
    %v303 = vmul.f32 %v283, 1.442695
    %v304 = vpow.pop %v303
    %v305 = vmul.f32 %v284, 1.442695
    %v306 = vpow.pop %v305
    %v307 = vmul.f32 %v285, 1.442695
    %v308 = vpow.pop %v307
    %v309 = vmul.f32 %v286, 1.442695
    %v310 = vpow.pop %v309
    %v311 = vmul.f32 %v287, 1.442695
    %v312 = vpow.pop %v311
    %v313 = vmul.f32 %v288, 1.442695
    %v314 = vpow.pop %v313
    %v315 = vmul.f32 %v289, 1.442695
    %v316 = vpow.pop %v315
    %v317 = vmul.f32 %v290, 1.442695
    %v318 = vpow.pop %v317
    %v319 = vmul.f32 %v291, 1.442695
    %v320 = vpow.pop %v319
    %v321 = vmul.f32 %v292, 1.442695
    %v322 = vpow.pop %v321
    %v323 = vmul.f32 %v293, 1.442695
    %v324 = vpow.pop %v323
    %v325 = vmul.f32 %v294, 1.442695
    %v326 = vpow.pop %v325
    %v327 = vadd.f32 %v296, 1.0
    %v328 = vadd.f32 %v298, 1.0
    %v329 = vadd.f32 %v300, 1.0
    %v330 = vadd.f32 %v302, 1.0
    %v331 = vadd.f32 %v304, 1.0
    %v332 = vadd.f32 %v306, 1.0
    %v333 = vadd.f32 %v308, 1.0
    %v334 = vadd.f32 %v310, 1.0
    %v335 = vadd.f32 %v312, 1.0
    %v336 = vadd.f32 %v314, 1.0
    %v337 = vadd.f32 %v316, 1.0
    %v338 = vadd.f32 %v318, 1.0
    %v339 = vadd.f32 %v320, 1.0
    %v340 = vadd.f32 %v322, 1.0
    %v341 = vadd.f32 %v324, 1.0
    %v342 = vadd.f32 %v326, 1.0
    %v343 = vrcp.pop %v327
    %v344 = vmul.f32 %v327, %v343
    %v345 = vsub.f32 1.0, %v344
    %v346 = vmul.f32 %v343, %v345
    %v347 = vadd.f32 %v343, %v346
    %vm348 = vweird.f32 %v327
    %vm349 = vweird.f32 %v343
    %vm350 = vmor %vm348, %vm349
    %v351 = vsel %vm350, %v343, %v347
    %v352 = vand.u32 2147483647, %v327
    %vm353 = vcmp.eq.f32.partialorder %v352, 8.507059e+37
    %v354 = vand.u32 %v327, 2147483648
    %v355 = vor.u32 1.1754944e-38, %v354
    %v356 = vsel %vm353, %v355, %v351
    %v357 = vmul.f32 1.0, %v356
    %v358 = vrcp.pop %v328
    %v359 = vmul.f32 %v328, %v358
    %v360 = vsub.f32 1.0, %v359
    %v361 = vmul.f32 %v358, %v360
    %v362 = vadd.f32 %v358, %v361
    %vm363 = vweird.f32 %v328
    %vm364 = vweird.f32 %v358
    %vm365 = vmor %vm363, %vm364
    %v366 = vsel %vm365, %v358, %v362
    %v367 = vand.u32 2147483647, %v328
    %vm368 = vcmp.eq.f32.partialorder %v367, 8.507059e+37
    %v369 = vand.u32 %v328, 2147483648
    %v370 = vor.u32 1.1754944e-38, %v369
    %v371 = vsel %vm368, %v370, %v366
    %v372 = vmul.f32 1.0, %v371
    %v373 = vrcp.pop %v329
    %v374 = vmul.f32 %v329, %v373
    %v375 = vsub.f32 1.0, %v374
    %v376 = vmul.f32 %v373, %v375
    %v377 = vadd.f32 %v373, %v376
    %vm378 = vweird.f32 %v329
    %vm379 = vweird.f32 %v373
    %vm380 = vmor %vm378, %vm379
    %v381 = vsel %vm380, %v373, %v377
    %v382 = vand.u32 2147483647, %v329
    %vm383 = vcmp.eq.f32.partialorder %v382, 8.507059e+37
    %v384 = vand.u32 %v329, 2147483648
    %v385 = vor.u32 1.1754944e-38, %v384
    %v386 = vsel %vm383, %v385, %v381
    %v387 = vmul.f32 1.0, %v386
    %v388 = vrcp.pop %v330
    %v389 = vmul.f32 %v330, %v388
    %v390 = vsub.f32 1.0, %v389
    %v391 = vmul.f32 %v388, %v390
    %v392 = vadd.f32 %v388, %v391
    %vm393 = vweird.f32 %v330
    %vm394 = vweird.f32 %v388
    %vm395 = vmor %vm393, %vm394
    %v396 = vsel %vm395, %v388, %v392
    %v397 = vand.u32 2147483647, %v330
    %vm398 = vcmp.eq.f32.partialorder %v397, 8.507059e+37
    %v399 = vand.u32 %v330, 2147483648
    %v400 = vor.u32 1.1754944e-38, %v399
    %v401 = vsel %vm398, %v400, %v396
    %v402 = vmul.f32 1.0, %v401
    %v403 = vrcp.pop %v331
    %v404 = vmul.f32 %v331, %v403
    %v405 = vsub.f32 1.0, %v404
    %v406 = vmul.f32 %v403, %v405
    %v407 = vadd.f32 %v403, %v406
    %vm408 = vweird.f32 %v331
    %vm409 = vweird.f32 %v403
    %vm410 = vmor %vm408, %vm409
    %v411 = vsel %vm410, %v403, %v407
    %v412 = vand.u32 2147483647, %v331
    %vm413 = vcmp.eq.f32.partialorder %v412, 8.507059e+37
    %v414 = vand.u32 %v331, 2147483648
    %v415 = vor.u32 1.1754944e-38, %v414
    %v416 = vsel %vm413, %v415, %v411
    %v417 = vmul.f32 1.0, %v416
    %v418 = vrcp.pop %v332
    %v419 = vmul.f32 %v332, %v418
    %v420 = vsub.f32 1.0, %v419
    %v421 = vmul.f32 %v418, %v420
    %v422 = vadd.f32 %v418, %v421
    %vm423 = vweird.f32 %v332
    %vm424 = vweird.f32 %v418
    %vm425 = vmor %vm423, %vm424
    %v426 = vsel %vm425, %v418, %v422
    %v427 = vand.u32 2147483647, %v332
    %vm428 = vcmp.eq.f32.partialorder %v427, 8.507059e+37
    %v429 = vand.u32 %v332, 2147483648
    %v430 = vor.u32 1.1754944e-38, %v429
    %v431 = vsel %vm428, %v430, %v426
    %v432 = vmul.f32 1.0, %v431
    %v433 = vrcp.pop %v333
    %v434 = vmul.f32 %v333, %v433
    %v435 = vsub.f32 1.0, %v434
    %v436 = vmul.f32 %v433, %v435
    %v437 = vadd.f32 %v433, %v436
    %vm438 = vweird.f32 %v333
    %vm439 = vweird.f32 %v433
    %vm440 = vmor %vm438, %vm439
    %v441 = vsel %vm440, %v433, %v437
    %v442 = vand.u32 2147483647, %v333
    %vm443 = vcmp.eq.f32.partialorder %v442, 8.507059e+37
    %v444 = vand.u32 %v333, 2147483648
    %v445 = vor.u32 1.1754944e-38, %v444
    %v446 = vsel %vm443, %v445, %v441
    %v447 = vmul.f32 1.0, %v446
    %v448 = vrcp.pop %v334
    %v449 = vmul.f32 %v334, %v448
    %v450 = vsub.f32 1.0, %v449
    %v451 = vmul.f32 %v448, %v450
    %v452 = vadd.f32 %v448, %v451
    %vm453 = vweird.f32 %v334
    %vm454 = vweird.f32 %v448
    %vm455 = vmor %vm453, %vm454
    %v456 = vsel %vm455, %v448, %v452
    %v457 = vand.u32 2147483647, %v334
    %vm458 = vcmp.eq.f32.partialorder %v457, 8.507059e+37
    %v459 = vand.u32 %v334, 2147483648
    %v460 = vor.u32 1.1754944e-38, %v459
    %v461 = vsel %vm458, %v460, %v456
    %v462 = vmul.f32 1.0, %v461
    %v463 = vrcp.pop %v335
    %v464 = vmul.f32 %v335, %v463
    %v465 = vsub.f32 1.0, %v464
    %v466 = vmul.f32 %v463, %v465
    %v467 = vadd.f32 %v463, %v466
    %vm468 = vweird.f32 %v335
    %vm469 = vweird.f32 %v463
    %vm470 = vmor %vm468, %vm469
    %v471 = vsel %vm470, %v463, %v467
    %v472 = vand.u32 2147483647, %v335
    %vm473 = vcmp.eq.f32.partialorder %v472, 8.507059e+37
    %v474 = vand.u32 %v335, 2147483648
    %v475 = vor.u32 1.1754944e-38, %v474
    %v476 = vsel %vm473, %v475, %v471
    %v477 = vmul.f32 1.0, %v476
    %v478 = vrcp.pop %v336
    %v479 = vmul.f32 %v336, %v478
    %v480 = vsub.f32 1.0, %v479
    %v481 = vmul.f32 %v478, %v480
    %v482 = vadd.f32 %v478, %v481
    %vm483 = vweird.f32 %v336
    %vm484 = vweird.f32 %v478
    %vm485 = vmor %vm483, %vm484
    %v486 = vsel %vm485, %v478, %v482
    %v487 = vand.u32 2147483647, %v336
    %vm488 = vcmp.eq.f32.partialorder %v487, 8.507059e+37
    %v489 = vand.u32 %v336, 2147483648
    %v490 = vor.u32 1.1754944e-38, %v489
    %v491 = vsel %vm488, %v490, %v486
    %v492 = vmul.f32 1.0, %v491
    %v493 = vrcp.pop %v337
    %v494 = vmul.f32 %v337, %v493
    %v495 = vsub.f32 1.0, %v494
    %v496 = vmul.f32 %v493, %v495
    %v497 = vadd.f32 %v493, %v496
    %vm498 = vweird.f32 %v337
    %vm499 = vweird.f32 %v493
    %vm500 = vmor %vm498, %vm499
    %v501 = vsel %vm500, %v493, %v497
    %v502 = vand.u32 2147483647, %v337
    %vm503 = vcmp.eq.f32.partialorder %v502, 8.507059e+37
    %v504 = vand.u32 %v337, 2147483648
    %v505 = vor.u32 1.1754944e-38, %v504
    %v506 = vsel %vm503, %v505, %v501
    %v507 = vmul.f32 1.0, %v506
    %v508 = vrcp.pop %v338
    %v509 = vmul.f32 %v338, %v508
    %v510 = vsub.f32 1.0, %v509
    %v511 = vmul.f32 %v508, %v510
    %v512 = vadd.f32 %v508, %v511
    %vm513 = vweird.f32 %v338
    %vm514 = vweird.f32 %v508
    %vm515 = vmor %vm513, %vm514
    %v516 = vsel %vm515, %v508, %v512
    %v517 = vand.u32 2147483647, %v338
    %vm518 = vcmp.eq.f32.partialorder %v517, 8.507059e+37
    %v519 = vand.u32 %v338, 2147483648
    %v520 = vor.u32 1.1754944e-38, %v519
    %v521 = vsel %vm518, %v520, %v516
    %v522 = vmul.f32 1.0, %v521
    %v523 = vrcp.pop %v339
    %v524 = vmul.f32 %v339, %v523
    %v525 = vsub.f32 1.0, %v524
    %v526 = vmul.f32 %v523, %v525
    %v527 = vadd.f32 %v523, %v526
    %vm528 = vweird.f32 %v339
    %vm529 = vweird.f32 %v523
    %vm530 = vmor %vm528, %vm529
    %v531 = vsel %vm530, %v523, %v527
    %v532 = vand.u32 2147483647, %v339
    %vm533 = vcmp.eq.f32.partialorder %v532, 8.507059e+37
    %v534 = vand.u32 %v339, 2147483648
    %v535 = vor.u32 1.1754944e-38, %v534
    %v536 = vsel %vm533, %v535, %v531
    %v537 = vmul.f32 1.0, %v536
    %v538 = vrcp.pop %v340
    %v539 = vmul.f32 %v340, %v538
    %v540 = vsub.f32 1.0, %v539
    %v541 = vmul.f32 %v538, %v540
    %v542 = vadd.f32 %v538, %v541
    %vm543 = vweird.f32 %v340
    %vm544 = vweird.f32 %v538
    %vm545 = vmor %vm543, %vm544
    %v546 = vsel %vm545, %v538, %v542
    %v547 = vand.u32 2147483647, %v340
    %vm548 = vcmp.eq.f32.partialorder %v547, 8.507059e+37
    %v549 = vand.u32 %v340, 2147483648
    %v550 = vor.u32 1.1754944e-38, %v549
    %v551 = vsel %vm548, %v550, %v546
    %v552 = vmul.f32 1.0, %v551
    %v553 = vrcp.pop %v341
    %v554 = vmul.f32 %v341, %v553
    %v555 = vsub.f32 1.0, %v554
    %v556 = vmul.f32 %v553, %v555
    %v557 = vadd.f32 %v553, %v556
    %vm558 = vweird.f32 %v341
    %vm559 = vweird.f32 %v553
    %vm560 = vmor %vm558, %vm559
    %v561 = vsel %vm560, %v553, %v557
    %v562 = vand.u32 2147483647, %v341
    %vm563 = vcmp.eq.f32.partialorder %v562, 8.507059e+37
    %v564 = vand.u32 %v341, 2147483648
    %v565 = vor.u32 1.1754944e-38, %v564
    %v566 = vsel %vm563, %v565, %v561
    %v567 = vmul.f32 1.0, %v566
    %v568 = vrcp.pop %v342
    %v569 = vmul.f32 %v342, %v568
    %v570 = vsub.f32 1.0, %v569
    %v571 = vmul.f32 %v568, %v570
    %v572 = vadd.f32 %v568, %v571
    %vm573 = vweird.f32 %v342
    %vm574 = vweird.f32 %v568
    %vm575 = vmor %vm573, %vm574
    %v576 = vsel %vm575, %v568, %v572
    %v577 = vand.u32 2147483647, %v342
    %vm578 = vcmp.eq.f32.partialorder %v577, 8.507059e+37
    %v579 = vand.u32 %v342, 2147483648
    %v580 = vor.u32 1.1754944e-38, %v579
    %v581 = vsel %vm578, %v580, %v576
    %v582 = vmul.f32 1.0, %v581
    %v583 = vmul.f32 %v263, %v357
    %v584 = vmul.f32 %v264, %v372
    %v585 = vmul.f32 %v265, %v387
    %v586 = vmul.f32 %v266, %v402
    %v587 = vmul.f32 %v267, %v417
    %v588 = vmul.f32 %v268, %v432
    %v589 = vmul.f32 %v269, %v447
    %v590 = vmul.f32 %v270, %v462
    %v591 = vmul.f32 %v271, %v477
    %v592 = vmul.f32 %v272, %v492
    %v593 = vmul.f32 %v273, %v507
    %v594 = vmul.f32 %v274, %v522
    %v595 = vmul.f32 %v275, %v537
    %v596 = vmul.f32 %v276, %v552
    %v597 = vmul.f32 %v277, %v567
    %v598 = vmul.f32 %v278, %v582
    %v599 = vld [vmem:[%s3] sm:$0xff]
    %v600 = vld [vmem:[%s3 + $0x8] sm:$0xff]
    %v601 = vld [vmem:[%s3 + $0x10] sm:$0xff]
    %v602 = vld [vmem:[%s3 + $0x18] sm:$0xff]
    %v603 = vld [vmem:[%s3 + $0x20] sm:$0xff]
    %v604 = vld [vmem:[%s3 + $0x28] sm:$0xff]
    %v605 = vld [vmem:[%s3 + $0x30] sm:$0xff]
    %v606 = vld [vmem:[%s3 + $0x38] sm:$0xff]
    %v607 = vld [vmem:[%s3 + $0x40] sm:$0xff]
    %v608 = vld [vmem:[%s3 + $0x48] sm:$0xff]
    %v609 = vld [vmem:[%s3 + $0x50] sm:$0xff]
    %v610 = vld [vmem:[%s3 + $0x58] sm:$0xff]
    %v611 = vld [vmem:[%s3 + $0x60] sm:$0xff]
    %v612 = vld [vmem:[%s3 + $0x68] sm:$0xff]
    %v613 = vld [vmem:[%s3 + $0x70] sm:$0xff]
    %v614 = vld [vmem:[%s3 + $0x78] sm:$0xff]
    %v615 = vadd.f32 %v583, %v599
    %v616 = vadd.f32 %v584, %v600
    %v617 = vadd.f32 %v585, %v601
    %v618 = vadd.f32 %v586, %v602
    %v619 = vadd.f32 %v587, %v603
    %v620 = vadd.f32 %v588, %v604
    %v621 = vadd.f32 %v589, %v605
    %v622 = vadd.f32 %v590, %v606
    %v623 = vadd.f32 %v591, %v607
    %v624 = vadd.f32 %v592, %v608
    %v625 = vadd.f32 %v593, %v609
    %v626 = vadd.f32 %v594, %v610
    %v627 = vadd.f32 %v595, %v611
    %v628 = vadd.f32 %v596, %v612
    %v629 = vadd.f32 %v597, %v613
    %v630 = vadd.f32 %v598, %v614
    %631 = vst [vmem:[%s4] sm:$0xff] %v615
    %632 = vst [vmem:[%s4 + $0x8] sm:$0xff] %v616
    %633 = vst [vmem:[%s4 + $0x10] sm:$0xff] %v617
    %634 = vst [vmem:[%s4 + $0x18] sm:$0xff] %v618
    %635 = vst [vmem:[%s4 + $0x20] sm:$0xff] %v619
    %636 = vst [vmem:[%s4 + $0x28] sm:$0xff] %v620
    %637 = vst [vmem:[%s4 + $0x30] sm:$0xff] %v621
    %638 = vst [vmem:[%s4 + $0x38] sm:$0xff] %v622
    %639 = vst [vmem:[%s4 + $0x40] sm:$0xff] %v623
    %640 = vst [vmem:[%s4 + $0x48] sm:$0xff] %v624
    %641 = vst [vmem:[%s4 + $0x50] sm:$0xff] %v625
    %642 = vst [vmem:[%s4 + $0x58] sm:$0xff] %v626
    %643 = vst [vmem:[%s4 + $0x60] sm:$0xff] %v627
    %644 = vst [vmem:[%s4 + $0x68] sm:$0xff] %v628
    %645 = vst [vmem:[%s4 + $0x70] sm:$0xff] %v629
    %646 = vst [vmem:[%s4 + $0x78] sm:$0xff] %v630
  $region25: #{_lambda_.19} parent=0 // pred_fallthru
    _
  // Predicated region
  $region26: #{_lambda_.19} parent=0 // pred_check
    _
  $region27: #{_lambda_.19} parent=0 // pred_check_branch
    %648 = sbr.rel (0) target = $region29
  $region28: #{_lambda_.19} parent=0 // pred_region
    _
  $region29: #{_lambda_.19} parent=0 // pred_fallthru
    _
  // Predicated region
  $region30: #{_lambda_.19} parent=0 // pred_check
    _
  $region31: #{_lambda_.19} parent=0 // pred_check_branch
    %650 = sbr.rel (0) target = $region33
  $region32: #{_lambda_.19} parent=0 // pred_region
    _
  $region33: #{_lambda_.19} parent=0 // pred_fallthru
    _

// kernel: _lambda_.17
$region0: #{_lambda_.17}
  #allocation0 [shape = 'u32[]', space=smem, size = 0x4, offset = 0x4, fixed_abs, tag = 'smem constant byte address 0x4 - core index']
  #allocation1 [shape = 'u32[72,128]{1,0:T(1,128)}', space=vmem, size = 0x9000, scoped, tag = 'internal scratch']
  #allocation2 [shape = 'f32[128,128]{1,0:T(8,128)}', space=vmem, size = 0x10000, scoped, tag = 'scratch operand']
  %s0 = inlined_call_operand.vmem [shape: bf16[128,512], index: 0, kind: input, shape index: {}]
  %s1 = inlined_call_operand.vmem [shape: bf16[512,128], index: 1, kind: input, shape index: {}]
  %s2 = inlined_call_operand.vmem [shape: f32[1,128], index: 2, kind: input, shape index: {}]
  %s3 = inlined_call_operand.vmem [shape: f32[128,128], index: 3, kind: input, shape index: {}]
  %s4 = inlined_call_operand.vmem [shape: f32[128,128], index: 4, kind: output, shape index: {}]
  %s5 = sld [smem:[#allocation0]]
  $region95: #{_lambda_.17} parent=0
    _
  %s7 = ssub.s32 1, %s5
  %s8 = scalar_select 0, %s7, %s5
  $region1: #{_lambda_.17} parent=0
    #allocation3 [shape = 'u8[131072]{0}', space=vmem, size = 0x20000, scoped, tag = 'input window, operand 0']
    loop: start=0, step=1, limit=4
    $region2: #{_lambda_.17} parent=1 // loop_pre_header
      _
    $region3: #{_lambda_.17} parent=1 // loop_header
      %s10 = sphi 0, %s14
      %p11 = scmp.ge.s32.totalorder %s10, 4
      %s17 = sphi 0, %s29
      %s18 = sphi 0, %s25
      %s19 = sphi 0, %s17
      %s20 = sphi 0, %s18
      %s21 = sphi 0, %s19
      %s22 = sphi 0, %s20
      %s34 = sphi 0, %s36
      %s37 = sphi 0, %s34
      %s38 = sphi 0, %s37
      %s54 = sphi 0, %s38
      %s60 = sphi 0, %s62
      %s63 = sphi 0, %s60
      %s64 = sphi 0, %s63
      %s80 = sphi 0, %s64
      %s84 = sphi 0, %s84
      %s86 = sphi 0, %s84
      %s87 = sphi 0, %s86
      %s101 = sphi 0, %s87
      %s107 = sphi 0, %s109
      %s110 = sphi 0, %s107
      %s111 = sphi 0, %s110
      %s127 = sphi 0, %s111
      %s133 = sphi 0, %s135
      %s136 = sphi 0, %s133
      %s137 = sphi 0, %s136
      %s153 = sphi 0, %s137
    $region4: #{_lambda_.17} parent=1 // loop_header_branch
      %13 = sbr.rel (%p11) target = $region8
    $region5: #{_lambda_.17} parent=1 // loop_body
      %s15 = ssub.s32 %s10, 1
      %s16 = ssub.s32 %s10, 2
      %s23 = sadd.s32 1, %s18
      %p24 = scmp.ge.s32.totalorder %s23, 2
      %s25 = scalar_select %p24, 0, %s23
      %s26 = sadd.s32 1, %s17
      %s27 = scalar_select %p24, %s26, %s17
      %p28 = scmp.ge.s32.totalorder %s27, 1
      %s29 = scalar_select %p28, 0, %s27
      %s30 = ssub.s32 %s17, %s29
      %s31 = ssub.s32 %s18, %s25
      %s32 = sor.u32 %s30, %s31
      %p33 = scmp.eq.s32.totalorder %s32, 0
      %s35 = sadd.s32 %s34, 1
      %s36 = scalar_select %p33, %s34, %s35
      %p39 = pneg %p33
      %p40 = scmp.eq.s32.totalorder %s10, 1
      %p41 = por %p39, %p40
      %p42 = scmp.ne.s32.totalorder %s34, %s37
      %p43 = scmp.eq.s32.totalorder %s10, 0
      %p44 = por %p42, %p43
      %p45 = scmp.ne.s32.totalorder %s34, %s37
      %p46 = scmp.eq.s32.totalorder %s15, 1
      %p47 = por %p45, %p46
      %p48 = scmp.ne.s32.totalorder %s37, %s38
      %p49 = scmp.eq.s32.totalorder %s15, 0
      %p50 = por %p48, %p49
      %p51 = scmp.ne.s32.totalorder %s37, %s38
      %p52 = scmp.eq.s32.totalorder %s16, 1
      %p53 = por %p51, %p52
      %p55 = scmp.ne.s32.totalorder %s38, %s54
      %p56 = scmp.eq.s32.totalorder %s16, 0
      %p57 = por %p55, %p56
      %s58 = ssub.s32 %s18, %s25
      %p59 = scmp.eq.s32.totalorder %s58, 0
      %s61 = sadd.s32 %s60, 1
      %s62 = scalar_select %p59, %s60, %s61
      %p65 = pneg %p59
      %p66 = scmp.eq.s32.totalorder %s10, 1
      %p67 = por %p65, %p66
      %p68 = scmp.ne.s32.totalorder %s60, %s63
      %p69 = scmp.eq.s32.totalorder %s10, 0
      %p70 = por %p68, %p69
      %p71 = scmp.ne.s32.totalorder %s60, %s63
      %p72 = scmp.eq.s32.totalorder %s15, 1
      %p73 = por %p71, %p72
      %p74 = scmp.ne.s32.totalorder %s63, %s64
      %p75 = scmp.eq.s32.totalorder %s15, 0
      %p76 = por %p74, %p75
      %p77 = scmp.ne.s32.totalorder %s63, %s64
      %p78 = scmp.eq.s32.totalorder %s16, 1
      %p79 = por %p77, %p78
      %p81 = scmp.ne.s32.totalorder %s64, %s80
      %p82 = scmp.eq.s32.totalorder %s16, 0
      %p83 = por %p81, %p82
      %s85 = sadd.s32 %s84, 1
      %p88 = scmp.eq.s32.totalorder %s10, 1
      %p89 = scmp.ne.s32.totalorder %s84, %s86
      %p90 = scmp.eq.s32.totalorder %s10, 0
      %p91 = por %p89, %p90
      %p92 = scmp.ne.s32.totalorder %s84, %s86
      %p93 = scmp.eq.s32.totalorder %s15, 1
      %p94 = por %p92, %p93
      %p95 = scmp.ne.s32.totalorder %s86, %s87
      %p96 = scmp.eq.s32.totalorder %s15, 0
      %p97 = por %p95, %p96
      %p98 = scmp.ne.s32.totalorder %s86, %s87
      %p99 = scmp.eq.s32.totalorder %s16, 1
      %p100 = por %p98, %p99
      %p102 = scmp.ne.s32.totalorder %s87, %s101
      %p103 = scmp.eq.s32.totalorder %s16, 0
      %p104 = por %p102, %p103
      %s105 = ssub.s32 %s17, %s29
      %p106 = scmp.eq.s32.totalorder %s105, 0
      %s108 = sadd.s32 %s107, 1
      %s109 = scalar_select %p106, %s107, %s108
      %p112 = pneg %p106
      %p113 = scmp.eq.s32.totalorder %s10, 1
      %p114 = por %p112, %p113
      %p115 = scmp.ne.s32.totalorder %s107, %s110
      %p116 = scmp.eq.s32.totalorder %s10, 0
      %p117 = por %p115, %p116
      %p118 = scmp.ne.s32.totalorder %s107, %s110
      %p119 = scmp.eq.s32.totalorder %s15, 1
      %p120 = por %p118, %p119
      %p121 = scmp.ne.s32.totalorder %s110, %s111
      %p122 = scmp.eq.s32.totalorder %s15, 0
      %p123 = por %p121, %p122
      %p124 = scmp.ne.s32.totalorder %s110, %s111
      %p125 = scmp.eq.s32.totalorder %s16, 1
      %p126 = por %p124, %p125
      %p128 = scmp.ne.s32.totalorder %s111, %s127
      %p129 = scmp.eq.s32.totalorder %s16, 0
      %p130 = por %p128, %p129
      %s131 = ssub.s32 %s17, %s29
      %p132 = scmp.eq.s32.totalorder %s131, 0
      %s134 = sadd.s32 %s133, 1
      %s135 = scalar_select %p132, %s133, %s134
      %p138 = pneg %p132
      %p139 = scmp.eq.s32.totalorder %s10, 1
      %p140 = por %p138, %p139
      %p141 = scmp.ne.s32.totalorder %s133, %s136
      %p142 = scmp.eq.s32.totalorder %s10, 0
      %p143 = por %p141, %p142
      %p144 = scmp.ne.s32.totalorder %s133, %s136
      %p145 = scmp.eq.s32.totalorder %s15, 1
      %p146 = por %p144, %p145
      %p147 = scmp.ne.s32.totalorder %s136, %s137
      %p148 = scmp.eq.s32.totalorder %s15, 0
      %p149 = por %p147, %p148
      %p150 = scmp.ne.s32.totalorder %s136, %s137
      %p151 = scmp.eq.s32.totalorder %s16, 1
      %p152 = por %p150, %p151
      %p154 = scmp.ne.s32.totalorder %s137, %s153
      %p155 = scmp.eq.s32.totalorder %s16, 0
      %p156 = por %p154, %p155
      %p157 = scmp.le.s32.totalorder 1, %s10
      %p158 = scmp.lt.s32.totalorder %s10, 3
      %p159 = pnand %p157, %p158
      %p160 = pneg %p159
      // Predicated region
      $region9: #{_lambda_.17} parent=5 // pred_check
        _
      $region10: #{_lambda_.17} parent=5 // pred_check_branch
        %162 = sbr.rel (%p159) target = $region12
      $region11: #{_lambda_.17} parent=5 // pred_region
        %s163 = ssub.s32 %s10, 1
        // Predicated region
        $region13: #{_lambda_.17} parent=11 // pred_check
          %p164 = pneg %p97
        $region14: #{_lambda_.17} parent=11 // pred_check_branch
          %166 = sbr.rel (%p164) target = $region16
        $region15: #{_lambda_.17} parent=11 // pred_region
          _
        $region16: #{_lambda_.17} parent=11 // pred_fallthru
          _
        // Predicated region
        $region17: #{_lambda_.17} parent=11 // pred_check
          %p167 = pneg %p123
        $region18: #{_lambda_.17} parent=11 // pred_check_branch
          %169 = sbr.rel (%p167) target = $region20
        $region19: #{_lambda_.17} parent=11 // pred_region
          %s170 = smul.u32 16, %s19
          %p171 = scmp.lt.s32.totalorder %s170, 15
          %s172 = scalar_select %p171, %s170, 15
          %s173 = smul.addr %s172, 8
          %s174 = scalar_lea.vmem %s3, %s173
          %s175 = smul.u32 16, %s19
        $region20: #{_lambda_.17} parent=11 // pred_fallthru
          _
      $region12: #{_lambda_.17} parent=5 // pred_fallthru
        _
      %p176 = scmp.lt.s32.totalorder %s10, 2
      // Predicated region
      $region21: #{_lambda_.17} parent=5 // pred_check
        %p177 = pneg %p176
      $region22: #{_lambda_.17} parent=5 // pred_check_branch
        %179 = sbr.rel (%p177) target = $region24
      $region23: #{_lambda_.17} parent=5 // pred_region
        // Predicated region
        $region25: #{_lambda_.17} parent=23 // pred_check
          %p180 = pneg %p44
        $region26: #{_lambda_.17} parent=23 // pred_check_branch
          %182 = sbr.rel (%p180) target = $region28
        $region27: #{_lambda_.17} parent=23 // pred_region
          %s183 = sand.u32 %s34, 1
          %s184 = sand.u32 %s34, 1
          %s185 = smul.addr %s184, 128
          %s186 = scalar_lea.vmem [#allocation3], %s185
          %s187 = smul.u32 16, %s17
          %s188 = smul.u32 2, %s18
          %s189 = smul.addr %s187, 4
          %s190 = sadd.s32 %s188, %s189
          %s191 = smul.addr %s190, 4
          %s192 = scalar_lea.vmem %s0, %s191
          // Predicated region
          $region29: #{_lambda_.17} parent=27 // pred_check
            _
          $region30: #{_lambda_.17} parent=27 // pred_check_branch
            %194 = sbr.rel (0) target = $region32
          $region31: #{_lambda_.17} parent=27 // pred_region
            // Predicated region
            $region33: #{_lambda_.17} parent=31 // pred_check
              _
            $region34: #{_lambda_.17} parent=31 // pred_check_branch
              %196 = sbr.rel (0) target = $region36
            $region35: #{_lambda_.17} parent=31 // pred_region
              // Predicated region
              $region48: #{_lambda_.17} parent=35 // pred_check
                _
              $region49: #{_lambda_.17} parent=35 // pred_check_branch
                %242 = sbr.rel (0) target = $region51
              $region50: #{_lambda_.17} parent=35 // pred_region
                loop: start=0, step=1, limit=1
                $region52: #{_lambda_.17} parent=50 // loop_pre_header
                  _
                $region53: #{_lambda_.17} parent=50 // loop_header
                  %s244 = sphi 0, %s248
                  %p245 = scmp.ge.s32.totalorder %s244, 1
                  %s249 = sphi %s192, %s192
                  %s250 = sphi %s186, %s186
                $region54: #{_lambda_.17} parent=50 // loop_header_branch
                  %247 = sbr.rel (%p245) target = $region58
                $region55: #{_lambda_.17} parent=50 // loop_body
                  %v251 = vld [vmem:[%s249] sm:$0xff]
                  %252 = vst [vmem:[%s250] sm:$0xff] %v251
                  %v253 = vld [vmem:[%s249 + $0x10] sm:$0xff]
                  %254 = vst [vmem:[%s250 + $0x8] sm:$0xff] %v253
                  %v255 = vld [vmem:[%s249 + $0x20] sm:$0xff]
                  %256 = vst [vmem:[%s250 + $0x10] sm:$0xff] %v255
                  %v257 = vld [vmem:[%s249 + $0x30] sm:$0xff]
                  %258 = vst [vmem:[%s250 + $0x18] sm:$0xff] %v257
                  %v259 = vld [vmem:[%s249 + $0x40] sm:$0xff]
                  %260 = vst [vmem:[%s250 + $0x20] sm:$0xff] %v259
                  %v261 = vld [vmem:[%s249 + $0x50] sm:$0xff]
                  %262 = vst [vmem:[%s250 + $0x28] sm:$0xff] %v261
                  %v263 = vld [vmem:[%s249 + $0x60] sm:$0xff]
                  %264 = vst [vmem:[%s250 + $0x30] sm:$0xff] %v263
                  %v265 = vld [vmem:[%s249 + $0x70] sm:$0xff]
                  %266 = vst [vmem:[%s250 + $0x38] sm:$0xff] %v265
                  %v267 = vld [vmem:[%s249 + $0x80] sm:$0xff]
                  %268 = vst [vmem:[%s250 + $0x40] sm:$0xff] %v267
                  %v269 = vld [vmem:[%s249 + $0x90] sm:$0xff]
                  %270 = vst [vmem:[%s250 + $0x48] sm:$0xff] %v269
                  %v271 = vld [vmem:[%s249 + $0xa0] sm:$0xff]
                  %272 = vst [vmem:[%s250 + $0x50] sm:$0xff] %v271
                  %v273 = vld [vmem:[%s249 + $0xb0] sm:$0xff]
                  %274 = vst [vmem:[%s250 + $0x58] sm:$0xff] %v273
                  %v275 = vld [vmem:[%s249 + $0xc0] sm:$0xff]
                  %276 = vst [vmem:[%s250 + $0x60] sm:$0xff] %v275
                  %v277 = vld [vmem:[%s249 + $0xd0] sm:$0xff]
                  %278 = vst [vmem:[%s250 + $0x68] sm:$0xff] %v277
                  %v279 = vld [vmem:[%s249 + $0xe0] sm:$0xff]
                  %280 = vst [vmem:[%s250 + $0x70] sm:$0xff] %v279
                  %v281 = vld [vmem:[%s249 + $0xf0] sm:$0xff]
                  %282 = vst [vmem:[%s250 + $0x78] sm:$0xff] %v281
                $region56: #{_lambda_.17} parent=50 // loop_footer
                  %s248 = sadd.s32 1, %s244
                $region57: #{_lambda_.17} parent=50 // loop_footer_branch
                  %243 = sbr.rel target = $region53
                $region58: #{_lambda_.17} parent=50 // loop_exit
                  _
              $region51: #{_lambda_.17} parent=35 // pred_fallthru
                _
              // Predicated region
              $region59: #{_lambda_.17} parent=35 // pred_check
                _
              $region60: #{_lambda_.17} parent=35 // pred_check_branch
                %284 = sbr.rel target = $region62
              $region61: #{_lambda_.17} parent=35 // pred_region
                _
              $region62: #{_lambda_.17} parent=35 // pred_fallthru
                _
            $region36: #{_lambda_.17} parent=31 // pred_fallthru
              _
            // Predicated region
            $region37: #{_lambda_.17} parent=31 // pred_check
              _
            $region38: #{_lambda_.17} parent=31 // pred_check_branch
              %198 = sbr.rel target = $region40
            $region39: #{_lambda_.17} parent=31 // pred_region
              %s200 = ssub.s32 256, 1
              loop: start=0, step=1, limit=1
              $region41: #{_lambda_.17} parent=39 // loop_pre_header
                _
              $region42: #{_lambda_.17} parent=39 // loop_header
                %s202 = sphi 0, %s206
                %p203 = scmp.ge.s32.totalorder %s202, 1
                %s207 = sphi %s192, %s192
                %s208 = sphi %s186, %s186
              $region43: #{_lambda_.17} parent=39 // loop_header_branch
                %205 = sbr.rel (%p203) target = $region47
              $region44: #{_lambda_.17} parent=39 // loop_body
                %v209 = vld [vmem:[%s207] sm:%s200]
                %210 = vst [vmem:[%s208] sm:%s200] %v209
                %v211 = vld [vmem:[%s207 + $0x10] sm:%s200]
                %212 = vst [vmem:[%s208 + $0x8] sm:%s200] %v211
                %v213 = vld [vmem:[%s207 + $0x20] sm:%s200]
                %214 = vst [vmem:[%s208 + $0x10] sm:%s200] %v213
                %v215 = vld [vmem:[%s207 + $0x30] sm:%s200]
                %216 = vst [vmem:[%s208 + $0x18] sm:%s200] %v215
                %v217 = vld [vmem:[%s207 + $0x40] sm:%s200]
                %218 = vst [vmem:[%s208 + $0x20] sm:%s200] %v217
                %v219 = vld [vmem:[%s207 + $0x50] sm:%s200]
                %220 = vst [vmem:[%s208 + $0x28] sm:%s200] %v219
                %v221 = vld [vmem:[%s207 + $0x60] sm:%s200]
                %222 = vst [vmem:[%s208 + $0x30] sm:%s200] %v221
                %v223 = vld [vmem:[%s207 + $0x70] sm:%s200]
                %224 = vst [vmem:[%s208 + $0x38] sm:%s200] %v223
                %v225 = vld [vmem:[%s207 + $0x80] sm:%s200]
                %226 = vst [vmem:[%s208 + $0x40] sm:%s200] %v225
                %v227 = vld [vmem:[%s207 + $0x90] sm:%s200]
                %228 = vst [vmem:[%s208 + $0x48] sm:%s200] %v227
                %v229 = vld [vmem:[%s207 + $0xa0] sm:%s200]
                %230 = vst [vmem:[%s208 + $0x50] sm:%s200] %v229
                %v231 = vld [vmem:[%s207 + $0xb0] sm:%s200]
                %232 = vst [vmem:[%s208 + $0x58] sm:%s200] %v231
                %v233 = vld [vmem:[%s207 + $0xc0] sm:%s200]
                %234 = vst [vmem:[%s208 + $0x60] sm:%s200] %v233
                %v235 = vld [vmem:[%s207 + $0xd0] sm:%s200]
                %236 = vst [vmem:[%s208 + $0x68] sm:%s200] %v235
                %v237 = vld [vmem:[%s207 + $0xe0] sm:%s200]
                %238 = vst [vmem:[%s208 + $0x70] sm:%s200] %v237
                %v239 = vld [vmem:[%s207 + $0xf0] sm:%s200]
                %240 = vst [vmem:[%s208 + $0x78] sm:%s200] %v239
              $region45: #{_lambda_.17} parent=39 // loop_footer
                %s206 = sadd.s32 1, %s202
              $region46: #{_lambda_.17} parent=39 // loop_footer_branch
                %201 = sbr.rel target = $region42
              $region47: #{_lambda_.17} parent=39 // loop_exit
                _
            $region40: #{_lambda_.17} parent=31 // pred_fallthru
              _
          $region32: #{_lambda_.17} parent=27 // pred_fallthru
            _
          %285 = vnop
        $region28: #{_lambda_.17} parent=23 // pred_fallthru
          _
        // Predicated region
        $region63: #{_lambda_.17} parent=23 // pred_check
          %p286 = pneg %p70
        $region64: #{_lambda_.17} parent=23 // pred_check_branch
          %288 = sbr.rel (%p286) target = $region66
        $region65: #{_lambda_.17} parent=23 // pred_region
          %s289 = smul.u32 32, %s18
          %p290 = scmp.lt.s32.totalorder %s289, 63
          %s291 = scalar_select %p290, %s289, 63
          %s292 = smul.addr %s291, 4
          %s293 = scalar_lea.vmem %s1, %s292
          %s294 = smul.u32 32, %s18
        $region66: #{_lambda_.17} parent=23 // pred_fallthru
          _
      $region24: #{_lambda_.17} parent=5 // pred_fallthru
        _
      %p295 = scmp.le.s32.totalorder 1, %s10
      %p296 = scmp.lt.s32.totalorder %s10, 3
      %p297 = pnand %p295, %p296
      %p298 = pneg %p297
      // Predicated region
      $region67: #{_lambda_.17} parent=5 // pred_check
        _
      $region68: #{_lambda_.17} parent=5 // pred_check_branch
        %300 = sbr.rel (%p297) target = $region70
      $region69: #{_lambda_.17} parent=5 // pred_region
        %s301 = ssub.s32 %s10, 1
        %s302 = sand.u32 %s37, 1
        %s303 = sand.u32 %s37, 1
        %s304 = smul.addr %s303, 128
        %s305 = scalar_lea.vmem [#allocation3], %s304
        // Predicated region
        $region71: #{_lambda_.17} parent=69 // pred_check
          %p306 = pneg %p50
        $region72: #{_lambda_.17} parent=69 // pred_check_branch
          %308 = sbr.rel (%p306) target = $region74
        $region73: #{_lambda_.17} parent=69 // pred_region
          _
        $region74: #{_lambda_.17} parent=69 // pred_fallthru
          _
        %s309 = sand.u32 %s37, 1
        %s310 = sand.u32 %s37, 1
        %s311 = smul.addr %s310, 128
        %s312 = scalar_lea.vmem [#allocation3], %s311
        %p313 = pneg %p50
        %p314 = pneg %p47
        %s315 = smul.u32 32, %s20
        %p316 = scmp.lt.s32.totalorder %s315, 63
        %s317 = scalar_select %p316, %s315, 63
        %s318 = smul.addr %s317, 4
        %s319 = scalar_lea.vmem %s1, %s318
        %p320 = pneg %p76
        %p321 = pneg %p73
        %p322 = pneg %p97
        %p323 = pneg %p94
        %s324 = smul.u32 16, %s19
        %p325 = scmp.lt.s32.totalorder %s324, 15
        %s326 = scalar_select %p325, %s324, 15
        %s327 = smul.addr %s326, 8
        %s328 = scalar_lea.vmem %s3, %s327
        %p329 = pneg %p123
        %p330 = pneg %p120
        %p331 = pneg %p149
        %p332 = pneg %p146
        %s333 = smul.u32 16, %s19
        %p334 = scmp.lt.s32.totalorder %s333, 15
        %s335 = scalar_select %p334, %s333, 15
        %s336 = smul.addr %s335, 8
        %s337 = scalar_lea.vmem %s4, %s336
        %s338 = smul.u32 16, %s19
        %s339 = smul.u32 2, %s20
        %s340 = smul.u32 32, %s20
        %p341 = scmp.lt.s32.totalorder %s340, 63
        %s342 = scalar_select %p341, %s340, 63
        %s343 = smul.addr %s342, 4
        %s344 = scalar_lea.vmem %s1, %s343
        %s345 = smul.u32 32, %s20
        %s346 = smul.u32 16, %s19
        %p347 = scmp.lt.s32.totalorder %s346, 15
        %s348 = scalar_select %p347, %s346, 15
        %s349 = smul.addr %s348, 8
        %s350 = scalar_lea.vmem %s3, %s349
        %s351 = smul.u32 16, %s19
        %s352 = smul.u32 16, %s19
        %p353 = scmp.lt.s32.totalorder %s352, 15
        %s354 = scalar_select %p353, %s352, 15
        %s355 = smul.addr %s354, 8
        %s356 = scalar_lea.vmem %s4, %s355
        %s357 = smul.u32 16, %s19
        %p358 = scmp.eq.s32.totalorder %s20, 0
        // Predicated region
        $region75: #{_lambda_.17} parent=69 // pred_check
          %p359 = pneg %p358
        $region76: #{_lambda_.17} parent=69 // pred_check_branch
          %361 = sbr.rel (%p359) target = $region78
        $region77: #{_lambda_.17} parent=69 // pred_region
          %362 = vst [vmem:[#allocation2] sm:$0xff] 0.0
          %363 = vst [vmem:[#allocation2 + $0x8] sm:$0xff] 0.0
          %364 = vst [vmem:[#allocation2 + $0x10] sm:$0xff] 0.0
          %365 = vst [vmem:[#allocation2 + $0x18] sm:$0xff] 0.0
          %366 = vst [vmem:[#allocation2 + $0x20] sm:$0xff] 0.0
          %367 = vst [vmem:[#allocation2 + $0x28] sm:$0xff] 0.0
          %368 = vst [vmem:[#allocation2 + $0x30] sm:$0xff] 0.0
          %369 = vst [vmem:[#allocation2 + $0x38] sm:$0xff] 0.0
          %370 = vst [vmem:[#allocation2 + $0x40] sm:$0xff] 0.0
          %371 = vst [vmem:[#allocation2 + $0x48] sm:$0xff] 0.0
          %372 = vst [vmem:[#allocation2 + $0x50] sm:$0xff] 0.0
          %373 = vst [vmem:[#allocation2 + $0x58] sm:$0xff] 0.0
          %374 = vst [vmem:[#allocation2 + $0x60] sm:$0xff] 0.0
          %375 = vst [vmem:[#allocation2 + $0x68] sm:$0xff] 0.0
          %376 = vst [vmem:[#allocation2 + $0x70] sm:$0xff] 0.0
          %377 = vst [vmem:[#allocation2 + $0x78] sm:$0xff] 0.0
        $region78: #{_lambda_.17} parent=69 // pred_fallthru
          _
        %v378 = vld [vmem:[#allocation2] sm:$0xff]
        %v379 = vld [vmem:[#allocation2 + $0x8] sm:$0xff]
        %v380 = vld [vmem:[#allocation2 + $0x10] sm:$0xff]
        %v381 = vld [vmem:[#allocation2 + $0x18] sm:$0xff]
        %v382 = vld [vmem:[#allocation2 + $0x20] sm:$0xff]
        %v383 = vld [vmem:[#allocation2 + $0x28] sm:$0xff]
        %v384 = vld [vmem:[#allocation2 + $0x30] sm:$0xff]
        %v385 = vld [vmem:[#allocation2 + $0x38] sm:$0xff]
        %v386 = vld [vmem:[#allocation2 + $0x40] sm:$0xff]
        %v387 = vld [vmem:[#allocation2 + $0x48] sm:$0xff]
        %v388 = vld [vmem:[#allocation2 + $0x50] sm:$0xff]
        %v389 = vld [vmem:[#allocation2 + $0x58] sm:$0xff]
        %v390 = vld [vmem:[#allocation2 + $0x60] sm:$0xff]
        %v391 = vld [vmem:[#allocation2 + $0x68] sm:$0xff]
        %v392 = vld [vmem:[#allocation2 + $0x70] sm:$0xff]
        %v393 = vld [vmem:[#allocation2 + $0x78] sm:$0xff]
        %v394 = vld [vmem:[%s305] sm:$0xff]
        %v395 = vld [vmem:[%s305 + $0x8] sm:$0xff]
        %v396 = vld [vmem:[%s305 + $0x10] sm:$0xff]
        %v397 = vld [vmem:[%s305 + $0x18] sm:$0xff]
        %v398 = vld [vmem:[%s305 + $0x20] sm:$0xff]
        %v399 = vld [vmem:[%s305 + $0x28] sm:$0xff]
        %v400 = vld [vmem:[%s305 + $0x30] sm:$0xff]
        %v401 = vld [vmem:[%s305 + $0x38] sm:$0xff]
        %v402 = vld [vmem:[%s305 + $0x40] sm:$0xff]
        %v403 = vld [vmem:[%s305 + $0x48] sm:$0xff]
        %v404 = vld [vmem:[%s305 + $0x50] sm:$0xff]
        %v405 = vld [vmem:[%s305 + $0x58] sm:$0xff]
        %v406 = vld [vmem:[%s305 + $0x60] sm:$0xff]
        %v407 = vld [vmem:[%s305 + $0x68] sm:$0xff]
        %v408 = vld [vmem:[%s305 + $0x70] sm:$0xff]
        %v409 = vld [vmem:[%s305 + $0x78] sm:$0xff]
        %v410 = vld [vmem:[%s344] sm:$0xf]
        %v411 = vld [vmem:[%s344 + $0x4] sm:$0xf]
        %v412 = vld [vmem:[%s344 + $0x8] sm:$0xf]
        %v413 = vld [vmem:[%s344 + $0xc] sm:$0xf]
        %v414 = vld [vmem:[%s344 + $0x10] sm:$0xf]
        %v415 = vld [vmem:[%s344 + $0x14] sm:$0xf]
        %v416 = vld [vmem:[%s344 + $0x18] sm:$0xf]
        %v417 = vld [vmem:[%s344 + $0x1c] sm:$0xf]
        %v418 = vld [vmem:[%s344 + $0x20] sm:$0xf]
        %v419 = vld [vmem:[%s344 + $0x24] sm:$0xf]
        %v420 = vld [vmem:[%s344 + $0x28] sm:$0xf]
        %v421 = vld [vmem:[%s344 + $0x2c] sm:$0xf]
        %v422 = vld [vmem:[%s344 + $0x30] sm:$0xf]
        %v423 = vld [vmem:[%s344 + $0x34] sm:$0xf]
        %v424 = vld [vmem:[%s344 + $0x38] sm:$0xf]
        %v425 = vld [vmem:[%s344 + $0x3c] sm:$0xf]
        %v426 = vld [vmem:[%s344 + $0x40] sm:$0xf]
        %v427 = vld [vmem:[%s344 + $0x44] sm:$0xf]
        %v428 = vld [vmem:[%s344 + $0x48] sm:$0xf]
        %v429 = vld [vmem:[%s344 + $0x4c] sm:$0xf]
        %v430 = vld [vmem:[%s344 + $0x50] sm:$0xf]
        %v431 = vld [vmem:[%s344 + $0x54] sm:$0xf]
        %v432 = vld [vmem:[%s344 + $0x58] sm:$0xf]
        %v433 = vld [vmem:[%s344 + $0x5c] sm:$0xf]
        %v434 = vld [vmem:[%s344 + $0x60] sm:$0xf]
        %v435 = vld [vmem:[%s344 + $0x64] sm:$0xf]
        %v436 = vld [vmem:[%s344 + $0x68] sm:$0xf]
        %v437 = vld [vmem:[%s344 + $0x6c] sm:$0xf]
        %v438 = vld [vmem:[%s344 + $0x70] sm:$0xf]
        %v439 = vld [vmem:[%s344 + $0x74] sm:$0xf]
        %v440 = vld [vmem:[%s344 + $0x78] sm:$0xf]
        %v441 = vld [vmem:[%s344 + $0x7c] sm:$0xf]
        %v458 = vunpack.c.l.b16 %v394
        %v459 = vunpack.c.h.b16 %v394
        %v460 = vunpack.c.l.b16 %v395
        %v461 = vunpack.c.h.b16 %v395
        %v462 = vunpack.c.l.b16 %v396
        %v463 = vunpack.c.h.b16 %v396
        %v464 = vunpack.c.l.b16 %v397
        %v465 = vunpack.c.h.b16 %v397
        %v466 = vunpack.c.l.b16 %v398
        %v467 = vunpack.c.h.b16 %v398
        %v468 = vunpack.c.l.b16 %v399
        %v469 = vunpack.c.h.b16 %v399
        %v470 = vunpack.c.l.b16 %v400
        %v471 = vunpack.c.h.b16 %v400
        %v472 = vunpack.c.l.b16 %v401
        %v473 = vunpack.c.h.b16 %v401
        %v474 = vunpack.c.l.b16 %v402
        %v475 = vunpack.c.h.b16 %v402
        %v476 = vunpack.c.l.b16 %v403
        %v477 = vunpack.c.h.b16 %v403
        %v478 = vunpack.c.l.b16 %v404
        %v479 = vunpack.c.h.b16 %v404
        %v480 = vunpack.c.l.b16 %v405
        %v481 = vunpack.c.h.b16 %v405
        %v482 = vunpack.c.l.b16 %v406
        %v483 = vunpack.c.h.b16 %v406
        %v484 = vunpack.c.l.b16 %v407
        %v485 = vunpack.c.h.b16 %v407
        %v486 = vunpack.c.l.b16 %v408
        %v487 = vunpack.c.h.b16 %v408
        %v488 = vunpack.c.l.b16 %v409
        %v489 = vunpack.c.h.b16 %v409
        %v490 = vpack.c.b16 %v460, %v458
        %v491 = vpack.c.b16 %v461, %v459
        %v492 = vpack.c.b16 %v464, %v462
        %v493 = vpack.c.b16 %v465, %v463
        %v494 = vpack.c.b16 %v468, %v466
        %v495 = vpack.c.b16 %v469, %v467
        %v496 = vpack.c.b16 %v472, %v470
        %v497 = vpack.c.b16 %v473, %v471
        %v498 = vpack.c.b16 %v476, %v474
        %v499 = vpack.c.b16 %v477, %v475
        %v500 = vpack.c.b16 %v480, %v478
        %v501 = vpack.c.b16 %v481, %v479
        %v502 = vpack.c.b16 %v484, %v482
        %v503 = vpack.c.b16 %v485, %v483
        %v504 = vpack.c.b16 %v488, %v486
        %v505 = vpack.c.b16 %v489, %v487
        %v554 = vunpack.c.l.b16 %v410
        %v555 = vunpack.c.l.b16 %v411
        %v556 = vunpack.c.l.b16 %v412
        %v557 = vunpack.c.l.b16 %v413
        %v558 = vunpack.c.l.b16 %v414
        %v559 = vunpack.c.l.b16 %v415
        %v560 = vunpack.c.l.b16 %v416
        %v561 = vunpack.c.l.b16 %v417
        %v562 = vunpack.c.l.b16 %v418
        %v563 = vunpack.c.l.b16 %v419
        %v564 = vunpack.c.l.b16 %v420
        %v565 = vunpack.c.l.b16 %v421
        %v566 = vunpack.c.l.b16 %v422
        %v567 = vunpack.c.l.b16 %v423
        %v568 = vunpack.c.l.b16 %v424
        %v569 = vunpack.c.l.b16 %v425
        %v570 = vunpack.c.l.b16 %v426
        %v571 = vunpack.c.l.b16 %v427
        %v572 = vunpack.c.l.b16 %v428
        %v573 = vunpack.c.l.b16 %v429
        %v574 = vunpack.c.l.b16 %v430
        %v575 = vunpack.c.l.b16 %v431
        %v576 = vunpack.c.l.b16 %v432
        %v577 = vunpack.c.l.b16 %v433
        %v578 = vunpack.c.l.b16 %v434
        %v579 = vunpack.c.l.b16 %v435
        %v580 = vunpack.c.l.b16 %v436
        %v581 = vunpack.c.l.b16 %v437
        %v582 = vunpack.c.l.b16 %v438
        %v583 = vunpack.c.l.b16 %v439
        %v584 = vunpack.c.l.b16 %v440
        %v585 = vunpack.c.l.b16 %v441
        %v586 = vpack.c.b16 %v555, %v554
        %v587 = vpack.c.b16 %v557, %v556
        %v588 = vpack.c.b16 %v559, %v558
        %v589 = vpack.c.b16 %v561, %v560
        %v590 = vpack.c.b16 %v563, %v562
        %v591 = vpack.c.b16 %v565, %v564
        %v592 = vpack.c.b16 %v567, %v566
        %v593 = vpack.c.b16 %v569, %v568
        %v594 = vpack.c.b16 %v571, %v570
        %v595 = vpack.c.b16 %v573, %v572
        %v596 = vpack.c.b16 %v575, %v574
        %v597 = vpack.c.b16 %v577, %v576
        %v598 = vpack.c.b16 %v579, %v578
        %v599 = vpack.c.b16 %v581, %v580
        %v600 = vpack.c.b16 %v583, %v582
        %v601 = vpack.c.b16 %v585, %v584
        %618 = vmatpush.bf16.msra.mxu0 %v593
        %619 = vmatpush.bf16.msra.mxu0 %v592
        %620 = vmatpush.bf16.msra.mxu0 %v591
        %621 = vmatpush.bf16.msra.mxu0 %v590
        %622 = vmatpush.bf16.msra.mxu0 %v589
        %623 = vmatpush.bf16.msra.mxu0 %v588
        %624 = vmatpush.bf16.msra.mxu0 %v587
        %625 = vmatpush.bf16.msra.mxu0 %v586
        %626 = vmatmul.bf16.gmra.mxu0 %v490
        %v627 = vpop.f32.mrf.mxu0
        %v628 = vadd.f32 0.0, %v627
        %v629 = vpop.f32.mrf.mxu0
        %v630 = vadd.f32 0.0, %v629
        %631 = vmatmul.bf16.gmra.mxu0 %v492
        %v632 = vpop.f32.mrf.mxu0
        %v633 = vadd.f32 0.0, %v632
        %v634 = vpop.f32.mrf.mxu0
        %v635 = vadd.f32 0.0, %v634
        %636 = vmatmul.bf16.gmra.mxu0 %v494
        %v637 = vpop.f32.mrf.mxu0
        %v638 = vadd.f32 0.0, %v637
        %v639 = vpop.f32.mrf.mxu0
        %v640 = vadd.f32 0.0, %v639
        %641 = vmatmul.bf16.gmra.mxu0 %v496
        %v642 = vpop.f32.mrf.mxu0
        %v643 = vadd.f32 0.0, %v642
        %v644 = vpop.f32.mrf.mxu0
        %v645 = vadd.f32 0.0, %v644
        %646 = vmatmul.bf16.gmra.mxu0 %v498
        %v647 = vpop.f32.mrf.mxu0
        %v648 = vadd.f32 0.0, %v647
        %v649 = vpop.f32.mrf.mxu0
        %v650 = vadd.f32 0.0, %v649
        %651 = vmatmul.bf16.gmra.mxu0 %v500
        %v652 = vpop.f32.mrf.mxu0
        %v653 = vadd.f32 0.0, %v652
        %v654 = vpop.f32.mrf.mxu0
        %v655 = vadd.f32 0.0, %v654
        %656 = vmatmul.bf16.gmra.mxu0 %v502
        %v657 = vpop.f32.mrf.mxu0
        %v658 = vadd.f32 0.0, %v657
        %v659 = vpop.f32.mrf.mxu0
        %v660 = vadd.f32 0.0, %v659
        %661 = vmatmul.bf16.gmra.mxu0 %v504
        %v662 = vpop.f32.mrf.mxu0
        %v663 = vadd.f32 0.0, %v662
        %v664 = vpop.f32.mrf.mxu0
        %v665 = vadd.f32 0.0, %v664
        %666 = vdwg.mxu0
        %667 = vmatpush.bf16.msra.mxu0 %v601
        %668 = vmatpush.bf16.msra.mxu0 %v600
        %669 = vmatpush.bf16.msra.mxu0 %v599
        %670 = vmatpush.bf16.msra.mxu0 %v598
        %671 = vmatpush.bf16.msra.mxu0 %v597
        %672 = vmatpush.bf16.msra.mxu0 %v596
        %673 = vmatpush.bf16.msra.mxu0 %v595
        %674 = vmatpush.bf16.msra.mxu0 %v594
        %675 = vmatmul.bf16.gmra.mxu0 %v491
        %v676 = vpop.f32.mrf.mxu0
        %v677 = vadd.f32 %v628, %v676
        %v678 = vpop.f32.mrf.mxu0
        %v679 = vadd.f32 %v630, %v678
        %680 = vmatmul.bf16.gmra.mxu0 %v493
        %v681 = vpop.f32.mrf.mxu0
        %v682 = vadd.f32 %v633, %v681
        %v683 = vpop.f32.mrf.mxu0
        %v684 = vadd.f32 %v635, %v683
        %685 = vmatmul.bf16.gmra.mxu0 %v495
        %v686 = vpop.f32.mrf.mxu0
        %v687 = vadd.f32 %v638, %v686
        %v688 = vpop.f32.mrf.mxu0
        %v689 = vadd.f32 %v640, %v688
        %690 = vmatmul.bf16.gmra.mxu0 %v497
        %v691 = vpop.f32.mrf.mxu0
        %v692 = vadd.f32 %v643, %v691
        %v693 = vpop.f32.mrf.mxu0
        %v694 = vadd.f32 %v645, %v693
        %695 = vmatmul.bf16.gmra.mxu0 %v499
        %v696 = vpop.f32.mrf.mxu0
        %v697 = vadd.f32 %v648, %v696
        %v698 = vpop.f32.mrf.mxu0
        %v699 = vadd.f32 %v650, %v698
        %700 = vmatmul.bf16.gmra.mxu0 %v501
        %v701 = vpop.f32.mrf.mxu0
        %v702 = vadd.f32 %v653, %v701
        %v703 = vpop.f32.mrf.mxu0
        %v704 = vadd.f32 %v655, %v703
        %705 = vmatmul.bf16.gmra.mxu0 %v503
        %v706 = vpop.f32.mrf.mxu0
        %v707 = vadd.f32 %v658, %v706
        %v708 = vpop.f32.mrf.mxu0
        %v709 = vadd.f32 %v660, %v708
        %710 = vmatmul.bf16.gmra.mxu0 %v505
        %v711 = vpop.f32.mrf.mxu0
        %v712 = vadd.f32 %v663, %v711
        %v713 = vpop.f32.mrf.mxu0
        %v714 = vadd.f32 %v665, %v713
        %715 = vdwg.mxu0
        %v716 = vadd.f32 %v378, %v677
        %v717 = vadd.f32 %v379, %v679
        %v718 = vadd.f32 %v380, %v682
        %v719 = vadd.f32 %v381, %v684
        %v720 = vadd.f32 %v382, %v687
        %v721 = vadd.f32 %v383, %v689
        %v722 = vadd.f32 %v384, %v692
        %v723 = vadd.f32 %v385, %v694
        %v724 = vadd.f32 %v386, %v697
        %v725 = vadd.f32 %v387, %v699
        %v726 = vadd.f32 %v388, %v702
        %v727 = vadd.f32 %v389, %v704
        %v728 = vadd.f32 %v390, %v707
        %v729 = vadd.f32 %v391, %v709
        %v730 = vadd.f32 %v392, %v712
        %v731 = vadd.f32 %v393, %v714
        %732 = vst [vmem:[#allocation2] sm:$0xff] %v716
        %733 = vst [vmem:[#allocation2 + $0x8] sm:$0xff] %v717
        %734 = vst [vmem:[#allocation2 + $0x10] sm:$0xff] %v718
        %735 = vst [vmem:[#allocation2 + $0x18] sm:$0xff] %v719
        %736 = vst [vmem:[#allocation2 + $0x20] sm:$0xff] %v720
        %737 = vst [vmem:[#allocation2 + $0x28] sm:$0xff] %v721
        %738 = vst [vmem:[#allocation2 + $0x30] sm:$0xff] %v722
        %739 = vst [vmem:[#allocation2 + $0x38] sm:$0xff] %v723
        %740 = vst [vmem:[#allocation2 + $0x40] sm:$0xff] %v724
        %741 = vst [vmem:[#allocation2 + $0x48] sm:$0xff] %v725
        %742 = vst [vmem:[#allocation2 + $0x50] sm:$0xff] %v726
        %743 = vst [vmem:[#allocation2 + $0x58] sm:$0xff] %v727
        %744 = vst [vmem:[#allocation2 + $0x60] sm:$0xff] %v728
        %745 = vst [vmem:[#allocation2 + $0x68] sm:$0xff] %v729
        %746 = vst [vmem:[#allocation2 + $0x70] sm:$0xff] %v730
        %747 = vst [vmem:[#allocation2 + $0x78] sm:$0xff] %v731
        %p748 = scmp.eq.s32.totalorder %s20, 1
        // Predicated region
        $region79: #{_lambda_.17} parent=69 // pred_check
          %p749 = pneg %p748
        $region80: #{_lambda_.17} parent=69 // pred_check_branch
          %751 = sbr.rel (%p749) target = $region82
        $region81: #{_lambda_.17} parent=69 // pred_region
          %v752 = vld [vmem:[#allocation2] sm:$0xff]
          %v753 = vld [vmem:[#allocation2 + $0x8] sm:$0xff]
          %v754 = vld [vmem:[#allocation2 + $0x10] sm:$0xff]
          %v755 = vld [vmem:[#allocation2 + $0x18] sm:$0xff]
          %v756 = vld [vmem:[#allocation2 + $0x20] sm:$0xff]
          %v757 = vld [vmem:[#allocation2 + $0x28] sm:$0xff]
          %v758 = vld [vmem:[#allocation2 + $0x30] sm:$0xff]
          %v759 = vld [vmem:[#allocation2 + $0x38] sm:$0xff]
          %v760 = vld [vmem:[#allocation2 + $0x40] sm:$0xff]
          %v761 = vld [vmem:[#allocation2 + $0x48] sm:$0xff]
          %v762 = vld [vmem:[#allocation2 + $0x50] sm:$0xff]
          %v763 = vld [vmem:[#allocation2 + $0x58] sm:$0xff]
          %v764 = vld [vmem:[#allocation2 + $0x60] sm:$0xff]
          %v765 = vld [vmem:[#allocation2 + $0x68] sm:$0xff]
          %v766 = vld [vmem:[#allocation2 + $0x70] sm:$0xff]
          %v767 = vld [vmem:[#allocation2 + $0x78] sm:$0xff]
          %v768 = vld [vmem:[%s2] sm:$0x1]
          %v770 = vperm.slane %v768, 0
          %v772 = vadd.f32 %v752, %v770
          %v773 = vadd.f32 %v753, %v770
          %v774 = vadd.f32 %v754, %v770
          %v775 = vadd.f32 %v755, %v770
          %v776 = vadd.f32 %v756, %v770
          %v777 = vadd.f32 %v757, %v770
          %v778 = vadd.f32 %v758, %v770
          %v779 = vadd.f32 %v759, %v770
          %v780 = vadd.f32 %v760, %v770
          %v781 = vadd.f32 %v761, %v770
          %v782 = vadd.f32 %v762, %v770
          %v783 = vadd.f32 %v763, %v770
          %v784 = vadd.f32 %v764, %v770
          %v785 = vadd.f32 %v765, %v770
          %v786 = vadd.f32 %v766, %v770
          %v787 = vadd.f32 %v767, %v770
          %v788 = vld [vmem:[%s350] sm:$0xff]
          %v789 = vld [vmem:[%s350 + $0x8] sm:$0xff]
          %v790 = vld [vmem:[%s350 + $0x10] sm:$0xff]
          %v791 = vld [vmem:[%s350 + $0x18] sm:$0xff]
          %v792 = vld [vmem:[%s350 + $0x20] sm:$0xff]
          %v793 = vld [vmem:[%s350 + $0x28] sm:$0xff]
          %v794 = vld [vmem:[%s350 + $0x30] sm:$0xff]
          %v795 = vld [vmem:[%s350 + $0x38] sm:$0xff]
          %v796 = vld [vmem:[%s350 + $0x40] sm:$0xff]
          %v797 = vld [vmem:[%s350 + $0x48] sm:$0xff]
          %v798 = vld [vmem:[%s350 + $0x50] sm:$0xff]
          %v799 = vld [vmem:[%s350 + $0x58] sm:$0xff]
          %v800 = vld [vmem:[%s350 + $0x60] sm:$0xff]
          %v801 = vld [vmem:[%s350 + $0x68] sm:$0xff]
          %v802 = vld [vmem:[%s350 + $0x70] sm:$0xff]
          %v803 = vld [vmem:[%s350 + $0x78] sm:$0xff]
          %v804 = vmul.f32 %v788, 14.586499
          %v805 = vmul.f32 %v789, 14.586499
          %v806 = vmul.f32 %v790, 14.586499
          %v807 = vmul.f32 %v791, 14.586499
          %v808 = vmul.f32 %v792, 14.586499
          %v809 = vmul.f32 %v793, 14.586499
          %v810 = vmul.f32 %v794, 14.586499
          %v811 = vmul.f32 %v795, 14.586499
          %v812 = vmul.f32 %v796, 14.586499
          %v813 = vmul.f32 %v797, 14.586499
          %v814 = vmul.f32 %v798, 14.586499
          %v815 = vmul.f32 %v799, 14.586499
          %v816 = vmul.f32 %v800, 14.586499
          %v817 = vmul.f32 %v801, 14.586499
          %v818 = vmul.f32 %v802, 14.586499
          %v819 = vmul.f32 %v803, 14.586499
          %v820 = vadd.f32 %v772, %v804
          %v821 = vadd.f32 %v773, %v805
          %v822 = vadd.f32 %v774, %v806
          %v823 = vadd.f32 %v775, %v807
          %v824 = vadd.f32 %v776, %v808
          %v825 = vadd.f32 %v777, %v809
          %v826 = vadd.f32 %v778, %v810
          %v827 = vadd.f32 %v779, %v811
          %v828 = vadd.f32 %v780, %v812
          %v829 = vadd.f32 %v781, %v813
          %v830 = vadd.f32 %v782, %v814
          %v831 = vadd.f32 %v783, %v815
          %v832 = vadd.f32 %v784, %v816
          %v833 = vadd.f32 %v785, %v817
          %v834 = vadd.f32 %v786, %v818
          %v835 = vadd.f32 %v787, %v819
          %836 = vst [vmem:[%s356] sm:$0xff] %v820
          %837 = vst [vmem:[%s356 + $0x8] sm:$0xff] %v821
          %838 = vst [vmem:[%s356 + $0x10] sm:$0xff] %v822
          %839 = vst [vmem:[%s356 + $0x18] sm:$0xff] %v823
          %840 = vst [vmem:[%s356 + $0x20] sm:$0xff] %v824
          %841 = vst [vmem:[%s356 + $0x28] sm:$0xff] %v825
          %842 = vst [vmem:[%s356 + $0x30] sm:$0xff] %v826
          %843 = vst [vmem:[%s356 + $0x38] sm:$0xff] %v827
          %844 = vst [vmem:[%s356 + $0x40] sm:$0xff] %v828
          %845 = vst [vmem:[%s356 + $0x48] sm:$0xff] %v829
          %846 = vst [vmem:[%s356 + $0x50] sm:$0xff] %v830
          %847 = vst [vmem:[%s356 + $0x58] sm:$0xff] %v831
          %848 = vst [vmem:[%s356 + $0x60] sm:$0xff] %v832
          %849 = vst [vmem:[%s356 + $0x68] sm:$0xff] %v833
          %850 = vst [vmem:[%s356 + $0x70] sm:$0xff] %v834
          %851 = vst [vmem:[%s356 + $0x78] sm:$0xff] %v835
        $region82: #{_lambda_.17} parent=69 // pred_fallthru
          _
        %s852 = smul.u32 16, %s19
        %p853 = scmp.lt.s32.totalorder %s852, 15
        %s854 = scalar_select %p853, %s852, 15
        %s855 = smul.addr %s854, 8
        %s856 = scalar_lea.vmem %s4, %s855
        // Predicated region
        $region83: #{_lambda_.17} parent=69 // pred_check
          %p857 = pneg %p146
        $region84: #{_lambda_.17} parent=69 // pred_check_branch
          %859 = sbr.rel (%p857) target = $region86
        $region85: #{_lambda_.17} parent=69 // pred_region
          %s860 = smul.u32 16, %s19
        $region86: #{_lambda_.17} parent=69 // pred_fallthru
          _
        // Predicated region
        $region87: #{_lambda_.17} parent=69 // pred_check
          %p861 = pneg %p146
        $region88: #{_lambda_.17} parent=69 // pred_check_branch
          %863 = sbr.rel (%p861) target = $region90
        $region89: #{_lambda_.17} parent=69 // pred_region
          %s864 = smul.u32 16, %s19
          %p865 = scmp.lt.s32.totalorder %s864, 15
          %s866 = scalar_select %p865, %s864, 15
          %s867 = smul.addr %s866, 8
          %s868 = scalar_lea.vmem %s4, %s867
        $region90: #{_lambda_.17} parent=69 // pred_fallthru
          _
      $region70: #{_lambda_.17} parent=5 // pred_fallthru
        _
      %p869 = scmp.le.s32.totalorder 2, %s10
      // Predicated region
      $region91: #{_lambda_.17} parent=5 // pred_check
        %p870 = pneg %p869
      $region92: #{_lambda_.17} parent=5 // pred_check_branch
        %872 = sbr.rel (%p870) target = $region94
      $region93: #{_lambda_.17} parent=5 // pred_region
        %s873 = ssub.s32 %s10, 2
      $region94: #{_lambda_.17} parent=5 // pred_fallthru
        _
    $region6: #{_lambda_.17} parent=1 // loop_footer
      %s14 = sadd.s32 1, %s10
    $region7: #{_lambda_.17} parent=1 // loop_footer_branch
      %9 = sbr.rel target = $region3
    $region8: #{_lambda_.17} parent=1 // loop_exit
      _

// kernel: _lambda_.20
$region0: #{_lambda_.20}
  #allocation0 [shape = 'u32[]', space=smem, size = 0x4, offset = 0x4, fixed_abs, tag = 'smem constant byte address 0x4 - core index']
  #allocation1 [shape = 'u32[72,128]{1,0:T(1,128)}', space=vmem, size = 0x9000, scoped, tag = 'internal scratch']
  #allocation2 [shape = 'f32[256,128]{1,0:T(8,128)}', space=vmem, size = 0x20000, scoped, tag = 'scratch operand']
  %s0 = inlined_call_operand.vmem [shape: bf16[512,512], index: 0, kind: input, shape index: {}]
  %s1 = inlined_call_operand.vmem [shape: bf16[512,128], index: 1, kind: input, shape index: {}]
  %s2 = inlined_call_operand.vmem [shape: f32[1,128], index: 2, kind: input, shape index: {}]
  %s3 = inlined_call_operand.vmem [shape: f32[512,128], index: 3, kind: output, shape index: {}]
  %s4 = sld [smem:[#allocation0]]
  $region91: #{_lambda_.20} parent=0
    _
  %s6 = ssub.s32 1, %s4
  %s7 = scalar_select 0, %s6, %s4
  $region1: #{_lambda_.20} parent=0
    #allocation3 [shape = 'u8[262144]{0}', space=vmem, size = 0x40000, scoped, tag = 'input window, operand 0']
    loop: start=0, step=1, limit=6
    $region2: #{_lambda_.20} parent=1 // loop_pre_header
      _
    $region3: #{_lambda_.20} parent=1 // loop_header
      %s9 = sphi 0, %s13
      %p10 = scmp.ge.s32.totalorder %s9, 6
      %s16 = sphi 0, %s28
      %s17 = sphi 0, %s24
      %s18 = sphi 0, %s16
      %s19 = sphi 0, %s17
      %s20 = sphi 0, %s18
      %s21 = sphi 0, %s19
      %s33 = sphi 0, %s35
      %s36 = sphi 0, %s33
      %s37 = sphi 0, %s36
      %s53 = sphi 0, %s37
      %s59 = sphi 0, %s61
      %s62 = sphi 0, %s59
      %s63 = sphi 0, %s62
      %s79 = sphi 0, %s63
      %s83 = sphi 0, %s83
      %s85 = sphi 0, %s83
      %s86 = sphi 0, %s85
      %s100 = sphi 0, %s86
      %s106 = sphi 0, %s108
      %s109 = sphi 0, %s106
      %s110 = sphi 0, %s109
      %s126 = sphi 0, %s110
    $region4: #{_lambda_.20} parent=1 // loop_header_branch
      %12 = sbr.rel (%p10) target = $region8
    $region5: #{_lambda_.20} parent=1 // loop_body
      %s14 = ssub.s32 %s9, 1
      %s15 = ssub.s32 %s9, 2
      %s22 = sadd.s32 1, %s17
      %p23 = scmp.ge.s32.totalorder %s22, 2
      %s24 = scalar_select %p23, 0, %s22
      %s25 = sadd.s32 1, %s16
      %s26 = scalar_select %p23, %s25, %s16
      %p27 = scmp.ge.s32.totalorder %s26, 2
      %s28 = scalar_select %p27, 0, %s26
      %s29 = ssub.s32 %s16, %s28
      %s30 = ssub.s32 %s17, %s24
      %s31 = sor.u32 %s29, %s30
      %p32 = scmp.eq.s32.totalorder %s31, 0
      %s34 = sadd.s32 %s33, 1
      %s35 = scalar_select %p32, %s33, %s34
      %p38 = pneg %p32
      %p39 = scmp.eq.s32.totalorder %s9, 3
      %p40 = por %p38, %p39
      %p41 = scmp.ne.s32.totalorder %s33, %s36
      %p42 = scmp.eq.s32.totalorder %s9, 0
      %p43 = por %p41, %p42
      %p44 = scmp.ne.s32.totalorder %s33, %s36
      %p45 = scmp.eq.s32.totalorder %s14, 3
      %p46 = por %p44, %p45
      %p47 = scmp.ne.s32.totalorder %s36, %s37
      %p48 = scmp.eq.s32.totalorder %s14, 0
      %p49 = por %p47, %p48
      %p50 = scmp.ne.s32.totalorder %s36, %s37
      %p51 = scmp.eq.s32.totalorder %s15, 3
      %p52 = por %p50, %p51
      %p54 = scmp.ne.s32.totalorder %s37, %s53
      %p55 = scmp.eq.s32.totalorder %s15, 0
      %p56 = por %p54, %p55
      %s57 = ssub.s32 %s17, %s24
      %p58 = scmp.eq.s32.totalorder %s57, 0
      %s60 = sadd.s32 %s59, 1
      %s61 = scalar_select %p58, %s59, %s60
      %p64 = pneg %p58
      %p65 = scmp.eq.s32.totalorder %s9, 3
      %p66 = por %p64, %p65
      %p67 = scmp.ne.s32.totalorder %s59, %s62
      %p68 = scmp.eq.s32.totalorder %s9, 0
      %p69 = por %p67, %p68
      %p70 = scmp.ne.s32.totalorder %s59, %s62
      %p71 = scmp.eq.s32.totalorder %s14, 3
      %p72 = por %p70, %p71
      %p73 = scmp.ne.s32.totalorder %s62, %s63
      %p74 = scmp.eq.s32.totalorder %s14, 0
      %p75 = por %p73, %p74
      %p76 = scmp.ne.s32.totalorder %s62, %s63
      %p77 = scmp.eq.s32.totalorder %s15, 3
      %p78 = por %p76, %p77
      %p80 = scmp.ne.s32.totalorder %s63, %s79
      %p81 = scmp.eq.s32.totalorder %s15, 0
      %p82 = por %p80, %p81
      %s84 = sadd.s32 %s83, 1
      %p87 = scmp.eq.s32.totalorder %s9, 3
      %p88 = scmp.ne.s32.totalorder %s83, %s85
      %p89 = scmp.eq.s32.totalorder %s9, 0
      %p90 = por %p88, %p89
      %p91 = scmp.ne.s32.totalorder %s83, %s85
      %p92 = scmp.eq.s32.totalorder %s14, 3
      %p93 = por %p91, %p92
      %p94 = scmp.ne.s32.totalorder %s85, %s86
      %p95 = scmp.eq.s32.totalorder %s14, 0
      %p96 = por %p94, %p95
      %p97 = scmp.ne.s32.totalorder %s85, %s86
      %p98 = scmp.eq.s32.totalorder %s15, 3
      %p99 = por %p97, %p98
      %p101 = scmp.ne.s32.totalorder %s86, %s100
      %p102 = scmp.eq.s32.totalorder %s15, 0
      %p103 = por %p101, %p102
      %s104 = ssub.s32 %s16, %s28
      %p105 = scmp.eq.s32.totalorder %s104, 0
      %s107 = sadd.s32 %s106, 1
      %s108 = scalar_select %p105, %s106, %s107
      %p111 = pneg %p105
      %p112 = scmp.eq.s32.totalorder %s9, 3
      %p113 = por %p111, %p112
      %p114 = scmp.ne.s32.totalorder %s106, %s109
      %p115 = scmp.eq.s32.totalorder %s9, 0
      %p116 = por %p114, %p115
      %p117 = scmp.ne.s32.totalorder %s106, %s109
      %p118 = scmp.eq.s32.totalorder %s14, 3
      %p119 = por %p117, %p118
      %p120 = scmp.ne.s32.totalorder %s109, %s110
      %p121 = scmp.eq.s32.totalorder %s14, 0
      %p122 = por %p120, %p121
      %p123 = scmp.ne.s32.totalorder %s109, %s110
      %p124 = scmp.eq.s32.totalorder %s15, 3
      %p125 = por %p123, %p124
      %p127 = scmp.ne.s32.totalorder %s110, %s126
      %p128 = scmp.eq.s32.totalorder %s15, 0
      %p129 = por %p127, %p128
      %p130 = scmp.le.s32.totalorder 1, %s9
      %p131 = scmp.lt.s32.totalorder %s9, 5
      %p132 = pnand %p130, %p131
      %p133 = pneg %p132
      // Predicated region
      $region9: #{_lambda_.20} parent=5 // pred_check
        _
      $region10: #{_lambda_.20} parent=5 // pred_check_branch
        %135 = sbr.rel (%p132) target = $region12
      $region11: #{_lambda_.20} parent=5 // pred_region
        %s136 = ssub.s32 %s9, 1
        // Predicated region
        $region13: #{_lambda_.20} parent=11 // pred_check
          %p137 = pneg %p96
        $region14: #{_lambda_.20} parent=11 // pred_check_branch
          %139 = sbr.rel (%p137) target = $region16
        $region15: #{_lambda_.20} parent=11 // pred_region
          _
        $region16: #{_lambda_.20} parent=11 // pred_fallthru
          _
      $region12: #{_lambda_.20} parent=5 // pred_fallthru
        _
      %p140 = scmp.lt.s32.totalorder %s9, 4
      // Predicated region
      $region17: #{_lambda_.20} parent=5 // pred_check
        %p141 = pneg %p140
      $region18: #{_lambda_.20} parent=5 // pred_check_branch
        %143 = sbr.rel (%p141) target = $region20
      $region19: #{_lambda_.20} parent=5 // pred_region
        // Predicated region
        $region21: #{_lambda_.20} parent=19 // pred_check
          %p144 = pneg %p43
        $region22: #{_lambda_.20} parent=19 // pred_check_branch
          %146 = sbr.rel (%p144) target = $region24
        $region23: #{_lambda_.20} parent=19 // pred_region
          %s147 = sand.u32 %s33, 1
          %s148 = sand.u32 %s33, 1
          %s149 = smul.addr %s148, 256
          %s150 = scalar_lea.vmem [#allocation3], %s149
          %s151 = smul.u32 32, %s16
          %s152 = smul.u32 2, %s17
          %s153 = smul.addr %s151, 4
          %s154 = sadd.s32 %s152, %s153
          %s155 = smul.addr %s154, 4
          %s156 = scalar_lea.vmem %s0, %s155
          // Predicated region
          $region25: #{_lambda_.20} parent=23 // pred_check
            _
          $region26: #{_lambda_.20} parent=23 // pred_check_branch
            %158 = sbr.rel (0) target = $region28
          $region27: #{_lambda_.20} parent=23 // pred_region
            // Predicated region
            $region29: #{_lambda_.20} parent=27 // pred_check
              _
            $region30: #{_lambda_.20} parent=27 // pred_check_branch
              %160 = sbr.rel (0) target = $region32
            $region31: #{_lambda_.20} parent=27 // pred_region
              // Predicated region
              $region44: #{_lambda_.20} parent=31 // pred_check
                _
              $region45: #{_lambda_.20} parent=31 // pred_check_branch
                %238 = sbr.rel (0) target = $region47
              $region46: #{_lambda_.20} parent=31 // pred_region
                loop: start=0, step=1, limit=1
                $region48: #{_lambda_.20} parent=46 // loop_pre_header
                  _
                $region49: #{_lambda_.20} parent=46 // loop_header
                  %s240 = sphi 0, %s244
                  %p241 = scmp.ge.s32.totalorder %s240, 1
                  %s245 = sphi %s156, %s156
                  %s246 = sphi %s150, %s150
                $region50: #{_lambda_.20} parent=46 // loop_header_branch
                  %243 = sbr.rel (%p241) target = $region54
                $region51: #{_lambda_.20} parent=46 // loop_body
                  %v247 = vld [vmem:[%s245] sm:$0xff]
                  %248 = vst [vmem:[%s246] sm:$0xff] %v247
                  %v249 = vld [vmem:[%s245 + $0x10] sm:$0xff]
                  %250 = vst [vmem:[%s246 + $0x8] sm:$0xff] %v249
                  %v251 = vld [vmem:[%s245 + $0x20] sm:$0xff]
                  %252 = vst [vmem:[%s246 + $0x10] sm:$0xff] %v251
                  %v253 = vld [vmem:[%s245 + $0x30] sm:$0xff]
                  %254 = vst [vmem:[%s246 + $0x18] sm:$0xff] %v253
                  %v255 = vld [vmem:[%s245 + $0x40] sm:$0xff]
                  %256 = vst [vmem:[%s246 + $0x20] sm:$0xff] %v255
                  %v257 = vld [vmem:[%s245 + $0x50] sm:$0xff]
                  %258 = vst [vmem:[%s246 + $0x28] sm:$0xff] %v257
                  %v259 = vld [vmem:[%s245 + $0x60] sm:$0xff]
                  %260 = vst [vmem:[%s246 + $0x30] sm:$0xff] %v259
                  %v261 = vld [vmem:[%s245 + $0x70] sm:$0xff]
                  %262 = vst [vmem:[%s246 + $0x38] sm:$0xff] %v261
                  %v263 = vld [vmem:[%s245 + $0x80] sm:$0xff]
                  %264 = vst [vmem:[%s246 + $0x40] sm:$0xff] %v263
                  %v265 = vld [vmem:[%s245 + $0x90] sm:$0xff]
                  %266 = vst [vmem:[%s246 + $0x48] sm:$0xff] %v265
                  %v267 = vld [vmem:[%s245 + $0xa0] sm:$0xff]
                  %268 = vst [vmem:[%s246 + $0x50] sm:$0xff] %v267
                  %v269 = vld [vmem:[%s245 + $0xb0] sm:$0xff]
                  %270 = vst [vmem:[%s246 + $0x58] sm:$0xff] %v269
                  %v271 = vld [vmem:[%s245 + $0xc0] sm:$0xff]
                  %272 = vst [vmem:[%s246 + $0x60] sm:$0xff] %v271
                  %v273 = vld [vmem:[%s245 + $0xd0] sm:$0xff]
                  %274 = vst [vmem:[%s246 + $0x68] sm:$0xff] %v273
                  %v275 = vld [vmem:[%s245 + $0xe0] sm:$0xff]
                  %276 = vst [vmem:[%s246 + $0x70] sm:$0xff] %v275
                  %v277 = vld [vmem:[%s245 + $0xf0] sm:$0xff]
                  %278 = vst [vmem:[%s246 + $0x78] sm:$0xff] %v277
                  %v279 = vld [vmem:[%s245 + $0x100] sm:$0xff]
                  %280 = vst [vmem:[%s246 + $0x80] sm:$0xff] %v279
                  %v281 = vld [vmem:[%s245 + $0x110] sm:$0xff]
                  %282 = vst [vmem:[%s246 + $0x88] sm:$0xff] %v281
                  %v283 = vld [vmem:[%s245 + $0x120] sm:$0xff]
                  %284 = vst [vmem:[%s246 + $0x90] sm:$0xff] %v283
                  %v285 = vld [vmem:[%s245 + $0x130] sm:$0xff]
                  %286 = vst [vmem:[%s246 + $0x98] sm:$0xff] %v285
                  %v287 = vld [vmem:[%s245 + $0x140] sm:$0xff]
                  %288 = vst [vmem:[%s246 + $0xa0] sm:$0xff] %v287
                  %v289 = vld [vmem:[%s245 + $0x150] sm:$0xff]
                  %290 = vst [vmem:[%s246 + $0xa8] sm:$0xff] %v289
                  %v291 = vld [vmem:[%s245 + $0x160] sm:$0xff]
                  %292 = vst [vmem:[%s246 + $0xb0] sm:$0xff] %v291
                  %v293 = vld [vmem:[%s245 + $0x170] sm:$0xff]
                  %294 = vst [vmem:[%s246 + $0xb8] sm:$0xff] %v293
                  %v295 = vld [vmem:[%s245 + $0x180] sm:$0xff]
                  %296 = vst [vmem:[%s246 + $0xc0] sm:$0xff] %v295
                  %v297 = vld [vmem:[%s245 + $0x190] sm:$0xff]
                  %298 = vst [vmem:[%s246 + $0xc8] sm:$0xff] %v297
                  %v299 = vld [vmem:[%s245 + $0x1a0] sm:$0xff]
                  %300 = vst [vmem:[%s246 + $0xd0] sm:$0xff] %v299
                  %v301 = vld [vmem:[%s245 + $0x1b0] sm:$0xff]
                  %302 = vst [vmem:[%s246 + $0xd8] sm:$0xff] %v301
                  %v303 = vld [vmem:[%s245 + $0x1c0] sm:$0xff]
                  %304 = vst [vmem:[%s246 + $0xe0] sm:$0xff] %v303
                  %v305 = vld [vmem:[%s245 + $0x1d0] sm:$0xff]
                  %306 = vst [vmem:[%s246 + $0xe8] sm:$0xff] %v305
                  %v307 = vld [vmem:[%s245 + $0x1e0] sm:$0xff]
                  %308 = vst [vmem:[%s246 + $0xf0] sm:$0xff] %v307
                  %v309 = vld [vmem:[%s245 + $0x1f0] sm:$0xff]
                  %310 = vst [vmem:[%s246 + $0xf8] sm:$0xff] %v309
                $region52: #{_lambda_.20} parent=46 // loop_footer
                  %s244 = sadd.s32 1, %s240
                $region53: #{_lambda_.20} parent=46 // loop_footer_branch
                  %239 = sbr.rel target = $region49
                $region54: #{_lambda_.20} parent=46 // loop_exit
                  _
              $region47: #{_lambda_.20} parent=31 // pred_fallthru
                _
              // Predicated region
              $region55: #{_lambda_.20} parent=31 // pred_check
                _
              $region56: #{_lambda_.20} parent=31 // pred_check_branch
                %312 = sbr.rel target = $region58
              $region57: #{_lambda_.20} parent=31 // pred_region
                _
              $region58: #{_lambda_.20} parent=31 // pred_fallthru
                _
            $region32: #{_lambda_.20} parent=27 // pred_fallthru
              _
            // Predicated region
            $region33: #{_lambda_.20} parent=27 // pred_check
              _
            $region34: #{_lambda_.20} parent=27 // pred_check_branch
              %162 = sbr.rel target = $region36
            $region35: #{_lambda_.20} parent=27 // pred_region
              %s164 = ssub.s32 256, 1
              loop: start=0, step=1, limit=1
              $region37: #{_lambda_.20} parent=35 // loop_pre_header
                _
              $region38: #{_lambda_.20} parent=35 // loop_header
                %s166 = sphi 0, %s170
                %p167 = scmp.ge.s32.totalorder %s166, 1
                %s171 = sphi %s156, %s156
                %s172 = sphi %s150, %s150
              $region39: #{_lambda_.20} parent=35 // loop_header_branch
                %169 = sbr.rel (%p167) target = $region43
              $region40: #{_lambda_.20} parent=35 // loop_body
                %v173 = vld [vmem:[%s171] sm:%s164]
                %174 = vst [vmem:[%s172] sm:%s164] %v173
                %v175 = vld [vmem:[%s171 + $0x10] sm:%s164]
                %176 = vst [vmem:[%s172 + $0x8] sm:%s164] %v175
                %v177 = vld [vmem:[%s171 + $0x20] sm:%s164]
                %178 = vst [vmem:[%s172 + $0x10] sm:%s164] %v177
                %v179 = vld [vmem:[%s171 + $0x30] sm:%s164]
                %180 = vst [vmem:[%s172 + $0x18] sm:%s164] %v179
                %v181 = vld [vmem:[%s171 + $0x40] sm:%s164]
                %182 = vst [vmem:[%s172 + $0x20] sm:%s164] %v181
                %v183 = vld [vmem:[%s171 + $0x50] sm:%s164]
                %184 = vst [vmem:[%s172 + $0x28] sm:%s164] %v183
                %v185 = vld [vmem:[%s171 + $0x60] sm:%s164]
                %186 = vst [vmem:[%s172 + $0x30] sm:%s164] %v185
                %v187 = vld [vmem:[%s171 + $0x70] sm:%s164]
                %188 = vst [vmem:[%s172 + $0x38] sm:%s164] %v187
                %v189 = vld [vmem:[%s171 + $0x80] sm:%s164]
                %190 = vst [vmem:[%s172 + $0x40] sm:%s164] %v189
                %v191 = vld [vmem:[%s171 + $0x90] sm:%s164]
                %192 = vst [vmem:[%s172 + $0x48] sm:%s164] %v191
                %v193 = vld [vmem:[%s171 + $0xa0] sm:%s164]
                %194 = vst [vmem:[%s172 + $0x50] sm:%s164] %v193
                %v195 = vld [vmem:[%s171 + $0xb0] sm:%s164]
                %196 = vst [vmem:[%s172 + $0x58] sm:%s164] %v195
                %v197 = vld [vmem:[%s171 + $0xc0] sm:%s164]
                %198 = vst [vmem:[%s172 + $0x60] sm:%s164] %v197
                %v199 = vld [vmem:[%s171 + $0xd0] sm:%s164]
                %200 = vst [vmem:[%s172 + $0x68] sm:%s164] %v199
                %v201 = vld [vmem:[%s171 + $0xe0] sm:%s164]
                %202 = vst [vmem:[%s172 + $0x70] sm:%s164] %v201
                %v203 = vld [vmem:[%s171 + $0xf0] sm:%s164]
                %204 = vst [vmem:[%s172 + $0x78] sm:%s164] %v203
                %v205 = vld [vmem:[%s171 + $0x100] sm:%s164]
                %206 = vst [vmem:[%s172 + $0x80] sm:%s164] %v205
                %v207 = vld [vmem:[%s171 + $0x110] sm:%s164]
                %208 = vst [vmem:[%s172 + $0x88] sm:%s164] %v207
                %v209 = vld [vmem:[%s171 + $0x120] sm:%s164]
                %210 = vst [vmem:[%s172 + $0x90] sm:%s164] %v209
                %v211 = vld [vmem:[%s171 + $0x130] sm:%s164]
                %212 = vst [vmem:[%s172 + $0x98] sm:%s164] %v211
                %v213 = vld [vmem:[%s171 + $0x140] sm:%s164]
                %214 = vst [vmem:[%s172 + $0xa0] sm:%s164] %v213
                %v215 = vld [vmem:[%s171 + $0x150] sm:%s164]
                %216 = vst [vmem:[%s172 + $0xa8] sm:%s164] %v215
                %v217 = vld [vmem:[%s171 + $0x160] sm:%s164]
                %218 = vst [vmem:[%s172 + $0xb0] sm:%s164] %v217
                %v219 = vld [vmem:[%s171 + $0x170] sm:%s164]
                %220 = vst [vmem:[%s172 + $0xb8] sm:%s164] %v219
                %v221 = vld [vmem:[%s171 + $0x180] sm:%s164]
                %222 = vst [vmem:[%s172 + $0xc0] sm:%s164] %v221
                %v223 = vld [vmem:[%s171 + $0x190] sm:%s164]
                %224 = vst [vmem:[%s172 + $0xc8] sm:%s164] %v223
                %v225 = vld [vmem:[%s171 + $0x1a0] sm:%s164]
                %226 = vst [vmem:[%s172 + $0xd0] sm:%s164] %v225
                %v227 = vld [vmem:[%s171 + $0x1b0] sm:%s164]
                %228 = vst [vmem:[%s172 + $0xd8] sm:%s164] %v227
                %v229 = vld [vmem:[%s171 + $0x1c0] sm:%s164]
                %230 = vst [vmem:[%s172 + $0xe0] sm:%s164] %v229
                %v231 = vld [vmem:[%s171 + $0x1d0] sm:%s164]
                %232 = vst [vmem:[%s172 + $0xe8] sm:%s164] %v231
                %v233 = vld [vmem:[%s171 + $0x1e0] sm:%s164]
                %234 = vst [vmem:[%s172 + $0xf0] sm:%s164] %v233
                %v235 = vld [vmem:[%s171 + $0x1f0] sm:%s164]
                %236 = vst [vmem:[%s172 + $0xf8] sm:%s164] %v235
              $region41: #{_lambda_.20} parent=35 // loop_footer
                %s170 = sadd.s32 1, %s166
              $region42: #{_lambda_.20} parent=35 // loop_footer_branch
                %165 = sbr.rel target = $region38
              $region43: #{_lambda_.20} parent=35 // loop_exit
                _
            $region36: #{_lambda_.20} parent=27 // pred_fallthru
              _
          $region28: #{_lambda_.20} parent=23 // pred_fallthru
            _
          %313 = vnop
        $region24: #{_lambda_.20} parent=19 // pred_fallthru
          _
        // Predicated region
        $region59: #{_lambda_.20} parent=19 // pred_check
          %p314 = pneg %p69
        $region60: #{_lambda_.20} parent=19 // pred_check_branch
          %316 = sbr.rel (%p314) target = $region62
        $region61: #{_lambda_.20} parent=19 // pred_region
          %s317 = smul.u32 32, %s17
          %p318 = scmp.lt.s32.totalorder %s317, 63
          %s319 = scalar_select %p318, %s317, 63
          %s320 = smul.addr %s319, 4
          %s321 = scalar_lea.vmem %s1, %s320
          %s322 = smul.u32 32, %s17
        $region62: #{_lambda_.20} parent=19 // pred_fallthru
          _
      $region20: #{_lambda_.20} parent=5 // pred_fallthru
        _
      %p323 = scmp.le.s32.totalorder 1, %s9
      %p324 = scmp.lt.s32.totalorder %s9, 5
      %p325 = pnand %p323, %p324
      %p326 = pneg %p325
      // Predicated region
      $region63: #{_lambda_.20} parent=5 // pred_check
        _
      $region64: #{_lambda_.20} parent=5 // pred_check_branch
        %328 = sbr.rel (%p325) target = $region66
      $region65: #{_lambda_.20} parent=5 // pred_region
        %s329 = ssub.s32 %s9, 1
        %s330 = sand.u32 %s36, 1
        %s331 = sand.u32 %s36, 1
        %s332 = smul.addr %s331, 256
        %s333 = scalar_lea.vmem [#allocation3], %s332
        // Predicated region
        $region67: #{_lambda_.20} parent=65 // pred_check
          %p334 = pneg %p49
        $region68: #{_lambda_.20} parent=65 // pred_check_branch
          %336 = sbr.rel (%p334) target = $region70
        $region69: #{_lambda_.20} parent=65 // pred_region
          _
        $region70: #{_lambda_.20} parent=65 // pred_fallthru
          _
        %s337 = sand.u32 %s36, 1
        %s338 = sand.u32 %s36, 1
        %s339 = smul.addr %s338, 256
        %s340 = scalar_lea.vmem [#allocation3], %s339
        %p341 = pneg %p49
        %p342 = pneg %p46
        %s343 = smul.u32 32, %s19
        %p344 = scmp.lt.s32.totalorder %s343, 63
        %s345 = scalar_select %p344, %s343, 63
        %s346 = smul.addr %s345, 4
        %s347 = scalar_lea.vmem %s1, %s346
        %p348 = pneg %p75
        %p349 = pneg %p72
        %p350 = pneg %p96
        %p351 = pneg %p93
        %p352 = pneg %p122
        %p353 = pneg %p119
        %s354 = smul.u32 32, %s18
        %p355 = scmp.lt.s32.totalorder %s354, 63
        %s356 = scalar_select %p355, %s354, 63
        %s357 = smul.addr %s356, 8
        %s358 = scalar_lea.vmem %s3, %s357
        %s359 = smul.u32 32, %s18
        %s360 = smul.u32 2, %s19
        %s361 = smul.u32 32, %s19
        %p362 = scmp.lt.s32.totalorder %s361, 63
        %s363 = scalar_select %p362, %s361, 63
        %s364 = smul.addr %s363, 4
        %s365 = scalar_lea.vmem %s1, %s364
        %s366 = smul.u32 32, %s19
        %s367 = smul.u32 32, %s18
        %p368 = scmp.lt.s32.totalorder %s367, 63
        %s369 = scalar_select %p368, %s367, 63
        %s370 = smul.addr %s369, 8
        %s371 = scalar_lea.vmem %s3, %s370
        %s372 = smul.u32 32, %s18
        %p373 = scmp.eq.s32.totalorder %s19, 0
        // Predicated region
        $region71: #{_lambda_.20} parent=65 // pred_check
          %p374 = pneg %p373
        $region72: #{_lambda_.20} parent=65 // pred_check_branch
          %376 = sbr.rel (%p374) target = $region74
        $region73: #{_lambda_.20} parent=65 // pred_region
          %377 = vst [vmem:[#allocation2] sm:$0xff] 0.0
          %378 = vst [vmem:[#allocation2 + $0x8] sm:$0xff] 0.0
          %379 = vst [vmem:[#allocation2 + $0x10] sm:$0xff] 0.0
          %380 = vst [vmem:[#allocation2 + $0x18] sm:$0xff] 0.0
          %381 = vst [vmem:[#allocation2 + $0x20] sm:$0xff] 0.0
          %382 = vst [vmem:[#allocation2 + $0x28] sm:$0xff] 0.0
          %383 = vst [vmem:[#allocation2 + $0x30] sm:$0xff] 0.0
          %384 = vst [vmem:[#allocation2 + $0x38] sm:$0xff] 0.0
          %385 = vst [vmem:[#allocation2 + $0x40] sm:$0xff] 0.0
          %386 = vst [vmem:[#allocation2 + $0x48] sm:$0xff] 0.0
          %387 = vst [vmem:[#allocation2 + $0x50] sm:$0xff] 0.0
          %388 = vst [vmem:[#allocation2 + $0x58] sm:$0xff] 0.0
          %389 = vst [vmem:[#allocation2 + $0x60] sm:$0xff] 0.0
          %390 = vst [vmem:[#allocation2 + $0x68] sm:$0xff] 0.0
          %391 = vst [vmem:[#allocation2 + $0x70] sm:$0xff] 0.0
          %392 = vst [vmem:[#allocation2 + $0x78] sm:$0xff] 0.0
          %393 = vst [vmem:[#allocation2 + $0x80] sm:$0xff] 0.0
          %394 = vst [vmem:[#allocation2 + $0x88] sm:$0xff] 0.0
          %395 = vst [vmem:[#allocation2 + $0x90] sm:$0xff] 0.0
          %396 = vst [vmem:[#allocation2 + $0x98] sm:$0xff] 0.0
          %397 = vst [vmem:[#allocation2 + $0xa0] sm:$0xff] 0.0
          %398 = vst [vmem:[#allocation2 + $0xa8] sm:$0xff] 0.0
          %399 = vst [vmem:[#allocation2 + $0xb0] sm:$0xff] 0.0
          %400 = vst [vmem:[#allocation2 + $0xb8] sm:$0xff] 0.0
          %401 = vst [vmem:[#allocation2 + $0xc0] sm:$0xff] 0.0
          %402 = vst [vmem:[#allocation2 + $0xc8] sm:$0xff] 0.0
          %403 = vst [vmem:[#allocation2 + $0xd0] sm:$0xff] 0.0
          %404 = vst [vmem:[#allocation2 + $0xd8] sm:$0xff] 0.0
          %405 = vst [vmem:[#allocation2 + $0xe0] sm:$0xff] 0.0
          %406 = vst [vmem:[#allocation2 + $0xe8] sm:$0xff] 0.0
          %407 = vst [vmem:[#allocation2 + $0xf0] sm:$0xff] 0.0
          %408 = vst [vmem:[#allocation2 + $0xf8] sm:$0xff] 0.0
        $region74: #{_lambda_.20} parent=65 // pred_fallthru
          _
        %v409 = vld [vmem:[#allocation2] sm:$0xff]
        %v410 = vld [vmem:[#allocation2 + $0x8] sm:$0xff]
        %v411 = vld [vmem:[#allocation2 + $0x10] sm:$0xff]
        %v412 = vld [vmem:[#allocation2 + $0x18] sm:$0xff]
        %v413 = vld [vmem:[#allocation2 + $0x20] sm:$0xff]
        %v414 = vld [vmem:[#allocation2 + $0x28] sm:$0xff]
        %v415 = vld [vmem:[#allocation2 + $0x30] sm:$0xff]
        %v416 = vld [vmem:[#allocation2 + $0x38] sm:$0xff]
        %v417 = vld [vmem:[#allocation2 + $0x40] sm:$0xff]
        %v418 = vld [vmem:[#allocation2 + $0x48] sm:$0xff]
        %v419 = vld [vmem:[#allocation2 + $0x50] sm:$0xff]
        %v420 = vld [vmem:[#allocation2 + $0x58] sm:$0xff]
        %v421 = vld [vmem:[#allocation2 + $0x60] sm:$0xff]
        %v422 = vld [vmem:[#allocation2 + $0x68] sm:$0xff]
        %v423 = vld [vmem:[#allocation2 + $0x70] sm:$0xff]
        %v424 = vld [vmem:[#allocation2 + $0x78] sm:$0xff]
        %v425 = vld [vmem:[#allocation2 + $0x80] sm:$0xff]
        %v426 = vld [vmem:[#allocation2 + $0x88] sm:$0xff]
        %v427 = vld [vmem:[#allocation2 + $0x90] sm:$0xff]
        %v428 = vld [vmem:[#allocation2 + $0x98] sm:$0xff]
        %v429 = vld [vmem:[#allocation2 + $0xa0] sm:$0xff]
        %v430 = vld [vmem:[#allocation2 + $0xa8] sm:$0xff]
        %v431 = vld [vmem:[#allocation2 + $0xb0] sm:$0xff]
        %v432 = vld [vmem:[#allocation2 + $0xb8] sm:$0xff]
        %v433 = vld [vmem:[#allocation2 + $0xc0] sm:$0xff]
        %v434 = vld [vmem:[#allocation2 + $0xc8] sm:$0xff]
        %v435 = vld [vmem:[#allocation2 + $0xd0] sm:$0xff]
        %v436 = vld [vmem:[#allocation2 + $0xd8] sm:$0xff]
        %v437 = vld [vmem:[#allocation2 + $0xe0] sm:$0xff]
        %v438 = vld [vmem:[#allocation2 + $0xe8] sm:$0xff]
        %v439 = vld [vmem:[#allocation2 + $0xf0] sm:$0xff]
        %v440 = vld [vmem:[#allocation2 + $0xf8] sm:$0xff]
        %v441 = vld [vmem:[%s333] sm:$0xff]
        %v442 = vld [vmem:[%s333 + $0x8] sm:$0xff]
        %v443 = vld [vmem:[%s333 + $0x10] sm:$0xff]
        %v444 = vld [vmem:[%s333 + $0x18] sm:$0xff]
        %v445 = vld [vmem:[%s333 + $0x20] sm:$0xff]
        %v446 = vld [vmem:[%s333 + $0x28] sm:$0xff]
        %v447 = vld [vmem:[%s333 + $0x30] sm:$0xff]
        %v448 = vld [vmem:[%s333 + $0x38] sm:$0xff]
        %v449 = vld [vmem:[%s333 + $0x40] sm:$0xff]
        %v450 = vld [vmem:[%s333 + $0x48] sm:$0xff]
        %v451 = vld [vmem:[%s333 + $0x50] sm:$0xff]
        %v452 = vld [vmem:[%s333 + $0x58] sm:$0xff]
        %v453 = vld [vmem:[%s333 + $0x60] sm:$0xff]
        %v454 = vld [vmem:[%s333 + $0x68] sm:$0xff]
        %v455 = vld [vmem:[%s333 + $0x70] sm:$0xff]
        %v456 = vld [vmem:[%s333 + $0x78] sm:$0xff]
        %v457 = vld [vmem:[%s333 + $0x80] sm:$0xff]
        %v458 = vld [vmem:[%s333 + $0x88] sm:$0xff]
        %v459 = vld [vmem:[%s333 + $0x90] sm:$0xff]
        %v460 = vld [vmem:[%s333 + $0x98] sm:$0xff]
        %v461 = vld [vmem:[%s333 + $0xa0] sm:$0xff]
        %v462 = vld [vmem:[%s333 + $0xa8] sm:$0xff]
        %v463 = vld [vmem:[%s333 + $0xb0] sm:$0xff]
        %v464 = vld [vmem:[%s333 + $0xb8] sm:$0xff]
        %v465 = vld [vmem:[%s333 + $0xc0] sm:$0xff]
        %v466 = vld [vmem:[%s333 + $0xc8] sm:$0xff]
        %v467 = vld [vmem:[%s333 + $0xd0] sm:$0xff]
        %v468 = vld [vmem:[%s333 + $0xd8] sm:$0xff]
        %v469 = vld [vmem:[%s333 + $0xe0] sm:$0xff]
        %v470 = vld [vmem:[%s333 + $0xe8] sm:$0xff]
        %v471 = vld [vmem:[%s333 + $0xf0] sm:$0xff]
        %v472 = vld [vmem:[%s333 + $0xf8] sm:$0xff]
        %v473 = vld [vmem:[%s365] sm:$0xf]
        %v474 = vld [vmem:[%s365 + $0x4] sm:$0xf]
        %v475 = vld [vmem:[%s365 + $0x8] sm:$0xf]
        %v476 = vld [vmem:[%s365 + $0xc] sm:$0xf]
        %v477 = vld [vmem:[%s365 + $0x10] sm:$0xf]
        %v478 = vld [vmem:[%s365 + $0x14] sm:$0xf]
        %v479 = vld [vmem:[%s365 + $0x18] sm:$0xf]
        %v480 = vld [vmem:[%s365 + $0x1c] sm:$0xf]
        %v481 = vld [vmem:[%s365 + $0x20] sm:$0xf]
        %v482 = vld [vmem:[%s365 + $0x24] sm:$0xf]
        %v483 = vld [vmem:[%s365 + $0x28] sm:$0xf]
        %v484 = vld [vmem:[%s365 + $0x2c] sm:$0xf]
        %v485 = vld [vmem:[%s365 + $0x30] sm:$0xf]
        %v486 = vld [vmem:[%s365 + $0x34] sm:$0xf]
        %v487 = vld [vmem:[%s365 + $0x38] sm:$0xf]
        %v488 = vld [vmem:[%s365 + $0x3c] sm:$0xf]
        %v489 = vld [vmem:[%s365 + $0x40] sm:$0xf]
        %v490 = vld [vmem:[%s365 + $0x44] sm:$0xf]
        %v491 = vld [vmem:[%s365 + $0x48] sm:$0xf]
        %v492 = vld [vmem:[%s365 + $0x4c] sm:$0xf]
        %v493 = vld [vmem:[%s365 + $0x50] sm:$0xf]
        %v494 = vld [vmem:[%s365 + $0x54] sm:$0xf]
        %v495 = vld [vmem:[%s365 + $0x58] sm:$0xf]
        %v496 = vld [vmem:[%s365 + $0x5c] sm:$0xf]
        %v497 = vld [vmem:[%s365 + $0x60] sm:$0xf]
        %v498 = vld [vmem:[%s365 + $0x64] sm:$0xf]
        %v499 = vld [vmem:[%s365 + $0x68] sm:$0xf]
        %v500 = vld [vmem:[%s365 + $0x6c] sm:$0xf]
        %v501 = vld [vmem:[%s365 + $0x70] sm:$0xf]
        %v502 = vld [vmem:[%s365 + $0x74] sm:$0xf]
        %v503 = vld [vmem:[%s365 + $0x78] sm:$0xf]
        %v504 = vld [vmem:[%s365 + $0x7c] sm:$0xf]
        %v537 = vunpack.c.l.b16 %v441
        %v538 = vunpack.c.h.b16 %v441
        %v539 = vunpack.c.l.b16 %v442
        %v540 = vunpack.c.h.b16 %v442
        %v541 = vunpack.c.l.b16 %v443
        %v542 = vunpack.c.h.b16 %v443
        %v543 = vunpack.c.l.b16 %v444
        %v544 = vunpack.c.h.b16 %v444
        %v545 = vunpack.c.l.b16 %v445
        %v546 = vunpack.c.h.b16 %v445
        %v547 = vunpack.c.l.b16 %v446
        %v548 = vunpack.c.h.b16 %v446
        %v549 = vunpack.c.l.b16 %v447
        %v550 = vunpack.c.h.b16 %v447
        %v551 = vunpack.c.l.b16 %v448
        %v552 = vunpack.c.h.b16 %v448
        %v553 = vunpack.c.l.b16 %v449
        %v554 = vunpack.c.h.b16 %v449
        %v555 = vunpack.c.l.b16 %v450
        %v556 = vunpack.c.h.b16 %v450
        %v557 = vunpack.c.l.b16 %v451
        %v558 = vunpack.c.h.b16 %v451
        %v559 = vunpack.c.l.b16 %v452
        %v560 = vunpack.c.h.b16 %v452
        %v561 = vunpack.c.l.b16 %v453
        %v562 = vunpack.c.h.b16 %v453
        %v563 = vunpack.c.l.b16 %v454
        %v564 = vunpack.c.h.b16 %v454
        %v565 = vunpack.c.l.b16 %v455
        %v566 = vunpack.c.h.b16 %v455
        %v567 = vunpack.c.l.b16 %v456
        %v568 = vunpack.c.h.b16 %v456
        %v569 = vunpack.c.l.b16 %v457
        %v570 = vunpack.c.h.b16 %v457
        %v571 = vunpack.c.l.b16 %v458
        %v572 = vunpack.c.h.b16 %v458
        %v573 = vunpack.c.l.b16 %v459
        %v574 = vunpack.c.h.b16 %v459
        %v575 = vunpack.c.l.b16 %v460
        %v576 = vunpack.c.h.b16 %v460
        %v577 = vunpack.c.l.b16 %v461
        %v578 = vunpack.c.h.b16 %v461
        %v579 = vunpack.c.l.b16 %v462
        %v580 = vunpack.c.h.b16 %v462
        %v581 = vunpack.c.l.b16 %v463
        %v582 = vunpack.c.h.b16 %v463
        %v583 = vunpack.c.l.b16 %v464
        %v584 = vunpack.c.h.b16 %v464
        %v585 = vunpack.c.l.b16 %v465
        %v586 = vunpack.c.h.b16 %v465
        %v587 = vunpack.c.l.b16 %v466
        %v588 = vunpack.c.h.b16 %v466
        %v589 = vunpack.c.l.b16 %v467
        %v590 = vunpack.c.h.b16 %v467
        %v591 = vunpack.c.l.b16 %v468
        %v592 = vunpack.c.h.b16 %v468
        %v593 = vunpack.c.l.b16 %v469
        %v594 = vunpack.c.h.b16 %v469
        %v595 = vunpack.c.l.b16 %v470
        %v596 = vunpack.c.h.b16 %v470
        %v597 = vunpack.c.l.b16 %v471
        %v598 = vunpack.c.h.b16 %v471
        %v599 = vunpack.c.l.b16 %v472
        %v600 = vunpack.c.h.b16 %v472
        %v601 = vpack.c.b16 %v539, %v537
        %v602 = vpack.c.b16 %v540, %v538
        %v603 = vpack.c.b16 %v543, %v541
        %v604 = vpack.c.b16 %v544, %v542
        %v605 = vpack.c.b16 %v547, %v545
        %v606 = vpack.c.b16 %v548, %v546
        %v607 = vpack.c.b16 %v551, %v549
        %v608 = vpack.c.b16 %v552, %v550
        %v609 = vpack.c.b16 %v555, %v553
        %v610 = vpack.c.b16 %v556, %v554
        %v611 = vpack.c.b16 %v559, %v557
        %v612 = vpack.c.b16 %v560, %v558
        %v613 = vpack.c.b16 %v563, %v561
        %v614 = vpack.c.b16 %v564, %v562
        %v615 = vpack.c.b16 %v567, %v565
        %v616 = vpack.c.b16 %v568, %v566
        %v617 = vpack.c.b16 %v571, %v569
        %v618 = vpack.c.b16 %v572, %v570
        %v619 = vpack.c.b16 %v575, %v573
        %v620 = vpack.c.b16 %v576, %v574
        %v621 = vpack.c.b16 %v579, %v577
        %v622 = vpack.c.b16 %v580, %v578
        %v623 = vpack.c.b16 %v583, %v581
        %v624 = vpack.c.b16 %v584, %v582
        %v625 = vpack.c.b16 %v587, %v585
        %v626 = vpack.c.b16 %v588, %v586
        %v627 = vpack.c.b16 %v591, %v589
        %v628 = vpack.c.b16 %v592, %v590
        %v629 = vpack.c.b16 %v595, %v593
        %v630 = vpack.c.b16 %v596, %v594
        %v631 = vpack.c.b16 %v599, %v597
        %v632 = vpack.c.b16 %v600, %v598
        %v697 = vunpack.c.l.b16 %v473
        %v698 = vunpack.c.l.b16 %v474
        %v699 = vunpack.c.l.b16 %v475
        %v700 = vunpack.c.l.b16 %v476
        %v701 = vunpack.c.l.b16 %v477
        %v702 = vunpack.c.l.b16 %v478
        %v703 = vunpack.c.l.b16 %v479
        %v704 = vunpack.c.l.b16 %v480
        %v705 = vunpack.c.l.b16 %v481
        %v706 = vunpack.c.l.b16 %v482
        %v707 = vunpack.c.l.b16 %v483
        %v708 = vunpack.c.l.b16 %v484
        %v709 = vunpack.c.l.b16 %v485
        %v710 = vunpack.c.l.b16 %v486
        %v711 = vunpack.c.l.b16 %v487
        %v712 = vunpack.c.l.b16 %v488
        %v713 = vunpack.c.l.b16 %v489
        %v714 = vunpack.c.l.b16 %v490
        %v715 = vunpack.c.l.b16 %v491
        %v716 = vunpack.c.l.b16 %v492
        %v717 = vunpack.c.l.b16 %v493
        %v718 = vunpack.c.l.b16 %v494
        %v719 = vunpack.c.l.b16 %v495
        %v720 = vunpack.c.l.b16 %v496
        %v721 = vunpack.c.l.b16 %v497
        %v722 = vunpack.c.l.b16 %v498
        %v723 = vunpack.c.l.b16 %v499
        %v724 = vunpack.c.l.b16 %v500
        %v725 = vunpack.c.l.b16 %v501
        %v726 = vunpack.c.l.b16 %v502
        %v727 = vunpack.c.l.b16 %v503
        %v728 = vunpack.c.l.b16 %v504
        %v729 = vpack.c.b16 %v698, %v697
        %v730 = vpack.c.b16 %v700, %v699
        %v731 = vpack.c.b16 %v702, %v701
        %v732 = vpack.c.b16 %v704, %v703
        %v733 = vpack.c.b16 %v706, %v705
        %v734 = vpack.c.b16 %v708, %v707
        %v735 = vpack.c.b16 %v710, %v709
        %v736 = vpack.c.b16 %v712, %v711
        %v737 = vpack.c.b16 %v714, %v713
        %v738 = vpack.c.b16 %v716, %v715
        %v739 = vpack.c.b16 %v718, %v717
        %v740 = vpack.c.b16 %v720, %v719
        %v741 = vpack.c.b16 %v722, %v721
        %v742 = vpack.c.b16 %v724, %v723
        %v743 = vpack.c.b16 %v726, %v725
        %v744 = vpack.c.b16 %v728, %v727
        %761 = vmatpush.bf16.msra.mxu0 %v736
        %762 = vmatpush.bf16.msra.mxu0 %v735
        %763 = vmatpush.bf16.msra.mxu0 %v734
        %764 = vmatpush.bf16.msra.mxu0 %v733
        %765 = vmatpush.bf16.msra.mxu0 %v732
        %766 = vmatpush.bf16.msra.mxu0 %v731
        %767 = vmatpush.bf16.msra.mxu0 %v730
        %768 = vmatpush.bf16.msra.mxu0 %v729
        %769 = vmatmul.bf16.gmra.mxu0 %v601
        %v770 = vpop.f32.mrf.mxu0
        %v771 = vadd.f32 0.0, %v770
        %v772 = vpop.f32.mrf.mxu0
        %v773 = vadd.f32 0.0, %v772
        %774 = vmatmul.bf16.gmra.mxu0 %v603
        %v775 = vpop.f32.mrf.mxu0
        %v776 = vadd.f32 0.0, %v775
        %v777 = vpop.f32.mrf.mxu0
        %v778 = vadd.f32 0.0, %v777
        %779 = vmatmul.bf16.gmra.mxu0 %v605
        %v780 = vpop.f32.mrf.mxu0
        %v781 = vadd.f32 0.0, %v780
        %v782 = vpop.f32.mrf.mxu0
        %v783 = vadd.f32 0.0, %v782
        %784 = vmatmul.bf16.gmra.mxu0 %v607
        %v785 = vpop.f32.mrf.mxu0
        %v786 = vadd.f32 0.0, %v785
        %v787 = vpop.f32.mrf.mxu0
        %v788 = vadd.f32 0.0, %v787
        %789 = vmatmul.bf16.gmra.mxu0 %v609
        %v790 = vpop.f32.mrf.mxu0
        %v791 = vadd.f32 0.0, %v790
        %v792 = vpop.f32.mrf.mxu0
        %v793 = vadd.f32 0.0, %v792
        %794 = vmatmul.bf16.gmra.mxu0 %v611
        %v795 = vpop.f32.mrf.mxu0
        %v796 = vadd.f32 0.0, %v795
        %v797 = vpop.f32.mrf.mxu0
        %v798 = vadd.f32 0.0, %v797
        %799 = vmatmul.bf16.gmra.mxu0 %v613
        %v800 = vpop.f32.mrf.mxu0
        %v801 = vadd.f32 0.0, %v800
        %v802 = vpop.f32.mrf.mxu0
        %v803 = vadd.f32 0.0, %v802
        %804 = vmatmul.bf16.gmra.mxu0 %v615
        %v805 = vpop.f32.mrf.mxu0
        %v806 = vadd.f32 0.0, %v805
        %v807 = vpop.f32.mrf.mxu0
        %v808 = vadd.f32 0.0, %v807
        %809 = vmatmul.bf16.gmra.mxu0 %v617
        %v810 = vpop.f32.mrf.mxu0
        %v811 = vadd.f32 0.0, %v810
        %v812 = vpop.f32.mrf.mxu0
        %v813 = vadd.f32 0.0, %v812
        %814 = vmatmul.bf16.gmra.mxu0 %v619
        %v815 = vpop.f32.mrf.mxu0
        %v816 = vadd.f32 0.0, %v815
        %v817 = vpop.f32.mrf.mxu0
        %v818 = vadd.f32 0.0, %v817
        %819 = vmatmul.bf16.gmra.mxu0 %v621
        %v820 = vpop.f32.mrf.mxu0
        %v821 = vadd.f32 0.0, %v820
        %v822 = vpop.f32.mrf.mxu0
        %v823 = vadd.f32 0.0, %v822
        %824 = vmatmul.bf16.gmra.mxu0 %v623
        %v825 = vpop.f32.mrf.mxu0
        %v826 = vadd.f32 0.0, %v825
        %v827 = vpop.f32.mrf.mxu0
        %v828 = vadd.f32 0.0, %v827
        %829 = vmatmul.bf16.gmra.mxu0 %v625
        %v830 = vpop.f32.mrf.mxu0
        %v831 = vadd.f32 0.0, %v830
        %v832 = vpop.f32.mrf.mxu0
        %v833 = vadd.f32 0.0, %v832
        %834 = vmatmul.bf16.gmra.mxu0 %v627
        %v835 = vpop.f32.mrf.mxu0
        %v836 = vadd.f32 0.0, %v835
        %v837 = vpop.f32.mrf.mxu0
        %v838 = vadd.f32 0.0, %v837
        %839 = vmatmul.bf16.gmra.mxu0 %v629
        %v840 = vpop.f32.mrf.mxu0
        %v841 = vadd.f32 0.0, %v840
        %v842 = vpop.f32.mrf.mxu0
        %v843 = vadd.f32 0.0, %v842
        %844 = vmatmul.bf16.gmra.mxu0 %v631
        %v845 = vpop.f32.mrf.mxu0
        %v846 = vadd.f32 0.0, %v845
        %v847 = vpop.f32.mrf.mxu0
        %v848 = vadd.f32 0.0, %v847
        %849 = vdwg.mxu0
        %850 = vmatpush.bf16.msra.mxu0 %v744
        %851 = vmatpush.bf16.msra.mxu0 %v743
        %852 = vmatpush.bf16.msra.mxu0 %v742
        %853 = vmatpush.bf16.msra.mxu0 %v741
        %854 = vmatpush.bf16.msra.mxu0 %v740
        %855 = vmatpush.bf16.msra.mxu0 %v739
        %856 = vmatpush.bf16.msra.mxu0 %v738
        %857 = vmatpush.bf16.msra.mxu0 %v737
        %858 = vmatmul.bf16.gmra.mxu0 %v602
        %v859 = vpop.f32.mrf.mxu0
        %v860 = vadd.f32 %v771, %v859
        %v861 = vpop.f32.mrf.mxu0
        %v862 = vadd.f32 %v773, %v861
        %863 = vmatmul.bf16.gmra.mxu0 %v604
        %v864 = vpop.f32.mrf.mxu0
        %v865 = vadd.f32 %v776, %v864
        %v866 = vpop.f32.mrf.mxu0
        %v867 = vadd.f32 %v778, %v866
        %868 = vmatmul.bf16.gmra.mxu0 %v606
        %v869 = vpop.f32.mrf.mxu0
        %v870 = vadd.f32 %v781, %v869
        %v871 = vpop.f32.mrf.mxu0
        %v872 = vadd.f32 %v783, %v871
        %873 = vmatmul.bf16.gmra.mxu0 %v608
        %v874 = vpop.f32.mrf.mxu0
        %v875 = vadd.f32 %v786, %v874
        %v876 = vpop.f32.mrf.mxu0
        %v877 = vadd.f32 %v788, %v876
        %878 = vmatmul.bf16.gmra.mxu0 %v610
        %v879 = vpop.f32.mrf.mxu0
        %v880 = vadd.f32 %v791, %v879
        %v881 = vpop.f32.mrf.mxu0
        %v882 = vadd.f32 %v793, %v881
        %883 = vmatmul.bf16.gmra.mxu0 %v612
        %v884 = vpop.f32.mrf.mxu0
        %v885 = vadd.f32 %v796, %v884
        %v886 = vpop.f32.mrf.mxu0
        %v887 = vadd.f32 %v798, %v886
        %888 = vmatmul.bf16.gmra.mxu0 %v614
        %v889 = vpop.f32.mrf.mxu0
        %v890 = vadd.f32 %v801, %v889
        %v891 = vpop.f32.mrf.mxu0
        %v892 = vadd.f32 %v803, %v891
        %893 = vmatmul.bf16.gmra.mxu0 %v616
        %v894 = vpop.f32.mrf.mxu0
        %v895 = vadd.f32 %v806, %v894
        %v896 = vpop.f32.mrf.mxu0
        %v897 = vadd.f32 %v808, %v896
        %898 = vmatmul.bf16.gmra.mxu0 %v618
        %v899 = vpop.f32.mrf.mxu0
        %v900 = vadd.f32 %v811, %v899
        %v901 = vpop.f32.mrf.mxu0
        %v902 = vadd.f32 %v813, %v901
        %903 = vmatmul.bf16.gmra.mxu0 %v620
        %v904 = vpop.f32.mrf.mxu0
        %v905 = vadd.f32 %v816, %v904
        %v906 = vpop.f32.mrf.mxu0
        %v907 = vadd.f32 %v818, %v906
        %908 = vmatmul.bf16.gmra.mxu0 %v622
        %v909 = vpop.f32.mrf.mxu0
        %v910 = vadd.f32 %v821, %v909
        %v911 = vpop.f32.mrf.mxu0
        %v912 = vadd.f32 %v823, %v911
        %913 = vmatmul.bf16.gmra.mxu0 %v624
        %v914 = vpop.f32.mrf.mxu0
        %v915 = vadd.f32 %v826, %v914
        %v916 = vpop.f32.mrf.mxu0
        %v917 = vadd.f32 %v828, %v916
        %918 = vmatmul.bf16.gmra.mxu0 %v626
        %v919 = vpop.f32.mrf.mxu0
        %v920 = vadd.f32 %v831, %v919
        %v921 = vpop.f32.mrf.mxu0
        %v922 = vadd.f32 %v833, %v921
        %923 = vmatmul.bf16.gmra.mxu0 %v628
        %v924 = vpop.f32.mrf.mxu0
        %v925 = vadd.f32 %v836, %v924
        %v926 = vpop.f32.mrf.mxu0
        %v927 = vadd.f32 %v838, %v926
        %928 = vmatmul.bf16.gmra.mxu0 %v630
        %v929 = vpop.f32.mrf.mxu0
        %v930 = vadd.f32 %v841, %v929
        %v931 = vpop.f32.mrf.mxu0
        %v932 = vadd.f32 %v843, %v931
        %933 = vmatmul.bf16.gmra.mxu0 %v632
        %v934 = vpop.f32.mrf.mxu0
        %v935 = vadd.f32 %v846, %v934
        %v936 = vpop.f32.mrf.mxu0
        %v937 = vadd.f32 %v848, %v936
        %938 = vdwg.mxu0
        %v939 = vadd.f32 %v409, %v860
        %v940 = vadd.f32 %v410, %v862
        %v941 = vadd.f32 %v411, %v865
        %v942 = vadd.f32 %v412, %v867
        %v943 = vadd.f32 %v413, %v870
        %v944 = vadd.f32 %v414, %v872
        %v945 = vadd.f32 %v415, %v875
        %v946 = vadd.f32 %v416, %v877
        %v947 = vadd.f32 %v417, %v880
        %v948 = vadd.f32 %v418, %v882
        %v949 = vadd.f32 %v419, %v885
        %v950 = vadd.f32 %v420, %v887
        %v951 = vadd.f32 %v421, %v890
        %v952 = vadd.f32 %v422, %v892
        %v953 = vadd.f32 %v423, %v895
        %v954 = vadd.f32 %v424, %v897
        %v955 = vadd.f32 %v425, %v900
        %v956 = vadd.f32 %v426, %v902
        %v957 = vadd.f32 %v427, %v905
        %v958 = vadd.f32 %v428, %v907
        %v959 = vadd.f32 %v429, %v910
        %v960 = vadd.f32 %v430, %v912
        %v961 = vadd.f32 %v431, %v915
        %v962 = vadd.f32 %v432, %v917
        %v963 = vadd.f32 %v433, %v920
        %v964 = vadd.f32 %v434, %v922
        %v965 = vadd.f32 %v435, %v925
        %v966 = vadd.f32 %v436, %v927
        %v967 = vadd.f32 %v437, %v930
        %v968 = vadd.f32 %v438, %v932
        %v969 = vadd.f32 %v439, %v935
        %v970 = vadd.f32 %v440, %v937
        %971 = vst [vmem:[#allocation2] sm:$0xff] %v939
        %972 = vst [vmem:[#allocation2 + $0x8] sm:$0xff] %v940
        %973 = vst [vmem:[#allocation2 + $0x10] sm:$0xff] %v941
        %974 = vst [vmem:[#allocation2 + $0x18] sm:$0xff] %v942
        %975 = vst [vmem:[#allocation2 + $0x20] sm:$0xff] %v943
        %976 = vst [vmem:[#allocation2 + $0x28] sm:$0xff] %v944
        %977 = vst [vmem:[#allocation2 + $0x30] sm:$0xff] %v945
        %978 = vst [vmem:[#allocation2 + $0x38] sm:$0xff] %v946
        %979 = vst [vmem:[#allocation2 + $0x40] sm:$0xff] %v947
        %980 = vst [vmem:[#allocation2 + $0x48] sm:$0xff] %v948
        %981 = vst [vmem:[#allocation2 + $0x50] sm:$0xff] %v949
        %982 = vst [vmem:[#allocation2 + $0x58] sm:$0xff] %v950
        %983 = vst [vmem:[#allocation2 + $0x60] sm:$0xff] %v951
        %984 = vst [vmem:[#allocation2 + $0x68] sm:$0xff] %v952
        %985 = vst [vmem:[#allocation2 + $0x70] sm:$0xff] %v953
        %986 = vst [vmem:[#allocation2 + $0x78] sm:$0xff] %v954
        %987 = vst [vmem:[#allocation2 + $0x80] sm:$0xff] %v955
        %988 = vst [vmem:[#allocation2 + $0x88] sm:$0xff] %v956
        %989 = vst [vmem:[#allocation2 + $0x90] sm:$0xff] %v957
        %990 = vst [vmem:[#allocation2 + $0x98] sm:$0xff] %v958
        %991 = vst [vmem:[#allocation2 + $0xa0] sm:$0xff] %v959
        %992 = vst [vmem:[#allocation2 + $0xa8] sm:$0xff] %v960
        %993 = vst [vmem:[#allocation2 + $0xb0] sm:$0xff] %v961
        %994 = vst [vmem:[#allocation2 + $0xb8] sm:$0xff] %v962
        %995 = vst [vmem:[#allocation2 + $0xc0] sm:$0xff] %v963
        %996 = vst [vmem:[#allocation2 + $0xc8] sm:$0xff] %v964
        %997 = vst [vmem:[#allocation2 + $0xd0] sm:$0xff] %v965
        %998 = vst [vmem:[#allocation2 + $0xd8] sm:$0xff] %v966
        %999 = vst [vmem:[#allocation2 + $0xe0] sm:$0xff] %v967
        %1000 = vst [vmem:[#allocation2 + $0xe8] sm:$0xff] %v968
        %1001 = vst [vmem:[#allocation2 + $0xf0] sm:$0xff] %v969
        %1002 = vst [vmem:[#allocation2 + $0xf8] sm:$0xff] %v970
        %p1003 = scmp.eq.s32.totalorder %s19, 1
        // Predicated region
        $region75: #{_lambda_.20} parent=65 // pred_check
          %p1004 = pneg %p1003
        $region76: #{_lambda_.20} parent=65 // pred_check_branch
          %1006 = sbr.rel (%p1004) target = $region78
        $region77: #{_lambda_.20} parent=65 // pred_region
          %v1007 = vld [vmem:[#allocation2] sm:$0xff]
          %v1008 = vld [vmem:[#allocation2 + $0x8] sm:$0xff]
          %v1009 = vld [vmem:[#allocation2 + $0x10] sm:$0xff]
          %v1010 = vld [vmem:[#allocation2 + $0x18] sm:$0xff]
          %v1011 = vld [vmem:[#allocation2 + $0x20] sm:$0xff]
          %v1012 = vld [vmem:[#allocation2 + $0x28] sm:$0xff]
          %v1013 = vld [vmem:[#allocation2 + $0x30] sm:$0xff]
          %v1014 = vld [vmem:[#allocation2 + $0x38] sm:$0xff]
          %v1015 = vld [vmem:[#allocation2 + $0x40] sm:$0xff]
          %v1016 = vld [vmem:[#allocation2 + $0x48] sm:$0xff]
          %v1017 = vld [vmem:[#allocation2 + $0x50] sm:$0xff]
          %v1018 = vld [vmem:[#allocation2 + $0x58] sm:$0xff]
          %v1019 = vld [vmem:[#allocation2 + $0x60] sm:$0xff]
          %v1020 = vld [vmem:[#allocation2 + $0x68] sm:$0xff]
          %v1021 = vld [vmem:[#allocation2 + $0x70] sm:$0xff]
          %v1022 = vld [vmem:[#allocation2 + $0x78] sm:$0xff]
          %v1023 = vld [vmem:[#allocation2 + $0x80] sm:$0xff]
          %v1024 = vld [vmem:[#allocation2 + $0x88] sm:$0xff]
          %v1025 = vld [vmem:[#allocation2 + $0x90] sm:$0xff]
          %v1026 = vld [vmem:[#allocation2 + $0x98] sm:$0xff]
          %v1027 = vld [vmem:[#allocation2 + $0xa0] sm:$0xff]
          %v1028 = vld [vmem:[#allocation2 + $0xa8] sm:$0xff]
          %v1029 = vld [vmem:[#allocation2 + $0xb0] sm:$0xff]
          %v1030 = vld [vmem:[#allocation2 + $0xb8] sm:$0xff]
          %v1031 = vld [vmem:[#allocation2 + $0xc0] sm:$0xff]
          %v1032 = vld [vmem:[#allocation2 + $0xc8] sm:$0xff]
          %v1033 = vld [vmem:[#allocation2 + $0xd0] sm:$0xff]
          %v1034 = vld [vmem:[#allocation2 + $0xd8] sm:$0xff]
          %v1035 = vld [vmem:[#allocation2 + $0xe0] sm:$0xff]
          %v1036 = vld [vmem:[#allocation2 + $0xe8] sm:$0xff]
          %v1037 = vld [vmem:[#allocation2 + $0xf0] sm:$0xff]
          %v1038 = vld [vmem:[#allocation2 + $0xf8] sm:$0xff]
          %v1039 = vld [vmem:[%s2] sm:$0x1]
          %v1041 = vperm.slane %v1039, 0
          %v1043 = vadd.f32 %v1007, %v1041
          %v1044 = vadd.f32 %v1008, %v1041
          %v1045 = vadd.f32 %v1009, %v1041
          %v1046 = vadd.f32 %v1010, %v1041
          %v1047 = vadd.f32 %v1011, %v1041
          %v1048 = vadd.f32 %v1012, %v1041
          %v1049 = vadd.f32 %v1013, %v1041
          %v1050 = vadd.f32 %v1014, %v1041
          %v1051 = vadd.f32 %v1015, %v1041
          %v1052 = vadd.f32 %v1016, %v1041
          %v1053 = vadd.f32 %v1017, %v1041
          %v1054 = vadd.f32 %v1018, %v1041
          %v1055 = vadd.f32 %v1019, %v1041
          %v1056 = vadd.f32 %v1020, %v1041
          %v1057 = vadd.f32 %v1021, %v1041
          %v1058 = vadd.f32 %v1022, %v1041
          %v1059 = vadd.f32 %v1023, %v1041
          %v1060 = vadd.f32 %v1024, %v1041
          %v1061 = vadd.f32 %v1025, %v1041
          %v1062 = vadd.f32 %v1026, %v1041
          %v1063 = vadd.f32 %v1027, %v1041
          %v1064 = vadd.f32 %v1028, %v1041
          %v1065 = vadd.f32 %v1029, %v1041
          %v1066 = vadd.f32 %v1030, %v1041
          %v1067 = vadd.f32 %v1031, %v1041
          %v1068 = vadd.f32 %v1032, %v1041
          %v1069 = vadd.f32 %v1033, %v1041
          %v1070 = vadd.f32 %v1034, %v1041
          %v1071 = vadd.f32 %v1035, %v1041
          %v1072 = vadd.f32 %v1036, %v1041
          %v1073 = vadd.f32 %v1037, %v1041
          %v1074 = vadd.f32 %v1038, %v1041
          %v1075 = vxor.u32 %v1043, 2147483648
          %v1076 = vxor.u32 %v1044, 2147483648
          %v1077 = vxor.u32 %v1045, 2147483648
          %v1078 = vxor.u32 %v1046, 2147483648
          %v1079 = vxor.u32 %v1047, 2147483648
          %v1080 = vxor.u32 %v1048, 2147483648
          %v1081 = vxor.u32 %v1049, 2147483648
          %v1082 = vxor.u32 %v1050, 2147483648
          %v1083 = vxor.u32 %v1051, 2147483648
          %v1084 = vxor.u32 %v1052, 2147483648
          %v1085 = vxor.u32 %v1053, 2147483648
          %v1086 = vxor.u32 %v1054, 2147483648
          %v1087 = vxor.u32 %v1055, 2147483648
          %v1088 = vxor.u32 %v1056, 2147483648
          %v1089 = vxor.u32 %v1057, 2147483648
          %v1090 = vxor.u32 %v1058, 2147483648
          %v1091 = vxor.u32 %v1059, 2147483648
          %v1092 = vxor.u32 %v1060, 2147483648
          %v1093 = vxor.u32 %v1061, 2147483648
          %v1094 = vxor.u32 %v1062, 2147483648
          %v1095 = vxor.u32 %v1063, 2147483648
          %v1096 = vxor.u32 %v1064, 2147483648
          %v1097 = vxor.u32 %v1065, 2147483648
          %v1098 = vxor.u32 %v1066, 2147483648
          %v1099 = vxor.u32 %v1067, 2147483648
          %v1100 = vxor.u32 %v1068, 2147483648
          %v1101 = vxor.u32 %v1069, 2147483648
          %v1102 = vxor.u32 %v1070, 2147483648
          %v1103 = vxor.u32 %v1071, 2147483648
          %v1104 = vxor.u32 %v1072, 2147483648
          %v1105 = vxor.u32 %v1073, 2147483648
          %v1106 = vxor.u32 %v1074, 2147483648
          %v1107 = vmul.f32 %v1075, 1.442695
          %v1108 = vpow.pop %v1107
          %v1109 = vmul.f32 %v1076, 1.442695
          %v1110 = vpow.pop %v1109
          %v1111 = vmul.f32 %v1077, 1.442695
          %v1112 = vpow.pop %v1111
          %v1113 = vmul.f32 %v1078, 1.442695
          %v1114 = vpow.pop %v1113
          %v1115 = vmul.f32 %v1079, 1.442695
          %v1116 = vpow.pop %v1115
          %v1117 = vmul.f32 %v1080, 1.442695
          %v1118 = vpow.pop %v1117
          %v1119 = vmul.f32 %v1081, 1.442695
          %v1120 = vpow.pop %v1119
          %v1121 = vmul.f32 %v1082, 1.442695
          %v1122 = vpow.pop %v1121
          %v1123 = vmul.f32 %v1083, 1.442695
          %v1124 = vpow.pop %v1123
          %v1125 = vmul.f32 %v1084, 1.442695
          %v1126 = vpow.pop %v1125
          %v1127 = vmul.f32 %v1085, 1.442695
          %v1128 = vpow.pop %v1127
          %v1129 = vmul.f32 %v1086, 1.442695
          %v1130 = vpow.pop %v1129
          %v1131 = vmul.f32 %v1087, 1.442695
          %v1132 = vpow.pop %v1131
          %v1133 = vmul.f32 %v1088, 1.442695
          %v1134 = vpow.pop %v1133
          %v1135 = vmul.f32 %v1089, 1.442695
          %v1136 = vpow.pop %v1135
          %v1137 = vmul.f32 %v1090, 1.442695
          %v1138 = vpow.pop %v1137
          %v1139 = vmul.f32 %v1091, 1.442695
          %v1140 = vpow.pop %v1139
          %v1141 = vmul.f32 %v1092, 1.442695
          %v1142 = vpow.pop %v1141
          %v1143 = vmul.f32 %v1093, 1.442695
          %v1144 = vpow.pop %v1143
          %v1145 = vmul.f32 %v1094, 1.442695
          %v1146 = vpow.pop %v1145
          %v1147 = vmul.f32 %v1095, 1.442695
          %v1148 = vpow.pop %v1147
          %v1149 = vmul.f32 %v1096, 1.442695
          %v1150 = vpow.pop %v1149
          %v1151 = vmul.f32 %v1097, 1.442695
          %v1152 = vpow.pop %v1151
          %v1153 = vmul.f32 %v1098, 1.442695
          %v1154 = vpow.pop %v1153
          %v1155 = vmul.f32 %v1099, 1.442695
          %v1156 = vpow.pop %v1155
          %v1157 = vmul.f32 %v1100, 1.442695
          %v1158 = vpow.pop %v1157
          %v1159 = vmul.f32 %v1101, 1.442695
          %v1160 = vpow.pop %v1159
          %v1161 = vmul.f32 %v1102, 1.442695
          %v1162 = vpow.pop %v1161
          %v1163 = vmul.f32 %v1103, 1.442695
          %v1164 = vpow.pop %v1163
          %v1165 = vmul.f32 %v1104, 1.442695
          %v1166 = vpow.pop %v1165
          %v1167 = vmul.f32 %v1105, 1.442695
          %v1168 = vpow.pop %v1167
          %v1169 = vmul.f32 %v1106, 1.442695
          %v1170 = vpow.pop %v1169
          %v1171 = vadd.f32 %v1108, 1.0
          %v1172 = vadd.f32 %v1110, 1.0
          %v1173 = vadd.f32 %v1112, 1.0
          %v1174 = vadd.f32 %v1114, 1.0
          %v1175 = vadd.f32 %v1116, 1.0
          %v1176 = vadd.f32 %v1118, 1.0
          %v1177 = vadd.f32 %v1120, 1.0
          %v1178 = vadd.f32 %v1122, 1.0
          %v1179 = vadd.f32 %v1124, 1.0
          %v1180 = vadd.f32 %v1126, 1.0
          %v1181 = vadd.f32 %v1128, 1.0
          %v1182 = vadd.f32 %v1130, 1.0
          %v1183 = vadd.f32 %v1132, 1.0
          %v1184 = vadd.f32 %v1134, 1.0
          %v1185 = vadd.f32 %v1136, 1.0
          %v1186 = vadd.f32 %v1138, 1.0
          %v1187 = vadd.f32 %v1140, 1.0
          %v1188 = vadd.f32 %v1142, 1.0
          %v1189 = vadd.f32 %v1144, 1.0
          %v1190 = vadd.f32 %v1146, 1.0
          %v1191 = vadd.f32 %v1148, 1.0
          %v1192 = vadd.f32 %v1150, 1.0
          %v1193 = vadd.f32 %v1152, 1.0
          %v1194 = vadd.f32 %v1154, 1.0
          %v1195 = vadd.f32 %v1156, 1.0
          %v1196 = vadd.f32 %v1158, 1.0
          %v1197 = vadd.f32 %v1160, 1.0
          %v1198 = vadd.f32 %v1162, 1.0
          %v1199 = vadd.f32 %v1164, 1.0
          %v1200 = vadd.f32 %v1166, 1.0
          %v1201 = vadd.f32 %v1168, 1.0
          %v1202 = vadd.f32 %v1170, 1.0
          %v1203 = vrcp.pop %v1171
          %v1204 = vmul.f32 %v1171, %v1203
          %v1205 = vsub.f32 1.0, %v1204
          %v1206 = vmul.f32 %v1203, %v1205
          %v1207 = vadd.f32 %v1203, %v1206
          %vm1208 = vweird.f32 %v1171
          %vm1209 = vweird.f32 %v1203
          %vm1210 = vmor %vm1208, %vm1209
          %v1211 = vsel %vm1210, %v1203, %v1207
          %v1212 = vand.u32 2147483647, %v1171
          %vm1213 = vcmp.eq.f32.partialorder %v1212, 8.507059e+37
          %v1214 = vand.u32 %v1171, 2147483648
          %v1215 = vor.u32 1.1754944e-38, %v1214
          %v1216 = vsel %vm1213, %v1215, %v1211
          %v1217 = vmul.f32 1.0, %v1216
          %v1218 = vrcp.pop %v1172
          %v1219 = vmul.f32 %v1172, %v1218
          %v1220 = vsub.f32 1.0, %v1219
          %v1221 = vmul.f32 %v1218, %v1220
          %v1222 = vadd.f32 %v1218, %v1221
          %vm1223 = vweird.f32 %v1172
          %vm1224 = vweird.f32 %v1218
          %vm1225 = vmor %vm1223, %vm1224
          %v1226 = vsel %vm1225, %v1218, %v1222
          %v1227 = vand.u32 2147483647, %v1172
          %vm1228 = vcmp.eq.f32.partialorder %v1227, 8.507059e+37
          %v1229 = vand.u32 %v1172, 2147483648
          %v1230 = vor.u32 1.1754944e-38, %v1229
          %v1231 = vsel %vm1228, %v1230, %v1226
          %v1232 = vmul.f32 1.0, %v1231
          %v1233 = vrcp.pop %v1173
          %v1234 = vmul.f32 %v1173, %v1233
          %v1235 = vsub.f32 1.0, %v1234
          %v1236 = vmul.f32 %v1233, %v1235
          %v1237 = vadd.f32 %v1233, %v1236
          %vm1238 = vweird.f32 %v1173
          %vm1239 = vweird.f32 %v1233
          %vm1240 = vmor %vm1238, %vm1239
          %v1241 = vsel %vm1240, %v1233, %v1237
          %v1242 = vand.u32 2147483647, %v1173
          %vm1243 = vcmp.eq.f32.partialorder %v1242, 8.507059e+37
          %v1244 = vand.u32 %v1173, 2147483648
          %v1245 = vor.u32 1.1754944e-38, %v1244
          %v1246 = vsel %vm1243, %v1245, %v1241
          %v1247 = vmul.f32 1.0, %v1246
          %v1248 = vrcp.pop %v1174
          %v1249 = vmul.f32 %v1174, %v1248
          %v1250 = vsub.f32 1.0, %v1249
          %v1251 = vmul.f32 %v1248, %v1250
          %v1252 = vadd.f32 %v1248, %v1251
          %vm1253 = vweird.f32 %v1174
          %vm1254 = vweird.f32 %v1248
          %vm1255 = vmor %vm1253, %vm1254
          %v1256 = vsel %vm1255, %v1248, %v1252
          %v1257 = vand.u32 2147483647, %v1174
          %vm1258 = vcmp.eq.f32.partialorder %v1257, 8.507059e+37
          %v1259 = vand.u32 %v1174, 2147483648
          %v1260 = vor.u32 1.1754944e-38, %v1259
          %v1261 = vsel %vm1258, %v1260, %v1256
          %v1262 = vmul.f32 1.0, %v1261
          %v1263 = vrcp.pop %v1175
          %v1264 = vmul.f32 %v1175, %v1263
          %v1265 = vsub.f32 1.0, %v1264
          %v1266 = vmul.f32 %v1263, %v1265
          %v1267 = vadd.f32 %v1263, %v1266
          %vm1268 = vweird.f32 %v1175
          %vm1269 = vweird.f32 %v1263
          %vm1270 = vmor %vm1268, %vm1269
          %v1271 = vsel %vm1270, %v1263, %v1267
          %v1272 = vand.u32 2147483647, %v1175
          %vm1273 = vcmp.eq.f32.partialorder %v1272, 8.507059e+37
          %v1274 = vand.u32 %v1175, 2147483648
          %v1275 = vor.u32 1.1754944e-38, %v1274
          %v1276 = vsel %vm1273, %v1275, %v1271
          %v1277 = vmul.f32 1.0, %v1276
          %v1278 = vrcp.pop %v1176
          %v1279 = vmul.f32 %v1176, %v1278
          %v1280 = vsub.f32 1.0, %v1279
          %v1281 = vmul.f32 %v1278, %v1280
          %v1282 = vadd.f32 %v1278, %v1281
          %vm1283 = vweird.f32 %v1176
          %vm1284 = vweird.f32 %v1278
          %vm1285 = vmor %vm1283, %vm1284
          %v1286 = vsel %vm1285, %v1278, %v1282
          %v1287 = vand.u32 2147483647, %v1176
          %vm1288 = vcmp.eq.f32.partialorder %v1287, 8.507059e+37
          %v1289 = vand.u32 %v1176, 2147483648
          %v1290 = vor.u32 1.1754944e-38, %v1289
          %v1291 = vsel %vm1288, %v1290, %v1286
          %v1292 = vmul.f32 1.0, %v1291
          %v1293 = vrcp.pop %v1177
          %v1294 = vmul.f32 %v1177, %v1293
          %v1295 = vsub.f32 1.0, %v1294
          %v1296 = vmul.f32 %v1293, %v1295
          %v1297 = vadd.f32 %v1293, %v1296
          %vm1298 = vweird.f32 %v1177
          %vm1299 = vweird.f32 %v1293
          %vm1300 = vmor %vm1298, %vm1299
          %v1301 = vsel %vm1300, %v1293, %v1297
          %v1302 = vand.u32 2147483647, %v1177
          %vm1303 = vcmp.eq.f32.partialorder %v1302, 8.507059e+37
          %v1304 = vand.u32 %v1177, 2147483648
          %v1305 = vor.u32 1.1754944e-38, %v1304
          %v1306 = vsel %vm1303, %v1305, %v1301
          %v1307 = vmul.f32 1.0, %v1306
          %v1308 = vrcp.pop %v1178
          %v1309 = vmul.f32 %v1178, %v1308
          %v1310 = vsub.f32 1.0, %v1309
          %v1311 = vmul.f32 %v1308, %v1310
          %v1312 = vadd.f32 %v1308, %v1311
          %vm1313 = vweird.f32 %v1178
          %vm1314 = vweird.f32 %v1308
          %vm1315 = vmor %vm1313, %vm1314
          %v1316 = vsel %vm1315, %v1308, %v1312
          %v1317 = vand.u32 2147483647, %v1178
          %vm1318 = vcmp.eq.f32.partialorder %v1317, 8.507059e+37
          %v1319 = vand.u32 %v1178, 2147483648
          %v1320 = vor.u32 1.1754944e-38, %v1319
          %v1321 = vsel %vm1318, %v1320, %v1316
          %v1322 = vmul.f32 1.0, %v1321
          %v1323 = vrcp.pop %v1179
          %v1324 = vmul.f32 %v1179, %v1323
          %v1325 = vsub.f32 1.0, %v1324
          %v1326 = vmul.f32 %v1323, %v1325
          %v1327 = vadd.f32 %v1323, %v1326
          %vm1328 = vweird.f32 %v1179
          %vm1329 = vweird.f32 %v1323
          %vm1330 = vmor %vm1328, %vm1329
          %v1331 = vsel %vm1330, %v1323, %v1327
          %v1332 = vand.u32 2147483647, %v1179
          %vm1333 = vcmp.eq.f32.partialorder %v1332, 8.507059e+37
          %v1334 = vand.u32 %v1179, 2147483648
          %v1335 = vor.u32 1.1754944e-38, %v1334
          %v1336 = vsel %vm1333, %v1335, %v1331
          %v1337 = vmul.f32 1.0, %v1336
          %v1338 = vrcp.pop %v1180
          %v1339 = vmul.f32 %v1180, %v1338
          %v1340 = vsub.f32 1.0, %v1339
          %v1341 = vmul.f32 %v1338, %v1340
          %v1342 = vadd.f32 %v1338, %v1341
          %vm1343 = vweird.f32 %v1180
          %vm1344 = vweird.f32 %v1338
          %vm1345 = vmor %vm1343, %vm1344
          %v1346 = vsel %vm1345, %v1338, %v1342
          %v1347 = vand.u32 2147483647, %v1180
          %vm1348 = vcmp.eq.f32.partialorder %v1347, 8.507059e+37
          %v1349 = vand.u32 %v1180, 2147483648
          %v1350 = vor.u32 1.1754944e-38, %v1349
          %v1351 = vsel %vm1348, %v1350, %v1346
          %v1352 = vmul.f32 1.0, %v1351
          %v1353 = vrcp.pop %v1181
          %v1354 = vmul.f32 %v1181, %v1353
          %v1355 = vsub.f32 1.0, %v1354
          %v1356 = vmul.f32 %v1353, %v1355
          %v1357 = vadd.f32 %v1353, %v1356
          %vm1358 = vweird.f32 %v1181
          %vm1359 = vweird.f32 %v1353
          %vm1360 = vmor %vm1358, %vm1359
          %v1361 = vsel %vm1360, %v1353, %v1357
          %v1362 = vand.u32 2147483647, %v1181
          %vm1363 = vcmp.eq.f32.partialorder %v1362, 8.507059e+37
          %v1364 = vand.u32 %v1181, 2147483648
          %v1365 = vor.u32 1.1754944e-38, %v1364
          %v1366 = vsel %vm1363, %v1365, %v1361
          %v1367 = vmul.f32 1.0, %v1366
          %v1368 = vrcp.pop %v1182
          %v1369 = vmul.f32 %v1182, %v1368
          %v1370 = vsub.f32 1.0, %v1369
          %v1371 = vmul.f32 %v1368, %v1370
          %v1372 = vadd.f32 %v1368, %v1371
          %vm1373 = vweird.f32 %v1182
          %vm1374 = vweird.f32 %v1368
          %vm1375 = vmor %vm1373, %vm1374
          %v1376 = vsel %vm1375, %v1368, %v1372
          %v1377 = vand.u32 2147483647, %v1182
          %vm1378 = vcmp.eq.f32.partialorder %v1377, 8.507059e+37
          %v1379 = vand.u32 %v1182, 2147483648
          %v1380 = vor.u32 1.1754944e-38, %v1379
          %v1381 = vsel %vm1378, %v1380, %v1376
          %v1382 = vmul.f32 1.0, %v1381
          %v1383 = vrcp.pop %v1183
          %v1384 = vmul.f32 %v1183, %v1383
          %v1385 = vsub.f32 1.0, %v1384
          %v1386 = vmul.f32 %v1383, %v1385
          %v1387 = vadd.f32 %v1383, %v1386
          %vm1388 = vweird.f32 %v1183
          %vm1389 = vweird.f32 %v1383
          %vm1390 = vmor %vm1388, %vm1389
          %v1391 = vsel %vm1390, %v1383, %v1387
          %v1392 = vand.u32 2147483647, %v1183
          %vm1393 = vcmp.eq.f32.partialorder %v1392, 8.507059e+37
          %v1394 = vand.u32 %v1183, 2147483648
          %v1395 = vor.u32 1.1754944e-38, %v1394
          %v1396 = vsel %vm1393, %v1395, %v1391
          %v1397 = vmul.f32 1.0, %v1396
          %v1398 = vrcp.pop %v1184
          %v1399 = vmul.f32 %v1184, %v1398
          %v1400 = vsub.f32 1.0, %v1399
          %v1401 = vmul.f32 %v1398, %v1400
          %v1402 = vadd.f32 %v1398, %v1401
          %vm1403 = vweird.f32 %v1184
          %vm1404 = vweird.f32 %v1398
          %vm1405 = vmor %vm1403, %vm1404
          %v1406 = vsel %vm1405, %v1398, %v1402
          %v1407 = vand.u32 2147483647, %v1184
          %vm1408 = vcmp.eq.f32.partialorder %v1407, 8.507059e+37
          %v1409 = vand.u32 %v1184, 2147483648
          %v1410 = vor.u32 1.1754944e-38, %v1409
          %v1411 = vsel %vm1408, %v1410, %v1406
          %v1412 = vmul.f32 1.0, %v1411
          %v1413 = vrcp.pop %v1185
          %v1414 = vmul.f32 %v1185, %v1413
          %v1415 = vsub.f32 1.0, %v1414
          %v1416 = vmul.f32 %v1413, %v1415
          %v1417 = vadd.f32 %v1413, %v1416
          %vm1418 = vweird.f32 %v1185
          %vm1419 = vweird.f32 %v1413
          %vm1420 = vmor %vm1418, %vm1419
          %v1421 = vsel %vm1420, %v1413, %v1417
          %v1422 = vand.u32 2147483647, %v1185
          %vm1423 = vcmp.eq.f32.partialorder %v1422, 8.507059e+37
          %v1424 = vand.u32 %v1185, 2147483648
          %v1425 = vor.u32 1.1754944e-38, %v1424
          %v1426 = vsel %vm1423, %v1425, %v1421
          %v1427 = vmul.f32 1.0, %v1426
          %v1428 = vrcp.pop %v1186
          %v1429 = vmul.f32 %v1186, %v1428
          %v1430 = vsub.f32 1.0, %v1429
          %v1431 = vmul.f32 %v1428, %v1430
          %v1432 = vadd.f32 %v1428, %v1431
          %vm1433 = vweird.f32 %v1186
          %vm1434 = vweird.f32 %v1428
          %vm1435 = vmor %vm1433, %vm1434
          %v1436 = vsel %vm1435, %v1428, %v1432
          %v1437 = vand.u32 2147483647, %v1186
          %vm1438 = vcmp.eq.f32.partialorder %v1437, 8.507059e+37
          %v1439 = vand.u32 %v1186, 2147483648
          %v1440 = vor.u32 1.1754944e-38, %v1439
          %v1441 = vsel %vm1438, %v1440, %v1436
          %v1442 = vmul.f32 1.0, %v1441
          %v1443 = vrcp.pop %v1187
          %v1444 = vmul.f32 %v1187, %v1443
          %v1445 = vsub.f32 1.0, %v1444
          %v1446 = vmul.f32 %v1443, %v1445
          %v1447 = vadd.f32 %v1443, %v1446
          %vm1448 = vweird.f32 %v1187
          %vm1449 = vweird.f32 %v1443
          %vm1450 = vmor %vm1448, %vm1449
          %v1451 = vsel %vm1450, %v1443, %v1447
          %v1452 = vand.u32 2147483647, %v1187
          %vm1453 = vcmp.eq.f32.partialorder %v1452, 8.507059e+37
          %v1454 = vand.u32 %v1187, 2147483648
          %v1455 = vor.u32 1.1754944e-38, %v1454
          %v1456 = vsel %vm1453, %v1455, %v1451
          %v1457 = vmul.f32 1.0, %v1456
          %v1458 = vrcp.pop %v1188
          %v1459 = vmul.f32 %v1188, %v1458
          %v1460 = vsub.f32 1.0, %v1459
          %v1461 = vmul.f32 %v1458, %v1460
          %v1462 = vadd.f32 %v1458, %v1461
          %vm1463 = vweird.f32 %v1188
          %vm1464 = vweird.f32 %v1458
          %vm1465 = vmor %vm1463, %vm1464
          %v1466 = vsel %vm1465, %v1458, %v1462
          %v1467 = vand.u32 2147483647, %v1188
          %vm1468 = vcmp.eq.f32.partialorder %v1467, 8.507059e+37
          %v1469 = vand.u32 %v1188, 2147483648
          %v1470 = vor.u32 1.1754944e-38, %v1469
          %v1471 = vsel %vm1468, %v1470, %v1466
          %v1472 = vmul.f32 1.0, %v1471
          %v1473 = vrcp.pop %v1189
          %v1474 = vmul.f32 %v1189, %v1473
          %v1475 = vsub.f32 1.0, %v1474
          %v1476 = vmul.f32 %v1473, %v1475
          %v1477 = vadd.f32 %v1473, %v1476
          %vm1478 = vweird.f32 %v1189
          %vm1479 = vweird.f32 %v1473
          %vm1480 = vmor %vm1478, %vm1479
          %v1481 = vsel %vm1480, %v1473, %v1477
          %v1482 = vand.u32 2147483647, %v1189
          %vm1483 = vcmp.eq.f32.partialorder %v1482, 8.507059e+37
          %v1484 = vand.u32 %v1189, 2147483648
          %v1485 = vor.u32 1.1754944e-38, %v1484
          %v1486 = vsel %vm1483, %v1485, %v1481
          %v1487 = vmul.f32 1.0, %v1486
          %v1488 = vrcp.pop %v1190
          %v1489 = vmul.f32 %v1190, %v1488
          %v1490 = vsub.f32 1.0, %v1489
          %v1491 = vmul.f32 %v1488, %v1490
          %v1492 = vadd.f32 %v1488, %v1491
          %vm1493 = vweird.f32 %v1190
          %vm1494 = vweird.f32 %v1488
          %vm1495 = vmor %vm1493, %vm1494
          %v1496 = vsel %vm1495, %v1488, %v1492
          %v1497 = vand.u32 2147483647, %v1190
          %vm1498 = vcmp.eq.f32.partialorder %v1497, 8.507059e+37
          %v1499 = vand.u32 %v1190, 2147483648
          %v1500 = vor.u32 1.1754944e-38, %v1499
          %v1501 = vsel %vm1498, %v1500, %v1496
          %v1502 = vmul.f32 1.0, %v1501
          %v1503 = vrcp.pop %v1191
          %v1504 = vmul.f32 %v1191, %v1503
          %v1505 = vsub.f32 1.0, %v1504
          %v1506 = vmul.f32 %v1503, %v1505
          %v1507 = vadd.f32 %v1503, %v1506
          %vm1508 = vweird.f32 %v1191
          %vm1509 = vweird.f32 %v1503
          %vm1510 = vmor %vm1508, %vm1509
          %v1511 = vsel %vm1510, %v1503, %v1507
          %v1512 = vand.u32 2147483647, %v1191
          %vm1513 = vcmp.eq.f32.partialorder %v1512, 8.507059e+37
          %v1514 = vand.u32 %v1191, 2147483648
          %v1515 = vor.u32 1.1754944e-38, %v1514
          %v1516 = vsel %vm1513, %v1515, %v1511
          %v1517 = vmul.f32 1.0, %v1516
          %v1518 = vrcp.pop %v1192
          %v1519 = vmul.f32 %v1192, %v1518
          %v1520 = vsub.f32 1.0, %v1519
          %v1521 = vmul.f32 %v1518, %v1520
          %v1522 = vadd.f32 %v1518, %v1521
          %vm1523 = vweird.f32 %v1192
          %vm1524 = vweird.f32 %v1518
          %vm1525 = vmor %vm1523, %vm1524
          %v1526 = vsel %vm1525, %v1518, %v1522
          %v1527 = vand.u32 2147483647, %v1192
          %vm1528 = vcmp.eq.f32.partialorder %v1527, 8.507059e+37
          %v1529 = vand.u32 %v1192, 2147483648
          %v1530 = vor.u32 1.1754944e-38, %v1529
          %v1531 = vsel %vm1528, %v1530, %v1526
          %v1532 = vmul.f32 1.0, %v1531
          %v1533 = vrcp.pop %v1193
          %v1534 = vmul.f32 %v1193, %v1533
          %v1535 = vsub.f32 1.0, %v1534
          %v1536 = vmul.f32 %v1533, %v1535
          %v1537 = vadd.f32 %v1533, %v1536
          %vm1538 = vweird.f32 %v1193
          %vm1539 = vweird.f32 %v1533
          %vm1540 = vmor %vm1538, %vm1539
          %v1541 = vsel %vm1540, %v1533, %v1537
          %v1542 = vand.u32 2147483647, %v1193
          %vm1543 = vcmp.eq.f32.partialorder %v1542, 8.507059e+37
          %v1544 = vand.u32 %v1193, 2147483648
          %v1545 = vor.u32 1.1754944e-38, %v1544
          %v1546 = vsel %vm1543, %v1545, %v1541
          %v1547 = vmul.f32 1.0, %v1546
          %v1548 = vrcp.pop %v1194
          %v1549 = vmul.f32 %v1194, %v1548
          %v1550 = vsub.f32 1.0, %v1549
          %v1551 = vmul.f32 %v1548, %v1550
          %v1552 = vadd.f32 %v1548, %v1551
          %vm1553 = vweird.f32 %v1194
          %vm1554 = vweird.f32 %v1548
          %vm1555 = vmor %vm1553, %vm1554
          %v1556 = vsel %vm1555, %v1548, %v1552
          %v1557 = vand.u32 2147483647, %v1194
          %vm1558 = vcmp.eq.f32.partialorder %v1557, 8.507059e+37
          %v1559 = vand.u32 %v1194, 2147483648
          %v1560 = vor.u32 1.1754944e-38, %v1559
          %v1561 = vsel %vm1558, %v1560, %v1556
          %v1562 = vmul.f32 1.0, %v1561
          %v1563 = vrcp.pop %v1195
          %v1564 = vmul.f32 %v1195, %v1563
          %v1565 = vsub.f32 1.0, %v1564
          %v1566 = vmul.f32 %v1563, %v1565
          %v1567 = vadd.f32 %v1563, %v1566
          %vm1568 = vweird.f32 %v1195
          %vm1569 = vweird.f32 %v1563
          %vm1570 = vmor %vm1568, %vm1569
          %v1571 = vsel %vm1570, %v1563, %v1567
          %v1572 = vand.u32 2147483647, %v1195
          %vm1573 = vcmp.eq.f32.partialorder %v1572, 8.507059e+37
          %v1574 = vand.u32 %v1195, 2147483648
          %v1575 = vor.u32 1.1754944e-38, %v1574
          %v1576 = vsel %vm1573, %v1575, %v1571
          %v1577 = vmul.f32 1.0, %v1576
          %v1578 = vrcp.pop %v1196
          %v1579 = vmul.f32 %v1196, %v1578
          %v1580 = vsub.f32 1.0, %v1579
          %v1581 = vmul.f32 %v1578, %v1580
          %v1582 = vadd.f32 %v1578, %v1581
          %vm1583 = vweird.f32 %v1196
          %vm1584 = vweird.f32 %v1578
          %vm1585 = vmor %vm1583, %vm1584
          %v1586 = vsel %vm1585, %v1578, %v1582
          %v1587 = vand.u32 2147483647, %v1196
          %vm1588 = vcmp.eq.f32.partialorder %v1587, 8.507059e+37
          %v1589 = vand.u32 %v1196, 2147483648
          %v1590 = vor.u32 1.1754944e-38, %v1589
          %v1591 = vsel %vm1588, %v1590, %v1586
          %v1592 = vmul.f32 1.0, %v1591
          %v1593 = vrcp.pop %v1197
          %v1594 = vmul.f32 %v1197, %v1593
          %v1595 = vsub.f32 1.0, %v1594
          %v1596 = vmul.f32 %v1593, %v1595
          %v1597 = vadd.f32 %v1593, %v1596
          %vm1598 = vweird.f32 %v1197
          %vm1599 = vweird.f32 %v1593
          %vm1600 = vmor %vm1598, %vm1599
          %v1601 = vsel %vm1600, %v1593, %v1597
          %v1602 = vand.u32 2147483647, %v1197
          %vm1603 = vcmp.eq.f32.partialorder %v1602, 8.507059e+37
          %v1604 = vand.u32 %v1197, 2147483648
          %v1605 = vor.u32 1.1754944e-38, %v1604
          %v1606 = vsel %vm1603, %v1605, %v1601
          %v1607 = vmul.f32 1.0, %v1606
          %v1608 = vrcp.pop %v1198
          %v1609 = vmul.f32 %v1198, %v1608
          %v1610 = vsub.f32 1.0, %v1609
          %v1611 = vmul.f32 %v1608, %v1610
          %v1612 = vadd.f32 %v1608, %v1611
          %vm1613 = vweird.f32 %v1198
          %vm1614 = vweird.f32 %v1608
          %vm1615 = vmor %vm1613, %vm1614
          %v1616 = vsel %vm1615, %v1608, %v1612
          %v1617 = vand.u32 2147483647, %v1198
          %vm1618 = vcmp.eq.f32.partialorder %v1617, 8.507059e+37
          %v1619 = vand.u32 %v1198, 2147483648
          %v1620 = vor.u32 1.1754944e-38, %v1619
          %v1621 = vsel %vm1618, %v1620, %v1616
          %v1622 = vmul.f32 1.0, %v1621
          %v1623 = vrcp.pop %v1199
          %v1624 = vmul.f32 %v1199, %v1623
          %v1625 = vsub.f32 1.0, %v1624
          %v1626 = vmul.f32 %v1623, %v1625
          %v1627 = vadd.f32 %v1623, %v1626
          %vm1628 = vweird.f32 %v1199
          %vm1629 = vweird.f32 %v1623
          %vm1630 = vmor %vm1628, %vm1629
          %v1631 = vsel %vm1630, %v1623, %v1627
          %v1632 = vand.u32 2147483647, %v1199
          %vm1633 = vcmp.eq.f32.partialorder %v1632, 8.507059e+37
          %v1634 = vand.u32 %v1199, 2147483648
          %v1635 = vor.u32 1.1754944e-38, %v1634
          %v1636 = vsel %vm1633, %v1635, %v1631
          %v1637 = vmul.f32 1.0, %v1636
          %v1638 = vrcp.pop %v1200
          %v1639 = vmul.f32 %v1200, %v1638
          %v1640 = vsub.f32 1.0, %v1639
          %v1641 = vmul.f32 %v1638, %v1640
          %v1642 = vadd.f32 %v1638, %v1641
          %vm1643 = vweird.f32 %v1200
          %vm1644 = vweird.f32 %v1638
          %vm1645 = vmor %vm1643, %vm1644
          %v1646 = vsel %vm1645, %v1638, %v1642
          %v1647 = vand.u32 2147483647, %v1200
          %vm1648 = vcmp.eq.f32.partialorder %v1647, 8.507059e+37
          %v1649 = vand.u32 %v1200, 2147483648
          %v1650 = vor.u32 1.1754944e-38, %v1649
          %v1651 = vsel %vm1648, %v1650, %v1646
          %v1652 = vmul.f32 1.0, %v1651
          %v1653 = vrcp.pop %v1201
          %v1654 = vmul.f32 %v1201, %v1653
          %v1655 = vsub.f32 1.0, %v1654
          %v1656 = vmul.f32 %v1653, %v1655
          %v1657 = vadd.f32 %v1653, %v1656
          %vm1658 = vweird.f32 %v1201
          %vm1659 = vweird.f32 %v1653
          %vm1660 = vmor %vm1658, %vm1659
          %v1661 = vsel %vm1660, %v1653, %v1657
          %v1662 = vand.u32 2147483647, %v1201
          %vm1663 = vcmp.eq.f32.partialorder %v1662, 8.507059e+37
          %v1664 = vand.u32 %v1201, 2147483648
          %v1665 = vor.u32 1.1754944e-38, %v1664
          %v1666 = vsel %vm1663, %v1665, %v1661
          %v1667 = vmul.f32 1.0, %v1666
          %v1668 = vrcp.pop %v1202
          %v1669 = vmul.f32 %v1202, %v1668
          %v1670 = vsub.f32 1.0, %v1669
          %v1671 = vmul.f32 %v1668, %v1670
          %v1672 = vadd.f32 %v1668, %v1671
          %vm1673 = vweird.f32 %v1202
          %vm1674 = vweird.f32 %v1668
          %vm1675 = vmor %vm1673, %vm1674
          %v1676 = vsel %vm1675, %v1668, %v1672
          %v1677 = vand.u32 2147483647, %v1202
          %vm1678 = vcmp.eq.f32.partialorder %v1677, 8.507059e+37
          %v1679 = vand.u32 %v1202, 2147483648
          %v1680 = vor.u32 1.1754944e-38, %v1679
          %v1681 = vsel %vm1678, %v1680, %v1676
          %v1682 = vmul.f32 1.0, %v1681
          %v1683 = vmul.f32 %v1043, %v1217
          %v1684 = vmul.f32 %v1044, %v1232
          %v1685 = vmul.f32 %v1045, %v1247
          %v1686 = vmul.f32 %v1046, %v1262
          %v1687 = vmul.f32 %v1047, %v1277
          %v1688 = vmul.f32 %v1048, %v1292
          %v1689 = vmul.f32 %v1049, %v1307
          %v1690 = vmul.f32 %v1050, %v1322
          %v1691 = vmul.f32 %v1051, %v1337
          %v1692 = vmul.f32 %v1052, %v1352
          %v1693 = vmul.f32 %v1053, %v1367
          %v1694 = vmul.f32 %v1054, %v1382
          %v1695 = vmul.f32 %v1055, %v1397
          %v1696 = vmul.f32 %v1056, %v1412
          %v1697 = vmul.f32 %v1057, %v1427
          %v1698 = vmul.f32 %v1058, %v1442
          %v1699 = vmul.f32 %v1059, %v1457
          %v1700 = vmul.f32 %v1060, %v1472
          %v1701 = vmul.f32 %v1061, %v1487
          %v1702 = vmul.f32 %v1062, %v1502
          %v1703 = vmul.f32 %v1063, %v1517
          %v1704 = vmul.f32 %v1064, %v1532
          %v1705 = vmul.f32 %v1065, %v1547
          %v1706 = vmul.f32 %v1066, %v1562
          %v1707 = vmul.f32 %v1067, %v1577
          %v1708 = vmul.f32 %v1068, %v1592
          %v1709 = vmul.f32 %v1069, %v1607
          %v1710 = vmul.f32 %v1070, %v1622
          %v1711 = vmul.f32 %v1071, %v1637
          %v1712 = vmul.f32 %v1072, %v1652
          %v1713 = vmul.f32 %v1073, %v1667
          %v1714 = vmul.f32 %v1074, %v1682
          %1715 = vst [vmem:[%s371] sm:$0xff] %v1683
          %1716 = vst [vmem:[%s371 + $0x8] sm:$0xff] %v1684
          %1717 = vst [vmem:[%s371 + $0x10] sm:$0xff] %v1685
          %1718 = vst [vmem:[%s371 + $0x18] sm:$0xff] %v1686
          %1719 = vst [vmem:[%s371 + $0x20] sm:$0xff] %v1687
          %1720 = vst [vmem:[%s371 + $0x28] sm:$0xff] %v1688
          %1721 = vst [vmem:[%s371 + $0x30] sm:$0xff] %v1689
          %1722 = vst [vmem:[%s371 + $0x38] sm:$0xff] %v1690
          %1723 = vst [vmem:[%s371 + $0x40] sm:$0xff] %v1691
          %1724 = vst [vmem:[%s371 + $0x48] sm:$0xff] %v1692
          %1725 = vst [vmem:[%s371 + $0x50] sm:$0xff] %v1693
          %1726 = vst [vmem:[%s371 + $0x58] sm:$0xff] %v1694
          %1727 = vst [vmem:[%s371 + $0x60] sm:$0xff] %v1695
          %1728 = vst [vmem:[%s371 + $0x68] sm:$0xff] %v1696
          %1729 = vst [vmem:[%s371 + $0x70] sm:$0xff] %v1697
          %1730 = vst [vmem:[%s371 + $0x78] sm:$0xff] %v1698
          %1731 = vst [vmem:[%s371 + $0x80] sm:$0xff] %v1699
          %1732 = vst [vmem:[%s371 + $0x88] sm:$0xff] %v1700
          %1733 = vst [vmem:[%s371 + $0x90] sm:$0xff] %v1701
          %1734 = vst [vmem:[%s371 + $0x98] sm:$0xff] %v1702
          %1735 = vst [vmem:[%s371 + $0xa0] sm:$0xff] %v1703
          %1736 = vst [vmem:[%s371 + $0xa8] sm:$0xff] %v1704
          %1737 = vst [vmem:[%s371 + $0xb0] sm:$0xff] %v1705
          %1738 = vst [vmem:[%s371 + $0xb8] sm:$0xff] %v1706
          %1739 = vst [vmem:[%s371 + $0xc0] sm:$0xff] %v1707
          %1740 = vst [vmem:[%s371 + $0xc8] sm:$0xff] %v1708
          %1741 = vst [vmem:[%s371 + $0xd0] sm:$0xff] %v1709
          %1742 = vst [vmem:[%s371 + $0xd8] sm:$0xff] %v1710
          %1743 = vst [vmem:[%s371 + $0xe0] sm:$0xff] %v1711
          %1744 = vst [vmem:[%s371 + $0xe8] sm:$0xff] %v1712
          %1745 = vst [vmem:[%s371 + $0xf0] sm:$0xff] %v1713
          %1746 = vst [vmem:[%s371 + $0xf8] sm:$0xff] %v1714
        $region78: #{_lambda_.20} parent=65 // pred_fallthru
          _
        %s1747 = smul.u32 32, %s18
        %p1748 = scmp.lt.s32.totalorder %s1747, 63
        %s1749 = scalar_select %p1748, %s1747, 63
        %s1750 = smul.addr %s1749, 8
        %s1751 = scalar_lea.vmem %s3, %s1750
        // Predicated region
        $region79: #{_lambda_.20} parent=65 // pred_check
          %p1752 = pneg %p119
        $region80: #{_lambda_.20} parent=65 // pred_check_branch
          %1754 = sbr.rel (%p1752) target = $region82
        $region81: #{_lambda_.20} parent=65 // pred_region
          %s1755 = smul.u32 32, %s18
        $region82: #{_lambda_.20} parent=65 // pred_fallthru
          _
      $region66: #{_lambda_.20} parent=5 // pred_fallthru
        _
      %p1756 = scmp.le.s32.totalorder 2, %s9
      // Predicated region
      $region83: #{_lambda_.20} parent=5 // pred_check
        %p1757 = pneg %p1756
      $region84: #{_lambda_.20} parent=5 // pred_check_branch
        %1759 = sbr.rel (%p1757) target = $region86
      $region85: #{_lambda_.20} parent=5 // pred_region
        %s1760 = ssub.s32 %s9, 2
        // Predicated region
        $region87: #{_lambda_.20} parent=85 // pred_check
          %p1761 = pneg %p125
        $region88: #{_lambda_.20} parent=85 // pred_check_branch
          %1763 = sbr.rel (%p1761) target = $region90
        $region89: #{_lambda_.20} parent=85 // pred_region
          %s1764 = smul.u32 32, %s20
          %p1765 = scmp.lt.s32.totalorder %s1764, 63
          %s1766 = scalar_select %p1765, %s1764, 63
          %s1767 = smul.addr %s1766, 8
          %s1768 = scalar_lea.vmem %s3, %s1767
        $region90: #{_lambda_.20} parent=85 // pred_fallthru
          _
      $region86: #{_lambda_.20} parent=5 // pred_fallthru
        _
    $region6: #{_lambda_.20} parent=1 // loop_footer
      %s13 = sadd.s32 1, %s9
    $region7: #{_lambda_.20} parent=1 // loop_footer_branch
      %8 = sbr.rel target = $region3
    $region8: #{_lambda_.20} parent=1 // loop_exit
      _

// kernel: _lambda_.21
$region0: #{_lambda_.21}
  #allocation0 [shape = 'u32[]', space=smem, size = 0x4, offset = 0x4, fixed_abs, tag = 'smem constant byte address 0x4 - core index']
  #allocation1 [shape = 'u32[72,128]{1,0:T(1,128)}', space=vmem, size = 0x9000, scoped, tag = 'internal scratch']
  #allocation2 [shape = 'f32[256,128]{1,0:T(8,128)}', space=vmem, size = 0x20000, scoped, tag = 'scratch operand']
  %s0 = inlined_call_operand.vmem [shape: bf16[512,512], index: 0, kind: input, shape index: {}]
  %s1 = inlined_call_operand.vmem [shape: bf16[512,128], index: 1, kind: input, shape index: {}]
  %s2 = inlined_call_operand.vmem [shape: f32[1,128], index: 2, kind: input, shape index: {}]
  %s3 = inlined_call_operand.vmem [shape: f32[512,128], index: 3, kind: output, shape index: {}]
  %s4 = sld [smem:[#allocation0]]
  $region91: #{_lambda_.21} parent=0
    _
  %s6 = ssub.s32 1, %s4
  %s7 = scalar_select 0, %s6, %s4
  $region1: #{_lambda_.21} parent=0
    #allocation3 [shape = 'u8[262144]{0}', space=vmem, size = 0x40000, scoped, tag = 'input window, operand 0']
    loop: start=0, step=1, limit=6
    $region2: #{_lambda_.21} parent=1 // loop_pre_header
      _
    $region3: #{_lambda_.21} parent=1 // loop_header
      %s9 = sphi 0, %s13
      %p10 = scmp.ge.s32.totalorder %s9, 6
      %s16 = sphi 0, %s28
      %s17 = sphi 0, %s24
      %s18 = sphi 0, %s16
      %s19 = sphi 0, %s17
      %s20 = sphi 0, %s18
      %s21 = sphi 0, %s19
      %s33 = sphi 0, %s35
      %s36 = sphi 0, %s33
      %s37 = sphi 0, %s36
      %s53 = sphi 0, %s37
      %s59 = sphi 0, %s61
      %s62 = sphi 0, %s59
      %s63 = sphi 0, %s62
      %s79 = sphi 0, %s63
      %s83 = sphi 0, %s83
      %s85 = sphi 0, %s83
      %s86 = sphi 0, %s85
      %s100 = sphi 0, %s86
      %s106 = sphi 0, %s108
      %s109 = sphi 0, %s106
      %s110 = sphi 0, %s109
      %s126 = sphi 0, %s110
    $region4: #{_lambda_.21} parent=1 // loop_header_branch
      %12 = sbr.rel (%p10) target = $region8
    $region5: #{_lambda_.21} parent=1 // loop_body
      %s14 = ssub.s32 %s9, 1
      %s15 = ssub.s32 %s9, 2
      %s22 = sadd.s32 1, %s17
      %p23 = scmp.ge.s32.totalorder %s22, 2
      %s24 = scalar_select %p23, 0, %s22
      %s25 = sadd.s32 1, %s16
      %s26 = scalar_select %p23, %s25, %s16
      %p27 = scmp.ge.s32.totalorder %s26, 2
      %s28 = scalar_select %p27, 0, %s26
      %s29 = ssub.s32 %s16, %s28
      %s30 = ssub.s32 %s17, %s24
      %s31 = sor.u32 %s29, %s30
      %p32 = scmp.eq.s32.totalorder %s31, 0
      %s34 = sadd.s32 %s33, 1
      %s35 = scalar_select %p32, %s33, %s34
      %p38 = pneg %p32
      %p39 = scmp.eq.s32.totalorder %s9, 3
      %p40 = por %p38, %p39
      %p41 = scmp.ne.s32.totalorder %s33, %s36
      %p42 = scmp.eq.s32.totalorder %s9, 0
      %p43 = por %p41, %p42
      %p44 = scmp.ne.s32.totalorder %s33, %s36
      %p45 = scmp.eq.s32.totalorder %s14, 3
      %p46 = por %p44, %p45
      %p47 = scmp.ne.s32.totalorder %s36, %s37
      %p48 = scmp.eq.s32.totalorder %s14, 0
      %p49 = por %p47, %p48
      %p50 = scmp.ne.s32.totalorder %s36, %s37
      %p51 = scmp.eq.s32.totalorder %s15, 3
      %p52 = por %p50, %p51
      %p54 = scmp.ne.s32.totalorder %s37, %s53
      %p55 = scmp.eq.s32.totalorder %s15, 0
      %p56 = por %p54, %p55
      %s57 = ssub.s32 %s17, %s24
      %p58 = scmp.eq.s32.totalorder %s57, 0
      %s60 = sadd.s32 %s59, 1
      %s61 = scalar_select %p58, %s59, %s60
      %p64 = pneg %p58
      %p65 = scmp.eq.s32.totalorder %s9, 3
      %p66 = por %p64, %p65
      %p67 = scmp.ne.s32.totalorder %s59, %s62
      %p68 = scmp.eq.s32.totalorder %s9, 0
      %p69 = por %p67, %p68
      %p70 = scmp.ne.s32.totalorder %s59, %s62
      %p71 = scmp.eq.s32.totalorder %s14, 3
      %p72 = por %p70, %p71
      %p73 = scmp.ne.s32.totalorder %s62, %s63
      %p74 = scmp.eq.s32.totalorder %s14, 0
      %p75 = por %p73, %p74
      %p76 = scmp.ne.s32.totalorder %s62, %s63
      %p77 = scmp.eq.s32.totalorder %s15, 3
      %p78 = por %p76, %p77
      %p80 = scmp.ne.s32.totalorder %s63, %s79
      %p81 = scmp.eq.s32.totalorder %s15, 0
      %p82 = por %p80, %p81
      %s84 = sadd.s32 %s83, 1
      %p87 = scmp.eq.s32.totalorder %s9, 3
      %p88 = scmp.ne.s32.totalorder %s83, %s85
      %p89 = scmp.eq.s32.totalorder %s9, 0
      %p90 = por %p88, %p89
      %p91 = scmp.ne.s32.totalorder %s83, %s85
      %p92 = scmp.eq.s32.totalorder %s14, 3
      %p93 = por %p91, %p92
      %p94 = scmp.ne.s32.totalorder %s85, %s86
      %p95 = scmp.eq.s32.totalorder %s14, 0
      %p96 = por %p94, %p95
      %p97 = scmp.ne.s32.totalorder %s85, %s86
      %p98 = scmp.eq.s32.totalorder %s15, 3
      %p99 = por %p97, %p98
      %p101 = scmp.ne.s32.totalorder %s86, %s100
      %p102 = scmp.eq.s32.totalorder %s15, 0
      %p103 = por %p101, %p102
      %s104 = ssub.s32 %s16, %s28
      %p105 = scmp.eq.s32.totalorder %s104, 0
      %s107 = sadd.s32 %s106, 1
      %s108 = scalar_select %p105, %s106, %s107
      %p111 = pneg %p105
      %p112 = scmp.eq.s32.totalorder %s9, 3
      %p113 = por %p111, %p112
      %p114 = scmp.ne.s32.totalorder %s106, %s109
      %p115 = scmp.eq.s32.totalorder %s9, 0
      %p116 = por %p114, %p115
      %p117 = scmp.ne.s32.totalorder %s106, %s109
      %p118 = scmp.eq.s32.totalorder %s14, 3
      %p119 = por %p117, %p118
      %p120 = scmp.ne.s32.totalorder %s109, %s110
      %p121 = scmp.eq.s32.totalorder %s14, 0
      %p122 = por %p120, %p121
      %p123 = scmp.ne.s32.totalorder %s109, %s110
      %p124 = scmp.eq.s32.totalorder %s15, 3
      %p125 = por %p123, %p124
      %p127 = scmp.ne.s32.totalorder %s110, %s126
      %p128 = scmp.eq.s32.totalorder %s15, 0
      %p129 = por %p127, %p128
      %p130 = scmp.le.s32.totalorder 1, %s9
      %p131 = scmp.lt.s32.totalorder %s9, 5
      %p132 = pnand %p130, %p131
      %p133 = pneg %p132
      // Predicated region
      $region9: #{_lambda_.21} parent=5 // pred_check
        _
      $region10: #{_lambda_.21} parent=5 // pred_check_branch
        %135 = sbr.rel (%p132) target = $region12
      $region11: #{_lambda_.21} parent=5 // pred_region
        %s136 = ssub.s32 %s9, 1
        // Predicated region
        $region13: #{_lambda_.21} parent=11 // pred_check
          %p137 = pneg %p96
        $region14: #{_lambda_.21} parent=11 // pred_check_branch
          %139 = sbr.rel (%p137) target = $region16
        $region15: #{_lambda_.21} parent=11 // pred_region
          _
        $region16: #{_lambda_.21} parent=11 // pred_fallthru
          _
      $region12: #{_lambda_.21} parent=5 // pred_fallthru
        _
      %p140 = scmp.lt.s32.totalorder %s9, 4
      // Predicated region
      $region17: #{_lambda_.21} parent=5 // pred_check
        %p141 = pneg %p140
      $region18: #{_lambda_.21} parent=5 // pred_check_branch
        %143 = sbr.rel (%p141) target = $region20
      $region19: #{_lambda_.21} parent=5 // pred_region
        // Predicated region
        $region21: #{_lambda_.21} parent=19 // pred_check
          %p144 = pneg %p43
        $region22: #{_lambda_.21} parent=19 // pred_check_branch
          %146 = sbr.rel (%p144) target = $region24
        $region23: #{_lambda_.21} parent=19 // pred_region
          %s147 = sand.u32 %s33, 1
          %s148 = sand.u32 %s33, 1
          %s149 = smul.addr %s148, 256
          %s150 = scalar_lea.vmem [#allocation3], %s149
          %s151 = smul.u32 32, %s16
          %s152 = smul.u32 2, %s17
          %s153 = smul.addr %s151, 4
          %s154 = sadd.s32 %s152, %s153
          %s155 = smul.addr %s154, 4
          %s156 = scalar_lea.vmem %s0, %s155
          // Predicated region
          $region25: #{_lambda_.21} parent=23 // pred_check
            _
          $region26: #{_lambda_.21} parent=23 // pred_check_branch
            %158 = sbr.rel (0) target = $region28
          $region27: #{_lambda_.21} parent=23 // pred_region
            // Predicated region
            $region29: #{_lambda_.21} parent=27 // pred_check
              _
            $region30: #{_lambda_.21} parent=27 // pred_check_branch
              %160 = sbr.rel (0) target = $region32
            $region31: #{_lambda_.21} parent=27 // pred_region
              // Predicated region
              $region44: #{_lambda_.21} parent=31 // pred_check
                _
              $region45: #{_lambda_.21} parent=31 // pred_check_branch
                %238 = sbr.rel (0) target = $region47
              $region46: #{_lambda_.21} parent=31 // pred_region
                loop: start=0, step=1, limit=1
                $region48: #{_lambda_.21} parent=46 // loop_pre_header
                  _
                $region49: #{_lambda_.21} parent=46 // loop_header
                  %s240 = sphi 0, %s244
                  %p241 = scmp.ge.s32.totalorder %s240, 1
                  %s245 = sphi %s156, %s156
                  %s246 = sphi %s150, %s150
                $region50: #{_lambda_.21} parent=46 // loop_header_branch
                  %243 = sbr.rel (%p241) target = $region54
                $region51: #{_lambda_.21} parent=46 // loop_body
                  %v247 = vld [vmem:[%s245] sm:$0xff]
                  %248 = vst [vmem:[%s246] sm:$0xff] %v247
                  %v249 = vld [vmem:[%s245 + $0x10] sm:$0xff]
                  %250 = vst [vmem:[%s246 + $0x8] sm:$0xff] %v249
                  %v251 = vld [vmem:[%s245 + $0x20] sm:$0xff]
                  %252 = vst [vmem:[%s246 + $0x10] sm:$0xff] %v251
                  %v253 = vld [vmem:[%s245 + $0x30] sm:$0xff]
                  %254 = vst [vmem:[%s246 + $0x18] sm:$0xff] %v253
                  %v255 = vld [vmem:[%s245 + $0x40] sm:$0xff]
                  %256 = vst [vmem:[%s246 + $0x20] sm:$0xff] %v255
                  %v257 = vld [vmem:[%s245 + $0x50] sm:$0xff]
                  %258 = vst [vmem:[%s246 + $0x28] sm:$0xff] %v257
                  %v259 = vld [vmem:[%s245 + $0x60] sm:$0xff]
                  %260 = vst [vmem:[%s246 + $0x30] sm:$0xff] %v259
                  %v261 = vld [vmem:[%s245 + $0x70] sm:$0xff]
                  %262 = vst [vmem:[%s246 + $0x38] sm:$0xff] %v261
                  %v263 = vld [vmem:[%s245 + $0x80] sm:$0xff]
                  %264 = vst [vmem:[%s246 + $0x40] sm:$0xff] %v263
                  %v265 = vld [vmem:[%s245 + $0x90] sm:$0xff]
                  %266 = vst [vmem:[%s246 + $0x48] sm:$0xff] %v265
                  %v267 = vld [vmem:[%s245 + $0xa0] sm:$0xff]
                  %268 = vst [vmem:[%s246 + $0x50] sm:$0xff] %v267
                  %v269 = vld [vmem:[%s245 + $0xb0] sm:$0xff]
                  %270 = vst [vmem:[%s246 + $0x58] sm:$0xff] %v269
                  %v271 = vld [vmem:[%s245 + $0xc0] sm:$0xff]
                  %272 = vst [vmem:[%s246 + $0x60] sm:$0xff] %v271
                  %v273 = vld [vmem:[%s245 + $0xd0] sm:$0xff]
                  %274 = vst [vmem:[%s246 + $0x68] sm:$0xff] %v273
                  %v275 = vld [vmem:[%s245 + $0xe0] sm:$0xff]
                  %276 = vst [vmem:[%s246 + $0x70] sm:$0xff] %v275
                  %v277 = vld [vmem:[%s245 + $0xf0] sm:$0xff]
                  %278 = vst [vmem:[%s246 + $0x78] sm:$0xff] %v277
                  %v279 = vld [vmem:[%s245 + $0x100] sm:$0xff]
                  %280 = vst [vmem:[%s246 + $0x80] sm:$0xff] %v279
                  %v281 = vld [vmem:[%s245 + $0x110] sm:$0xff]
                  %282 = vst [vmem:[%s246 + $0x88] sm:$0xff] %v281
                  %v283 = vld [vmem:[%s245 + $0x120] sm:$0xff]
                  %284 = vst [vmem:[%s246 + $0x90] sm:$0xff] %v283
                  %v285 = vld [vmem:[%s245 + $0x130] sm:$0xff]
                  %286 = vst [vmem:[%s246 + $0x98] sm:$0xff] %v285
                  %v287 = vld [vmem:[%s245 + $0x140] sm:$0xff]
                  %288 = vst [vmem:[%s246 + $0xa0] sm:$0xff] %v287
                  %v289 = vld [vmem:[%s245 + $0x150] sm:$0xff]
                  %290 = vst [vmem:[%s246 + $0xa8] sm:$0xff] %v289
                  %v291 = vld [vmem:[%s245 + $0x160] sm:$0xff]
                  %292 = vst [vmem:[%s246 + $0xb0] sm:$0xff] %v291
                  %v293 = vld [vmem:[%s245 + $0x170] sm:$0xff]
                  %294 = vst [vmem:[%s246 + $0xb8] sm:$0xff] %v293
                  %v295 = vld [vmem:[%s245 + $0x180] sm:$0xff]
                  %296 = vst [vmem:[%s246 + $0xc0] sm:$0xff] %v295
                  %v297 = vld [vmem:[%s245 + $0x190] sm:$0xff]
                  %298 = vst [vmem:[%s246 + $0xc8] sm:$0xff] %v297
                  %v299 = vld [vmem:[%s245 + $0x1a0] sm:$0xff]
                  %300 = vst [vmem:[%s246 + $0xd0] sm:$0xff] %v299
                  %v301 = vld [vmem:[%s245 + $0x1b0] sm:$0xff]
                  %302 = vst [vmem:[%s246 + $0xd8] sm:$0xff] %v301
                  %v303 = vld [vmem:[%s245 + $0x1c0] sm:$0xff]
                  %304 = vst [vmem:[%s246 + $0xe0] sm:$0xff] %v303
                  %v305 = vld [vmem:[%s245 + $0x1d0] sm:$0xff]
                  %306 = vst [vmem:[%s246 + $0xe8] sm:$0xff] %v305
                  %v307 = vld [vmem:[%s245 + $0x1e0] sm:$0xff]
                  %308 = vst [vmem:[%s246 + $0xf0] sm:$0xff] %v307
                  %v309 = vld [vmem:[%s245 + $0x1f0] sm:$0xff]
                  %310 = vst [vmem:[%s246 + $0xf8] sm:$0xff] %v309
                $region52: #{_lambda_.21} parent=46 // loop_footer
                  %s244 = sadd.s32 1, %s240
                $region53: #{_lambda_.21} parent=46 // loop_footer_branch
                  %239 = sbr.rel target = $region49
                $region54: #{_lambda_.21} parent=46 // loop_exit
                  _
              $region47: #{_lambda_.21} parent=31 // pred_fallthru
                _
              // Predicated region
              $region55: #{_lambda_.21} parent=31 // pred_check
                _
              $region56: #{_lambda_.21} parent=31 // pred_check_branch
                %312 = sbr.rel target = $region58
              $region57: #{_lambda_.21} parent=31 // pred_region
                _
              $region58: #{_lambda_.21} parent=31 // pred_fallthru
                _
            $region32: #{_lambda_.21} parent=27 // pred_fallthru
              _
            // Predicated region
            $region33: #{_lambda_.21} parent=27 // pred_check
              _
            $region34: #{_lambda_.21} parent=27 // pred_check_branch
              %162 = sbr.rel target = $region36
            $region35: #{_lambda_.21} parent=27 // pred_region
              %s164 = ssub.s32 256, 1
              loop: start=0, step=1, limit=1
              $region37: #{_lambda_.21} parent=35 // loop_pre_header
                _
              $region38: #{_lambda_.21} parent=35 // loop_header
                %s166 = sphi 0, %s170
                %p167 = scmp.ge.s32.totalorder %s166, 1
                %s171 = sphi %s156, %s156
                %s172 = sphi %s150, %s150
              $region39: #{_lambda_.21} parent=35 // loop_header_branch
                %169 = sbr.rel (%p167) target = $region43
              $region40: #{_lambda_.21} parent=35 // loop_body
                %v173 = vld [vmem:[%s171] sm:%s164]
                %174 = vst [vmem:[%s172] sm:%s164] %v173
                %v175 = vld [vmem:[%s171 + $0x10] sm:%s164]
                %176 = vst [vmem:[%s172 + $0x8] sm:%s164] %v175
                %v177 = vld [vmem:[%s171 + $0x20] sm:%s164]
                %178 = vst [vmem:[%s172 + $0x10] sm:%s164] %v177
                %v179 = vld [vmem:[%s171 + $0x30] sm:%s164]
                %180 = vst [vmem:[%s172 + $0x18] sm:%s164] %v179
                %v181 = vld [vmem:[%s171 + $0x40] sm:%s164]
                %182 = vst [vmem:[%s172 + $0x20] sm:%s164] %v181
                %v183 = vld [vmem:[%s171 + $0x50] sm:%s164]
                %184 = vst [vmem:[%s172 + $0x28] sm:%s164] %v183
                %v185 = vld [vmem:[%s171 + $0x60] sm:%s164]
                %186 = vst [vmem:[%s172 + $0x30] sm:%s164] %v185
                %v187 = vld [vmem:[%s171 + $0x70] sm:%s164]
                %188 = vst [vmem:[%s172 + $0x38] sm:%s164] %v187
                %v189 = vld [vmem:[%s171 + $0x80] sm:%s164]
                %190 = vst [vmem:[%s172 + $0x40] sm:%s164] %v189
                %v191 = vld [vmem:[%s171 + $0x90] sm:%s164]
                %192 = vst [vmem:[%s172 + $0x48] sm:%s164] %v191
                %v193 = vld [vmem:[%s171 + $0xa0] sm:%s164]
                %194 = vst [vmem:[%s172 + $0x50] sm:%s164] %v193
                %v195 = vld [vmem:[%s171 + $0xb0] sm:%s164]
                %196 = vst [vmem:[%s172 + $0x58] sm:%s164] %v195
                %v197 = vld [vmem:[%s171 + $0xc0] sm:%s164]
                %198 = vst [vmem:[%s172 + $0x60] sm:%s164] %v197
                %v199 = vld [vmem:[%s171 + $0xd0] sm:%s164]
                %200 = vst [vmem:[%s172 + $0x68] sm:%s164] %v199
                %v201 = vld [vmem:[%s171 + $0xe0] sm:%s164]
                %202 = vst [vmem:[%s172 + $0x70] sm:%s164] %v201
                %v203 = vld [vmem:[%s171 + $0xf0] sm:%s164]
                %204 = vst [vmem:[%s172 + $0x78] sm:%s164] %v203
                %v205 = vld [vmem:[%s171 + $0x100] sm:%s164]
                %206 = vst [vmem:[%s172 + $0x80] sm:%s164] %v205
                %v207 = vld [vmem:[%s171 + $0x110] sm:%s164]
                %208 = vst [vmem:[%s172 + $0x88] sm:%s164] %v207
                %v209 = vld [vmem:[%s171 + $0x120] sm:%s164]
                %210 = vst [vmem:[%s172 + $0x90] sm:%s164] %v209
                %v211 = vld [vmem:[%s171 + $0x130] sm:%s164]
                %212 = vst [vmem:[%s172 + $0x98] sm:%s164] %v211
                %v213 = vld [vmem:[%s171 + $0x140] sm:%s164]
                %214 = vst [vmem:[%s172 + $0xa0] sm:%s164] %v213
                %v215 = vld [vmem:[%s171 + $0x150] sm:%s164]
                %216 = vst [vmem:[%s172 + $0xa8] sm:%s164] %v215
                %v217 = vld [vmem:[%s171 + $0x160] sm:%s164]
                %218 = vst [vmem:[%s172 + $0xb0] sm:%s164] %v217
                %v219 = vld [vmem:[%s171 + $0x170] sm:%s164]
                %220 = vst [vmem:[%s172 + $0xb8] sm:%s164] %v219
                %v221 = vld [vmem:[%s171 + $0x180] sm:%s164]
                %222 = vst [vmem:[%s172 + $0xc0] sm:%s164] %v221
                %v223 = vld [vmem:[%s171 + $0x190] sm:%s164]
                %224 = vst [vmem:[%s172 + $0xc8] sm:%s164] %v223
                %v225 = vld [vmem:[%s171 + $0x1a0] sm:%s164]
                %226 = vst [vmem:[%s172 + $0xd0] sm:%s164] %v225
                %v227 = vld [vmem:[%s171 + $0x1b0] sm:%s164]
                %228 = vst [vmem:[%s172 + $0xd8] sm:%s164] %v227
                %v229 = vld [vmem:[%s171 + $0x1c0] sm:%s164]
                %230 = vst [vmem:[%s172 + $0xe0] sm:%s164] %v229
                %v231 = vld [vmem:[%s171 + $0x1d0] sm:%s164]
                %232 = vst [vmem:[%s172 + $0xe8] sm:%s164] %v231
                %v233 = vld [vmem:[%s171 + $0x1e0] sm:%s164]
                %234 = vst [vmem:[%s172 + $0xf0] sm:%s164] %v233
                %v235 = vld [vmem:[%s171 + $0x1f0] sm:%s164]
                %236 = vst [vmem:[%s172 + $0xf8] sm:%s164] %v235
              $region41: #{_lambda_.21} parent=35 // loop_footer
                %s170 = sadd.s32 1, %s166
              $region42: #{_lambda_.21} parent=35 // loop_footer_branch
                %165 = sbr.rel target = $region38
              $region43: #{_lambda_.21} parent=35 // loop_exit
                _
            $region36: #{_lambda_.21} parent=27 // pred_fallthru
              _
          $region28: #{_lambda_.21} parent=23 // pred_fallthru
            _
          %313 = vnop
        $region24: #{_lambda_.21} parent=19 // pred_fallthru
          _
        // Predicated region
        $region59: #{_lambda_.21} parent=19 // pred_check
          %p314 = pneg %p69
        $region60: #{_lambda_.21} parent=19 // pred_check_branch
          %316 = sbr.rel (%p314) target = $region62
        $region61: #{_lambda_.21} parent=19 // pred_region
          %s317 = smul.u32 32, %s17
          %p318 = scmp.lt.s32.totalorder %s317, 63
          %s319 = scalar_select %p318, %s317, 63
          %s320 = smul.addr %s319, 4
          %s321 = scalar_lea.vmem %s1, %s320
          %s322 = smul.u32 32, %s17
        $region62: #{_lambda_.21} parent=19 // pred_fallthru
          _
      $region20: #{_lambda_.21} parent=5 // pred_fallthru
        _
      %p323 = scmp.le.s32.totalorder 1, %s9
      %p324 = scmp.lt.s32.totalorder %s9, 5
      %p325 = pnand %p323, %p324
      %p326 = pneg %p325
      // Predicated region
      $region63: #{_lambda_.21} parent=5 // pred_check
        _
      $region64: #{_lambda_.21} parent=5 // pred_check_branch
        %328 = sbr.rel (%p325) target = $region66
      $region65: #{_lambda_.21} parent=5 // pred_region
        %s329 = ssub.s32 %s9, 1
        %s330 = sand.u32 %s36, 1
        %s331 = sand.u32 %s36, 1
        %s332 = smul.addr %s331, 256
        %s333 = scalar_lea.vmem [#allocation3], %s332
        // Predicated region
        $region67: #{_lambda_.21} parent=65 // pred_check
          %p334 = pneg %p49
        $region68: #{_lambda_.21} parent=65 // pred_check_branch
          %336 = sbr.rel (%p334) target = $region70
        $region69: #{_lambda_.21} parent=65 // pred_region
          _
        $region70: #{_lambda_.21} parent=65 // pred_fallthru
          _
        %s337 = sand.u32 %s36, 1
        %s338 = sand.u32 %s36, 1
        %s339 = smul.addr %s338, 256
        %s340 = scalar_lea.vmem [#allocation3], %s339
        %p341 = pneg %p49
        %p342 = pneg %p46
        %s343 = smul.u32 32, %s19
        %p344 = scmp.lt.s32.totalorder %s343, 63
        %s345 = scalar_select %p344, %s343, 63
        %s346 = smul.addr %s345, 4
        %s347 = scalar_lea.vmem %s1, %s346
        %p348 = pneg %p75
        %p349 = pneg %p72
        %p350 = pneg %p96
        %p351 = pneg %p93
        %p352 = pneg %p122
        %p353 = pneg %p119
        %s354 = smul.u32 32, %s18
        %p355 = scmp.lt.s32.totalorder %s354, 63
        %s356 = scalar_select %p355, %s354, 63
        %s357 = smul.addr %s356, 8
        %s358 = scalar_lea.vmem %s3, %s357
        %s359 = smul.u32 32, %s18
        %s360 = smul.u32 2, %s19
        %s361 = smul.u32 32, %s19
        %p362 = scmp.lt.s32.totalorder %s361, 63
        %s363 = scalar_select %p362, %s361, 63
        %s364 = smul.addr %s363, 4
        %s365 = scalar_lea.vmem %s1, %s364
        %s366 = smul.u32 32, %s19
        %s367 = smul.u32 32, %s18
        %p368 = scmp.lt.s32.totalorder %s367, 63
        %s369 = scalar_select %p368, %s367, 63
        %s370 = smul.addr %s369, 8
        %s371 = scalar_lea.vmem %s3, %s370
        %s372 = smul.u32 32, %s18
        %p373 = scmp.eq.s32.totalorder %s19, 0
        // Predicated region
        $region71: #{_lambda_.21} parent=65 // pred_check
          %p374 = pneg %p373
        $region72: #{_lambda_.21} parent=65 // pred_check_branch
          %376 = sbr.rel (%p374) target = $region74
        $region73: #{_lambda_.21} parent=65 // pred_region
          %377 = vst [vmem:[#allocation2] sm:$0xff] 0.0
          %378 = vst [vmem:[#allocation2 + $0x8] sm:$0xff] 0.0
          %379 = vst [vmem:[#allocation2 + $0x10] sm:$0xff] 0.0
          %380 = vst [vmem:[#allocation2 + $0x18] sm:$0xff] 0.0
          %381 = vst [vmem:[#allocation2 + $0x20] sm:$0xff] 0.0
          %382 = vst [vmem:[#allocation2 + $0x28] sm:$0xff] 0.0
          %383 = vst [vmem:[#allocation2 + $0x30] sm:$0xff] 0.0
          %384 = vst [vmem:[#allocation2 + $0x38] sm:$0xff] 0.0
          %385 = vst [vmem:[#allocation2 + $0x40] sm:$0xff] 0.0
          %386 = vst [vmem:[#allocation2 + $0x48] sm:$0xff] 0.0
          %387 = vst [vmem:[#allocation2 + $0x50] sm:$0xff] 0.0
          %388 = vst [vmem:[#allocation2 + $0x58] sm:$0xff] 0.0
          %389 = vst [vmem:[#allocation2 + $0x60] sm:$0xff] 0.0
          %390 = vst [vmem:[#allocation2 + $0x68] sm:$0xff] 0.0
          %391 = vst [vmem:[#allocation2 + $0x70] sm:$0xff] 0.0
          %392 = vst [vmem:[#allocation2 + $0x78] sm:$0xff] 0.0
          %393 = vst [vmem:[#allocation2 + $0x80] sm:$0xff] 0.0
          %394 = vst [vmem:[#allocation2 + $0x88] sm:$0xff] 0.0
          %395 = vst [vmem:[#allocation2 + $0x90] sm:$0xff] 0.0
          %396 = vst [vmem:[#allocation2 + $0x98] sm:$0xff] 0.0
          %397 = vst [vmem:[#allocation2 + $0xa0] sm:$0xff] 0.0
          %398 = vst [vmem:[#allocation2 + $0xa8] sm:$0xff] 0.0
          %399 = vst [vmem:[#allocation2 + $0xb0] sm:$0xff] 0.0
          %400 = vst [vmem:[#allocation2 + $0xb8] sm:$0xff] 0.0
          %401 = vst [vmem:[#allocation2 + $0xc0] sm:$0xff] 0.0
          %402 = vst [vmem:[#allocation2 + $0xc8] sm:$0xff] 0.0
          %403 = vst [vmem:[#allocation2 + $0xd0] sm:$0xff] 0.0
          %404 = vst [vmem:[#allocation2 + $0xd8] sm:$0xff] 0.0
          %405 = vst [vmem:[#allocation2 + $0xe0] sm:$0xff] 0.0
          %406 = vst [vmem:[#allocation2 + $0xe8] sm:$0xff] 0.0
          %407 = vst [vmem:[#allocation2 + $0xf0] sm:$0xff] 0.0
          %408 = vst [vmem:[#allocation2 + $0xf8] sm:$0xff] 0.0
        $region74: #{_lambda_.21} parent=65 // pred_fallthru
          _
        %v409 = vld [vmem:[#allocation2] sm:$0xff]
        %v410 = vld [vmem:[#allocation2 + $0x8] sm:$0xff]
        %v411 = vld [vmem:[#allocation2 + $0x10] sm:$0xff]
        %v412 = vld [vmem:[#allocation2 + $0x18] sm:$0xff]
        %v413 = vld [vmem:[#allocation2 + $0x20] sm:$0xff]
        %v414 = vld [vmem:[#allocation2 + $0x28] sm:$0xff]
        %v415 = vld [vmem:[#allocation2 + $0x30] sm:$0xff]
        %v416 = vld [vmem:[#allocation2 + $0x38] sm:$0xff]
        %v417 = vld [vmem:[#allocation2 + $0x40] sm:$0xff]
        %v418 = vld [vmem:[#allocation2 + $0x48] sm:$0xff]
        %v419 = vld [vmem:[#allocation2 + $0x50] sm:$0xff]
        %v420 = vld [vmem:[#allocation2 + $0x58] sm:$0xff]
        %v421 = vld [vmem:[#allocation2 + $0x60] sm:$0xff]
        %v422 = vld [vmem:[#allocation2 + $0x68] sm:$0xff]
        %v423 = vld [vmem:[#allocation2 + $0x70] sm:$0xff]
        %v424 = vld [vmem:[#allocation2 + $0x78] sm:$0xff]
        %v425 = vld [vmem:[#allocation2 + $0x80] sm:$0xff]
        %v426 = vld [vmem:[#allocation2 + $0x88] sm:$0xff]
        %v427 = vld [vmem:[#allocation2 + $0x90] sm:$0xff]
        %v428 = vld [vmem:[#allocation2 + $0x98] sm:$0xff]
        %v429 = vld [vmem:[#allocation2 + $0xa0] sm:$0xff]
        %v430 = vld [vmem:[#allocation2 + $0xa8] sm:$0xff]
        %v431 = vld [vmem:[#allocation2 + $0xb0] sm:$0xff]
        %v432 = vld [vmem:[#allocation2 + $0xb8] sm:$0xff]
        %v433 = vld [vmem:[#allocation2 + $0xc0] sm:$0xff]
        %v434 = vld [vmem:[#allocation2 + $0xc8] sm:$0xff]
        %v435 = vld [vmem:[#allocation2 + $0xd0] sm:$0xff]
        %v436 = vld [vmem:[#allocation2 + $0xd8] sm:$0xff]
        %v437 = vld [vmem:[#allocation2 + $0xe0] sm:$0xff]
        %v438 = vld [vmem:[#allocation2 + $0xe8] sm:$0xff]
        %v439 = vld [vmem:[#allocation2 + $0xf0] sm:$0xff]
        %v440 = vld [vmem:[#allocation2 + $0xf8] sm:$0xff]
        %v441 = vld [vmem:[%s333] sm:$0xff]
        %v442 = vld [vmem:[%s333 + $0x8] sm:$0xff]
        %v443 = vld [vmem:[%s333 + $0x10] sm:$0xff]
        %v444 = vld [vmem:[%s333 + $0x18] sm:$0xff]
        %v445 = vld [vmem:[%s333 + $0x20] sm:$0xff]
        %v446 = vld [vmem:[%s333 + $0x28] sm:$0xff]
        %v447 = vld [vmem:[%s333 + $0x30] sm:$0xff]
        %v448 = vld [vmem:[%s333 + $0x38] sm:$0xff]
        %v449 = vld [vmem:[%s333 + $0x40] sm:$0xff]
        %v450 = vld [vmem:[%s333 + $0x48] sm:$0xff]
        %v451 = vld [vmem:[%s333 + $0x50] sm:$0xff]
        %v452 = vld [vmem:[%s333 + $0x58] sm:$0xff]
        %v453 = vld [vmem:[%s333 + $0x60] sm:$0xff]
        %v454 = vld [vmem:[%s333 + $0x68] sm:$0xff]
        %v455 = vld [vmem:[%s333 + $0x70] sm:$0xff]
        %v456 = vld [vmem:[%s333 + $0x78] sm:$0xff]
        %v457 = vld [vmem:[%s333 + $0x80] sm:$0xff]
        %v458 = vld [vmem:[%s333 + $0x88] sm:$0xff]
        %v459 = vld [vmem:[%s333 + $0x90] sm:$0xff]
        %v460 = vld [vmem:[%s333 + $0x98] sm:$0xff]
        %v461 = vld [vmem:[%s333 + $0xa0] sm:$0xff]
        %v462 = vld [vmem:[%s333 + $0xa8] sm:$0xff]
        %v463 = vld [vmem:[%s333 + $0xb0] sm:$0xff]
        %v464 = vld [vmem:[%s333 + $0xb8] sm:$0xff]
        %v465 = vld [vmem:[%s333 + $0xc0] sm:$0xff]
        %v466 = vld [vmem:[%s333 + $0xc8] sm:$0xff]
        %v467 = vld [vmem:[%s333 + $0xd0] sm:$0xff]
        %v468 = vld [vmem:[%s333 + $0xd8] sm:$0xff]
        %v469 = vld [vmem:[%s333 + $0xe0] sm:$0xff]
        %v470 = vld [vmem:[%s333 + $0xe8] sm:$0xff]
        %v471 = vld [vmem:[%s333 + $0xf0] sm:$0xff]
        %v472 = vld [vmem:[%s333 + $0xf8] sm:$0xff]
        %v473 = vld [vmem:[%s365] sm:$0xf]
        %v474 = vld [vmem:[%s365 + $0x4] sm:$0xf]
        %v475 = vld [vmem:[%s365 + $0x8] sm:$0xf]
        %v476 = vld [vmem:[%s365 + $0xc] sm:$0xf]
        %v477 = vld [vmem:[%s365 + $0x10] sm:$0xf]
        %v478 = vld [vmem:[%s365 + $0x14] sm:$0xf]
        %v479 = vld [vmem:[%s365 + $0x18] sm:$0xf]
        %v480 = vld [vmem:[%s365 + $0x1c] sm:$0xf]
        %v481 = vld [vmem:[%s365 + $0x20] sm:$0xf]
        %v482 = vld [vmem:[%s365 + $0x24] sm:$0xf]
        %v483 = vld [vmem:[%s365 + $0x28] sm:$0xf]
        %v484 = vld [vmem:[%s365 + $0x2c] sm:$0xf]
        %v485 = vld [vmem:[%s365 + $0x30] sm:$0xf]
        %v486 = vld [vmem:[%s365 + $0x34] sm:$0xf]
        %v487 = vld [vmem:[%s365 + $0x38] sm:$0xf]
        %v488 = vld [vmem:[%s365 + $0x3c] sm:$0xf]
        %v489 = vld [vmem:[%s365 + $0x40] sm:$0xf]
        %v490 = vld [vmem:[%s365 + $0x44] sm:$0xf]
        %v491 = vld [vmem:[%s365 + $0x48] sm:$0xf]
        %v492 = vld [vmem:[%s365 + $0x4c] sm:$0xf]
        %v493 = vld [vmem:[%s365 + $0x50] sm:$0xf]
        %v494 = vld [vmem:[%s365 + $0x54] sm:$0xf]
        %v495 = vld [vmem:[%s365 + $0x58] sm:$0xf]
        %v496 = vld [vmem:[%s365 + $0x5c] sm:$0xf]
        %v497 = vld [vmem:[%s365 + $0x60] sm:$0xf]
        %v498 = vld [vmem:[%s365 + $0x64] sm:$0xf]
        %v499 = vld [vmem:[%s365 + $0x68] sm:$0xf]
        %v500 = vld [vmem:[%s365 + $0x6c] sm:$0xf]
        %v501 = vld [vmem:[%s365 + $0x70] sm:$0xf]
        %v502 = vld [vmem:[%s365 + $0x74] sm:$0xf]
        %v503 = vld [vmem:[%s365 + $0x78] sm:$0xf]
        %v504 = vld [vmem:[%s365 + $0x7c] sm:$0xf]
        %v537 = vunpack.c.l.b16 %v441
        %v538 = vunpack.c.h.b16 %v441
        %v539 = vunpack.c.l.b16 %v442
        %v540 = vunpack.c.h.b16 %v442
        %v541 = vunpack.c.l.b16 %v443
        %v542 = vunpack.c.h.b16 %v443
        %v543 = vunpack.c.l.b16 %v444
        %v544 = vunpack.c.h.b16 %v444
        %v545 = vunpack.c.l.b16 %v445
        %v546 = vunpack.c.h.b16 %v445
        %v547 = vunpack.c.l.b16 %v446
        %v548 = vunpack.c.h.b16 %v446
        %v549 = vunpack.c.l.b16 %v447
        %v550 = vunpack.c.h.b16 %v447
        %v551 = vunpack.c.l.b16 %v448
        %v552 = vunpack.c.h.b16 %v448
        %v553 = vunpack.c.l.b16 %v449
        %v554 = vunpack.c.h.b16 %v449
        %v555 = vunpack.c.l.b16 %v450
        %v556 = vunpack.c.h.b16 %v450
        %v557 = vunpack.c.l.b16 %v451
        %v558 = vunpack.c.h.b16 %v451
        %v559 = vunpack.c.l.b16 %v452
        %v560 = vunpack.c.h.b16 %v452
        %v561 = vunpack.c.l.b16 %v453
        %v562 = vunpack.c.h.b16 %v453
        %v563 = vunpack.c.l.b16 %v454
        %v564 = vunpack.c.h.b16 %v454
        %v565 = vunpack.c.l.b16 %v455
        %v566 = vunpack.c.h.b16 %v455
        %v567 = vunpack.c.l.b16 %v456
        %v568 = vunpack.c.h.b16 %v456
        %v569 = vunpack.c.l.b16 %v457
        %v570 = vunpack.c.h.b16 %v457
        %v571 = vunpack.c.l.b16 %v458
        %v572 = vunpack.c.h.b16 %v458
        %v573 = vunpack.c.l.b16 %v459
        %v574 = vunpack.c.h.b16 %v459
        %v575 = vunpack.c.l.b16 %v460
        %v576 = vunpack.c.h.b16 %v460
        %v577 = vunpack.c.l.b16 %v461
        %v578 = vunpack.c.h.b16 %v461
        %v579 = vunpack.c.l.b16 %v462
        %v580 = vunpack.c.h.b16 %v462
        %v581 = vunpack.c.l.b16 %v463
        %v582 = vunpack.c.h.b16 %v463
        %v583 = vunpack.c.l.b16 %v464
        %v584 = vunpack.c.h.b16 %v464
        %v585 = vunpack.c.l.b16 %v465
        %v586 = vunpack.c.h.b16 %v465
        %v587 = vunpack.c.l.b16 %v466
        %v588 = vunpack.c.h.b16 %v466
        %v589 = vunpack.c.l.b16 %v467
        %v590 = vunpack.c.h.b16 %v467
        %v591 = vunpack.c.l.b16 %v468
        %v592 = vunpack.c.h.b16 %v468
        %v593 = vunpack.c.l.b16 %v469
        %v594 = vunpack.c.h.b16 %v469
        %v595 = vunpack.c.l.b16 %v470
        %v596 = vunpack.c.h.b16 %v470
        %v597 = vunpack.c.l.b16 %v471
        %v598 = vunpack.c.h.b16 %v471
        %v599 = vunpack.c.l.b16 %v472
        %v600 = vunpack.c.h.b16 %v472
        %v601 = vpack.c.b16 %v539, %v537
        %v602 = vpack.c.b16 %v540, %v538
        %v603 = vpack.c.b16 %v543, %v541
        %v604 = vpack.c.b16 %v544, %v542
        %v605 = vpack.c.b16 %v547, %v545
        %v606 = vpack.c.b16 %v548, %v546
        %v607 = vpack.c.b16 %v551, %v549
        %v608 = vpack.c.b16 %v552, %v550
        %v609 = vpack.c.b16 %v555, %v553
        %v610 = vpack.c.b16 %v556, %v554
        %v611 = vpack.c.b16 %v559, %v557
        %v612 = vpack.c.b16 %v560, %v558
        %v613 = vpack.c.b16 %v563, %v561
        %v614 = vpack.c.b16 %v564, %v562
        %v615 = vpack.c.b16 %v567, %v565
        %v616 = vpack.c.b16 %v568, %v566
        %v617 = vpack.c.b16 %v571, %v569
        %v618 = vpack.c.b16 %v572, %v570
        %v619 = vpack.c.b16 %v575, %v573
        %v620 = vpack.c.b16 %v576, %v574
        %v621 = vpack.c.b16 %v579, %v577
        %v622 = vpack.c.b16 %v580, %v578
        %v623 = vpack.c.b16 %v583, %v581
        %v624 = vpack.c.b16 %v584, %v582
        %v625 = vpack.c.b16 %v587, %v585
        %v626 = vpack.c.b16 %v588, %v586
        %v627 = vpack.c.b16 %v591, %v589
        %v628 = vpack.c.b16 %v592, %v590
        %v629 = vpack.c.b16 %v595, %v593
        %v630 = vpack.c.b16 %v596, %v594
        %v631 = vpack.c.b16 %v599, %v597
        %v632 = vpack.c.b16 %v600, %v598
        %v697 = vunpack.c.l.b16 %v473
        %v698 = vunpack.c.l.b16 %v474
        %v699 = vunpack.c.l.b16 %v475
        %v700 = vunpack.c.l.b16 %v476
        %v701 = vunpack.c.l.b16 %v477
        %v702 = vunpack.c.l.b16 %v478
        %v703 = vunpack.c.l.b16 %v479
        %v704 = vunpack.c.l.b16 %v480
        %v705 = vunpack.c.l.b16 %v481
        %v706 = vunpack.c.l.b16 %v482
        %v707 = vunpack.c.l.b16 %v483
        %v708 = vunpack.c.l.b16 %v484
        %v709 = vunpack.c.l.b16 %v485
        %v710 = vunpack.c.l.b16 %v486
        %v711 = vunpack.c.l.b16 %v487
        %v712 = vunpack.c.l.b16 %v488
        %v713 = vunpack.c.l.b16 %v489
        %v714 = vunpack.c.l.b16 %v490
        %v715 = vunpack.c.l.b16 %v491
        %v716 = vunpack.c.l.b16 %v492
        %v717 = vunpack.c.l.b16 %v493
        %v718 = vunpack.c.l.b16 %v494
        %v719 = vunpack.c.l.b16 %v495
        %v720 = vunpack.c.l.b16 %v496
        %v721 = vunpack.c.l.b16 %v497
        %v722 = vunpack.c.l.b16 %v498
        %v723 = vunpack.c.l.b16 %v499
        %v724 = vunpack.c.l.b16 %v500
        %v725 = vunpack.c.l.b16 %v501
        %v726 = vunpack.c.l.b16 %v502
        %v727 = vunpack.c.l.b16 %v503
        %v728 = vunpack.c.l.b16 %v504
        %v729 = vpack.c.b16 %v698, %v697
        %v730 = vpack.c.b16 %v700, %v699
        %v731 = vpack.c.b16 %v702, %v701
        %v732 = vpack.c.b16 %v704, %v703
        %v733 = vpack.c.b16 %v706, %v705
        %v734 = vpack.c.b16 %v708, %v707
        %v735 = vpack.c.b16 %v710, %v709
        %v736 = vpack.c.b16 %v712, %v711
        %v737 = vpack.c.b16 %v714, %v713
        %v738 = vpack.c.b16 %v716, %v715
        %v739 = vpack.c.b16 %v718, %v717
        %v740 = vpack.c.b16 %v720, %v719
        %v741 = vpack.c.b16 %v722, %v721
        %v742 = vpack.c.b16 %v724, %v723
        %v743 = vpack.c.b16 %v726, %v725
        %v744 = vpack.c.b16 %v728, %v727
        %761 = vmatpush.bf16.msra.mxu0 %v736
        %762 = vmatpush.bf16.msra.mxu0 %v735
        %763 = vmatpush.bf16.msra.mxu0 %v734
        %764 = vmatpush.bf16.msra.mxu0 %v733
        %765 = vmatpush.bf16.msra.mxu0 %v732
        %766 = vmatpush.bf16.msra.mxu0 %v731
        %767 = vmatpush.bf16.msra.mxu0 %v730
        %768 = vmatpush.bf16.msra.mxu0 %v729
        %769 = vmatmul.bf16.gmra.mxu0 %v601
        %v770 = vpop.f32.mrf.mxu0
        %v771 = vadd.f32 0.0, %v770
        %v772 = vpop.f32.mrf.mxu0
        %v773 = vadd.f32 0.0, %v772
        %774 = vmatmul.bf16.gmra.mxu0 %v603
        %v775 = vpop.f32.mrf.mxu0
        %v776 = vadd.f32 0.0, %v775
        %v777 = vpop.f32.mrf.mxu0
        %v778 = vadd.f32 0.0, %v777
        %779 = vmatmul.bf16.gmra.mxu0 %v605
        %v780 = vpop.f32.mrf.mxu0
        %v781 = vadd.f32 0.0, %v780
        %v782 = vpop.f32.mrf.mxu0
        %v783 = vadd.f32 0.0, %v782
        %784 = vmatmul.bf16.gmra.mxu0 %v607
        %v785 = vpop.f32.mrf.mxu0
        %v786 = vadd.f32 0.0, %v785
        %v787 = vpop.f32.mrf.mxu0
        %v788 = vadd.f32 0.0, %v787
        %789 = vmatmul.bf16.gmra.mxu0 %v609
        %v790 = vpop.f32.mrf.mxu0
        %v791 = vadd.f32 0.0, %v790
        %v792 = vpop.f32.mrf.mxu0
        %v793 = vadd.f32 0.0, %v792
        %794 = vmatmul.bf16.gmra.mxu0 %v611
        %v795 = vpop.f32.mrf.mxu0
        %v796 = vadd.f32 0.0, %v795
        %v797 = vpop.f32.mrf.mxu0
        %v798 = vadd.f32 0.0, %v797
        %799 = vmatmul.bf16.gmra.mxu0 %v613
        %v800 = vpop.f32.mrf.mxu0
        %v801 = vadd.f32 0.0, %v800
        %v802 = vpop.f32.mrf.mxu0
        %v803 = vadd.f32 0.0, %v802
        %804 = vmatmul.bf16.gmra.mxu0 %v615
        %v805 = vpop.f32.mrf.mxu0
        %v806 = vadd.f32 0.0, %v805
        %v807 = vpop.f32.mrf.mxu0
        %v808 = vadd.f32 0.0, %v807
        %809 = vmatmul.bf16.gmra.mxu0 %v617
        %v810 = vpop.f32.mrf.mxu0
        %v811 = vadd.f32 0.0, %v810
        %v812 = vpop.f32.mrf.mxu0
        %v813 = vadd.f32 0.0, %v812
        %814 = vmatmul.bf16.gmra.mxu0 %v619
        %v815 = vpop.f32.mrf.mxu0
        %v816 = vadd.f32 0.0, %v815
        %v817 = vpop.f32.mrf.mxu0
        %v818 = vadd.f32 0.0, %v817
        %819 = vmatmul.bf16.gmra.mxu0 %v621
        %v820 = vpop.f32.mrf.mxu0
        %v821 = vadd.f32 0.0, %v820
        %v822 = vpop.f32.mrf.mxu0
        %v823 = vadd.f32 0.0, %v822
        %824 = vmatmul.bf16.gmra.mxu0 %v623
        %v825 = vpop.f32.mrf.mxu0
        %v826 = vadd.f32 0.0, %v825
        %v827 = vpop.f32.mrf.mxu0
        %v828 = vadd.f32 0.0, %v827
        %829 = vmatmul.bf16.gmra.mxu0 %v625
        %v830 = vpop.f32.mrf.mxu0
        %v831 = vadd.f32 0.0, %v830
        %v832 = vpop.f32.mrf.mxu0
        %v833 = vadd.f32 0.0, %v832
        %834 = vmatmul.bf16.gmra.mxu0 %v627
        %v835 = vpop.f32.mrf.mxu0
        %v836 = vadd.f32 0.0, %v835
        %v837 = vpop.f32.mrf.mxu0
        %v838 = vadd.f32 0.0, %v837
        %839 = vmatmul.bf16.gmra.mxu0 %v629
        %v840 = vpop.f32.mrf.mxu0
        %v841 = vadd.f32 0.0, %v840
        %v842 = vpop.f32.mrf.mxu0
        %v843 = vadd.f32 0.0, %v842
        %844 = vmatmul.bf16.gmra.mxu0 %v631
        %v845 = vpop.f32.mrf.mxu0
        %v846 = vadd.f32 0.0, %v845
        %v847 = vpop.f32.mrf.mxu0
        %v848 = vadd.f32 0.0, %v847
        %849 = vdwg.mxu0
        %850 = vmatpush.bf16.msra.mxu0 %v744
        %851 = vmatpush.bf16.msra.mxu0 %v743
        %852 = vmatpush.bf16.msra.mxu0 %v742
        %853 = vmatpush.bf16.msra.mxu0 %v741
        %854 = vmatpush.bf16.msra.mxu0 %v740
        %855 = vmatpush.bf16.msra.mxu0 %v739
        %856 = vmatpush.bf16.msra.mxu0 %v738
        %857 = vmatpush.bf16.msra.mxu0 %v737
        %858 = vmatmul.bf16.gmra.mxu0 %v602
        %v859 = vpop.f32.mrf.mxu0
        %v860 = vadd.f32 %v771, %v859
        %v861 = vpop.f32.mrf.mxu0
        %v862 = vadd.f32 %v773, %v861
        %863 = vmatmul.bf16.gmra.mxu0 %v604
        %v864 = vpop.f32.mrf.mxu0
        %v865 = vadd.f32 %v776, %v864
        %v866 = vpop.f32.mrf.mxu0
        %v867 = vadd.f32 %v778, %v866
        %868 = vmatmul.bf16.gmra.mxu0 %v606
        %v869 = vpop.f32.mrf.mxu0
        %v870 = vadd.f32 %v781, %v869
        %v871 = vpop.f32.mrf.mxu0
        %v872 = vadd.f32 %v783, %v871
        %873 = vmatmul.bf16.gmra.mxu0 %v608
        %v874 = vpop.f32.mrf.mxu0
        %v875 = vadd.f32 %v786, %v874
        %v876 = vpop.f32.mrf.mxu0
        %v877 = vadd.f32 %v788, %v876
        %878 = vmatmul.bf16.gmra.mxu0 %v610
        %v879 = vpop.f32.mrf.mxu0
        %v880 = vadd.f32 %v791, %v879
        %v881 = vpop.f32.mrf.mxu0
        %v882 = vadd.f32 %v793, %v881
        %883 = vmatmul.bf16.gmra.mxu0 %v612
        %v884 = vpop.f32.mrf.mxu0
        %v885 = vadd.f32 %v796, %v884
        %v886 = vpop.f32.mrf.mxu0
        %v887 = vadd.f32 %v798, %v886
        %888 = vmatmul.bf16.gmra.mxu0 %v614
        %v889 = vpop.f32.mrf.mxu0
        %v890 = vadd.f32 %v801, %v889
        %v891 = vpop.f32.mrf.mxu0
        %v892 = vadd.f32 %v803, %v891
        %893 = vmatmul.bf16.gmra.mxu0 %v616
        %v894 = vpop.f32.mrf.mxu0
        %v895 = vadd.f32 %v806, %v894
        %v896 = vpop.f32.mrf.mxu0
        %v897 = vadd.f32 %v808, %v896
        %898 = vmatmul.bf16.gmra.mxu0 %v618
        %v899 = vpop.f32.mrf.mxu0
        %v900 = vadd.f32 %v811, %v899
        %v901 = vpop.f32.mrf.mxu0
        %v902 = vadd.f32 %v813, %v901
        %903 = vmatmul.bf16.gmra.mxu0 %v620
        %v904 = vpop.f32.mrf.mxu0
        %v905 = vadd.f32 %v816, %v904
        %v906 = vpop.f32.mrf.mxu0
        %v907 = vadd.f32 %v818, %v906
        %908 = vmatmul.bf16.gmra.mxu0 %v622
        %v909 = vpop.f32.mrf.mxu0
        %v910 = vadd.f32 %v821, %v909
        %v911 = vpop.f32.mrf.mxu0
        %v912 = vadd.f32 %v823, %v911
        %913 = vmatmul.bf16.gmra.mxu0 %v624
        %v914 = vpop.f32.mrf.mxu0
        %v915 = vadd.f32 %v826, %v914
        %v916 = vpop.f32.mrf.mxu0
        %v917 = vadd.f32 %v828, %v916
        %918 = vmatmul.bf16.gmra.mxu0 %v626
        %v919 = vpop.f32.mrf.mxu0
        %v920 = vadd.f32 %v831, %v919
        %v921 = vpop.f32.mrf.mxu0
        %v922 = vadd.f32 %v833, %v921
        %923 = vmatmul.bf16.gmra.mxu0 %v628
        %v924 = vpop.f32.mrf.mxu0
        %v925 = vadd.f32 %v836, %v924
        %v926 = vpop.f32.mrf.mxu0
        %v927 = vadd.f32 %v838, %v926
        %928 = vmatmul.bf16.gmra.mxu0 %v630
        %v929 = vpop.f32.mrf.mxu0
        %v930 = vadd.f32 %v841, %v929
        %v931 = vpop.f32.mrf.mxu0
        %v932 = vadd.f32 %v843, %v931
        %933 = vmatmul.bf16.gmra.mxu0 %v632
        %v934 = vpop.f32.mrf.mxu0
        %v935 = vadd.f32 %v846, %v934
        %v936 = vpop.f32.mrf.mxu0
        %v937 = vadd.f32 %v848, %v936
        %938 = vdwg.mxu0
        %v939 = vadd.f32 %v409, %v860
        %v940 = vadd.f32 %v410, %v862
        %v941 = vadd.f32 %v411, %v865
        %v942 = vadd.f32 %v412, %v867
        %v943 = vadd.f32 %v413, %v870
        %v944 = vadd.f32 %v414, %v872
        %v945 = vadd.f32 %v415, %v875
        %v946 = vadd.f32 %v416, %v877
        %v947 = vadd.f32 %v417, %v880
        %v948 = vadd.f32 %v418, %v882
        %v949 = vadd.f32 %v419, %v885
        %v950 = vadd.f32 %v420, %v887
        %v951 = vadd.f32 %v421, %v890
        %v952 = vadd.f32 %v422, %v892
        %v953 = vadd.f32 %v423, %v895
        %v954 = vadd.f32 %v424, %v897
        %v955 = vadd.f32 %v425, %v900
        %v956 = vadd.f32 %v426, %v902
        %v957 = vadd.f32 %v427, %v905
        %v958 = vadd.f32 %v428, %v907
        %v959 = vadd.f32 %v429, %v910
        %v960 = vadd.f32 %v430, %v912
        %v961 = vadd.f32 %v431, %v915
        %v962 = vadd.f32 %v432, %v917
        %v963 = vadd.f32 %v433, %v920
        %v964 = vadd.f32 %v434, %v922
        %v965 = vadd.f32 %v435, %v925
        %v966 = vadd.f32 %v436, %v927
        %v967 = vadd.f32 %v437, %v930
        %v968 = vadd.f32 %v438, %v932
        %v969 = vadd.f32 %v439, %v935
        %v970 = vadd.f32 %v440, %v937
        %971 = vst [vmem:[#allocation2] sm:$0xff] %v939
        %972 = vst [vmem:[#allocation2 + $0x8] sm:$0xff] %v940
        %973 = vst [vmem:[#allocation2 + $0x10] sm:$0xff] %v941
        %974 = vst [vmem:[#allocation2 + $0x18] sm:$0xff] %v942
        %975 = vst [vmem:[#allocation2 + $0x20] sm:$0xff] %v943
        %976 = vst [vmem:[#allocation2 + $0x28] sm:$0xff] %v944
        %977 = vst [vmem:[#allocation2 + $0x30] sm:$0xff] %v945
        %978 = vst [vmem:[#allocation2 + $0x38] sm:$0xff] %v946
        %979 = vst [vmem:[#allocation2 + $0x40] sm:$0xff] %v947
        %980 = vst [vmem:[#allocation2 + $0x48] sm:$0xff] %v948
        %981 = vst [vmem:[#allocation2 + $0x50] sm:$0xff] %v949
        %982 = vst [vmem:[#allocation2 + $0x58] sm:$0xff] %v950
        %983 = vst [vmem:[#allocation2 + $0x60] sm:$0xff] %v951
        %984 = vst [vmem:[#allocation2 + $0x68] sm:$0xff] %v952
        %985 = vst [vmem:[#allocation2 + $0x70] sm:$0xff] %v953
        %986 = vst [vmem:[#allocation2 + $0x78] sm:$0xff] %v954
        %987 = vst [vmem:[#allocation2 + $0x80] sm:$0xff] %v955
        %988 = vst [vmem:[#allocation2 + $0x88] sm:$0xff] %v956
        %989 = vst [vmem:[#allocation2 + $0x90] sm:$0xff] %v957
        %990 = vst [vmem:[#allocation2 + $0x98] sm:$0xff] %v958
        %991 = vst [vmem:[#allocation2 + $0xa0] sm:$0xff] %v959
        %992 = vst [vmem:[#allocation2 + $0xa8] sm:$0xff] %v960
        %993 = vst [vmem:[#allocation2 + $0xb0] sm:$0xff] %v961
        %994 = vst [vmem:[#allocation2 + $0xb8] sm:$0xff] %v962
        %995 = vst [vmem:[#allocation2 + $0xc0] sm:$0xff] %v963
        %996 = vst [vmem:[#allocation2 + $0xc8] sm:$0xff] %v964
        %997 = vst [vmem:[#allocation2 + $0xd0] sm:$0xff] %v965
        %998 = vst [vmem:[#allocation2 + $0xd8] sm:$0xff] %v966
        %999 = vst [vmem:[#allocation2 + $0xe0] sm:$0xff] %v967
        %1000 = vst [vmem:[#allocation2 + $0xe8] sm:$0xff] %v968
        %1001 = vst [vmem:[#allocation2 + $0xf0] sm:$0xff] %v969
        %1002 = vst [vmem:[#allocation2 + $0xf8] sm:$0xff] %v970
        %p1003 = scmp.eq.s32.totalorder %s19, 1
        // Predicated region
        $region75: #{_lambda_.21} parent=65 // pred_check
          %p1004 = pneg %p1003
        $region76: #{_lambda_.21} parent=65 // pred_check_branch
          %1006 = sbr.rel (%p1004) target = $region78
        $region77: #{_lambda_.21} parent=65 // pred_region
          %v1007 = vld [vmem:[#allocation2] sm:$0xff]
          %v1008 = vld [vmem:[#allocation2 + $0x8] sm:$0xff]
          %v1009 = vld [vmem:[#allocation2 + $0x10] sm:$0xff]
          %v1010 = vld [vmem:[#allocation2 + $0x18] sm:$0xff]
          %v1011 = vld [vmem:[#allocation2 + $0x20] sm:$0xff]
          %v1012 = vld [vmem:[#allocation2 + $0x28] sm:$0xff]
          %v1013 = vld [vmem:[#allocation2 + $0x30] sm:$0xff]
          %v1014 = vld [vmem:[#allocation2 + $0x38] sm:$0xff]
          %v1015 = vld [vmem:[#allocation2 + $0x40] sm:$0xff]
          %v1016 = vld [vmem:[#allocation2 + $0x48] sm:$0xff]
          %v1017 = vld [vmem:[#allocation2 + $0x50] sm:$0xff]
          %v1018 = vld [vmem:[#allocation2 + $0x58] sm:$0xff]
          %v1019 = vld [vmem:[#allocation2 + $0x60] sm:$0xff]
          %v1020 = vld [vmem:[#allocation2 + $0x68] sm:$0xff]
          %v1021 = vld [vmem:[#allocation2 + $0x70] sm:$0xff]
          %v1022 = vld [vmem:[#allocation2 + $0x78] sm:$0xff]
          %v1023 = vld [vmem:[#allocation2 + $0x80] sm:$0xff]
          %v1024 = vld [vmem:[#allocation2 + $0x88] sm:$0xff]
          %v1025 = vld [vmem:[#allocation2 + $0x90] sm:$0xff]
          %v1026 = vld [vmem:[#allocation2 + $0x98] sm:$0xff]
          %v1027 = vld [vmem:[#allocation2 + $0xa0] sm:$0xff]
          %v1028 = vld [vmem:[#allocation2 + $0xa8] sm:$0xff]
          %v1029 = vld [vmem:[#allocation2 + $0xb0] sm:$0xff]
          %v1030 = vld [vmem:[#allocation2 + $0xb8] sm:$0xff]
          %v1031 = vld [vmem:[#allocation2 + $0xc0] sm:$0xff]
          %v1032 = vld [vmem:[#allocation2 + $0xc8] sm:$0xff]
          %v1033 = vld [vmem:[#allocation2 + $0xd0] sm:$0xff]
          %v1034 = vld [vmem:[#allocation2 + $0xd8] sm:$0xff]
          %v1035 = vld [vmem:[#allocation2 + $0xe0] sm:$0xff]
          %v1036 = vld [vmem:[#allocation2 + $0xe8] sm:$0xff]
          %v1037 = vld [vmem:[#allocation2 + $0xf0] sm:$0xff]
          %v1038 = vld [vmem:[#allocation2 + $0xf8] sm:$0xff]
          %v1039 = vld [vmem:[%s2] sm:$0x1]
          %v1041 = vperm.slane %v1039, 0
          %v1043 = vadd.f32 %v1007, %v1041
          %v1044 = vadd.f32 %v1008, %v1041
          %v1045 = vadd.f32 %v1009, %v1041
          %v1046 = vadd.f32 %v1010, %v1041
          %v1047 = vadd.f32 %v1011, %v1041
          %v1048 = vadd.f32 %v1012, %v1041
          %v1049 = vadd.f32 %v1013, %v1041
          %v1050 = vadd.f32 %v1014, %v1041
          %v1051 = vadd.f32 %v1015, %v1041
          %v1052 = vadd.f32 %v1016, %v1041
          %v1053 = vadd.f32 %v1017, %v1041
          %v1054 = vadd.f32 %v1018, %v1041
          %v1055 = vadd.f32 %v1019, %v1041
          %v1056 = vadd.f32 %v1020, %v1041
          %v1057 = vadd.f32 %v1021, %v1041
          %v1058 = vadd.f32 %v1022, %v1041
          %v1059 = vadd.f32 %v1023, %v1041
          %v1060 = vadd.f32 %v1024, %v1041
          %v1061 = vadd.f32 %v1025, %v1041
          %v1062 = vadd.f32 %v1026, %v1041
          %v1063 = vadd.f32 %v1027, %v1041
          %v1064 = vadd.f32 %v1028, %v1041
          %v1065 = vadd.f32 %v1029, %v1041
          %v1066 = vadd.f32 %v1030, %v1041
          %v1067 = vadd.f32 %v1031, %v1041
          %v1068 = vadd.f32 %v1032, %v1041
          %v1069 = vadd.f32 %v1033, %v1041
          %v1070 = vadd.f32 %v1034, %v1041
          %v1071 = vadd.f32 %v1035, %v1041
          %v1072 = vadd.f32 %v1036, %v1041
          %v1073 = vadd.f32 %v1037, %v1041
          %v1074 = vadd.f32 %v1038, %v1041
          %v1075 = vmax.f32 %v1043, -1.0
          %v1076 = vmax.f32 %v1044, -1.0
          %v1077 = vmax.f32 %v1045, -1.0
          %v1078 = vmax.f32 %v1046, -1.0
          %v1079 = vmax.f32 %v1047, -1.0
          %v1080 = vmax.f32 %v1048, -1.0
          %v1081 = vmax.f32 %v1049, -1.0
          %v1082 = vmax.f32 %v1050, -1.0
          %v1083 = vmax.f32 %v1051, -1.0
          %v1084 = vmax.f32 %v1052, -1.0
          %v1085 = vmax.f32 %v1053, -1.0
          %v1086 = vmax.f32 %v1054, -1.0
          %v1087 = vmax.f32 %v1055, -1.0
          %v1088 = vmax.f32 %v1056, -1.0
          %v1089 = vmax.f32 %v1057, -1.0
          %v1090 = vmax.f32 %v1058, -1.0
          %v1091 = vmax.f32 %v1059, -1.0
          %v1092 = vmax.f32 %v1060, -1.0
          %v1093 = vmax.f32 %v1061, -1.0
          %v1094 = vmax.f32 %v1062, -1.0
          %v1095 = vmax.f32 %v1063, -1.0
          %v1096 = vmax.f32 %v1064, -1.0
          %v1097 = vmax.f32 %v1065, -1.0
          %v1098 = vmax.f32 %v1066, -1.0
          %v1099 = vmax.f32 %v1067, -1.0
          %v1100 = vmax.f32 %v1068, -1.0
          %v1101 = vmax.f32 %v1069, -1.0
          %v1102 = vmax.f32 %v1070, -1.0
          %v1103 = vmax.f32 %v1071, -1.0
          %v1104 = vmax.f32 %v1072, -1.0
          %v1105 = vmax.f32 %v1073, -1.0
          %v1106 = vmax.f32 %v1074, -1.0
          %v1107 = vmin.f32 %v1075, 1.0
          %v1108 = vmin.f32 %v1076, 1.0
          %v1109 = vmin.f32 %v1077, 1.0
          %v1110 = vmin.f32 %v1078, 1.0
          %v1111 = vmin.f32 %v1079, 1.0
          %v1112 = vmin.f32 %v1080, 1.0
          %v1113 = vmin.f32 %v1081, 1.0
          %v1114 = vmin.f32 %v1082, 1.0
          %v1115 = vmin.f32 %v1083, 1.0
          %v1116 = vmin.f32 %v1084, 1.0
          %v1117 = vmin.f32 %v1085, 1.0
          %v1118 = vmin.f32 %v1086, 1.0
          %v1119 = vmin.f32 %v1087, 1.0
          %v1120 = vmin.f32 %v1088, 1.0
          %v1121 = vmin.f32 %v1089, 1.0
          %v1122 = vmin.f32 %v1090, 1.0
          %v1123 = vmin.f32 %v1091, 1.0
          %v1124 = vmin.f32 %v1092, 1.0
          %v1125 = vmin.f32 %v1093, 1.0
          %v1126 = vmin.f32 %v1094, 1.0
          %v1127 = vmin.f32 %v1095, 1.0
          %v1128 = vmin.f32 %v1096, 1.0
          %v1129 = vmin.f32 %v1097, 1.0
          %v1130 = vmin.f32 %v1098, 1.0
          %v1131 = vmin.f32 %v1099, 1.0
          %v1132 = vmin.f32 %v1100, 1.0
          %v1133 = vmin.f32 %v1101, 1.0
          %v1134 = vmin.f32 %v1102, 1.0
          %v1135 = vmin.f32 %v1103, 1.0
          %v1136 = vmin.f32 %v1104, 1.0
          %v1137 = vmin.f32 %v1105, 1.0
          %v1138 = vmin.f32 %v1106, 1.0
          %1139 = vst [vmem:[%s371] sm:$0xff] %v1107
          %1140 = vst [vmem:[%s371 + $0x8] sm:$0xff] %v1108
          %1141 = vst [vmem:[%s371 + $0x10] sm:$0xff] %v1109
          %1142 = vst [vmem:[%s371 + $0x18] sm:$0xff] %v1110
          %1143 = vst [vmem:[%s371 + $0x20] sm:$0xff] %v1111
          %1144 = vst [vmem:[%s371 + $0x28] sm:$0xff] %v1112
          %1145 = vst [vmem:[%s371 + $0x30] sm:$0xff] %v1113
          %1146 = vst [vmem:[%s371 + $0x38] sm:$0xff] %v1114
          %1147 = vst [vmem:[%s371 + $0x40] sm:$0xff] %v1115
          %1148 = vst [vmem:[%s371 + $0x48] sm:$0xff] %v1116
          %1149 = vst [vmem:[%s371 + $0x50] sm:$0xff] %v1117
          %1150 = vst [vmem:[%s371 + $0x58] sm:$0xff] %v1118
          %1151 = vst [vmem:[%s371 + $0x60] sm:$0xff] %v1119
          %1152 = vst [vmem:[%s371 + $0x68] sm:$0xff] %v1120
          %1153 = vst [vmem:[%s371 + $0x70] sm:$0xff] %v1121
          %1154 = vst [vmem:[%s371 + $0x78] sm:$0xff] %v1122
          %1155 = vst [vmem:[%s371 + $0x80] sm:$0xff] %v1123
          %1156 = vst [vmem:[%s371 + $0x88] sm:$0xff] %v1124
          %1157 = vst [vmem:[%s371 + $0x90] sm:$0xff] %v1125
          %1158 = vst [vmem:[%s371 + $0x98] sm:$0xff] %v1126
          %1159 = vst [vmem:[%s371 + $0xa0] sm:$0xff] %v1127
          %1160 = vst [vmem:[%s371 + $0xa8] sm:$0xff] %v1128
          %1161 = vst [vmem:[%s371 + $0xb0] sm:$0xff] %v1129
          %1162 = vst [vmem:[%s371 + $0xb8] sm:$0xff] %v1130
          %1163 = vst [vmem:[%s371 + $0xc0] sm:$0xff] %v1131
          %1164 = vst [vmem:[%s371 + $0xc8] sm:$0xff] %v1132
          %1165 = vst [vmem:[%s371 + $0xd0] sm:$0xff] %v1133
          %1166 = vst [vmem:[%s371 + $0xd8] sm:$0xff] %v1134
          %1167 = vst [vmem:[%s371 + $0xe0] sm:$0xff] %v1135
          %1168 = vst [vmem:[%s371 + $0xe8] sm:$0xff] %v1136
          %1169 = vst [vmem:[%s371 + $0xf0] sm:$0xff] %v1137
          %1170 = vst [vmem:[%s371 + $0xf8] sm:$0xff] %v1138
        $region78: #{_lambda_.21} parent=65 // pred_fallthru
          _
        %s1171 = smul.u32 32, %s18
        %p1172 = scmp.lt.s32.totalorder %s1171, 63
        %s1173 = scalar_select %p1172, %s1171, 63
        %s1174 = smul.addr %s1173, 8
        %s1175 = scalar_lea.vmem %s3, %s1174
        // Predicated region
        $region79: #{_lambda_.21} parent=65 // pred_check
          %p1176 = pneg %p119
        $region80: #{_lambda_.21} parent=65 // pred_check_branch
          %1178 = sbr.rel (%p1176) target = $region82
        $region81: #{_lambda_.21} parent=65 // pred_region
          %s1179 = smul.u32 32, %s18
        $region82: #{_lambda_.21} parent=65 // pred_fallthru
          _
      $region66: #{_lambda_.21} parent=5 // pred_fallthru
        _
      %p1180 = scmp.le.s32.totalorder 2, %s9
      // Predicated region
      $region83: #{_lambda_.21} parent=5 // pred_check
        %p1181 = pneg %p1180
      $region84: #{_lambda_.21} parent=5 // pred_check_branch
        %1183 = sbr.rel (%p1181) target = $region86
      $region85: #{_lambda_.21} parent=5 // pred_region
        %s1184 = ssub.s32 %s9, 2
        // Predicated region
        $region87: #{_lambda_.21} parent=85 // pred_check
          %p1185 = pneg %p125
        $region88: #{_lambda_.21} parent=85 // pred_check_branch
          %1187 = sbr.rel (%p1185) target = $region90
        $region89: #{_lambda_.21} parent=85 // pred_region
          %s1188 = smul.u32 32, %s20
          %p1189 = scmp.lt.s32.totalorder %s1188, 63
          %s1190 = scalar_select %p1189, %s1188, 63
          %s1191 = smul.addr %s1190, 8
          %s1192 = scalar_lea.vmem %s3, %s1191
        $region90: #{_lambda_.21} parent=85 // pred_fallthru
          _
      $region86: #{_lambda_.21} parent=5 // pred_fallthru
        _
    $region6: #{_lambda_.21} parent=1 // loop_footer
      %s13 = sadd.s32 1, %s9
    $region7: #{_lambda_.21} parent=1 // loop_footer_branch
      %8 = sbr.rel target = $region3
    $region8: #{_lambda_.21} parent=1 // loop_exit
      _

</llo_original>
